<compile_context>
chip_gen: v6e
topology: v6e:2x2x1
jax: 0.10.0
libtpu: 0.0.40
codegen_flags: <defaults>
</compile_context>

<pallas_src>
import functools

import jax
import jax.numpy as jnp
from jax import lax
from jax.experimental import pallas as pl
from jax.experimental.pallas import tpu as pltpu


def _round_up(x, m):
    return ((x + m - 1) // m) * m


# ------------------------------ fused kernel ------------------------------- #

def _fused_seg_kernel(x_ref, mask_ref, w1_ref, s1_ref, w2_ref, s2_ref,
                      w3_ref, s3_ref, w4t_ref, s4t_ref, o_ref,
                      p2_ref, p3_ref, *, wp, m_out, base, r):
    """All four layers for one image; activations never leave VMEM.

    Every staged activation buffer S (x_ref, p2_ref, p3_ref) holds the layer
    output in the zero-padded, row-flattened frame of the *next* 3x3 conv:
        S[r + m] = out[m] * mask[m]  for m in [0, m_out),  S = 0 elsewhere,
    so the next layer's tap (dy, dx) for output row m reads
        S[base + dy*wp + dx + m],   base = r - (wp + 1),  r % 8 == 0.
    """
    mask = mask_ref[...]                                    # (m_out, 1) f32

    def taps_k9(ref):
        # Layer-1 full im2col: (m_out, 9*Cin) bf16, K-order = (dy, dx, c).
        return jnp.concatenate(
            [ref[base + dy * wp + dx: base + dy * wp + dx + m_out, :]
             for dy in range(3) for dx in range(3)],
            axis=-1).astype(jnp.bfloat16)

    def tap_dy(ref, dy):
        # dx folded into the contraction: (m_out, 3*Cin) bf16, K-order = (dx, c).
        off = base + dy * wp
        return jnp.concatenate(
            [ref[off + dx: off + dx + m_out, :] for dx in range(3)],
            axis=-1).astype(jnp.bfloat16)

    def stage(p_ref, hval):
        # Write the masked ReLU output into the next layer's padded flat frame.
        p_ref[...] = jnp.zeros_like(p_ref)                  # borders / tail = 0
        p_ref[r:r + m_out, :] = hval                        # sublane-aligned store

    # Layer 1: conv3x3 (Cin_pad=8 -> 64) as a single K=72 MXU matmul.
    acc1 = jnp.dot(taps_k9(x_ref), w1_ref[...],
                   preferred_element_type=jnp.float32)
    stage(p2_ref, jnp.maximum(acc1 + s1_ref[...], 0.0) * mask)

    # Layer 2: conv3x3 (64 -> 128): 3 matmuls, K = 192.
    acc2 = jnp.dot(tap_dy(p2_ref, 0), w2_ref[0], preferred_element_type=jnp.float32)
    acc2 = acc2 + jnp.dot(tap_dy(p2_ref, 1), w2_ref[1], preferred_element_type=jnp.float32)
    acc2 = acc2 + jnp.dot(tap_dy(p2_ref, 2), w2_ref[2], preferred_element_type=jnp.float32)
    stage(p3_ref, jnp.maximum(acc2 + s2_ref[...], 0.0) * mask)

    # Layer 3: conv3x3 (128 -> 256): 3 matmuls, K = 384.
    acc3 = jnp.dot(tap_dy(p3_ref, 0), w3_ref[0], preferred_element_type=jnp.float32)
    acc3 = acc3 + jnp.dot(tap_dy(p3_ref, 1), w3_ref[1], preferred_element_type=jnp.float32)
    acc3 = acc3 + jnp.dot(tap_dy(p3_ref, 2), w3_ref[2], preferred_element_type=jnp.float32)
    h3 = jnp.maximum(acc3 + s3_ref[...], 0.0).astype(jnp.bfloat16)   # stays in VMEM

    # Layer 4: 1x1 conv + BN + ReLU, emitted directly transposed (Cout, m_out)
    # via A @ B^T so the store is lane-dense and only the real channels go out.
    y_t = lax.dot_general(w4t_ref[...], h3,
                          dimension_numbers=(((1,), (1,)), ((), ())),
                          preferred_element_type=jnp.float32)
    o_ref[...] = jnp.maximum(y_t + s4t_ref[...], 0.0)


# ----------------------------- pallas_call wrapper -------------------------- #

def _fused_forward_call(flat, mask, params, *, wp, m_out, base, r, a_rows):
    n, _, cin_pad = flat.shape
    c1 = params["w1"].shape[1]
    c2 = params["w2"].shape[2]
    c3 = params["w3"].shape[2]
    cout = params["w4t"].shape[0]

    kernel = functools.partial(_fused_seg_kernel, wp=wp, m_out=m_out,
                               base=base, r=r)

    # VMEM budget from the actual per-step footprint (weights + pipelined
    # in/out blocks + staging scratch + live matmul operands/accumulators).
    weight_bytes = 2 * int(params["w1"].size + params["w2"].size
                           + params["w3"].size + params["w4t"].size)
    live_bytes = m_out * (9 * cin_pad * 2 + 2 * 3 * c2 * 2 + 3 * c3 * 2
                          + 4 * c2 + 8 * c3)
    est = (2 * weight_bytes
           + 2 * a_rows * cin_pad * 4 + 2 * cout * m_out * 4
           + a_rows * (c1 + c2) * 4 + live_bytes)
    vmem_limit = int(min(max(2 * est, 16 * 2**20), 56 * 2**20))

    flops = 2 * n * m_out * (9 * cin_pad * c1 + 3 * 3 * c1 * c2
                             + 3 * 3 * c2 * c3 + c3 * cout)
    bytes_accessed = int(flat.size * 4 + n * cout * m_out * 4 + weight_bytes)

    return pl.pallas_call(
        kernel,
        out_shape=jax.ShapeDtypeStruct((n, cout, m_out), jnp.float32),
        grid_spec=pltpu.PrefetchScalarGridSpec(
            num_scalar_prefetch=0,
            grid=(n,),
            in_specs=[
                pl.BlockSpec((None, a_rows, cin_pad), lambda b: (b, 0, 0)),
                pl.BlockSpec((m_out, 1), lambda b: (0, 0)),
                pl.BlockSpec(params["w1"].shape, lambda b: (0, 0)),
                pl.BlockSpec(params["s1"].shape, lambda b: (0, 0)),
                pl.BlockSpec(params["w2"].shape, lambda b: (0, 0, 0)),
                pl.BlockSpec(params["s2"].shape, lambda b: (0, 0)),
                pl.BlockSpec(params["w3"].shape, lambda b: (0, 0, 0)),
                pl.BlockSpec(params["s3"].shape, lambda b: (0, 0)),
                pl.BlockSpec(params["w4t"].shape, lambda b: (0, 0)),
                pl.BlockSpec(params["s4t"].shape, lambda b: (0, 0)),
            ],
            out_specs=pl.BlockSpec((None, cout, m_out), lambda b: (b, 0, 0)),
            scratch_shapes=[
                pltpu.VMEM((a_rows, c1), jnp.float32),   # layer-1 out, padded flat
                pltpu.VMEM((a_rows, c2), jnp.float32),   # layer-2 out, padded flat
            ],
        ),
        compiler_params=pltpu.CompilerParams(
            dimension_semantics=("parallel",),
            vmem_limit_bytes=vmem_limit,
        ),
        cost_estimate=pl.CostEstimate(flops=int(flops), transcendentals=0,
                                      bytes_accessed=bytes_accessed),
    )(flat, mask, params["w1"], params["s1"], params["w2"], params["s2"],
      params["w3"], params["s3"], params["w4t"], params["s4t"])


# ----------------------------- params / packing ----------------------------- #

def xavier_uniform(key, cout, cin, kh, kw):
    fan_in = cin * kh * kw
    fan_out = cout * kh * kw
    bound = (6.0 / (fan_in + fan_out)) ** 0.5
    return jax.random.uniform(key, (cout, cin, kh, kw),
                              minval=-bound, maxval=bound, dtype=jnp.float32)


def init_layers(key, network_output_channel, eps=1e-5):
    """Raw per-layer params matching the PyTorch init (eval-mode BN folded)."""
    specs = [(64, 3, 3), (128, 64, 3), (256, 128, 3),
             (network_output_channel, 256, 1)]
    raw = []
    for i, (cout, cin, k) in enumerate(specs):
        w = xavier_uniform(jax.random.fold_in(key, i), cout, cin, k, k)
        bias = jnp.zeros((cout,), jnp.float32)      # Conv bias init: constant 0
        gamma = jnp.ones((cout,), jnp.float32)      # BN weight = 1
        beta = jnp.zeros((cout,), jnp.float32)      # BN bias = 0
        rmean = jnp.zeros((cout,), jnp.float32)
        rvar = jnp.ones((cout,), jnp.float32)
        scale = gamma / jnp.sqrt(rvar + eps)
        shift = beta + (bias - rmean) * scale
        raw.append(dict(w=w, scale=scale, shift=shift, ksize=k))
    return raw


def pack_params(raw, cin_pad=8):
    """Fold BN scale into weights, reorder for the fused kernel, cast to bf16."""
    # Layer 1: (Cout,Cin,3,3) -> (9*Cin_pad, Cout), K-order (dy, dx, c).
    w, scale = raw[0]["w"], raw[0]["scale"]
    c1, cin = w.shape[0], w.shape[1]
    wt = jnp.transpose(w, (2, 3, 1, 0)) * scale[None, None, None, :]
    wt = jnp.pad(wt, ((0, 0), (0, 0), (0, cin_pad - cin), (0, 0)))
    w1 = wt.reshape(9 * cin_pad, c1).astype(jnp.bfloat16)
    s1 = raw[0]["shift"].reshape(1, c1).astype(jnp.float32)

    def pack3x3(layer):
        # (Cout,Cin,3,3) -> (3, 3*Cin, Cout): row index of w[dy] = dx*Cin + c.
        wl, sc = layer["w"], layer["scale"]
        cout, cin_l = wl.shape[0], wl.shape[1]
        wtl = jnp.transpose(wl, (2, 3, 1, 0)) * sc[None, None, None, :]
        return (wtl.reshape(3, 3 * cin_l, cout).astype(jnp.bfloat16),
                layer["shift"].reshape(1, cout).astype(jnp.float32))

    w2, s2 = pack3x3(raw[1])
    w3, s3 = pack3x3(raw[2])

    # Layer 4 (1x1): keep pre-transposed (Cout, 256) so the kernel can emit the
    # lane-dense (Cout, m_out) output directly via an A @ B^T matmul.
    w, scale = raw[3]["w"], raw[3]["scale"]
    cout, cin4 = w.shape[0], w.shape[1]
    w4t = (w.reshape(cout, cin4) * scale[:, None]).astype(jnp.bfloat16)
    s4t = raw[3]["shift"].reshape(cout, 1).astype(jnp.float32)

    return dict(w1=w1, s1=s1, w2=w2, s2=s2, w3=w3, s3=s3,
                w4t=w4t, s4t=s4t, cin_pad=cin_pad)


# ----------------------------- forward (wrapper) ---------------------------- #

def segmentation_network_stl_forward(params, x_nchw):
    """Forward pass; input/output NCHW f32 to mirror the PyTorch module."""
    n, c, h, w = x_nchw.shape
    cin_pad = params["cin_pad"]
    cout = params["w4t"].shape[0]

    wp = w + 2                       # padded-row width of the flattened image
    m_out = h * wp                   # rows of every conv output (flat frame)
    r = _round_up(wp + 1, 8)         # sublane-aligned store offset for staging
    base = r - (wp + 1)              # extra shift added to every tap read
    a_rows = _round_up(r + m_out + wp + 1, 8)

    # Build the layer-1 staged input: spatial zero-pad by 1, channel-pad to
    # cin_pad, flatten rows, place at row offset `base` (same convention as
    # the in-kernel staging buffers).
    x = jnp.transpose(x_nchw, (0, 2, 3, 1)).astype(jnp.float32)       # NHWC
    x = jnp.pad(x, ((0, 0), (1, 1), (1, 1), (0, cin_pad - c)))
    flat = x.reshape(n, (h + 2) * wp, cin_pad)
    flat = jnp.pad(flat, ((0, 0), (base, a_rows - base - (h + 2) * wp), (0, 0)))

    # Interior mask: zero the wrap-around columns (x >= W) of the flat frame.
    cols = jnp.arange(m_out, dtype=jnp.int32) % wp
    mask = (cols < w).astype(jnp.float32).reshape(m_out, 1)

    out = _fused_forward_call(flat, mask, params, wp=wp, m_out=m_out,
                              base=base, r=r, a_rows=a_rows)
    # (N, Cout, m_out) -> NCHW (crop the padded-width columns).
    return out.reshape(n, cout, h, wp)[:, :, :, :w]


# ----------------------------- reference (pure JAX) ------------------------- #

def reference_forward(raw, x_nchw):
    x = jnp.transpose(x_nchw, (0, 2, 3, 1)).astype(jnp.float32)
    for layer in raw:
        w_hwio = jnp.transpose(layer["w"], (2, 3, 1, 0))
        y = lax.conv_general_dilated(
            x, w_hwio, window_strides=(1, 1),
            padding="SAME" if layer["ksize"] == 3 else "VALID",
            dimension_numbers=("NHWC", "HWIO", "NHWC"))
        x = jnp.maximum(y * layer["scale"] + layer["shift"], 0.0)
    return jnp.transpose(x, (0, 3, 1, 2))


# ----------------------------- main ----------------------------------------- #

if __name__ == "__main__":
    key = jax.random.PRNGKey(0)
    network_output_channel = 8

    raw = init_layers(jax.random.fold_in(key, 1000), network_output_channel)
    params = pack_params(raw)

    x = jax.random.normal(jax.random.fold_in(key, 2000),
                          (2, 3, 16, 16), dtype=jnp.float32)          # NCHW

    fwd = jax.jit(functools.partial(segmentation_network_stl_forward, params))
    out = jax.block_until_ready(fwd(x))

    assert out.shape == (2, network_output_channel, 16, 16), out.shape
    assert bool(jnp.all(out >= 0.0)), "ReLU output must be non-negative"

    # Correctness vs f32 XLA reference (loose tolerance for bf16 MXU operands).
    ref = jax.block_until_ready(jax.jit(functools.partial(reference_forward, raw))(x))
    err = float(jnp.max(jnp.abs(out - ref)))
    ref_scale = float(jnp.max(jnp.abs(ref)))
    assert err <= 5e-2 * ref_scale + 5e-2, (err, ref_scale)

    print("KERNEL_OK")
</pallas_src>

<mosaic_0001>
module attributes {stable_mosaic.version = 11 : i64} {
  func.func @_fused_seg_kernel(%arg0: i32, %arg1: memref<1x336x8xf32, #tpu.memory_space<vmem>>, %arg2: memref<288x1xf32, #tpu.memory_space<vmem>>, %arg3: memref<72x64xbf16, #tpu.memory_space<vmem>>, %arg4: memref<1x64xf32, #tpu.memory_space<vmem>>, %arg5: memref<3x192x128xbf16, #tpu.memory_space<vmem>>, %arg6: memref<1x128xf32, #tpu.memory_space<vmem>>, %arg7: memref<3x384x256xbf16, #tpu.memory_space<vmem>>, %arg8: memref<1x256xf32, #tpu.memory_space<vmem>>, %arg9: memref<8x256xbf16, #tpu.memory_space<vmem>>, %arg10: memref<8x1xf32, #tpu.memory_space<vmem>>, %arg11: memref<1x8x288xf32, #tpu.memory_space<vmem>>, %arg12: memref<336x64xf32, #tpu.memory_space<vmem>>, %arg13: memref<336x128xf32, #tpu.memory_space<vmem>>) attributes {dimension_semantics = [#tpu.dimension_semantics<parallel>], iteration_bounds = array<i64: 2>, scalar_prefetch = 0 : i64, scratch_operands = 2 : i64, tpu.core_type = #tpu.core_type<tc>, window_params = [{transform_indices = @transform_0, window_bounds = array<i64: 1, 336, 8>}, {pipeline_mode = #tpu.pipeline_mode<synchronous>, transform_indices = @transform_1, window_bounds = array<i64: 288, 1>}, {pipeline_mode = #tpu.pipeline_mode<synchronous>, transform_indices = @transform_2, window_bounds = array<i64: 72, 64>}, {pipeline_mode = #tpu.pipeline_mode<synchronous>, transform_indices = @transform_3, window_bounds = array<i64: 1, 64>}, {pipeline_mode = #tpu.pipeline_mode<synchronous>, transform_indices = @transform_4, window_bounds = array<i64: 3, 192, 128>}, {pipeline_mode = #tpu.pipeline_mode<synchronous>, transform_indices = @transform_5, window_bounds = array<i64: 1, 128>}, {pipeline_mode = #tpu.pipeline_mode<synchronous>, transform_indices = @transform_6, window_bounds = array<i64: 3, 384, 256>}, {pipeline_mode = #tpu.pipeline_mode<synchronous>, transform_indices = @transform_7, window_bounds = array<i64: 1, 256>}, {pipeline_mode = #tpu.pipeline_mode<synchronous>, transform_indices = @transform_8, window_bounds = array<i64: 8, 256>}, {pipeline_mode = #tpu.pipeline_mode<synchronous>, transform_indices = @transform_9, window_bounds = array<i64: 8, 1>}, {transform_indices = @transform_10, window_bounds = array<i64: 1, 8, 288>}]} {
    %c0 = arith.constant 0 : index
    %c0_0 = arith.constant 0 : index
    %0 = vector.load %arg2[%c0, %c0_0] : memref<288x1xf32, #tpu.memory_space<vmem>>, vector<288x1xf32>
    %c0_1 = arith.constant 0 : index
    %c5 = arith.constant 5 : index
    %c0_2 = arith.constant 0 : index
    %1 = vector.load %arg1[%c0_1, %c5, %c0_2] : memref<1x336x8xf32, #tpu.memory_space<vmem>>, vector<1x288x8xf32>
    %2 = vector.shape_cast %1 : vector<1x288x8xf32> to vector<288x8xf32>
    %c0_3 = arith.constant 0 : index
    %c6 = arith.constant 6 : index
    %c0_4 = arith.constant 0 : index
    %3 = vector.load %arg1[%c0_3, %c6, %c0_4] : memref<1x336x8xf32, #tpu.memory_space<vmem>>, vector<1x288x8xf32>
    %4 = vector.shape_cast %3 : vector<1x288x8xf32> to vector<288x8xf32>
    %c0_5 = arith.constant 0 : index
    %c7 = arith.constant 7 : index
    %c0_6 = arith.constant 0 : index
    %5 = vector.load %arg1[%c0_5, %c7, %c0_6] : memref<1x336x8xf32, #tpu.memory_space<vmem>>, vector<1x288x8xf32>
    %6 = vector.shape_cast %5 : vector<1x288x8xf32> to vector<288x8xf32>
    %c0_7 = arith.constant 0 : index
    %c23 = arith.constant 23 : index
    %c0_8 = arith.constant 0 : index
    %7 = vector.load %arg1[%c0_7, %c23, %c0_8] : memref<1x336x8xf32, #tpu.memory_space<vmem>>, vector<1x288x8xf32>
    %8 = vector.shape_cast %7 : vector<1x288x8xf32> to vector<288x8xf32>
    %c0_9 = arith.constant 0 : index
    %c24 = arith.constant 24 : index
    %c0_10 = arith.constant 0 : index
    %9 = vector.load %arg1[%c0_9, %c24, %c0_10] : memref<1x336x8xf32, #tpu.memory_space<vmem>>, vector<1x288x8xf32>
    %10 = vector.shape_cast %9 : vector<1x288x8xf32> to vector<288x8xf32>
    %c0_11 = arith.constant 0 : index
    %c25 = arith.constant 25 : index
    %c0_12 = arith.constant 0 : index
    %11 = vector.load %arg1[%c0_11, %c25, %c0_12] : memref<1x336x8xf32, #tpu.memory_space<vmem>>, vector<1x288x8xf32>
    %12 = vector.shape_cast %11 : vector<1x288x8xf32> to vector<288x8xf32>
    %c0_13 = arith.constant 0 : index
    %c41 = arith.constant 41 : index
    %c0_14 = arith.constant 0 : index
    %13 = vector.load %arg1[%c0_13, %c41, %c0_14] : memref<1x336x8xf32, #tpu.memory_space<vmem>>, vector<1x288x8xf32>
    %14 = vector.shape_cast %13 : vector<1x288x8xf32> to vector<288x8xf32>
    %c0_15 = arith.constant 0 : index
    %c42 = arith.constant 42 : index
    %c0_16 = arith.constant 0 : index
    %15 = vector.load %arg1[%c0_15, %c42, %c0_16] : memref<1x336x8xf32, #tpu.memory_space<vmem>>, vector<1x288x8xf32>
    %16 = vector.shape_cast %15 : vector<1x288x8xf32> to vector<288x8xf32>
    %c0_17 = arith.constant 0 : index
    %c43 = arith.constant 43 : index
    %c0_18 = arith.constant 0 : index
    %17 = vector.load %arg1[%c0_17, %c43, %c0_18] : memref<1x336x8xf32, #tpu.memory_space<vmem>>, vector<1x288x8xf32>
    %18 = vector.shape_cast %17 : vector<1x288x8xf32> to vector<288x8xf32>
    %19 = tpu.concatenate %2, %4, %6, %8, %10, %12, %14, %16, %18 in 1 : vector<288x8xf32>, vector<288x8xf32>, vector<288x8xf32>, vector<288x8xf32>, vector<288x8xf32>, vector<288x8xf32>, vector<288x8xf32>, vector<288x8xf32>, vector<288x8xf32> -> vector<288x72xf32>
    %20 = arith.truncf %19 : vector<288x72xf32> to vector<288x72xbf16>
    %c0_19 = arith.constant 0 : index
    %c0_20 = arith.constant 0 : index
    %21 = vector.load %arg3[%c0_19, %c0_20] : memref<72x64xbf16, #tpu.memory_space<vmem>>, vector<72x64xbf16>
    %cst = arith.constant dense<0.000000e+00> : vector<288x64xf32>
    %22 = tpu.matmul %20, %21, %cst {dimension_numbers = #tpu.dot_dimension_numbers<[1], [0], [0], [1], [0, 0, 1, 1], [], []>} : vector<288x72xbf16>, vector<72x64xbf16>, vector<288x64xf32> -> vector<288x64xf32>
    %c0_21 = arith.constant 0 : index
    %c0_22 = arith.constant 0 : index
    %23 = vector.load %arg4[%c0_21, %c0_22] : memref<1x64xf32, #tpu.memory_space<vmem>>, vector<1x64xf32>
    %24 = vector.broadcast %23 : vector<1x64xf32> to vector<288x64xf32>
    %25 = arith.addf %22, %24 : vector<288x64xf32>
    %cst_23 = arith.constant 0.000000e+00 : f32
    %26 = vector.broadcast %cst_23 : f32 to vector<288x64xf32>
    %27 = arith.maximumf %25, %26 : vector<288x64xf32>
    %28 = vector.broadcast %0 : vector<288x1xf32> to vector<288x64xf32>
    %29 = arith.mulf %27, %28 : vector<288x64xf32>
    %cst_24 = arith.constant 0.000000e+00 : f32
    %30 = vector.broadcast %cst_24 : f32 to vector<336x64xf32>
    %c0_25 = arith.constant 0 : index
    %c0_26 = arith.constant 0 : index
    %31 = vector.load %arg12[%c0_25, %c0_26] : memref<336x64xf32, #tpu.memory_space<vmem>>, vector<336x64xf32>
    tpu.vector_store %arg12[%c0_25, %c0_26], %30 {strides = array<i32>} : memref<336x64xf32, #tpu.memory_space<vmem>>, vector<336x64xf32>,
    %c24_27 = arith.constant 24 : index
    %c0_28 = arith.constant 0 : index
    %32 = vector.load %arg12[%c24_27, %c0_28] : memref<336x64xf32, #tpu.memory_space<vmem>>, vector<288x64xf32>
    tpu.vector_store %arg12[%c24_27, %c0_28], %29 {strides = array<i32>} : memref<336x64xf32, #tpu.memory_space<vmem>>, vector<288x64xf32>,
    %c5_29 = arith.constant 5 : index
    %c0_30 = arith.constant 0 : index
    %33 = vector.load %arg12[%c5_29, %c0_30] : memref<336x64xf32, #tpu.memory_space<vmem>>, vector<288x64xf32>
    %c6_31 = arith.constant 6 : index
    %c0_32 = arith.constant 0 : index
    %34 = vector.load %arg12[%c6_31, %c0_32] : memref<336x64xf32, #tpu.memory_space<vmem>>, vector<288x64xf32>
    %c7_33 = arith.constant 7 : index
    %c0_34 = arith.constant 0 : index
    %35 = vector.load %arg12[%c7_33, %c0_34] : memref<336x64xf32, #tpu.memory_space<vmem>>, vector<288x64xf32>
    %36 = tpu.concatenate %33, %34, %35 in 1 : vector<288x64xf32>, vector<288x64xf32>, vector<288x64xf32> -> vector<288x192xf32>
    %37 = arith.truncf %36 : vector<288x192xf32> to vector<288x192xbf16>
    %c0_35 = arith.constant 0 : index
    %c0_36 = arith.constant 0 : index
    %c0_37 = arith.constant 0 : index
    %38 = vector.load %arg5[%c0_35, %c0_36, %c0_37] : memref<3x192x128xbf16, #tpu.memory_space<vmem>>, vector<1x192x128xbf16>
    %39 = vector.shape_cast %38 : vector<1x192x128xbf16> to vector<192x128xbf16>
    %cst_38 = arith.constant dense<0.000000e+00> : vector<288x128xf32>
    %40 = tpu.matmul %37, %39, %cst_38 {dimension_numbers = #tpu.dot_dimension_numbers<[1], [0], [0], [1], [0, 0, 1, 1], [], []>} : vector<288x192xbf16>, vector<192x128xbf16>, vector<288x128xf32> -> vector<288x128xf32>
    %c23_39 = arith.constant 23 : index
    %c0_40 = arith.constant 0 : index
    %41 = vector.load %arg12[%c23_39, %c0_40] : memref<336x64xf32, #tpu.memory_space<vmem>>, vector<288x64xf32>
    %c24_41 = arith.constant 24 : index
    %c0_42 = arith.constant 0 : index
    %42 = vector.load %arg12[%c24_41, %c0_42] : memref<336x64xf32, #tpu.memory_space<vmem>>, vector<288x64xf32>
    %c25_43 = arith.constant 25 : index
    %c0_44 = arith.constant 0 : index
    %43 = vector.load %arg12[%c25_43, %c0_44] : memref<336x64xf32, #tpu.memory_space<vmem>>, vector<288x64xf32>
    %44 = tpu.concatenate %41, %42, %43 in 1 : vector<288x64xf32>, vector<288x64xf32>, vector<288x64xf32> -> vector<288x192xf32>
    %45 = arith.truncf %44 : vector<288x192xf32> to vector<288x192xbf16>
    %c1 = arith.constant 1 : index
    %c0_45 = arith.constant 0 : index
    %c0_46 = arith.constant 0 : index
    %46 = vector.load %arg5[%c1, %c0_45, %c0_46] : memref<3x192x128xbf16, #tpu.memory_space<vmem>>, vector<1x192x128xbf16>
    %47 = vector.shape_cast %46 : vector<1x192x128xbf16> to vector<192x128xbf16>
    %cst_47 = arith.constant dense<0.000000e+00> : vector<288x128xf32>
    %48 = tpu.matmul %45, %47, %cst_47 {dimension_numbers = #tpu.dot_dimension_numbers<[1], [0], [0], [1], [0, 0, 1, 1], [], []>} : vector<288x192xbf16>, vector<192x128xbf16>, vector<288x128xf32> -> vector<288x128xf32>
    %49 = arith.addf %40, %48 : vector<288x128xf32>
    %c41_48 = arith.constant 41 : index
    %c0_49 = arith.constant 0 : index
    %50 = vector.load %arg12[%c41_48, %c0_49] : memref<336x64xf32, #tpu.memory_space<vmem>>, vector<288x64xf32>
    %c42_50 = arith.constant 42 : index
    %c0_51 = arith.constant 0 : index
    %51 = vector.load %arg12[%c42_50, %c0_51] : memref<336x64xf32, #tpu.memory_space<vmem>>, vector<288x64xf32>
    %c43_52 = arith.constant 43 : index
    %c0_53 = arith.constant 0 : index
    %52 = vector.load %arg12[%c43_52, %c0_53] : memref<336x64xf32, #tpu.memory_space<vmem>>, vector<288x64xf32>
    %53 = tpu.concatenate %50, %51, %52 in 1 : vector<288x64xf32>, vector<288x64xf32>, vector<288x64xf32> -> vector<288x192xf32>
    %54 = arith.truncf %53 : vector<288x192xf32> to vector<288x192xbf16>
    %c2 = arith.constant 2 : index
    %c0_54 = arith.constant 0 : index
    %c0_55 = arith.constant 0 : index
    %55 = vector.load %arg5[%c2, %c0_54, %c0_55] : memref<3x192x128xbf16, #tpu.memory_space<vmem>>, vector<1x192x128xbf16>
    %56 = vector.shape_cast %55 : vector<1x192x128xbf16> to vector<192x128xbf16>
    %cst_56 = arith.constant dense<0.000000e+00> : vector<288x128xf32>
    %57 = tpu.matmul %54, %56, %cst_56 {dimension_numbers = #tpu.dot_dimension_numbers<[1], [0], [0], [1], [0, 0, 1, 1], [], []>} : vector<288x192xbf16>, vector<192x128xbf16>, vector<288x128xf32> -> vector<288x128xf32>
    %58 = arith.addf %49, %57 : vector<288x128xf32>
    %c0_57 = arith.constant 0 : index
    %c0_58 = arith.constant 0 : index
    %59 = vector.load %arg6[%c0_57, %c0_58] : memref<1x128xf32, #tpu.memory_space<vmem>>, vector<1x128xf32>
    %60 = vector.broadcast %59 : vector<1x128xf32> to vector<288x128xf32>
    %61 = arith.addf %58, %60 : vector<288x128xf32>
    %cst_59 = arith.constant 0.000000e+00 : f32
    %62 = vector.broadcast %cst_59 : f32 to vector<288x128xf32>
    %63 = arith.maximumf %61, %62 : vector<288x128xf32>
    %64 = vector.broadcast %0 : vector<288x1xf32> to vector<288x128xf32>
    %65 = arith.mulf %63, %64 : vector<288x128xf32>
    %cst_60 = arith.constant 0.000000e+00 : f32
    %66 = vector.broadcast %cst_60 : f32 to vector<336x128xf32>
    %c0_61 = arith.constant 0 : index
    %c0_62 = arith.constant 0 : index
    %67 = vector.load %arg13[%c0_61, %c0_62] : memref<336x128xf32, #tpu.memory_space<vmem>>, vector<336x128xf32>
    tpu.vector_store %arg13[%c0_61, %c0_62], %66 {strides = array<i32>} : memref<336x128xf32, #tpu.memory_space<vmem>>, vector<336x128xf32>,
    %c24_63 = arith.constant 24 : index
    %c0_64 = arith.constant 0 : index
    %68 = vector.load %arg13[%c24_63, %c0_64] : memref<336x128xf32, #tpu.memory_space<vmem>>, vector<288x128xf32>
    tpu.vector_store %arg13[%c24_63, %c0_64], %65 {strides = array<i32>} : memref<336x128xf32, #tpu.memory_space<vmem>>, vector<288x128xf32>,
    %c5_65 = arith.constant 5 : index
    %c0_66 = arith.constant 0 : index
    %69 = vector.load %arg13[%c5_65, %c0_66] : memref<336x128xf32, #tpu.memory_space<vmem>>, vector<288x128xf32>
    %c6_67 = arith.constant 6 : index
    %c0_68 = arith.constant 0 : index
    %70 = vector.load %arg13[%c6_67, %c0_68] : memref<336x128xf32, #tpu.memory_space<vmem>>, vector<288x128xf32>
    %c7_69 = arith.constant 7 : index
    %c0_70 = arith.constant 0 : index
    %71 = vector.load %arg13[%c7_69, %c0_70] : memref<336x128xf32, #tpu.memory_space<vmem>>, vector<288x128xf32>
    %72 = tpu.concatenate %69, %70, %71 in 1 : vector<288x128xf32>, vector<288x128xf32>, vector<288x128xf32> -> vector<288x384xf32>
    %73 = arith.truncf %72 : vector<288x384xf32> to vector<288x384xbf16>
    %c0_71 = arith.constant 0 : index
    %c0_72 = arith.constant 0 : index
    %c0_73 = arith.constant 0 : index
    %74 = vector.load %arg7[%c0_71, %c0_72, %c0_73] : memref<3x384x256xbf16, #tpu.memory_space<vmem>>, vector<1x384x256xbf16>
    %75 = vector.shape_cast %74 : vector<1x384x256xbf16> to vector<384x256xbf16>
    %cst_74 = arith.constant dense<0.000000e+00> : vector<288x256xf32>
    %76 = tpu.matmul %73, %75, %cst_74 {dimension_numbers = #tpu.dot_dimension_numbers<[1], [0], [0], [1], [0, 0, 1, 1], [], []>} : vector<288x384xbf16>, vector<384x256xbf16>, vector<288x256xf32> -> vector<288x256xf32>
    %c23_75 = arith.constant 23 : index
    %c0_76 = arith.constant 0 : index
    %77 = vector.load %arg13[%c23_75, %c0_76] : memref<336x128xf32, #tpu.memory_space<vmem>>, vector<288x128xf32>
    %c24_77 = arith.constant 24 : index
    %c0_78 = arith.constant 0 : index
    %78 = vector.load %arg13[%c24_77, %c0_78] : memref<336x128xf32, #tpu.memory_space<vmem>>, vector<288x128xf32>
    %c25_79 = arith.constant 25 : index
    %c0_80 = arith.constant 0 : index
    %79 = vector.load %arg13[%c25_79, %c0_80] : memref<336x128xf32, #tpu.memory_space<vmem>>, vector<288x128xf32>
    %80 = tpu.concatenate %77, %78, %79 in 1 : vector<288x128xf32>, vector<288x128xf32>, vector<288x128xf32> -> vector<288x384xf32>
    %81 = arith.truncf %80 : vector<288x384xf32> to vector<288x384xbf16>
    %c1_81 = arith.constant 1 : index
    %c0_82 = arith.constant 0 : index
    %c0_83 = arith.constant 0 : index
    %82 = vector.load %arg7[%c1_81, %c0_82, %c0_83] : memref<3x384x256xbf16, #tpu.memory_space<vmem>>, vector<1x384x256xbf16>
    %83 = vector.shape_cast %82 : vector<1x384x256xbf16> to vector<384x256xbf16>
    %cst_84 = arith.constant dense<0.000000e+00> : vector<288x256xf32>
    %84 = tpu.matmul %81, %83, %cst_84 {dimension_numbers = #tpu.dot_dimension_numbers<[1], [0], [0], [1], [0, 0, 1, 1], [], []>} : vector<288x384xbf16>, vector<384x256xbf16>, vector<288x256xf32> -> vector<288x256xf32>
    %85 = arith.addf %76, %84 : vector<288x256xf32>
    %c41_85 = arith.constant 41 : index
    %c0_86 = arith.constant 0 : index
    %86 = vector.load %arg13[%c41_85, %c0_86] : memref<336x128xf32, #tpu.memory_space<vmem>>, vector<288x128xf32>
    %c42_87 = arith.constant 42 : index
    %c0_88 = arith.constant 0 : index
    %87 = vector.load %arg13[%c42_87, %c0_88] : memref<336x128xf32, #tpu.memory_space<vmem>>, vector<288x128xf32>
    %c43_89 = arith.constant 43 : index
    %c0_90 = arith.constant 0 : index
    %88 = vector.load %arg13[%c43_89, %c0_90] : memref<336x128xf32, #tpu.memory_space<vmem>>, vector<288x128xf32>
    %89 = tpu.concatenate %86, %87, %88 in 1 : vector<288x128xf32>, vector<288x128xf32>, vector<288x128xf32> -> vector<288x384xf32>
    %90 = arith.truncf %89 : vector<288x384xf32> to vector<288x384xbf16>
    %c2_91 = arith.constant 2 : index
    %c0_92 = arith.constant 0 : index
    %c0_93 = arith.constant 0 : index
    %91 = vector.load %arg7[%c2_91, %c0_92, %c0_93] : memref<3x384x256xbf16, #tpu.memory_space<vmem>>, vector<1x384x256xbf16>
    %92 = vector.shape_cast %91 : vector<1x384x256xbf16> to vector<384x256xbf16>
    %cst_94 = arith.constant dense<0.000000e+00> : vector<288x256xf32>
    %93 = tpu.matmul %90, %92, %cst_94 {dimension_numbers = #tpu.dot_dimension_numbers<[1], [0], [0], [1], [0, 0, 1, 1], [], []>} : vector<288x384xbf16>, vector<384x256xbf16>, vector<288x256xf32> -> vector<288x256xf32>
    %94 = arith.addf %85, %93 : vector<288x256xf32>
    %c0_95 = arith.constant 0 : index
    %c0_96 = arith.constant 0 : index
    %95 = vector.load %arg8[%c0_95, %c0_96] : memref<1x256xf32, #tpu.memory_space<vmem>>, vector<1x256xf32>
    %96 = vector.broadcast %95 : vector<1x256xf32> to vector<288x256xf32>
    %97 = arith.addf %94, %96 : vector<288x256xf32>
    %cst_97 = arith.constant 0.000000e+00 : f32
    %98 = vector.broadcast %cst_97 : f32 to vector<288x256xf32>
    %99 = arith.maximumf %97, %98 : vector<288x256xf32>
    %100 = arith.truncf %99 : vector<288x256xf32> to vector<288x256xbf16>
    %c0_98 = arith.constant 0 : index
    %c0_99 = arith.constant 0 : index
    %101 = vector.load %arg9[%c0_98, %c0_99] : memref<8x256xbf16, #tpu.memory_space<vmem>>, vector<8x256xbf16>
    %cst_100 = arith.constant dense<0.000000e+00> : vector<8x288xf32>
    %102 = tpu.matmul %101, %100, %cst_100 {dimension_numbers = #tpu.dot_dimension_numbers<[1], [1], [0], [0], [0, 0, 1, 0], [], []>} : vector<8x256xbf16>, vector<288x256xbf16>, vector<8x288xf32> -> vector<8x288xf32>
    %c0_101 = arith.constant 0 : index
    %c0_102 = arith.constant 0 : index
    %103 = vector.load %arg10[%c0_101, %c0_102] : memref<8x1xf32, #tpu.memory_space<vmem>>, vector<8x1xf32>
    %104 = vector.broadcast %103 : vector<8x1xf32> to vector<8x288xf32>
    %105 = arith.addf %102, %104 : vector<8x288xf32>
    %cst_103 = arith.constant 0.000000e+00 : f32
    %106 = vector.broadcast %cst_103 : f32 to vector<8x288xf32>
    %107 = arith.maximumf %105, %106 : vector<8x288xf32>
    %c0_104 = arith.constant 0 : index
    %c0_105 = arith.constant 0 : index
    %c0_106 = arith.constant 0 : index
    %108 = vector.load %arg11[%c0_104, %c0_105, %c0_106] : memref<1x8x288xf32, #tpu.memory_space<vmem>>, vector<1x8x288xf32>
    %109 = vector.shape_cast %108 : vector<1x8x288xf32> to vector<8x288xf32>
    %110 = vector.shape_cast %107 : vector<8x288xf32> to vector<1x8x288xf32>
    tpu.vector_store %arg11[%c0_104, %c0_105, %c0_106], %110 {strides = array<i32>} : memref<1x8x288xf32, #tpu.memory_space<vmem>>, vector<1x8x288xf32>,
    return
  }
  func.func @transform_0(%arg0: i32) -> (i32, i32, i32) {
    %c0_i32 = arith.constant 0 : i32
    %c0_i32_0 = arith.constant 0 : i32
    %c0_i32_1 = arith.constant 0 : i32
    return %arg0, %c0_i32, %c0_i32_0 : i32, i32, i32
  }
  func.func @transform_1(%arg0: i32) -> (i32, i32) {
    %c0_i32 = arith.constant 0 : i32
    %c0_i32_0 = arith.constant 0 : i32
    %c0_i32_1 = arith.constant 0 : i32
    return %c0_i32, %c0_i32_0 : i32, i32
  }
  func.func @transform_2(%arg0: i32) -> (i32, i32) {
    %c0_i32 = arith.constant 0 : i32
    %c0_i32_0 = arith.constant 0 : i32
    %c0_i32_1 = arith.constant 0 : i32
    return %c0_i32, %c0_i32_0 : i32, i32
  }
  func.func @transform_3(%arg0: i32) -> (i32, i32) {
    %c0_i32 = arith.constant 0 : i32
    %c0_i32_0 = arith.constant 0 : i32
    %c0_i32_1 = arith.constant 0 : i32
    return %c0_i32, %c0_i32_0 : i32, i32
  }
  func.func @transform_4(%arg0: i32) -> (i32, i32, i32) {
    %c0_i32 = arith.constant 0 : i32
    %c0_i32_0 = arith.constant 0 : i32
    %c0_i32_1 = arith.constant 0 : i32
    %c0_i32_2 = arith.constant 0 : i32
    return %c0_i32, %c0_i32_0, %c0_i32_1 : i32, i32, i32
  }
  func.func @transform_5(%arg0: i32) -> (i32, i32) {
    %c0_i32 = arith.constant 0 : i32
    %c0_i32_0 = arith.constant 0 : i32
    %c0_i32_1 = arith.constant 0 : i32
    return %c0_i32, %c0_i32_0 : i32, i32
  }
  func.func @transform_6(%arg0: i32) -> (i32, i32, i32) {
    %c0_i32 = arith.constant 0 : i32
    %c0_i32_0 = arith.constant 0 : i32
    %c0_i32_1 = arith.constant 0 : i32
    %c0_i32_2 = arith.constant 0 : i32
    return %c0_i32, %c0_i32_0, %c0_i32_1 : i32, i32, i32
  }
  func.func @transform_7(%arg0: i32) -> (i32, i32) {
    %c0_i32 = arith.constant 0 : i32
    %c0_i32_0 = arith.constant 0 : i32
    %c0_i32_1 = arith.constant 0 : i32
    return %c0_i32, %c0_i32_0 : i32, i32
  }
  func.func @transform_8(%arg0: i32) -> (i32, i32) {
    %c0_i32 = arith.constant 0 : i32
    %c0_i32_0 = arith.constant 0 : i32
    %c0_i32_1 = arith.constant 0 : i32
    return %c0_i32, %c0_i32_0 : i32, i32
  }
  func.func @transform_9(%arg0: i32) -> (i32, i32) {
    %c0_i32 = arith.constant 0 : i32
    %c0_i32_0 = arith.constant 0 : i32
    %c0_i32_1 = arith.constant 0 : i32
    return %c0_i32, %c0_i32_0 : i32, i32
  }
  func.func @transform_10(%arg0: i32) -> (i32, i32, i32) {
    %c0_i32 = arith.constant 0 : i32
    %c0_i32_0 = arith.constant 0 : i32
    %c0_i32_1 = arith.constant 0 : i32
    return %arg0, %c0_i32, %c0_i32_0 : i32, i32, i32
  }
}

</mosaic_0001>

<llo_original>
// kernel: segmentation_network_stl_forward.1
$region0: #{segmentation_network_stl_forward.1}
  #allocation0 [shape = 'u32[]', space=smem, size = 0x4, offset = 0x4, fixed_abs, tag = 'smem constant byte address 0x4 - core index']
  #allocation1 [shape = 'u32[144,128]{1,0:T(1,128)}', space=vmem, size = 0x12000, scoped, tag = 'internal scratch']
  #allocation2 [shape = 'f32[336,64]{1,0:T(8,128)}', space=vmem, size = 0x2a000, scoped, tag = 'scratch operand']
  #allocation3 [shape = 'f32[336,128]{1,0:T(8,128)}', space=vmem, size = 0x2a000, scoped, tag = 'scratch operand']
  %s0 = inlined_call_operand.vmem [shape: f32[2,336,8], index: 0, kind: input, shape index: {}]
  %s1 = inlined_call_operand.vmem [shape: f32[288,1], index: 1, kind: input, shape index: {}]
  %s2 = inlined_call_operand.vmem [shape: bf16[72,64], index: 2, kind: input, shape index: {}]
  %s3 = inlined_call_operand.vmem [shape: f32[1,64], index: 3, kind: input, shape index: {}]
  %s4 = inlined_call_operand.vmem [shape: bf16[3,192,128], index: 4, kind: input, shape index: {}]
  %s5 = inlined_call_operand.vmem [shape: f32[1,128], index: 5, kind: input, shape index: {}]
  %s6 = inlined_call_operand.vmem [shape: bf16[3,384,256], index: 6, kind: input, shape index: {}]
  %s7 = inlined_call_operand.vmem [shape: f32[1,256], index: 7, kind: input, shape index: {}]
  %s8 = inlined_call_operand.vmem [shape: bf16[8,256], index: 8, kind: input, shape index: {}]
  %s9 = inlined_call_operand.vmem [shape: f32[8,1], index: 9, kind: input, shape index: {}]
  %s10 = inlined_call_operand.vmem [shape: f32[2,8,288], index: 10, kind: output, shape index: {}]
  %s11 = sld [smem:[#allocation0]]
  $region73: #{segmentation_network_stl_forward.1} parent=0
    _
  %s13 = ssub.s32 1, %s11
  %s14 = scalar_select 0, %s13, %s11
  loop: start=0, step=1, limit=4
  $region2: #{segmentation_network_stl_forward.1} parent=0 // loop_pre_header
    _
  $region3: #{segmentation_network_stl_forward.1} parent=0 // loop_header
    %s16 = sphi 0, %s20
    %p17 = scmp.ge.s32.totalorder %s16, 4
    %s26 = sphi 0, %s28
    %s29 = sphi 0, %s26
    %s30 = sphi 0, %s29
    %s46 = sphi 0, %s30
    %s50 = sphi 0, %s50
    %s52 = sphi 0, %s50
    %s53 = sphi 0, %s52
    %s67 = sphi 0, %s53
    %s71 = sphi 0, %s71
    %s73 = sphi 0, %s71
    %s74 = sphi 0, %s73
    %s88 = sphi 0, %s74
    %s92 = sphi 0, %s92
    %s94 = sphi 0, %s92
    %s95 = sphi 0, %s94
    %s109 = sphi 0, %s95
    %s113 = sphi 0, %s113
    %s115 = sphi 0, %s113
    %s116 = sphi 0, %s115
    %s130 = sphi 0, %s116
    %s134 = sphi 0, %s134
    %s136 = sphi 0, %s134
    %s137 = sphi 0, %s136
    %s151 = sphi 0, %s137
    %s155 = sphi 0, %s155
    %s157 = sphi 0, %s155
    %s158 = sphi 0, %s157
    %s172 = sphi 0, %s158
    %s176 = sphi 0, %s176
    %s178 = sphi 0, %s176
    %s179 = sphi 0, %s178
    %s193 = sphi 0, %s179
    %s197 = sphi 0, %s197
    %s199 = sphi 0, %s197
    %s200 = sphi 0, %s199
    %s214 = sphi 0, %s200
    %s218 = sphi 0, %s218
    %s220 = sphi 0, %s218
    %s221 = sphi 0, %s220
    %s235 = sphi 0, %s221
    %s241 = sphi 0, %s243
    %s244 = sphi 0, %s241
    %s245 = sphi 0, %s244
    %s261 = sphi 0, %s245
  $region4: #{segmentation_network_stl_forward.1} parent=0 // loop_header_branch
    %19 = sbr.rel (%p17) target = $region8
  $region5: #{segmentation_network_stl_forward.1} parent=0 // loop_body
    %s21 = ssub.s32 %s16, 1
    %s22 = ssub.s32 %s16, 2
    %s23 = sadd.s32 %s16, 1
    %s24 = ssub.s32 %s16, %s23
    %p25 = scmp.eq.s32.totalorder %s24, 0
    %s27 = sadd.s32 %s26, 1
    %s28 = scalar_select %p25, %s26, %s27
    %p31 = pneg %p25
    %p32 = scmp.eq.s32.totalorder %s16, 1
    %p33 = por %p31, %p32
    %p34 = scmp.ne.s32.totalorder %s26, %s29
    %p35 = scmp.eq.s32.totalorder %s16, 0
    %p36 = por %p34, %p35
    %p37 = scmp.ne.s32.totalorder %s26, %s29
    %p38 = scmp.eq.s32.totalorder %s21, 1
    %p39 = por %p37, %p38
    %p40 = scmp.ne.s32.totalorder %s29, %s30
    %p41 = scmp.eq.s32.totalorder %s21, 0
    %p42 = por %p40, %p41
    %p43 = scmp.ne.s32.totalorder %s29, %s30
    %p44 = scmp.eq.s32.totalorder %s22, 1
    %p45 = por %p43, %p44
    %p47 = scmp.ne.s32.totalorder %s30, %s46
    %p48 = scmp.eq.s32.totalorder %s22, 0
    %p49 = por %p47, %p48
    %s51 = sadd.s32 %s50, 1
    %p54 = scmp.eq.s32.totalorder %s16, 1
    %p55 = scmp.ne.s32.totalorder %s50, %s52
    %p56 = scmp.eq.s32.totalorder %s16, 0
    %p57 = por %p55, %p56
    %p58 = scmp.ne.s32.totalorder %s50, %s52
    %p59 = scmp.eq.s32.totalorder %s21, 1
    %p60 = por %p58, %p59
    %p61 = scmp.ne.s32.totalorder %s52, %s53
    %p62 = scmp.eq.s32.totalorder %s21, 0
    %p63 = por %p61, %p62
    %p64 = scmp.ne.s32.totalorder %s52, %s53
    %p65 = scmp.eq.s32.totalorder %s22, 1
    %p66 = por %p64, %p65
    %p68 = scmp.ne.s32.totalorder %s53, %s67
    %p69 = scmp.eq.s32.totalorder %s22, 0
    %p70 = por %p68, %p69
    %s72 = sadd.s32 %s71, 1
    %p75 = scmp.eq.s32.totalorder %s16, 1
    %p76 = scmp.ne.s32.totalorder %s71, %s73
    %p77 = scmp.eq.s32.totalorder %s16, 0
    %p78 = por %p76, %p77
    %p79 = scmp.ne.s32.totalorder %s71, %s73
    %p80 = scmp.eq.s32.totalorder %s21, 1
    %p81 = por %p79, %p80
    %p82 = scmp.ne.s32.totalorder %s73, %s74
    %p83 = scmp.eq.s32.totalorder %s21, 0
    %p84 = por %p82, %p83
    %p85 = scmp.ne.s32.totalorder %s73, %s74
    %p86 = scmp.eq.s32.totalorder %s22, 1
    %p87 = por %p85, %p86
    %p89 = scmp.ne.s32.totalorder %s74, %s88
    %p90 = scmp.eq.s32.totalorder %s22, 0
    %p91 = por %p89, %p90
    %s93 = sadd.s32 %s92, 1
    %p96 = scmp.eq.s32.totalorder %s16, 1
    %p97 = scmp.ne.s32.totalorder %s92, %s94
    %p98 = scmp.eq.s32.totalorder %s16, 0
    %p99 = por %p97, %p98
    %p100 = scmp.ne.s32.totalorder %s92, %s94
    %p101 = scmp.eq.s32.totalorder %s21, 1
    %p102 = por %p100, %p101
    %p103 = scmp.ne.s32.totalorder %s94, %s95
    %p104 = scmp.eq.s32.totalorder %s21, 0
    %p105 = por %p103, %p104
    %p106 = scmp.ne.s32.totalorder %s94, %s95
    %p107 = scmp.eq.s32.totalorder %s22, 1
    %p108 = por %p106, %p107
    %p110 = scmp.ne.s32.totalorder %s95, %s109
    %p111 = scmp.eq.s32.totalorder %s22, 0
    %p112 = por %p110, %p111
    %s114 = sadd.s32 %s113, 1
    %p117 = scmp.eq.s32.totalorder %s16, 1
    %p118 = scmp.ne.s32.totalorder %s113, %s115
    %p119 = scmp.eq.s32.totalorder %s16, 0
    %p120 = por %p118, %p119
    %p121 = scmp.ne.s32.totalorder %s113, %s115
    %p122 = scmp.eq.s32.totalorder %s21, 1
    %p123 = por %p121, %p122
    %p124 = scmp.ne.s32.totalorder %s115, %s116
    %p125 = scmp.eq.s32.totalorder %s21, 0
    %p126 = por %p124, %p125
    %p127 = scmp.ne.s32.totalorder %s115, %s116
    %p128 = scmp.eq.s32.totalorder %s22, 1
    %p129 = por %p127, %p128
    %p131 = scmp.ne.s32.totalorder %s116, %s130
    %p132 = scmp.eq.s32.totalorder %s22, 0
    %p133 = por %p131, %p132
    %s135 = sadd.s32 %s134, 1
    %p138 = scmp.eq.s32.totalorder %s16, 1
    %p139 = scmp.ne.s32.totalorder %s134, %s136
    %p140 = scmp.eq.s32.totalorder %s16, 0
    %p141 = por %p139, %p140
    %p142 = scmp.ne.s32.totalorder %s134, %s136
    %p143 = scmp.eq.s32.totalorder %s21, 1
    %p144 = por %p142, %p143
    %p145 = scmp.ne.s32.totalorder %s136, %s137
    %p146 = scmp.eq.s32.totalorder %s21, 0
    %p147 = por %p145, %p146
    %p148 = scmp.ne.s32.totalorder %s136, %s137
    %p149 = scmp.eq.s32.totalorder %s22, 1
    %p150 = por %p148, %p149
    %p152 = scmp.ne.s32.totalorder %s137, %s151
    %p153 = scmp.eq.s32.totalorder %s22, 0
    %p154 = por %p152, %p153
    %s156 = sadd.s32 %s155, 1
    %p159 = scmp.eq.s32.totalorder %s16, 1
    %p160 = scmp.ne.s32.totalorder %s155, %s157
    %p161 = scmp.eq.s32.totalorder %s16, 0
    %p162 = por %p160, %p161
    %p163 = scmp.ne.s32.totalorder %s155, %s157
    %p164 = scmp.eq.s32.totalorder %s21, 1
    %p165 = por %p163, %p164
    %p166 = scmp.ne.s32.totalorder %s157, %s158
    %p167 = scmp.eq.s32.totalorder %s21, 0
    %p168 = por %p166, %p167
    %p169 = scmp.ne.s32.totalorder %s157, %s158
    %p170 = scmp.eq.s32.totalorder %s22, 1
    %p171 = por %p169, %p170
    %p173 = scmp.ne.s32.totalorder %s158, %s172
    %p174 = scmp.eq.s32.totalorder %s22, 0
    %p175 = por %p173, %p174
    %s177 = sadd.s32 %s176, 1
    %p180 = scmp.eq.s32.totalorder %s16, 1
    %p181 = scmp.ne.s32.totalorder %s176, %s178
    %p182 = scmp.eq.s32.totalorder %s16, 0
    %p183 = por %p181, %p182
    %p184 = scmp.ne.s32.totalorder %s176, %s178
    %p185 = scmp.eq.s32.totalorder %s21, 1
    %p186 = por %p184, %p185
    %p187 = scmp.ne.s32.totalorder %s178, %s179
    %p188 = scmp.eq.s32.totalorder %s21, 0
    %p189 = por %p187, %p188
    %p190 = scmp.ne.s32.totalorder %s178, %s179
    %p191 = scmp.eq.s32.totalorder %s22, 1
    %p192 = por %p190, %p191
    %p194 = scmp.ne.s32.totalorder %s179, %s193
    %p195 = scmp.eq.s32.totalorder %s22, 0
    %p196 = por %p194, %p195
    %s198 = sadd.s32 %s197, 1
    %p201 = scmp.eq.s32.totalorder %s16, 1
    %p202 = scmp.ne.s32.totalorder %s197, %s199
    %p203 = scmp.eq.s32.totalorder %s16, 0
    %p204 = por %p202, %p203
    %p205 = scmp.ne.s32.totalorder %s197, %s199
    %p206 = scmp.eq.s32.totalorder %s21, 1
    %p207 = por %p205, %p206
    %p208 = scmp.ne.s32.totalorder %s199, %s200
    %p209 = scmp.eq.s32.totalorder %s21, 0
    %p210 = por %p208, %p209
    %p211 = scmp.ne.s32.totalorder %s199, %s200
    %p212 = scmp.eq.s32.totalorder %s22, 1
    %p213 = por %p211, %p212
    %p215 = scmp.ne.s32.totalorder %s200, %s214
    %p216 = scmp.eq.s32.totalorder %s22, 0
    %p217 = por %p215, %p216
    %s219 = sadd.s32 %s218, 1
    %p222 = scmp.eq.s32.totalorder %s16, 1
    %p223 = scmp.ne.s32.totalorder %s218, %s220
    %p224 = scmp.eq.s32.totalorder %s16, 0
    %p225 = por %p223, %p224
    %p226 = scmp.ne.s32.totalorder %s218, %s220
    %p227 = scmp.eq.s32.totalorder %s21, 1
    %p228 = por %p226, %p227
    %p229 = scmp.ne.s32.totalorder %s220, %s221
    %p230 = scmp.eq.s32.totalorder %s21, 0
    %p231 = por %p229, %p230
    %p232 = scmp.ne.s32.totalorder %s220, %s221
    %p233 = scmp.eq.s32.totalorder %s22, 1
    %p234 = por %p232, %p233
    %p236 = scmp.ne.s32.totalorder %s221, %s235
    %p237 = scmp.eq.s32.totalorder %s22, 0
    %p238 = por %p236, %p237
    %s239 = ssub.s32 %s16, %s23
    %p240 = scmp.eq.s32.totalorder %s239, 0
    %s242 = sadd.s32 %s241, 1
    %s243 = scalar_select %p240, %s241, %s242
    %p246 = pneg %p240
    %p247 = scmp.eq.s32.totalorder %s16, 1
    %p248 = por %p246, %p247
    %p249 = scmp.ne.s32.totalorder %s241, %s244
    %p250 = scmp.eq.s32.totalorder %s16, 0
    %p251 = por %p249, %p250
    %p252 = scmp.ne.s32.totalorder %s241, %s244
    %p253 = scmp.eq.s32.totalorder %s21, 1
    %p254 = por %p252, %p253
    %p255 = scmp.ne.s32.totalorder %s244, %s245
    %p256 = scmp.eq.s32.totalorder %s21, 0
    %p257 = por %p255, %p256
    %p258 = scmp.ne.s32.totalorder %s244, %s245
    %p259 = scmp.eq.s32.totalorder %s22, 1
    %p260 = por %p258, %p259
    %p262 = scmp.ne.s32.totalorder %s245, %s261
    %p263 = scmp.eq.s32.totalorder %s22, 0
    %p264 = por %p262, %p263
    %p265 = scmp.le.s32.totalorder 1, %s16
    %p266 = scmp.lt.s32.totalorder %s16, 3
    %p267 = pnand %p265, %p266
    %p268 = pneg %p267
    // Predicated region
    $region9: #{segmentation_network_stl_forward.1} parent=5 // pred_check
      _
    $region10: #{segmentation_network_stl_forward.1} parent=5 // pred_check_branch
      %270 = sbr.rel (%p267) target = $region12
    $region11: #{segmentation_network_stl_forward.1} parent=5 // pred_region
      %s271 = ssub.s32 %s16, 1
      // Predicated region
      $region13: #{segmentation_network_stl_forward.1} parent=11 // pred_check
        %p272 = pneg %p63
      $region14: #{segmentation_network_stl_forward.1} parent=11 // pred_check_branch
        %274 = sbr.rel (%p272) target = $region16
      $region15: #{segmentation_network_stl_forward.1} parent=11 // pred_region
        _
      $region16: #{segmentation_network_stl_forward.1} parent=11 // pred_fallthru
        _
      // Predicated region
      $region17: #{segmentation_network_stl_forward.1} parent=11 // pred_check
        %p275 = pneg %p84
      $region18: #{segmentation_network_stl_forward.1} parent=11 // pred_check_branch
        %277 = sbr.rel (%p275) target = $region20
      $region19: #{segmentation_network_stl_forward.1} parent=11 // pred_region
        _
      $region20: #{segmentation_network_stl_forward.1} parent=11 // pred_fallthru
        _
      // Predicated region
      $region21: #{segmentation_network_stl_forward.1} parent=11 // pred_check
        %p278 = pneg %p105
      $region22: #{segmentation_network_stl_forward.1} parent=11 // pred_check_branch
        %280 = sbr.rel (%p278) target = $region24
      $region23: #{segmentation_network_stl_forward.1} parent=11 // pred_region
        _
      $region24: #{segmentation_network_stl_forward.1} parent=11 // pred_fallthru
        _
      // Predicated region
      $region25: #{segmentation_network_stl_forward.1} parent=11 // pred_check
        %p281 = pneg %p126
      $region26: #{segmentation_network_stl_forward.1} parent=11 // pred_check_branch
        %283 = sbr.rel (%p281) target = $region28
      $region27: #{segmentation_network_stl_forward.1} parent=11 // pred_region
        _
      $region28: #{segmentation_network_stl_forward.1} parent=11 // pred_fallthru
        _
      // Predicated region
      $region29: #{segmentation_network_stl_forward.1} parent=11 // pred_check
        %p284 = pneg %p147
      $region30: #{segmentation_network_stl_forward.1} parent=11 // pred_check_branch
        %286 = sbr.rel (%p284) target = $region32
      $region31: #{segmentation_network_stl_forward.1} parent=11 // pred_region
        _
      $region32: #{segmentation_network_stl_forward.1} parent=11 // pred_fallthru
        _
      // Predicated region
      $region33: #{segmentation_network_stl_forward.1} parent=11 // pred_check
        %p287 = pneg %p168
      $region34: #{segmentation_network_stl_forward.1} parent=11 // pred_check_branch
        %289 = sbr.rel (%p287) target = $region36
      $region35: #{segmentation_network_stl_forward.1} parent=11 // pred_region
        _
      $region36: #{segmentation_network_stl_forward.1} parent=11 // pred_fallthru
        _
      // Predicated region
      $region37: #{segmentation_network_stl_forward.1} parent=11 // pred_check
        %p290 = pneg %p189
      $region38: #{segmentation_network_stl_forward.1} parent=11 // pred_check_branch
        %292 = sbr.rel (%p290) target = $region40
      $region39: #{segmentation_network_stl_forward.1} parent=11 // pred_region
        _
      $region40: #{segmentation_network_stl_forward.1} parent=11 // pred_fallthru
        _
      // Predicated region
      $region41: #{segmentation_network_stl_forward.1} parent=11 // pred_check
        %p293 = pneg %p210
      $region42: #{segmentation_network_stl_forward.1} parent=11 // pred_check_branch
        %295 = sbr.rel (%p293) target = $region44
      $region43: #{segmentation_network_stl_forward.1} parent=11 // pred_region
        _
      $region44: #{segmentation_network_stl_forward.1} parent=11 // pred_fallthru
        _
      // Predicated region
      $region45: #{segmentation_network_stl_forward.1} parent=11 // pred_check
        %p296 = pneg %p231
      $region46: #{segmentation_network_stl_forward.1} parent=11 // pred_check_branch
        %298 = sbr.rel (%p296) target = $region48
      $region47: #{segmentation_network_stl_forward.1} parent=11 // pred_region
        _
      $region48: #{segmentation_network_stl_forward.1} parent=11 // pred_fallthru
        _
    $region12: #{segmentation_network_stl_forward.1} parent=5 // pred_fallthru
      _
    %p299 = scmp.lt.s32.totalorder %s16, 2
    // Predicated region
    $region49: #{segmentation_network_stl_forward.1} parent=5 // pred_check
      %p300 = pneg %p299
    $region50: #{segmentation_network_stl_forward.1} parent=5 // pred_check_branch
      %302 = sbr.rel (%p300) target = $region52
    $region51: #{segmentation_network_stl_forward.1} parent=5 // pred_region
      // Predicated region
      $region53: #{segmentation_network_stl_forward.1} parent=51 // pred_check
        %p303 = pneg %p36
      $region54: #{segmentation_network_stl_forward.1} parent=51 // pred_check_branch
        %305 = sbr.rel (%p303) target = $region56
      $region55: #{segmentation_network_stl_forward.1} parent=51 // pred_region
        %p306 = scmp.lt.s32.totalorder %s16, 1
        %s307 = scalar_select %p306, %s16, 1
        %s308 = smul.addr %s307, 42
        %s309 = smul.addr %s308, 8
        %s310 = scalar_lea.vmem %s0, %s309
      $region56: #{segmentation_network_stl_forward.1} parent=51 // pred_fallthru
        _
    $region52: #{segmentation_network_stl_forward.1} parent=5 // pred_fallthru
      _
    %p311 = scmp.le.s32.totalorder 1, %s16
    %p312 = scmp.lt.s32.totalorder %s16, 3
    %p313 = pnand %p311, %p312
    %p314 = pneg %p313
    // Predicated region
    $region57: #{segmentation_network_stl_forward.1} parent=5 // pred_check
      _
    $region58: #{segmentation_network_stl_forward.1} parent=5 // pred_check_branch
      %316 = sbr.rel (%p313) target = $region60
    $region59: #{segmentation_network_stl_forward.1} parent=5 // pred_region
      %s317 = ssub.s32 %s16, 1
      %p318 = scmp.lt.s32.totalorder %s21, 1
      %s319 = scalar_select %p318, %s21, 1
      %s320 = smul.addr %s319, 42
      %s321 = smul.addr %s320, 8
      %s322 = scalar_lea.vmem %s0, %s321
      %p323 = pneg %p42
      %p324 = pneg %p39
      %p325 = pneg %p63
      %p326 = pneg %p60
      %p327 = pneg %p84
      %p328 = pneg %p81
      %p329 = pneg %p105
      %p330 = pneg %p102
      %p331 = pneg %p126
      %p332 = pneg %p123
      %p333 = pneg %p147
      %p334 = pneg %p144
      %p335 = pneg %p168
      %p336 = pneg %p165
      %p337 = pneg %p189
      %p338 = pneg %p186
      %p339 = pneg %p210
      %p340 = pneg %p207
      %p341 = pneg %p231
      %p342 = pneg %p228
      %p343 = pneg %p257
      %p344 = pneg %p254
      %p345 = scmp.lt.s32.totalorder %s21, 1
      %s346 = scalar_select %p345, %s21, 1
      %s347 = smul.addr %s346, 3
      %s348 = smul.addr %s347, 8
      %s349 = scalar_lea.vmem %s10, %s348
      %p350 = scmp.lt.s32.totalorder %s21, 1
      %s351 = scalar_select %p350, %s21, 1
      %s352 = smul.addr %s351, 42
      %s353 = smul.addr %s352, 8
      %s354 = scalar_lea.vmem %s0, %s353
      %p355 = scmp.lt.s32.totalorder %s21, 1
      %s356 = scalar_select %p355, %s21, 1
      %s357 = smul.addr %s356, 3
      %s358 = smul.addr %s357, 8
      %s359 = scalar_lea.vmem %s10, %s358
      %v361 = vld [vmem:[%s1] sm:$0xff]
      %v362 = vld [vmem:[%s1 + $0x8] sm:$0xff]
      %v363 = vld [vmem:[%s1 + $0x10] sm:$0xff]
      %v364 = vld [vmem:[%s1 + $0x18] sm:$0xff]
      %v365 = vld [vmem:[%s1 + $0x20] sm:$0xff]
      %v366 = vld [vmem:[%s1 + $0x28] sm:$0xff]
      %v367 = vld [vmem:[%s1 + $0x30] sm:$0xff]
      %v368 = vld [vmem:[%s1 + $0x38] sm:$0xff]
      %v369 = vld [vmem:[%s1 + $0x40] sm:$0xff]
      %v370 = vld [vmem:[%s1 + $0x48] sm:$0xff]
      %v371 = vld [vmem:[%s1 + $0x50] sm:$0xff]
      %v372 = vld [vmem:[%s1 + $0x58] sm:$0xff]
      %v373 = vld [vmem:[%s1 + $0x60] sm:$0xff]
      %v374 = vld [vmem:[%s1 + $0x68] sm:$0xff]
      %v375 = vld [vmem:[%s1 + $0x70] sm:$0xff]
      %v376 = vld [vmem:[%s1 + $0x78] sm:$0xff]
      %v377 = vld [vmem:[%s1 + $0x80] sm:$0xff]
      %v378 = vld [vmem:[%s1 + $0x88] sm:$0xff]
      %v379 = vld [vmem:[%s1 + $0x90] sm:$0xff]
      %v380 = vld [vmem:[%s1 + $0x98] sm:$0xff]
      %v381 = vld [vmem:[%s1 + $0xa0] sm:$0xff]
      %v382 = vld [vmem:[%s1 + $0xa8] sm:$0xff]
      %v383 = vld [vmem:[%s1 + $0xb0] sm:$0xff]
      %v384 = vld [vmem:[%s1 + $0xb8] sm:$0xff]
      %v385 = vld [vmem:[%s1 + $0xc0] sm:$0xff]
      %v386 = vld [vmem:[%s1 + $0xc8] sm:$0xff]
      %v387 = vld [vmem:[%s1 + $0xd0] sm:$0xff]
      %v388 = vld [vmem:[%s1 + $0xd8] sm:$0xff]
      %v389 = vld [vmem:[%s1 + $0xe0] sm:$0xff]
      %v390 = vld [vmem:[%s1 + $0xe8] sm:$0xff]
      %v391 = vld [vmem:[%s1 + $0xf0] sm:$0xff]
      %v392 = vld [vmem:[%s1 + $0xf8] sm:$0xff]
      %v393 = vld [vmem:[%s1 + $0x100] sm:$0xff]
      %v394 = vld [vmem:[%s1 + $0x108] sm:$0xff]
      %v395 = vld [vmem:[%s1 + $0x110] sm:$0xff]
      %v396 = vld [vmem:[%s1 + $0x118] sm:$0xff]
      %v397 = vld [vmem:[%s354 + $0x5] sm:$0xff]
      %v398 = vld [vmem:[%s354 + $0xd] sm:$0xff]
      %v399 = vld [vmem:[%s354 + $0x15] sm:$0xff]
      %v400 = vld [vmem:[%s354 + $0x1d] sm:$0xff]
      %v401 = vld [vmem:[%s354 + $0x25] sm:$0xff]
      %v402 = vld [vmem:[%s354 + $0x2d] sm:$0xff]
      %v403 = vld [vmem:[%s354 + $0x35] sm:$0xff]
      %v404 = vld [vmem:[%s354 + $0x3d] sm:$0xff]
      %v405 = vld [vmem:[%s354 + $0x45] sm:$0xff]
      %v406 = vld [vmem:[%s354 + $0x4d] sm:$0xff]
      %v407 = vld [vmem:[%s354 + $0x55] sm:$0xff]
      %v408 = vld [vmem:[%s354 + $0x5d] sm:$0xff]
      %v409 = vld [vmem:[%s354 + $0x65] sm:$0xff]
      %v410 = vld [vmem:[%s354 + $0x6d] sm:$0xff]
      %v411 = vld [vmem:[%s354 + $0x75] sm:$0xff]
      %v412 = vld [vmem:[%s354 + $0x7d] sm:$0xff]
      %v413 = vld [vmem:[%s354 + $0x85] sm:$0xff]
      %v414 = vld [vmem:[%s354 + $0x8d] sm:$0xff]
      %v415 = vld [vmem:[%s354 + $0x95] sm:$0xff]
      %v416 = vld [vmem:[%s354 + $0x9d] sm:$0xff]
      %v417 = vld [vmem:[%s354 + $0xa5] sm:$0xff]
      %v418 = vld [vmem:[%s354 + $0xad] sm:$0xff]
      %v419 = vld [vmem:[%s354 + $0xb5] sm:$0xff]
      %v420 = vld [vmem:[%s354 + $0xbd] sm:$0xff]
      %v421 = vld [vmem:[%s354 + $0xc5] sm:$0xff]
      %v422 = vld [vmem:[%s354 + $0xcd] sm:$0xff]
      %v423 = vld [vmem:[%s354 + $0xd5] sm:$0xff]
      %v424 = vld [vmem:[%s354 + $0xdd] sm:$0xff]
      %v425 = vld [vmem:[%s354 + $0xe5] sm:$0xff]
      %v426 = vld [vmem:[%s354 + $0xed] sm:$0xff]
      %v427 = vld [vmem:[%s354 + $0xf5] sm:$0xff]
      %v428 = vld [vmem:[%s354 + $0xfd] sm:$0xff]
      %v429 = vld [vmem:[%s354 + $0x105] sm:$0xff]
      %v430 = vld [vmem:[%s354 + $0x10d] sm:$0xff]
      %v431 = vld [vmem:[%s354 + $0x115] sm:$0xff]
      %v432 = vld [vmem:[%s354 + $0x11d] sm:$0xff]
      %v433 = vld [vmem:[%s354 + $0x6] sm:$0xff]
      %v434 = vld [vmem:[%s354 + $0xe] sm:$0xff]
      %v435 = vld [vmem:[%s354 + $0x16] sm:$0xff]
      %v436 = vld [vmem:[%s354 + $0x1e] sm:$0xff]
      %v437 = vld [vmem:[%s354 + $0x26] sm:$0xff]
      %v438 = vld [vmem:[%s354 + $0x2e] sm:$0xff]
      %v439 = vld [vmem:[%s354 + $0x36] sm:$0xff]
      %v440 = vld [vmem:[%s354 + $0x3e] sm:$0xff]
      %v441 = vld [vmem:[%s354 + $0x46] sm:$0xff]
      %v442 = vld [vmem:[%s354 + $0x4e] sm:$0xff]
      %v443 = vld [vmem:[%s354 + $0x56] sm:$0xff]
      %v444 = vld [vmem:[%s354 + $0x5e] sm:$0xff]
      %v445 = vld [vmem:[%s354 + $0x66] sm:$0xff]
      %v446 = vld [vmem:[%s354 + $0x6e] sm:$0xff]
      %v447 = vld [vmem:[%s354 + $0x76] sm:$0xff]
      %v448 = vld [vmem:[%s354 + $0x7e] sm:$0xff]
      %v449 = vld [vmem:[%s354 + $0x86] sm:$0xff]
      %v450 = vld [vmem:[%s354 + $0x8e] sm:$0xff]
      %v451 = vld [vmem:[%s354 + $0x96] sm:$0xff]
      %v452 = vld [vmem:[%s354 + $0x9e] sm:$0xff]
      %v453 = vld [vmem:[%s354 + $0xa6] sm:$0xff]
      %v454 = vld [vmem:[%s354 + $0xae] sm:$0xff]
      %v455 = vld [vmem:[%s354 + $0xb6] sm:$0xff]
      %v456 = vld [vmem:[%s354 + $0xbe] sm:$0xff]
      %v457 = vld [vmem:[%s354 + $0xc6] sm:$0xff]
      %v458 = vld [vmem:[%s354 + $0xce] sm:$0xff]
      %v459 = vld [vmem:[%s354 + $0xd6] sm:$0xff]
      %v460 = vld [vmem:[%s354 + $0xde] sm:$0xff]
      %v461 = vld [vmem:[%s354 + $0xe6] sm:$0xff]
      %v462 = vld [vmem:[%s354 + $0xee] sm:$0xff]
      %v463 = vld [vmem:[%s354 + $0xf6] sm:$0xff]
      %v464 = vld [vmem:[%s354 + $0xfe] sm:$0xff]
      %v465 = vld [vmem:[%s354 + $0x106] sm:$0xff]
      %v466 = vld [vmem:[%s354 + $0x10e] sm:$0xff]
      %v467 = vld [vmem:[%s354 + $0x116] sm:$0xff]
      %v468 = vld [vmem:[%s354 + $0x11e] sm:$0xff]
      %v469 = vld [vmem:[%s354 + $0x7] sm:$0xff]
      %v470 = vld [vmem:[%s354 + $0xf] sm:$0xff]
      %v471 = vld [vmem:[%s354 + $0x17] sm:$0xff]
      %v472 = vld [vmem:[%s354 + $0x1f] sm:$0xff]
      %v473 = vld [vmem:[%s354 + $0x27] sm:$0xff]
      %v474 = vld [vmem:[%s354 + $0x2f] sm:$0xff]
      %v475 = vld [vmem:[%s354 + $0x37] sm:$0xff]
      %v476 = vld [vmem:[%s354 + $0x3f] sm:$0xff]
      %v477 = vld [vmem:[%s354 + $0x47] sm:$0xff]
      %v478 = vld [vmem:[%s354 + $0x4f] sm:$0xff]
      %v479 = vld [vmem:[%s354 + $0x57] sm:$0xff]
      %v480 = vld [vmem:[%s354 + $0x5f] sm:$0xff]
      %v481 = vld [vmem:[%s354 + $0x67] sm:$0xff]
      %v482 = vld [vmem:[%s354 + $0x6f] sm:$0xff]
      %v483 = vld [vmem:[%s354 + $0x77] sm:$0xff]
      %v484 = vld [vmem:[%s354 + $0x7f] sm:$0xff]
      %v485 = vld [vmem:[%s354 + $0x87] sm:$0xff]
      %v486 = vld [vmem:[%s354 + $0x8f] sm:$0xff]
      %v487 = vld [vmem:[%s354 + $0x97] sm:$0xff]
      %v488 = vld [vmem:[%s354 + $0x9f] sm:$0xff]
      %v489 = vld [vmem:[%s354 + $0xa7] sm:$0xff]
      %v490 = vld [vmem:[%s354 + $0xaf] sm:$0xff]
      %v491 = vld [vmem:[%s354 + $0xb7] sm:$0xff]
      %v492 = vld [vmem:[%s354 + $0xbf] sm:$0xff]
      %v493 = vld [vmem:[%s354 + $0xc7] sm:$0xff]
      %v494 = vld [vmem:[%s354 + $0xcf] sm:$0xff]
      %v495 = vld [vmem:[%s354 + $0xd7] sm:$0xff]
      %v496 = vld [vmem:[%s354 + $0xdf] sm:$0xff]
      %v497 = vld [vmem:[%s354 + $0xe7] sm:$0xff]
      %v498 = vld [vmem:[%s354 + $0xef] sm:$0xff]
      %v499 = vld [vmem:[%s354 + $0xf7] sm:$0xff]
      %v500 = vld [vmem:[%s354 + $0xff] sm:$0xff]
      %v501 = vld [vmem:[%s354 + $0x107] sm:$0xff]
      %v502 = vld [vmem:[%s354 + $0x10f] sm:$0xff]
      %v503 = vld [vmem:[%s354 + $0x117] sm:$0xff]
      %v504 = vld [vmem:[%s354 + $0x11f] sm:$0xff]
      %v505 = vld [vmem:[%s354 + $0x127] sm:$0xff]
      %v506 = vld [vmem:[%s354 + $0x12f] sm:$0xff]
      %v507 = vld [vmem:[%s354 + $0x18] sm:$0xff]
      %v508 = vld [vmem:[%s354 + $0x20] sm:$0xff]
      %v509 = vld [vmem:[%s354 + $0x28] sm:$0xff]
      %v510 = vld [vmem:[%s354 + $0x30] sm:$0xff]
      %v511 = vld [vmem:[%s354 + $0x38] sm:$0xff]
      %v512 = vld [vmem:[%s354 + $0x40] sm:$0xff]
      %v513 = vld [vmem:[%s354 + $0x48] sm:$0xff]
      %v514 = vld [vmem:[%s354 + $0x50] sm:$0xff]
      %v515 = vld [vmem:[%s354 + $0x58] sm:$0xff]
      %v516 = vld [vmem:[%s354 + $0x60] sm:$0xff]
      %v517 = vld [vmem:[%s354 + $0x68] sm:$0xff]
      %v518 = vld [vmem:[%s354 + $0x70] sm:$0xff]
      %v519 = vld [vmem:[%s354 + $0x78] sm:$0xff]
      %v520 = vld [vmem:[%s354 + $0x80] sm:$0xff]
      %v521 = vld [vmem:[%s354 + $0x88] sm:$0xff]
      %v522 = vld [vmem:[%s354 + $0x90] sm:$0xff]
      %v523 = vld [vmem:[%s354 + $0x98] sm:$0xff]
      %v524 = vld [vmem:[%s354 + $0xa0] sm:$0xff]
      %v525 = vld [vmem:[%s354 + $0xa8] sm:$0xff]
      %v526 = vld [vmem:[%s354 + $0xb0] sm:$0xff]
      %v527 = vld [vmem:[%s354 + $0xb8] sm:$0xff]
      %v528 = vld [vmem:[%s354 + $0xc0] sm:$0xff]
      %v529 = vld [vmem:[%s354 + $0xc8] sm:$0xff]
      %v530 = vld [vmem:[%s354 + $0xd0] sm:$0xff]
      %v531 = vld [vmem:[%s354 + $0xd8] sm:$0xff]
      %v532 = vld [vmem:[%s354 + $0xe0] sm:$0xff]
      %v533 = vld [vmem:[%s354 + $0xe8] sm:$0xff]
      %v534 = vld [vmem:[%s354 + $0xf0] sm:$0xff]
      %v535 = vld [vmem:[%s354 + $0xf8] sm:$0xff]
      %v536 = vld [vmem:[%s354 + $0x100] sm:$0xff]
      %v537 = vld [vmem:[%s354 + $0x108] sm:$0xff]
      %v538 = vld [vmem:[%s354 + $0x110] sm:$0xff]
      %v539 = vld [vmem:[%s354 + $0x118] sm:$0xff]
      %v540 = vld [vmem:[%s354 + $0x120] sm:$0xff]
      %v541 = vld [vmem:[%s354 + $0x128] sm:$0xff]
      %v542 = vld [vmem:[%s354 + $0x130] sm:$0xff]
      %v543 = vld [vmem:[%s354 + $0x19] sm:$0xff]
      %v544 = vld [vmem:[%s354 + $0x21] sm:$0xff]
      %v545 = vld [vmem:[%s354 + $0x29] sm:$0xff]
      %v546 = vld [vmem:[%s354 + $0x31] sm:$0xff]
      %v547 = vld [vmem:[%s354 + $0x39] sm:$0xff]
      %v548 = vld [vmem:[%s354 + $0x41] sm:$0xff]
      %v549 = vld [vmem:[%s354 + $0x49] sm:$0xff]
      %v550 = vld [vmem:[%s354 + $0x51] sm:$0xff]
      %v551 = vld [vmem:[%s354 + $0x59] sm:$0xff]
      %v552 = vld [vmem:[%s354 + $0x61] sm:$0xff]
      %v553 = vld [vmem:[%s354 + $0x69] sm:$0xff]
      %v554 = vld [vmem:[%s354 + $0x71] sm:$0xff]
      %v555 = vld [vmem:[%s354 + $0x79] sm:$0xff]
      %v556 = vld [vmem:[%s354 + $0x81] sm:$0xff]
      %v557 = vld [vmem:[%s354 + $0x89] sm:$0xff]
      %v558 = vld [vmem:[%s354 + $0x91] sm:$0xff]
      %v559 = vld [vmem:[%s354 + $0x99] sm:$0xff]
      %v560 = vld [vmem:[%s354 + $0xa1] sm:$0xff]
      %v561 = vld [vmem:[%s354 + $0xa9] sm:$0xff]
      %v562 = vld [vmem:[%s354 + $0xb1] sm:$0xff]
      %v563 = vld [vmem:[%s354 + $0xb9] sm:$0xff]
      %v564 = vld [vmem:[%s354 + $0xc1] sm:$0xff]
      %v565 = vld [vmem:[%s354 + $0xc9] sm:$0xff]
      %v566 = vld [vmem:[%s354 + $0xd1] sm:$0xff]
      %v567 = vld [vmem:[%s354 + $0xd9] sm:$0xff]
      %v568 = vld [vmem:[%s354 + $0xe1] sm:$0xff]
      %v569 = vld [vmem:[%s354 + $0xe9] sm:$0xff]
      %v570 = vld [vmem:[%s354 + $0xf1] sm:$0xff]
      %v571 = vld [vmem:[%s354 + $0xf9] sm:$0xff]
      %v572 = vld [vmem:[%s354 + $0x101] sm:$0xff]
      %v573 = vld [vmem:[%s354 + $0x109] sm:$0xff]
      %v574 = vld [vmem:[%s354 + $0x111] sm:$0xff]
      %v575 = vld [vmem:[%s354 + $0x119] sm:$0xff]
      %v576 = vld [vmem:[%s354 + $0x121] sm:$0xff]
      %v577 = vld [vmem:[%s354 + $0x129] sm:$0xff]
      %v578 = vld [vmem:[%s354 + $0x131] sm:$0xff]
      %v579 = vld [vmem:[%s354 + $0x139] sm:$0xff]
      %v580 = vld [vmem:[%s354 + $0x141] sm:$0xff]
      %v581 = vld [vmem:[%s354 + $0x2a] sm:$0xff]
      %v582 = vld [vmem:[%s354 + $0x32] sm:$0xff]
      %v583 = vld [vmem:[%s354 + $0x3a] sm:$0xff]
      %v584 = vld [vmem:[%s354 + $0x42] sm:$0xff]
      %v585 = vld [vmem:[%s354 + $0x4a] sm:$0xff]
      %v586 = vld [vmem:[%s354 + $0x52] sm:$0xff]
      %v587 = vld [vmem:[%s354 + $0x5a] sm:$0xff]
      %v588 = vld [vmem:[%s354 + $0x62] sm:$0xff]
      %v589 = vld [vmem:[%s354 + $0x6a] sm:$0xff]
      %v590 = vld [vmem:[%s354 + $0x72] sm:$0xff]
      %v591 = vld [vmem:[%s354 + $0x7a] sm:$0xff]
      %v592 = vld [vmem:[%s354 + $0x82] sm:$0xff]
      %v593 = vld [vmem:[%s354 + $0x8a] sm:$0xff]
      %v594 = vld [vmem:[%s354 + $0x92] sm:$0xff]
      %v595 = vld [vmem:[%s354 + $0x9a] sm:$0xff]
      %v596 = vld [vmem:[%s354 + $0xa2] sm:$0xff]
      %v597 = vld [vmem:[%s354 + $0xaa] sm:$0xff]
      %v598 = vld [vmem:[%s354 + $0xb2] sm:$0xff]
      %v599 = vld [vmem:[%s354 + $0xba] sm:$0xff]
      %v600 = vld [vmem:[%s354 + $0xc2] sm:$0xff]
      %v601 = vld [vmem:[%s354 + $0xca] sm:$0xff]
      %v602 = vld [vmem:[%s354 + $0xd2] sm:$0xff]
      %v603 = vld [vmem:[%s354 + $0xda] sm:$0xff]
      %v604 = vld [vmem:[%s354 + $0xe2] sm:$0xff]
      %v605 = vld [vmem:[%s354 + $0xea] sm:$0xff]
      %v606 = vld [vmem:[%s354 + $0xf2] sm:$0xff]
      %v607 = vld [vmem:[%s354 + $0xfa] sm:$0xff]
      %v608 = vld [vmem:[%s354 + $0x102] sm:$0xff]
      %v609 = vld [vmem:[%s354 + $0x10a] sm:$0xff]
      %v610 = vld [vmem:[%s354 + $0x112] sm:$0xff]
      %v611 = vld [vmem:[%s354 + $0x11a] sm:$0xff]
      %v612 = vld [vmem:[%s354 + $0x122] sm:$0xff]
      %v613 = vld [vmem:[%s354 + $0x12a] sm:$0xff]
      %v614 = vld [vmem:[%s354 + $0x132] sm:$0xff]
      %v615 = vld [vmem:[%s354 + $0x13a] sm:$0xff]
      %v616 = vld [vmem:[%s354 + $0x142] sm:$0xff]
      %v617 = vld [vmem:[%s354 + $0x2b] sm:$0xff]
      %v618 = vld [vmem:[%s354 + $0x33] sm:$0xff]
      %v619 = vld [vmem:[%s354 + $0x3b] sm:$0xff]
      %v620 = vld [vmem:[%s354 + $0x43] sm:$0xff]
      %v621 = vld [vmem:[%s354 + $0x4b] sm:$0xff]
      %v622 = vld [vmem:[%s354 + $0x53] sm:$0xff]
      %v623 = vld [vmem:[%s354 + $0x5b] sm:$0xff]
      %v624 = vld [vmem:[%s354 + $0x63] sm:$0xff]
      %v625 = vld [vmem:[%s354 + $0x6b] sm:$0xff]
      %v626 = vld [vmem:[%s354 + $0x73] sm:$0xff]
      %v627 = vld [vmem:[%s354 + $0x7b] sm:$0xff]
      %v628 = vld [vmem:[%s354 + $0x83] sm:$0xff]
      %v629 = vld [vmem:[%s354 + $0x8b] sm:$0xff]
      %v630 = vld [vmem:[%s354 + $0x93] sm:$0xff]
      %v631 = vld [vmem:[%s354 + $0x9b] sm:$0xff]
      %v632 = vld [vmem:[%s354 + $0xa3] sm:$0xff]
      %v633 = vld [vmem:[%s354 + $0xab] sm:$0xff]
      %v634 = vld [vmem:[%s354 + $0xb3] sm:$0xff]
      %v635 = vld [vmem:[%s354 + $0xbb] sm:$0xff]
      %v636 = vld [vmem:[%s354 + $0xc3] sm:$0xff]
      %v637 = vld [vmem:[%s354 + $0xcb] sm:$0xff]
      %v638 = vld [vmem:[%s354 + $0xd3] sm:$0xff]
      %v639 = vld [vmem:[%s354 + $0xdb] sm:$0xff]
      %v640 = vld [vmem:[%s354 + $0xe3] sm:$0xff]
      %v641 = vld [vmem:[%s354 + $0xeb] sm:$0xff]
      %v642 = vld [vmem:[%s354 + $0xf3] sm:$0xff]
      %v643 = vld [vmem:[%s354 + $0xfb] sm:$0xff]
      %v644 = vld [vmem:[%s354 + $0x103] sm:$0xff]
      %v645 = vld [vmem:[%s354 + $0x10b] sm:$0xff]
      %v646 = vld [vmem:[%s354 + $0x113] sm:$0xff]
      %v647 = vld [vmem:[%s354 + $0x11b] sm:$0xff]
      %v648 = vld [vmem:[%s354 + $0x123] sm:$0xff]
      %v649 = vld [vmem:[%s354 + $0x12b] sm:$0xff]
      %v650 = vld [vmem:[%s354 + $0x133] sm:$0xff]
      %v651 = vld [vmem:[%s354 + $0x13b] sm:$0xff]
      %v652 = vld [vmem:[%s354 + $0x143] sm:$0xff]
      %689 = vrot.lane.b32.xlu0 %v433, 8
      %v690 = vpop.permute.xlu0 %689
      %691 = vrot.lane.b32.xlu0 %v434, 8
      %v692 = vpop.permute.xlu0 %691
      %693 = vrot.lane.b32.xlu0 %v435, 8
      %v694 = vpop.permute.xlu0 %693
      %695 = vrot.lane.b32.xlu0 %v436, 8
      %v696 = vpop.permute.xlu0 %695
      %697 = vrot.lane.b32.xlu0 %v437, 8
      %v698 = vpop.permute.xlu0 %697
      %699 = vrot.lane.b32.xlu0 %v438, 8
      %v700 = vpop.permute.xlu0 %699
      %701 = vrot.lane.b32.xlu0 %v439, 8
      %v702 = vpop.permute.xlu0 %701
      %703 = vrot.lane.b32.xlu0 %v440, 8
      %v704 = vpop.permute.xlu0 %703
      %705 = vrot.lane.b32.xlu0 %v441, 8
      %v706 = vpop.permute.xlu0 %705
      %707 = vrot.lane.b32.xlu0 %v442, 8
      %v708 = vpop.permute.xlu0 %707
      %709 = vrot.lane.b32.xlu0 %v443, 8
      %v710 = vpop.permute.xlu0 %709
      %711 = vrot.lane.b32.xlu0 %v444, 8
      %v712 = vpop.permute.xlu0 %711
      %713 = vrot.lane.b32.xlu0 %v445, 8
      %v714 = vpop.permute.xlu0 %713
      %715 = vrot.lane.b32.xlu0 %v446, 8
      %v716 = vpop.permute.xlu0 %715
      %717 = vrot.lane.b32.xlu0 %v447, 8
      %v718 = vpop.permute.xlu0 %717
      %719 = vrot.lane.b32.xlu0 %v448, 8
      %v720 = vpop.permute.xlu0 %719
      %721 = vrot.lane.b32.xlu0 %v449, 8
      %v722 = vpop.permute.xlu0 %721
      %723 = vrot.lane.b32.xlu0 %v450, 8
      %v724 = vpop.permute.xlu0 %723
      %725 = vrot.lane.b32.xlu0 %v451, 8
      %v726 = vpop.permute.xlu0 %725
      %727 = vrot.lane.b32.xlu0 %v452, 8
      %v728 = vpop.permute.xlu0 %727
      %729 = vrot.lane.b32.xlu0 %v453, 8
      %v730 = vpop.permute.xlu0 %729
      %731 = vrot.lane.b32.xlu0 %v454, 8
      %v732 = vpop.permute.xlu0 %731
      %733 = vrot.lane.b32.xlu0 %v455, 8
      %v734 = vpop.permute.xlu0 %733
      %735 = vrot.lane.b32.xlu0 %v456, 8
      %v736 = vpop.permute.xlu0 %735
      %737 = vrot.lane.b32.xlu0 %v457, 8
      %v738 = vpop.permute.xlu0 %737
      %739 = vrot.lane.b32.xlu0 %v458, 8
      %v740 = vpop.permute.xlu0 %739
      %741 = vrot.lane.b32.xlu0 %v459, 8
      %v742 = vpop.permute.xlu0 %741
      %743 = vrot.lane.b32.xlu0 %v460, 8
      %v744 = vpop.permute.xlu0 %743
      %745 = vrot.lane.b32.xlu0 %v461, 8
      %v746 = vpop.permute.xlu0 %745
      %747 = vrot.lane.b32.xlu0 %v462, 8
      %v748 = vpop.permute.xlu0 %747
      %749 = vrot.lane.b32.xlu0 %v463, 8
      %v750 = vpop.permute.xlu0 %749
      %751 = vrot.lane.b32.xlu0 %v464, 8
      %v752 = vpop.permute.xlu0 %751
      %753 = vrot.lane.b32.xlu0 %v465, 8
      %v754 = vpop.permute.xlu0 %753
      %755 = vrot.lane.b32.xlu0 %v466, 8
      %v756 = vpop.permute.xlu0 %755
      %757 = vrot.lane.b32.xlu0 %v467, 8
      %v758 = vpop.permute.xlu0 %757
      %759 = vrot.lane.b32.xlu0 %v468, 8
      %v760 = vpop.permute.xlu0 %759
      %833 = vrot.lane.b32.xlu0 %v469, 16
      %v834 = vpop.permute.xlu0 %833
      %835 = vrot.lane.b32.xlu0 %v470, 16
      %v836 = vpop.permute.xlu0 %835
      %837 = vrot.lane.b32.xlu0 %v471, 16
      %v838 = vpop.permute.xlu0 %837
      %839 = vrot.lane.b32.xlu0 %v472, 16
      %v840 = vpop.permute.xlu0 %839
      %841 = vrot.lane.b32.xlu0 %v473, 16
      %v842 = vpop.permute.xlu0 %841
      %843 = vrot.lane.b32.xlu0 %v474, 16
      %v844 = vpop.permute.xlu0 %843
      %845 = vrot.lane.b32.xlu0 %v475, 16
      %v846 = vpop.permute.xlu0 %845
      %847 = vrot.lane.b32.xlu0 %v476, 16
      %v848 = vpop.permute.xlu0 %847
      %849 = vrot.lane.b32.xlu0 %v477, 16
      %v850 = vpop.permute.xlu0 %849
      %851 = vrot.lane.b32.xlu0 %v478, 16
      %v852 = vpop.permute.xlu0 %851
      %853 = vrot.lane.b32.xlu0 %v479, 16
      %v854 = vpop.permute.xlu0 %853
      %855 = vrot.lane.b32.xlu0 %v480, 16
      %v856 = vpop.permute.xlu0 %855
      %857 = vrot.lane.b32.xlu0 %v481, 16
      %v858 = vpop.permute.xlu0 %857
      %859 = vrot.lane.b32.xlu0 %v482, 16
      %v860 = vpop.permute.xlu0 %859
      %861 = vrot.lane.b32.xlu0 %v483, 16
      %v862 = vpop.permute.xlu0 %861
      %863 = vrot.lane.b32.xlu0 %v484, 16
      %v864 = vpop.permute.xlu0 %863
      %865 = vrot.lane.b32.xlu0 %v485, 16
      %v866 = vpop.permute.xlu0 %865
      %867 = vrot.lane.b32.xlu0 %v486, 16
      %v868 = vpop.permute.xlu0 %867
      %869 = vrot.lane.b32.xlu0 %v487, 16
      %v870 = vpop.permute.xlu0 %869
      %871 = vrot.lane.b32.xlu0 %v488, 16
      %v872 = vpop.permute.xlu0 %871
      %873 = vrot.lane.b32.xlu0 %v489, 16
      %v874 = vpop.permute.xlu0 %873
      %875 = vrot.lane.b32.xlu0 %v490, 16
      %v876 = vpop.permute.xlu0 %875
      %877 = vrot.lane.b32.xlu0 %v491, 16
      %v878 = vpop.permute.xlu0 %877
      %879 = vrot.lane.b32.xlu0 %v492, 16
      %v880 = vpop.permute.xlu0 %879
      %881 = vrot.lane.b32.xlu0 %v493, 16
      %v882 = vpop.permute.xlu0 %881
      %883 = vrot.lane.b32.xlu0 %v494, 16
      %v884 = vpop.permute.xlu0 %883
      %885 = vrot.lane.b32.xlu0 %v495, 16
      %v886 = vpop.permute.xlu0 %885
      %887 = vrot.lane.b32.xlu0 %v496, 16
      %v888 = vpop.permute.xlu0 %887
      %889 = vrot.lane.b32.xlu0 %v497, 16
      %v890 = vpop.permute.xlu0 %889
      %891 = vrot.lane.b32.xlu0 %v498, 16
      %v892 = vpop.permute.xlu0 %891
      %893 = vrot.lane.b32.xlu0 %v499, 16
      %v894 = vpop.permute.xlu0 %893
      %895 = vrot.lane.b32.xlu0 %v500, 16
      %v896 = vpop.permute.xlu0 %895
      %897 = vrot.lane.b32.xlu0 %v501, 16
      %v898 = vpop.permute.xlu0 %897
      %899 = vrot.lane.b32.xlu0 %v502, 16
      %v900 = vpop.permute.xlu0 %899
      %901 = vrot.lane.b32.xlu0 %v503, 16
      %v902 = vpop.permute.xlu0 %901
      %903 = vrot.lane.b32.xlu0 %v504, 16
      %v904 = vpop.permute.xlu0 %903
      %943 = vrot.lane.b32.xlu0 %v471, 24
      %v944 = vpop.permute.xlu0 %943
      %945 = vrot.lane.b32.xlu0 %v472, 24
      %v946 = vpop.permute.xlu0 %945
      %947 = vrot.lane.b32.xlu0 %v473, 24
      %v948 = vpop.permute.xlu0 %947
      %949 = vrot.lane.b32.xlu0 %v474, 24
      %v950 = vpop.permute.xlu0 %949
      %951 = vrot.lane.b32.xlu0 %v475, 24
      %v952 = vpop.permute.xlu0 %951
      %953 = vrot.lane.b32.xlu0 %v476, 24
      %v954 = vpop.permute.xlu0 %953
      %955 = vrot.lane.b32.xlu0 %v477, 24
      %v956 = vpop.permute.xlu0 %955
      %957 = vrot.lane.b32.xlu0 %v478, 24
      %v958 = vpop.permute.xlu0 %957
      %959 = vrot.lane.b32.xlu0 %v479, 24
      %v960 = vpop.permute.xlu0 %959
      %961 = vrot.lane.b32.xlu0 %v480, 24
      %v962 = vpop.permute.xlu0 %961
      %963 = vrot.lane.b32.xlu0 %v481, 24
      %v964 = vpop.permute.xlu0 %963
      %965 = vrot.lane.b32.xlu0 %v482, 24
      %v966 = vpop.permute.xlu0 %965
      %967 = vrot.lane.b32.xlu0 %v483, 24
      %v968 = vpop.permute.xlu0 %967
      %969 = vrot.lane.b32.xlu0 %v484, 24
      %v970 = vpop.permute.xlu0 %969
      %971 = vrot.lane.b32.xlu0 %v485, 24
      %v972 = vpop.permute.xlu0 %971
      %973 = vrot.lane.b32.xlu0 %v486, 24
      %v974 = vpop.permute.xlu0 %973
      %975 = vrot.lane.b32.xlu0 %v487, 24
      %v976 = vpop.permute.xlu0 %975
      %977 = vrot.lane.b32.xlu0 %v488, 24
      %v978 = vpop.permute.xlu0 %977
      %979 = vrot.lane.b32.xlu0 %v489, 24
      %v980 = vpop.permute.xlu0 %979
      %981 = vrot.lane.b32.xlu0 %v490, 24
      %v982 = vpop.permute.xlu0 %981
      %983 = vrot.lane.b32.xlu0 %v491, 24
      %v984 = vpop.permute.xlu0 %983
      %985 = vrot.lane.b32.xlu0 %v492, 24
      %v986 = vpop.permute.xlu0 %985
      %987 = vrot.lane.b32.xlu0 %v493, 24
      %v988 = vpop.permute.xlu0 %987
      %989 = vrot.lane.b32.xlu0 %v494, 24
      %v990 = vpop.permute.xlu0 %989
      %991 = vrot.lane.b32.xlu0 %v495, 24
      %v992 = vpop.permute.xlu0 %991
      %993 = vrot.lane.b32.xlu0 %v496, 24
      %v994 = vpop.permute.xlu0 %993
      %995 = vrot.lane.b32.xlu0 %v497, 24
      %v996 = vpop.permute.xlu0 %995
      %997 = vrot.lane.b32.xlu0 %v498, 24
      %v998 = vpop.permute.xlu0 %997
      %999 = vrot.lane.b32.xlu0 %v499, 24
      %v1000 = vpop.permute.xlu0 %999
      %1001 = vrot.lane.b32.xlu0 %v500, 24
      %v1002 = vpop.permute.xlu0 %1001
      %1003 = vrot.lane.b32.xlu0 %v501, 24
      %v1004 = vpop.permute.xlu0 %1003
      %1005 = vrot.lane.b32.xlu0 %v502, 24
      %v1006 = vpop.permute.xlu0 %1005
      %1007 = vrot.lane.b32.xlu0 %v503, 24
      %v1008 = vpop.permute.xlu0 %1007
      %1009 = vrot.lane.b32.xlu0 %v504, 24
      %v1010 = vpop.permute.xlu0 %1009
      %1011 = vrot.lane.b32.xlu0 %v505, 24
      %v1012 = vpop.permute.xlu0 %1011
      %1013 = vrot.lane.b32.xlu0 %v506, 24
      %v1014 = vpop.permute.xlu0 %1013
      %1087 = vrot.lane.b32.xlu0 %v507, 32
      %v1088 = vpop.permute.xlu0 %1087
      %1089 = vrot.lane.b32.xlu0 %v508, 32
      %v1090 = vpop.permute.xlu0 %1089
      %1091 = vrot.lane.b32.xlu0 %v509, 32
      %v1092 = vpop.permute.xlu0 %1091
      %1093 = vrot.lane.b32.xlu0 %v510, 32
      %v1094 = vpop.permute.xlu0 %1093
      %1095 = vrot.lane.b32.xlu0 %v511, 32
      %v1096 = vpop.permute.xlu0 %1095
      %1097 = vrot.lane.b32.xlu0 %v512, 32
      %v1098 = vpop.permute.xlu0 %1097
      %1099 = vrot.lane.b32.xlu0 %v513, 32
      %v1100 = vpop.permute.xlu0 %1099
      %1101 = vrot.lane.b32.xlu0 %v514, 32
      %v1102 = vpop.permute.xlu0 %1101
      %1103 = vrot.lane.b32.xlu0 %v515, 32
      %v1104 = vpop.permute.xlu0 %1103
      %1105 = vrot.lane.b32.xlu0 %v516, 32
      %v1106 = vpop.permute.xlu0 %1105
      %1107 = vrot.lane.b32.xlu0 %v517, 32
      %v1108 = vpop.permute.xlu0 %1107
      %1109 = vrot.lane.b32.xlu0 %v518, 32
      %v1110 = vpop.permute.xlu0 %1109
      %1111 = vrot.lane.b32.xlu0 %v519, 32
      %v1112 = vpop.permute.xlu0 %1111
      %1113 = vrot.lane.b32.xlu0 %v520, 32
      %v1114 = vpop.permute.xlu0 %1113
      %1115 = vrot.lane.b32.xlu0 %v521, 32
      %v1116 = vpop.permute.xlu0 %1115
      %1117 = vrot.lane.b32.xlu0 %v522, 32
      %v1118 = vpop.permute.xlu0 %1117
      %1119 = vrot.lane.b32.xlu0 %v523, 32
      %v1120 = vpop.permute.xlu0 %1119
      %1121 = vrot.lane.b32.xlu0 %v524, 32
      %v1122 = vpop.permute.xlu0 %1121
      %1123 = vrot.lane.b32.xlu0 %v525, 32
      %v1124 = vpop.permute.xlu0 %1123
      %1125 = vrot.lane.b32.xlu0 %v526, 32
      %v1126 = vpop.permute.xlu0 %1125
      %1127 = vrot.lane.b32.xlu0 %v527, 32
      %v1128 = vpop.permute.xlu0 %1127
      %1129 = vrot.lane.b32.xlu0 %v528, 32
      %v1130 = vpop.permute.xlu0 %1129
      %1131 = vrot.lane.b32.xlu0 %v529, 32
      %v1132 = vpop.permute.xlu0 %1131
      %1133 = vrot.lane.b32.xlu0 %v530, 32
      %v1134 = vpop.permute.xlu0 %1133
      %1135 = vrot.lane.b32.xlu0 %v531, 32
      %v1136 = vpop.permute.xlu0 %1135
      %1137 = vrot.lane.b32.xlu0 %v532, 32
      %v1138 = vpop.permute.xlu0 %1137
      %1139 = vrot.lane.b32.xlu0 %v533, 32
      %v1140 = vpop.permute.xlu0 %1139
      %1141 = vrot.lane.b32.xlu0 %v534, 32
      %v1142 = vpop.permute.xlu0 %1141
      %1143 = vrot.lane.b32.xlu0 %v535, 32
      %v1144 = vpop.permute.xlu0 %1143
      %1145 = vrot.lane.b32.xlu0 %v536, 32
      %v1146 = vpop.permute.xlu0 %1145
      %1147 = vrot.lane.b32.xlu0 %v537, 32
      %v1148 = vpop.permute.xlu0 %1147
      %1149 = vrot.lane.b32.xlu0 %v538, 32
      %v1150 = vpop.permute.xlu0 %1149
      %1151 = vrot.lane.b32.xlu0 %v539, 32
      %v1152 = vpop.permute.xlu0 %1151
      %1153 = vrot.lane.b32.xlu0 %v540, 32
      %v1154 = vpop.permute.xlu0 %1153
      %1155 = vrot.lane.b32.xlu0 %v541, 32
      %v1156 = vpop.permute.xlu0 %1155
      %1157 = vrot.lane.b32.xlu0 %v542, 32
      %v1158 = vpop.permute.xlu0 %1157
      %1231 = vrot.lane.b32.xlu0 %v543, 40
      %v1232 = vpop.permute.xlu0 %1231
      %1233 = vrot.lane.b32.xlu0 %v544, 40
      %v1234 = vpop.permute.xlu0 %1233
      %1235 = vrot.lane.b32.xlu0 %v545, 40
      %v1236 = vpop.permute.xlu0 %1235
      %1237 = vrot.lane.b32.xlu0 %v546, 40
      %v1238 = vpop.permute.xlu0 %1237
      %1239 = vrot.lane.b32.xlu0 %v547, 40
      %v1240 = vpop.permute.xlu0 %1239
      %1241 = vrot.lane.b32.xlu0 %v548, 40
      %v1242 = vpop.permute.xlu0 %1241
      %1243 = vrot.lane.b32.xlu0 %v549, 40
      %v1244 = vpop.permute.xlu0 %1243
      %1245 = vrot.lane.b32.xlu0 %v550, 40
      %v1246 = vpop.permute.xlu0 %1245
      %1247 = vrot.lane.b32.xlu0 %v551, 40
      %v1248 = vpop.permute.xlu0 %1247
      %1249 = vrot.lane.b32.xlu0 %v552, 40
      %v1250 = vpop.permute.xlu0 %1249
      %1251 = vrot.lane.b32.xlu0 %v553, 40
      %v1252 = vpop.permute.xlu0 %1251
      %1253 = vrot.lane.b32.xlu0 %v554, 40
      %v1254 = vpop.permute.xlu0 %1253
      %1255 = vrot.lane.b32.xlu0 %v555, 40
      %v1256 = vpop.permute.xlu0 %1255
      %1257 = vrot.lane.b32.xlu0 %v556, 40
      %v1258 = vpop.permute.xlu0 %1257
      %1259 = vrot.lane.b32.xlu0 %v557, 40
      %v1260 = vpop.permute.xlu0 %1259
      %1261 = vrot.lane.b32.xlu0 %v558, 40
      %v1262 = vpop.permute.xlu0 %1261
      %1263 = vrot.lane.b32.xlu0 %v559, 40
      %v1264 = vpop.permute.xlu0 %1263
      %1265 = vrot.lane.b32.xlu0 %v560, 40
      %v1266 = vpop.permute.xlu0 %1265
      %1267 = vrot.lane.b32.xlu0 %v561, 40
      %v1268 = vpop.permute.xlu0 %1267
      %1269 = vrot.lane.b32.xlu0 %v562, 40
      %v1270 = vpop.permute.xlu0 %1269
      %1271 = vrot.lane.b32.xlu0 %v563, 40
      %v1272 = vpop.permute.xlu0 %1271
      %1273 = vrot.lane.b32.xlu0 %v564, 40
      %v1274 = vpop.permute.xlu0 %1273
      %1275 = vrot.lane.b32.xlu0 %v565, 40
      %v1276 = vpop.permute.xlu0 %1275
      %1277 = vrot.lane.b32.xlu0 %v566, 40
      %v1278 = vpop.permute.xlu0 %1277
      %1279 = vrot.lane.b32.xlu0 %v567, 40
      %v1280 = vpop.permute.xlu0 %1279
      %1281 = vrot.lane.b32.xlu0 %v568, 40
      %v1282 = vpop.permute.xlu0 %1281
      %1283 = vrot.lane.b32.xlu0 %v569, 40
      %v1284 = vpop.permute.xlu0 %1283
      %1285 = vrot.lane.b32.xlu0 %v570, 40
      %v1286 = vpop.permute.xlu0 %1285
      %1287 = vrot.lane.b32.xlu0 %v571, 40
      %v1288 = vpop.permute.xlu0 %1287
      %1289 = vrot.lane.b32.xlu0 %v572, 40
      %v1290 = vpop.permute.xlu0 %1289
      %1291 = vrot.lane.b32.xlu0 %v573, 40
      %v1292 = vpop.permute.xlu0 %1291
      %1293 = vrot.lane.b32.xlu0 %v574, 40
      %v1294 = vpop.permute.xlu0 %1293
      %1295 = vrot.lane.b32.xlu0 %v575, 40
      %v1296 = vpop.permute.xlu0 %1295
      %1297 = vrot.lane.b32.xlu0 %v576, 40
      %v1298 = vpop.permute.xlu0 %1297
      %1299 = vrot.lane.b32.xlu0 %v577, 40
      %v1300 = vpop.permute.xlu0 %1299
      %1301 = vrot.lane.b32.xlu0 %v578, 40
      %v1302 = vpop.permute.xlu0 %1301
      %1341 = vrot.lane.b32.xlu0 %v545, 48
      %v1342 = vpop.permute.xlu0 %1341
      %1343 = vrot.lane.b32.xlu0 %v546, 48
      %v1344 = vpop.permute.xlu0 %1343
      %1345 = vrot.lane.b32.xlu0 %v547, 48
      %v1346 = vpop.permute.xlu0 %1345
      %1347 = vrot.lane.b32.xlu0 %v548, 48
      %v1348 = vpop.permute.xlu0 %1347
      %1349 = vrot.lane.b32.xlu0 %v549, 48
      %v1350 = vpop.permute.xlu0 %1349
      %1351 = vrot.lane.b32.xlu0 %v550, 48
      %v1352 = vpop.permute.xlu0 %1351
      %1353 = vrot.lane.b32.xlu0 %v551, 48
      %v1354 = vpop.permute.xlu0 %1353
      %1355 = vrot.lane.b32.xlu0 %v552, 48
      %v1356 = vpop.permute.xlu0 %1355
      %1357 = vrot.lane.b32.xlu0 %v553, 48
      %v1358 = vpop.permute.xlu0 %1357
      %1359 = vrot.lane.b32.xlu0 %v554, 48
      %v1360 = vpop.permute.xlu0 %1359
      %1361 = vrot.lane.b32.xlu0 %v555, 48
      %v1362 = vpop.permute.xlu0 %1361
      %1363 = vrot.lane.b32.xlu0 %v556, 48
      %v1364 = vpop.permute.xlu0 %1363
      %1365 = vrot.lane.b32.xlu0 %v557, 48
      %v1366 = vpop.permute.xlu0 %1365
      %1367 = vrot.lane.b32.xlu0 %v558, 48
      %v1368 = vpop.permute.xlu0 %1367
      %1369 = vrot.lane.b32.xlu0 %v559, 48
      %v1370 = vpop.permute.xlu0 %1369
      %1371 = vrot.lane.b32.xlu0 %v560, 48
      %v1372 = vpop.permute.xlu0 %1371
      %1373 = vrot.lane.b32.xlu0 %v561, 48
      %v1374 = vpop.permute.xlu0 %1373
      %1375 = vrot.lane.b32.xlu0 %v562, 48
      %v1376 = vpop.permute.xlu0 %1375
      %1377 = vrot.lane.b32.xlu0 %v563, 48
      %v1378 = vpop.permute.xlu0 %1377
      %1379 = vrot.lane.b32.xlu0 %v564, 48
      %v1380 = vpop.permute.xlu0 %1379
      %1381 = vrot.lane.b32.xlu0 %v565, 48
      %v1382 = vpop.permute.xlu0 %1381
      %1383 = vrot.lane.b32.xlu0 %v566, 48
      %v1384 = vpop.permute.xlu0 %1383
      %1385 = vrot.lane.b32.xlu0 %v567, 48
      %v1386 = vpop.permute.xlu0 %1385
      %1387 = vrot.lane.b32.xlu0 %v568, 48
      %v1388 = vpop.permute.xlu0 %1387
      %1389 = vrot.lane.b32.xlu0 %v569, 48
      %v1390 = vpop.permute.xlu0 %1389
      %1391 = vrot.lane.b32.xlu0 %v570, 48
      %v1392 = vpop.permute.xlu0 %1391
      %1393 = vrot.lane.b32.xlu0 %v571, 48
      %v1394 = vpop.permute.xlu0 %1393
      %1395 = vrot.lane.b32.xlu0 %v572, 48
      %v1396 = vpop.permute.xlu0 %1395
      %1397 = vrot.lane.b32.xlu0 %v573, 48
      %v1398 = vpop.permute.xlu0 %1397
      %1399 = vrot.lane.b32.xlu0 %v574, 48
      %v1400 = vpop.permute.xlu0 %1399
      %1401 = vrot.lane.b32.xlu0 %v575, 48
      %v1402 = vpop.permute.xlu0 %1401
      %1403 = vrot.lane.b32.xlu0 %v576, 48
      %v1404 = vpop.permute.xlu0 %1403
      %1405 = vrot.lane.b32.xlu0 %v577, 48
      %v1406 = vpop.permute.xlu0 %1405
      %1407 = vrot.lane.b32.xlu0 %v578, 48
      %v1408 = vpop.permute.xlu0 %1407
      %1409 = vrot.lane.b32.xlu0 %v579, 48
      %v1410 = vpop.permute.xlu0 %1409
      %1411 = vrot.lane.b32.xlu0 %v580, 48
      %v1412 = vpop.permute.xlu0 %1411
      %1485 = vrot.lane.b32.xlu0 %v581, 56
      %v1486 = vpop.permute.xlu0 %1485
      %1487 = vrot.lane.b32.xlu0 %v582, 56
      %v1488 = vpop.permute.xlu0 %1487
      %1489 = vrot.lane.b32.xlu0 %v583, 56
      %v1490 = vpop.permute.xlu0 %1489
      %1491 = vrot.lane.b32.xlu0 %v584, 56
      %v1492 = vpop.permute.xlu0 %1491
      %1493 = vrot.lane.b32.xlu0 %v585, 56
      %v1494 = vpop.permute.xlu0 %1493
      %1495 = vrot.lane.b32.xlu0 %v586, 56
      %v1496 = vpop.permute.xlu0 %1495
      %1497 = vrot.lane.b32.xlu0 %v587, 56
      %v1498 = vpop.permute.xlu0 %1497
      %1499 = vrot.lane.b32.xlu0 %v588, 56
      %v1500 = vpop.permute.xlu0 %1499
      %1501 = vrot.lane.b32.xlu0 %v589, 56
      %v1502 = vpop.permute.xlu0 %1501
      %1503 = vrot.lane.b32.xlu0 %v590, 56
      %v1504 = vpop.permute.xlu0 %1503
      %1505 = vrot.lane.b32.xlu0 %v591, 56
      %v1506 = vpop.permute.xlu0 %1505
      %1507 = vrot.lane.b32.xlu0 %v592, 56
      %v1508 = vpop.permute.xlu0 %1507
      %1509 = vrot.lane.b32.xlu0 %v593, 56
      %v1510 = vpop.permute.xlu0 %1509
      %1511 = vrot.lane.b32.xlu0 %v594, 56
      %v1512 = vpop.permute.xlu0 %1511
      %1513 = vrot.lane.b32.xlu0 %v595, 56
      %v1514 = vpop.permute.xlu0 %1513
      %1515 = vrot.lane.b32.xlu0 %v596, 56
      %v1516 = vpop.permute.xlu0 %1515
      %1517 = vrot.lane.b32.xlu0 %v597, 56
      %v1518 = vpop.permute.xlu0 %1517
      %1519 = vrot.lane.b32.xlu0 %v598, 56
      %v1520 = vpop.permute.xlu0 %1519
      %1521 = vrot.lane.b32.xlu0 %v599, 56
      %v1522 = vpop.permute.xlu0 %1521
      %1523 = vrot.lane.b32.xlu0 %v600, 56
      %v1524 = vpop.permute.xlu0 %1523
      %1525 = vrot.lane.b32.xlu0 %v601, 56
      %v1526 = vpop.permute.xlu0 %1525
      %1527 = vrot.lane.b32.xlu0 %v602, 56
      %v1528 = vpop.permute.xlu0 %1527
      %1529 = vrot.lane.b32.xlu0 %v603, 56
      %v1530 = vpop.permute.xlu0 %1529
      %1531 = vrot.lane.b32.xlu0 %v604, 56
      %v1532 = vpop.permute.xlu0 %1531
      %1533 = vrot.lane.b32.xlu0 %v605, 56
      %v1534 = vpop.permute.xlu0 %1533
      %1535 = vrot.lane.b32.xlu0 %v606, 56
      %v1536 = vpop.permute.xlu0 %1535
      %1537 = vrot.lane.b32.xlu0 %v607, 56
      %v1538 = vpop.permute.xlu0 %1537
      %1539 = vrot.lane.b32.xlu0 %v608, 56
      %v1540 = vpop.permute.xlu0 %1539
      %1541 = vrot.lane.b32.xlu0 %v609, 56
      %v1542 = vpop.permute.xlu0 %1541
      %1543 = vrot.lane.b32.xlu0 %v610, 56
      %v1544 = vpop.permute.xlu0 %1543
      %1545 = vrot.lane.b32.xlu0 %v611, 56
      %v1546 = vpop.permute.xlu0 %1545
      %1547 = vrot.lane.b32.xlu0 %v612, 56
      %v1548 = vpop.permute.xlu0 %1547
      %1549 = vrot.lane.b32.xlu0 %v613, 56
      %v1550 = vpop.permute.xlu0 %1549
      %1551 = vrot.lane.b32.xlu0 %v614, 56
      %v1552 = vpop.permute.xlu0 %1551
      %1553 = vrot.lane.b32.xlu0 %v615, 56
      %v1554 = vpop.permute.xlu0 %1553
      %1555 = vrot.lane.b32.xlu0 %v616, 56
      %v1556 = vpop.permute.xlu0 %1555
      %1629 = vrot.lane.b32.xlu0 %v617, 64
      %v1630 = vpop.permute.xlu0 %1629
      %1631 = vrot.lane.b32.xlu0 %v618, 64
      %v1632 = vpop.permute.xlu0 %1631
      %1633 = vrot.lane.b32.xlu0 %v619, 64
      %v1634 = vpop.permute.xlu0 %1633
      %1635 = vrot.lane.b32.xlu0 %v620, 64
      %v1636 = vpop.permute.xlu0 %1635
      %1637 = vrot.lane.b32.xlu0 %v621, 64
      %v1638 = vpop.permute.xlu0 %1637
      %1639 = vrot.lane.b32.xlu0 %v622, 64
      %v1640 = vpop.permute.xlu0 %1639
      %1641 = vrot.lane.b32.xlu0 %v623, 64
      %v1642 = vpop.permute.xlu0 %1641
      %1643 = vrot.lane.b32.xlu0 %v624, 64
      %v1644 = vpop.permute.xlu0 %1643
      %1645 = vrot.lane.b32.xlu0 %v625, 64
      %v1646 = vpop.permute.xlu0 %1645
      %1647 = vrot.lane.b32.xlu0 %v626, 64
      %v1648 = vpop.permute.xlu0 %1647
      %1649 = vrot.lane.b32.xlu0 %v627, 64
      %v1650 = vpop.permute.xlu0 %1649
      %1651 = vrot.lane.b32.xlu0 %v628, 64
      %v1652 = vpop.permute.xlu0 %1651
      %1653 = vrot.lane.b32.xlu0 %v629, 64
      %v1654 = vpop.permute.xlu0 %1653
      %1655 = vrot.lane.b32.xlu0 %v630, 64
      %v1656 = vpop.permute.xlu0 %1655
      %1657 = vrot.lane.b32.xlu0 %v631, 64
      %v1658 = vpop.permute.xlu0 %1657
      %1659 = vrot.lane.b32.xlu0 %v632, 64
      %v1660 = vpop.permute.xlu0 %1659
      %1661 = vrot.lane.b32.xlu0 %v633, 64
      %v1662 = vpop.permute.xlu0 %1661
      %1663 = vrot.lane.b32.xlu0 %v634, 64
      %v1664 = vpop.permute.xlu0 %1663
      %1665 = vrot.lane.b32.xlu0 %v635, 64
      %v1666 = vpop.permute.xlu0 %1665
      %1667 = vrot.lane.b32.xlu0 %v636, 64
      %v1668 = vpop.permute.xlu0 %1667
      %1669 = vrot.lane.b32.xlu0 %v637, 64
      %v1670 = vpop.permute.xlu0 %1669
      %1671 = vrot.lane.b32.xlu0 %v638, 64
      %v1672 = vpop.permute.xlu0 %1671
      %1673 = vrot.lane.b32.xlu0 %v639, 64
      %v1674 = vpop.permute.xlu0 %1673
      %1675 = vrot.lane.b32.xlu0 %v640, 64
      %v1676 = vpop.permute.xlu0 %1675
      %1677 = vrot.lane.b32.xlu0 %v641, 64
      %v1678 = vpop.permute.xlu0 %1677
      %1679 = vrot.lane.b32.xlu0 %v642, 64
      %v1680 = vpop.permute.xlu0 %1679
      %1681 = vrot.lane.b32.xlu0 %v643, 64
      %v1682 = vpop.permute.xlu0 %1681
      %1683 = vrot.lane.b32.xlu0 %v644, 64
      %v1684 = vpop.permute.xlu0 %1683
      %1685 = vrot.lane.b32.xlu0 %v645, 64
      %v1686 = vpop.permute.xlu0 %1685
      %1687 = vrot.lane.b32.xlu0 %v646, 64
      %v1688 = vpop.permute.xlu0 %1687
      %1689 = vrot.lane.b32.xlu0 %v647, 64
      %v1690 = vpop.permute.xlu0 %1689
      %1691 = vrot.lane.b32.xlu0 %v648, 64
      %v1692 = vpop.permute.xlu0 %1691
      %1693 = vrot.lane.b32.xlu0 %v649, 64
      %v1694 = vpop.permute.xlu0 %1693
      %1695 = vrot.lane.b32.xlu0 %v650, 64
      %v1696 = vpop.permute.xlu0 %1695
      %1697 = vrot.lane.b32.xlu0 %v651, 64
      %v1698 = vpop.permute.xlu0 %1697
      %1699 = vrot.lane.b32.xlu0 %v652, 64
      %v1700 = vpop.permute.xlu0 %1699
      %vm1737 = vcmask 64512
      %v1738 = vsel %vm1737, %v397, %v690
      %v1739 = vsel %vm1737, %v398, %v692
      %v1740 = vsel %vm1737, %v399, %v694
      %v1741 = vsel %vm1737, %v400, %v696
      %v1742 = vsel %vm1737, %v401, %v698
      %v1743 = vsel %vm1737, %v402, %v700
      %v1744 = vsel %vm1737, %v403, %v702
      %v1745 = vsel %vm1737, %v404, %v704
      %v1746 = vsel %vm1737, %v405, %v706
      %v1747 = vsel %vm1737, %v406, %v708
      %v1748 = vsel %vm1737, %v407, %v710
      %v1749 = vsel %vm1737, %v408, %v712
      %v1750 = vsel %vm1737, %v409, %v714
      %v1751 = vsel %vm1737, %v410, %v716
      %v1752 = vsel %vm1737, %v411, %v718
      %v1753 = vsel %vm1737, %v412, %v720
      %v1754 = vsel %vm1737, %v413, %v722
      %v1755 = vsel %vm1737, %v414, %v724
      %v1756 = vsel %vm1737, %v415, %v726
      %v1757 = vsel %vm1737, %v416, %v728
      %v1758 = vsel %vm1737, %v417, %v730
      %v1759 = vsel %vm1737, %v418, %v732
      %v1760 = vsel %vm1737, %v419, %v734
      %v1761 = vsel %vm1737, %v420, %v736
      %v1762 = vsel %vm1737, %v421, %v738
      %v1763 = vsel %vm1737, %v422, %v740
      %v1764 = vsel %vm1737, %v423, %v742
      %v1765 = vsel %vm1737, %v424, %v744
      %v1766 = vsel %vm1737, %v425, %v746
      %v1767 = vsel %vm1737, %v426, %v748
      %v1768 = vsel %vm1737, %v427, %v750
      %v1769 = vsel %vm1737, %v428, %v752
      %v1770 = vsel %vm1737, %v429, %v754
      %v1771 = vsel %vm1737, %v430, %v756
      %v1772 = vsel %vm1737, %v431, %v758
      %v1773 = vsel %vm1737, %v432, %v760
      %vm1774 = vcmask 130048
      %v1775 = vsel %vm1774, %v1738, %v834
      %v1776 = vsel %vm1774, %v1739, %v836
      %v1777 = vsel %vm1774, %v1740, %v838
      %v1778 = vsel %vm1774, %v1741, %v840
      %v1779 = vsel %vm1774, %v1742, %v842
      %v1780 = vsel %vm1774, %v1743, %v844
      %v1781 = vsel %vm1774, %v1744, %v846
      %v1782 = vsel %vm1774, %v1745, %v848
      %v1783 = vsel %vm1774, %v1746, %v850
      %v1784 = vsel %vm1774, %v1747, %v852
      %v1785 = vsel %vm1774, %v1748, %v854
      %v1786 = vsel %vm1774, %v1749, %v856
      %v1787 = vsel %vm1774, %v1750, %v858
      %v1788 = vsel %vm1774, %v1751, %v860
      %v1789 = vsel %vm1774, %v1752, %v862
      %v1790 = vsel %vm1774, %v1753, %v864
      %v1791 = vsel %vm1774, %v1754, %v866
      %v1792 = vsel %vm1774, %v1755, %v868
      %v1793 = vsel %vm1774, %v1756, %v870
      %v1794 = vsel %vm1774, %v1757, %v872
      %v1795 = vsel %vm1774, %v1758, %v874
      %v1796 = vsel %vm1774, %v1759, %v876
      %v1797 = vsel %vm1774, %v1760, %v878
      %v1798 = vsel %vm1774, %v1761, %v880
      %v1799 = vsel %vm1774, %v1762, %v882
      %v1800 = vsel %vm1774, %v1763, %v884
      %v1801 = vsel %vm1774, %v1764, %v886
      %v1802 = vsel %vm1774, %v1765, %v888
      %v1803 = vsel %vm1774, %v1766, %v890
      %v1804 = vsel %vm1774, %v1767, %v892
      %v1805 = vsel %vm1774, %v1768, %v894
      %v1806 = vsel %vm1774, %v1769, %v896
      %v1807 = vsel %vm1774, %v1770, %v898
      %v1808 = vsel %vm1774, %v1771, %v900
      %v1809 = vsel %vm1774, %v1772, %v902
      %v1810 = vsel %vm1774, %v1773, %v904
      %vm1811 = vcmask 195584
      %v1812 = vsel %vm1811, %v1775, %v944
      %v1813 = vsel %vm1811, %v1776, %v946
      %v1814 = vsel %vm1811, %v1777, %v948
      %v1815 = vsel %vm1811, %v1778, %v950
      %v1816 = vsel %vm1811, %v1779, %v952
      %v1817 = vsel %vm1811, %v1780, %v954
      %v1818 = vsel %vm1811, %v1781, %v956
      %v1819 = vsel %vm1811, %v1782, %v958
      %v1820 = vsel %vm1811, %v1783, %v960
      %v1821 = vsel %vm1811, %v1784, %v962
      %v1822 = vsel %vm1811, %v1785, %v964
      %v1823 = vsel %vm1811, %v1786, %v966
      %v1824 = vsel %vm1811, %v1787, %v968
      %v1825 = vsel %vm1811, %v1788, %v970
      %v1826 = vsel %vm1811, %v1789, %v972
      %v1827 = vsel %vm1811, %v1790, %v974
      %v1828 = vsel %vm1811, %v1791, %v976
      %v1829 = vsel %vm1811, %v1792, %v978
      %v1830 = vsel %vm1811, %v1793, %v980
      %v1831 = vsel %vm1811, %v1794, %v982
      %v1832 = vsel %vm1811, %v1795, %v984
      %v1833 = vsel %vm1811, %v1796, %v986
      %v1834 = vsel %vm1811, %v1797, %v988
      %v1835 = vsel %vm1811, %v1798, %v990
      %v1836 = vsel %vm1811, %v1799, %v992
      %v1837 = vsel %vm1811, %v1800, %v994
      %v1838 = vsel %vm1811, %v1801, %v996
      %v1839 = vsel %vm1811, %v1802, %v998
      %v1840 = vsel %vm1811, %v1803, %v1000
      %v1841 = vsel %vm1811, %v1804, %v1002
      %v1842 = vsel %vm1811, %v1805, %v1004
      %v1843 = vsel %vm1811, %v1806, %v1006
      %v1844 = vsel %vm1811, %v1807, %v1008
      %v1845 = vsel %vm1811, %v1808, %v1010
      %v1846 = vsel %vm1811, %v1809, %v1012
      %v1847 = vsel %vm1811, %v1810, %v1014
      %vm1848 = vcmask 261120
      %v1849 = vsel %vm1848, %v1812, %v1088
      %v1850 = vsel %vm1848, %v1813, %v1090
      %v1851 = vsel %vm1848, %v1814, %v1092
      %v1852 = vsel %vm1848, %v1815, %v1094
      %v1853 = vsel %vm1848, %v1816, %v1096
      %v1854 = vsel %vm1848, %v1817, %v1098
      %v1855 = vsel %vm1848, %v1818, %v1100
      %v1856 = vsel %vm1848, %v1819, %v1102
      %v1857 = vsel %vm1848, %v1820, %v1104
      %v1858 = vsel %vm1848, %v1821, %v1106
      %v1859 = vsel %vm1848, %v1822, %v1108
      %v1860 = vsel %vm1848, %v1823, %v1110
      %v1861 = vsel %vm1848, %v1824, %v1112
      %v1862 = vsel %vm1848, %v1825, %v1114
      %v1863 = vsel %vm1848, %v1826, %v1116
      %v1864 = vsel %vm1848, %v1827, %v1118
      %v1865 = vsel %vm1848, %v1828, %v1120
      %v1866 = vsel %vm1848, %v1829, %v1122
      %v1867 = vsel %vm1848, %v1830, %v1124
      %v1868 = vsel %vm1848, %v1831, %v1126
      %v1869 = vsel %vm1848, %v1832, %v1128
      %v1870 = vsel %vm1848, %v1833, %v1130
      %v1871 = vsel %vm1848, %v1834, %v1132
      %v1872 = vsel %vm1848, %v1835, %v1134
      %v1873 = vsel %vm1848, %v1836, %v1136
      %v1874 = vsel %vm1848, %v1837, %v1138
      %v1875 = vsel %vm1848, %v1838, %v1140
      %v1876 = vsel %vm1848, %v1839, %v1142
      %v1877 = vsel %vm1848, %v1840, %v1144
      %v1878 = vsel %vm1848, %v1841, %v1146
      %v1879 = vsel %vm1848, %v1842, %v1148
      %v1880 = vsel %vm1848, %v1843, %v1150
      %v1881 = vsel %vm1848, %v1844, %v1152
      %v1882 = vsel %vm1848, %v1845, %v1154
      %v1883 = vsel %vm1848, %v1846, %v1156
      %v1884 = vsel %vm1848, %v1847, %v1158
      %vm1885 = vcmask 326656
      %v1886 = vsel %vm1885, %v1849, %v1232
      %v1887 = vsel %vm1885, %v1850, %v1234
      %v1888 = vsel %vm1885, %v1851, %v1236
      %v1889 = vsel %vm1885, %v1852, %v1238
      %v1890 = vsel %vm1885, %v1853, %v1240
      %v1891 = vsel %vm1885, %v1854, %v1242
      %v1892 = vsel %vm1885, %v1855, %v1244
      %v1893 = vsel %vm1885, %v1856, %v1246
      %v1894 = vsel %vm1885, %v1857, %v1248
      %v1895 = vsel %vm1885, %v1858, %v1250
      %v1896 = vsel %vm1885, %v1859, %v1252
      %v1897 = vsel %vm1885, %v1860, %v1254
      %v1898 = vsel %vm1885, %v1861, %v1256
      %v1899 = vsel %vm1885, %v1862, %v1258
      %v1900 = vsel %vm1885, %v1863, %v1260
      %v1901 = vsel %vm1885, %v1864, %v1262
      %v1902 = vsel %vm1885, %v1865, %v1264
      %v1903 = vsel %vm1885, %v1866, %v1266
      %v1904 = vsel %vm1885, %v1867, %v1268
      %v1905 = vsel %vm1885, %v1868, %v1270
      %v1906 = vsel %vm1885, %v1869, %v1272
      %v1907 = vsel %vm1885, %v1870, %v1274
      %v1908 = vsel %vm1885, %v1871, %v1276
      %v1909 = vsel %vm1885, %v1872, %v1278
      %v1910 = vsel %vm1885, %v1873, %v1280
      %v1911 = vsel %vm1885, %v1874, %v1282
      %v1912 = vsel %vm1885, %v1875, %v1284
      %v1913 = vsel %vm1885, %v1876, %v1286
      %v1914 = vsel %vm1885, %v1877, %v1288
      %v1915 = vsel %vm1885, %v1878, %v1290
      %v1916 = vsel %vm1885, %v1879, %v1292
      %v1917 = vsel %vm1885, %v1880, %v1294
      %v1918 = vsel %vm1885, %v1881, %v1296
      %v1919 = vsel %vm1885, %v1882, %v1298
      %v1920 = vsel %vm1885, %v1883, %v1300
      %v1921 = vsel %vm1885, %v1884, %v1302
      %vm1922 = vcmask 392192
      %v1923 = vsel %vm1922, %v1886, %v1342
      %v1924 = vsel %vm1922, %v1887, %v1344
      %v1925 = vsel %vm1922, %v1888, %v1346
      %v1926 = vsel %vm1922, %v1889, %v1348
      %v1927 = vsel %vm1922, %v1890, %v1350
      %v1928 = vsel %vm1922, %v1891, %v1352
      %v1929 = vsel %vm1922, %v1892, %v1354
      %v1930 = vsel %vm1922, %v1893, %v1356
      %v1931 = vsel %vm1922, %v1894, %v1358
      %v1932 = vsel %vm1922, %v1895, %v1360
      %v1933 = vsel %vm1922, %v1896, %v1362
      %v1934 = vsel %vm1922, %v1897, %v1364
      %v1935 = vsel %vm1922, %v1898, %v1366
      %v1936 = vsel %vm1922, %v1899, %v1368
      %v1937 = vsel %vm1922, %v1900, %v1370
      %v1938 = vsel %vm1922, %v1901, %v1372
      %v1939 = vsel %vm1922, %v1902, %v1374
      %v1940 = vsel %vm1922, %v1903, %v1376
      %v1941 = vsel %vm1922, %v1904, %v1378
      %v1942 = vsel %vm1922, %v1905, %v1380
      %v1943 = vsel %vm1922, %v1906, %v1382
      %v1944 = vsel %vm1922, %v1907, %v1384
      %v1945 = vsel %vm1922, %v1908, %v1386
      %v1946 = vsel %vm1922, %v1909, %v1388
      %v1947 = vsel %vm1922, %v1910, %v1390
      %v1948 = vsel %vm1922, %v1911, %v1392
      %v1949 = vsel %vm1922, %v1912, %v1394
      %v1950 = vsel %vm1922, %v1913, %v1396
      %v1951 = vsel %vm1922, %v1914, %v1398
      %v1952 = vsel %vm1922, %v1915, %v1400
      %v1953 = vsel %vm1922, %v1916, %v1402
      %v1954 = vsel %vm1922, %v1917, %v1404
      %v1955 = vsel %vm1922, %v1918, %v1406
      %v1956 = vsel %vm1922, %v1919, %v1408
      %v1957 = vsel %vm1922, %v1920, %v1410
      %v1958 = vsel %vm1922, %v1921, %v1412
      %vm1959 = vcmask 457728
      %v1960 = vsel %vm1959, %v1923, %v1486
      %v1961 = vsel %vm1959, %v1924, %v1488
      %v1962 = vsel %vm1959, %v1925, %v1490
      %v1963 = vsel %vm1959, %v1926, %v1492
      %v1964 = vsel %vm1959, %v1927, %v1494
      %v1965 = vsel %vm1959, %v1928, %v1496
      %v1966 = vsel %vm1959, %v1929, %v1498
      %v1967 = vsel %vm1959, %v1930, %v1500
      %v1968 = vsel %vm1959, %v1931, %v1502
      %v1969 = vsel %vm1959, %v1932, %v1504
      %v1970 = vsel %vm1959, %v1933, %v1506
      %v1971 = vsel %vm1959, %v1934, %v1508
      %v1972 = vsel %vm1959, %v1935, %v1510
      %v1973 = vsel %vm1959, %v1936, %v1512
      %v1974 = vsel %vm1959, %v1937, %v1514
      %v1975 = vsel %vm1959, %v1938, %v1516
      %v1976 = vsel %vm1959, %v1939, %v1518
      %v1977 = vsel %vm1959, %v1940, %v1520
      %v1978 = vsel %vm1959, %v1941, %v1522
      %v1979 = vsel %vm1959, %v1942, %v1524
      %v1980 = vsel %vm1959, %v1943, %v1526
      %v1981 = vsel %vm1959, %v1944, %v1528
      %v1982 = vsel %vm1959, %v1945, %v1530
      %v1983 = vsel %vm1959, %v1946, %v1532
      %v1984 = vsel %vm1959, %v1947, %v1534
      %v1985 = vsel %vm1959, %v1948, %v1536
      %v1986 = vsel %vm1959, %v1949, %v1538
      %v1987 = vsel %vm1959, %v1950, %v1540
      %v1988 = vsel %vm1959, %v1951, %v1542
      %v1989 = vsel %vm1959, %v1952, %v1544
      %v1990 = vsel %vm1959, %v1953, %v1546
      %v1991 = vsel %vm1959, %v1954, %v1548
      %v1992 = vsel %vm1959, %v1955, %v1550
      %v1993 = vsel %vm1959, %v1956, %v1552
      %v1994 = vsel %vm1959, %v1957, %v1554
      %v1995 = vsel %vm1959, %v1958, %v1556
      %vm1996 = vcmask 523264
      %v1997 = vsel %vm1996, %v1960, %v1630
      %v1998 = vsel %vm1996, %v1961, %v1632
      %v1999 = vsel %vm1996, %v1962, %v1634
      %v2000 = vsel %vm1996, %v1963, %v1636
      %v2001 = vsel %vm1996, %v1964, %v1638
      %v2002 = vsel %vm1996, %v1965, %v1640
      %v2003 = vsel %vm1996, %v1966, %v1642
      %v2004 = vsel %vm1996, %v1967, %v1644
      %v2005 = vsel %vm1996, %v1968, %v1646
      %v2006 = vsel %vm1996, %v1969, %v1648
      %v2007 = vsel %vm1996, %v1970, %v1650
      %v2008 = vsel %vm1996, %v1971, %v1652
      %v2009 = vsel %vm1996, %v1972, %v1654
      %v2010 = vsel %vm1996, %v1973, %v1656
      %v2011 = vsel %vm1996, %v1974, %v1658
      %v2012 = vsel %vm1996, %v1975, %v1660
      %v2013 = vsel %vm1996, %v1976, %v1662
      %v2014 = vsel %vm1996, %v1977, %v1664
      %v2015 = vsel %vm1996, %v1978, %v1666
      %v2016 = vsel %vm1996, %v1979, %v1668
      %v2017 = vsel %vm1996, %v1980, %v1670
      %v2018 = vsel %vm1996, %v1981, %v1672
      %v2019 = vsel %vm1996, %v1982, %v1674
      %v2020 = vsel %vm1996, %v1983, %v1676
      %v2021 = vsel %vm1996, %v1984, %v1678
      %v2022 = vsel %vm1996, %v1985, %v1680
      %v2023 = vsel %vm1996, %v1986, %v1682
      %v2024 = vsel %vm1996, %v1987, %v1684
      %v2025 = vsel %vm1996, %v1988, %v1686
      %v2026 = vsel %vm1996, %v1989, %v1688
      %v2027 = vsel %vm1996, %v1990, %v1690
      %v2028 = vsel %vm1996, %v1991, %v1692
      %v2029 = vsel %vm1996, %v1992, %v1694
      %v2030 = vsel %vm1996, %v1993, %v1696
      %v2031 = vsel %vm1996, %v1994, %v1698
      %v2032 = vsel %vm1996, %v1995, %v1700
      %v2033 = vpack.c.bf16 %v1998, %v1997
      %v2034 = vpack.c.bf16 %v2000, %v1999
      %v2035 = vpack.c.bf16 %v2002, %v2001
      %v2036 = vpack.c.bf16 %v2004, %v2003
      %v2037 = vpack.c.bf16 %v2006, %v2005
      %v2038 = vpack.c.bf16 %v2008, %v2007
      %v2039 = vpack.c.bf16 %v2010, %v2009
      %v2040 = vpack.c.bf16 %v2012, %v2011
      %v2041 = vpack.c.bf16 %v2014, %v2013
      %v2042 = vpack.c.bf16 %v2016, %v2015
      %v2043 = vpack.c.bf16 %v2018, %v2017
      %v2044 = vpack.c.bf16 %v2020, %v2019
      %v2045 = vpack.c.bf16 %v2022, %v2021
      %v2046 = vpack.c.bf16 %v2024, %v2023
      %v2047 = vpack.c.bf16 %v2026, %v2025
      %v2048 = vpack.c.bf16 %v2028, %v2027
      %v2049 = vpack.c.bf16 %v2030, %v2029
      %v2050 = vpack.c.bf16 %v2032, %v2031
      %v2051 = vld [vmem:[%s2] sm:$0xf]
      %v2052 = vld [vmem:[%s2 + $0x4] sm:$0xf]
      %v2053 = vld [vmem:[%s2 + $0x8] sm:$0xf]
      %v2054 = vld [vmem:[%s2 + $0xc] sm:$0xf]
      %v2055 = vld [vmem:[%s2 + $0x10] sm:$0xf]
      %v2056 = vld [vmem:[%s2 + $0x14] sm:$0xf]
      %v2057 = vld [vmem:[%s2 + $0x18] sm:$0xf]
      %v2058 = vld [vmem:[%s2 + $0x1c] sm:$0xf]
      %v2059 = vld [vmem:[%s2 + $0x20] sm:$0xf]
      %v2060 = vld [vmem:[%s3] sm:$0x1]
      %v2062 = vlaneseq
      %v2063 = vshrl.u32 %v2062, 7
      %v2064 = vsub.s32 0, %v2063
      %v2065 = vrot.slane %v2060, %v2064
      %v2076 = vunpack.c.l.b16 %v2051
      %v2077 = vunpack.c.l.b16 %v2052
      %v2078 = vunpack.c.l.b16 %v2053
      %v2079 = vunpack.c.l.b16 %v2054
      %v2080 = vunpack.c.l.b16 %v2055
      %v2081 = vunpack.c.l.b16 %v2056
      %v2082 = vunpack.c.l.b16 %v2057
      %v2083 = vunpack.c.l.b16 %v2058
      %v2084 = vunpack.c.l.b16 %v2059
      %v2085 = vpack.c.b16 %v2077, %v2076
      %v2086 = vpack.c.b16 %v2079, %v2078
      %v2087 = vpack.c.b16 %v2081, %v2080
      %v2088 = vpack.c.b16 %v2083, %v2082
      %v2089 = vpack.c.b16 %v2084, %v2084
      %vm2094 = vcmask 588800
      %v2096 = vsel %vm2094, %v2033, 0
      %v2099 = vsel %vm2094, %v2034, 0
      %v2102 = vsel %vm2094, %v2035, 0
      %v2105 = vsel %vm2094, %v2036, 0
      %v2108 = vsel %vm2094, %v2037, 0
      %v2111 = vsel %vm2094, %v2038, 0
      %v2114 = vsel %vm2094, %v2039, 0
      %v2117 = vsel %vm2094, %v2040, 0
      %v2120 = vsel %vm2094, %v2041, 0
      %v2123 = vsel %vm2094, %v2042, 0
      %v2126 = vsel %vm2094, %v2043, 0
      %v2129 = vsel %vm2094, %v2044, 0
      %v2132 = vsel %vm2094, %v2045, 0
      %v2135 = vsel %vm2094, %v2046, 0
      %v2138 = vsel %vm2094, %v2047, 0
      %v2141 = vsel %vm2094, %v2048, 0
      %v2144 = vsel %vm2094, %v2049, 0
      %v2147 = vsel %vm2094, %v2050, 0
      %vm2149 = vcmask 1043456
      %v2151 = vsel %vm2149, %v2089, 0
      %2153 = vmatprep.subr.bf16.mxu0 0
      %2154 = vmatpush1.bf16.msra.mxu0 0
      %2155 = vmatprep.subr.bf16.mxu0 0
      %2156 = vmatpush1.bf16.msra.mxu0 0
      %2157 = vmatprep.subr.bf16.mxu0 0
      %2158 = vmatpush1.bf16.msra.mxu0 0
      %2159 = vmatprep.subr.bf16.mxu0 0
      %2160 = vmatpush1.bf16.msra.mxu0 %v2151
      %2161 = vmatprep.subr.bf16.mxu0 0
      %2162 = vmatpush1.bf16.msra.mxu0 %v2088
      %2163 = vmatprep.subr.bf16.mxu0 0
      %2164 = vmatpush1.bf16.msra.mxu0 %v2087
      %2165 = vmatprep.subr.bf16.mxu0 0
      %2166 = vmatpush1.bf16.msra.mxu0 %v2086
      %2167 = vmatprep.subr.bf16.mxu0 0
      %2168 = vmatpush1.bf16.msra.mxu0 %v2085
      %2169 = vmatprep.subr.bf16.mxu0 0
      %2170 = vmatpush2.bf16.msra.mxu0 0
      %2171 = vmatprep.subr.bf16.mxu0 0
      %2172 = vmatpush2.bf16.msra.mxu0 0
      %2173 = vmatprep.subr.bf16.mxu0 0
      %2174 = vmatpush2.bf16.msra.mxu0 0
      %2175 = vmatprep.subr.bf16.mxu0 0
      %2176 = vmatpush2.bf16.msra.mxu0 0
      %2177 = vmatprep.subr.bf16.mxu0 0
      %2178 = vmatpush2.bf16.msra.mxu0 0
      %2179 = vmatprep.subr.bf16.mxu0 0
      %2180 = vmatpush2.bf16.msra.mxu0 0
      %2181 = vmatprep.subr.bf16.mxu0 0
      %2182 = vmatpush2.bf16.msra.mxu0 0
      %2183 = vmatprep.subr.bf16.mxu0 0
      %2184 = vmatpush2.bf16.msra.mxu0 0
      %2185 = vmatprep.mubr.bf16.mxu0 0
      %2186 = vmatmul.mubr.bf16.gmra.mxu0 %v2096
      %v2187 = vpop.f32.mrf.mxu0
      %v2188 = vadd.f32 %v2065, %v2187
      %v2189 = vpop.f32.mrf.mxu0
      %v2190 = vpop.f32.mrf.mxu0
      %v2191 = vadd.f32 %v2065, %v2190
      %v2192 = vpop.f32.mrf.mxu0
      %2193 = vmatprep.mubr.bf16.mxu0 0
      %2194 = vmatmul.mubr.bf16.gmra.mxu0 %v2099
      %v2195 = vpop.f32.mrf.mxu0
      %v2196 = vadd.f32 %v2065, %v2195
      %v2197 = vpop.f32.mrf.mxu0
      %v2198 = vpop.f32.mrf.mxu0
      %v2199 = vadd.f32 %v2065, %v2198
      %v2200 = vpop.f32.mrf.mxu0
      %2201 = vmatprep.mubr.bf16.mxu0 0
      %2202 = vmatmul.mubr.bf16.gmra.mxu0 %v2102
      %v2203 = vpop.f32.mrf.mxu0
      %v2204 = vadd.f32 %v2065, %v2203
      %v2205 = vpop.f32.mrf.mxu0
      %v2206 = vpop.f32.mrf.mxu0
      %v2207 = vadd.f32 %v2065, %v2206
      %v2208 = vpop.f32.mrf.mxu0
      %2209 = vmatprep.mubr.bf16.mxu0 0
      %2210 = vmatmul.mubr.bf16.gmra.mxu0 %v2105
      %v2211 = vpop.f32.mrf.mxu0
      %v2212 = vadd.f32 %v2065, %v2211
      %v2213 = vpop.f32.mrf.mxu0
      %v2214 = vpop.f32.mrf.mxu0
      %v2215 = vadd.f32 %v2065, %v2214
      %v2216 = vpop.f32.mrf.mxu0
      %2217 = vmatprep.mubr.bf16.mxu0 0
      %2218 = vmatmul.mubr.bf16.gmra.mxu0 %v2108
      %v2219 = vpop.f32.mrf.mxu0
      %v2220 = vadd.f32 %v2065, %v2219
      %v2221 = vpop.f32.mrf.mxu0
      %v2222 = vpop.f32.mrf.mxu0
      %v2223 = vadd.f32 %v2065, %v2222
      %v2224 = vpop.f32.mrf.mxu0
      %2225 = vmatprep.mubr.bf16.mxu0 0
      %2226 = vmatmul.mubr.bf16.gmra.mxu0 %v2111
      %v2227 = vpop.f32.mrf.mxu0
      %v2228 = vadd.f32 %v2065, %v2227
      %v2229 = vpop.f32.mrf.mxu0
      %v2230 = vpop.f32.mrf.mxu0
      %v2231 = vadd.f32 %v2065, %v2230
      %v2232 = vpop.f32.mrf.mxu0
      %2233 = vmatprep.mubr.bf16.mxu0 0
      %2234 = vmatmul.mubr.bf16.gmra.mxu0 %v2114
      %v2235 = vpop.f32.mrf.mxu0
      %v2236 = vadd.f32 %v2065, %v2235
      %v2237 = vpop.f32.mrf.mxu0
      %v2238 = vpop.f32.mrf.mxu0
      %v2239 = vadd.f32 %v2065, %v2238
      %v2240 = vpop.f32.mrf.mxu0
      %2241 = vmatprep.mubr.bf16.mxu0 0
      %2242 = vmatmul.mubr.bf16.gmra.mxu0 %v2117
      %v2243 = vpop.f32.mrf.mxu0
      %v2244 = vadd.f32 %v2065, %v2243
      %v2245 = vpop.f32.mrf.mxu0
      %v2246 = vpop.f32.mrf.mxu0
      %v2247 = vadd.f32 %v2065, %v2246
      %v2248 = vpop.f32.mrf.mxu0
      %2249 = vmatprep.mubr.bf16.mxu0 0
      %2250 = vmatmul.mubr.bf16.gmra.mxu0 %v2120
      %v2251 = vpop.f32.mrf.mxu0
      %v2252 = vadd.f32 %v2065, %v2251
      %v2253 = vpop.f32.mrf.mxu0
      %v2254 = vpop.f32.mrf.mxu0
      %v2255 = vadd.f32 %v2065, %v2254
      %v2256 = vpop.f32.mrf.mxu0
      %2257 = vmatprep.mubr.bf16.mxu0 0
      %2258 = vmatmul.mubr.bf16.gmra.mxu0 %v2123
      %v2259 = vpop.f32.mrf.mxu0
      %v2260 = vadd.f32 %v2065, %v2259
      %v2261 = vpop.f32.mrf.mxu0
      %v2262 = vpop.f32.mrf.mxu0
      %v2263 = vadd.f32 %v2065, %v2262
      %v2264 = vpop.f32.mrf.mxu0
      %2265 = vmatprep.mubr.bf16.mxu0 0
      %2266 = vmatmul.mubr.bf16.gmra.mxu0 %v2126
      %v2267 = vpop.f32.mrf.mxu0
      %v2268 = vadd.f32 %v2065, %v2267
      %v2269 = vpop.f32.mrf.mxu0
      %v2270 = vpop.f32.mrf.mxu0
      %v2271 = vadd.f32 %v2065, %v2270
      %v2272 = vpop.f32.mrf.mxu0
      %2273 = vmatprep.mubr.bf16.mxu0 0
      %2274 = vmatmul.mubr.bf16.gmra.mxu0 %v2129
      %v2275 = vpop.f32.mrf.mxu0
      %v2276 = vadd.f32 %v2065, %v2275
      %v2277 = vpop.f32.mrf.mxu0
      %v2278 = vpop.f32.mrf.mxu0
      %v2279 = vadd.f32 %v2065, %v2278
      %v2280 = vpop.f32.mrf.mxu0
      %2281 = vmatprep.mubr.bf16.mxu0 0
      %2282 = vmatmul.mubr.bf16.gmra.mxu0 %v2132
      %v2283 = vpop.f32.mrf.mxu0
      %v2284 = vadd.f32 %v2065, %v2283
      %v2285 = vpop.f32.mrf.mxu0
      %v2286 = vpop.f32.mrf.mxu0
      %v2287 = vadd.f32 %v2065, %v2286
      %v2288 = vpop.f32.mrf.mxu0
      %2289 = vmatprep.mubr.bf16.mxu0 0
      %2290 = vmatmul.mubr.bf16.gmra.mxu0 %v2135
      %v2291 = vpop.f32.mrf.mxu0
      %v2292 = vadd.f32 %v2065, %v2291
      %v2293 = vpop.f32.mrf.mxu0
      %v2294 = vpop.f32.mrf.mxu0
      %v2295 = vadd.f32 %v2065, %v2294
      %v2296 = vpop.f32.mrf.mxu0
      %2297 = vmatprep.mubr.bf16.mxu0 0
      %2298 = vmatmul.mubr.bf16.gmra.mxu0 %v2138
      %v2299 = vpop.f32.mrf.mxu0
      %v2300 = vadd.f32 %v2065, %v2299
      %v2301 = vpop.f32.mrf.mxu0
      %v2302 = vpop.f32.mrf.mxu0
      %v2303 = vadd.f32 %v2065, %v2302
      %v2304 = vpop.f32.mrf.mxu0
      %2305 = vmatprep.mubr.bf16.mxu0 0
      %2306 = vmatmul.mubr.bf16.gmra.mxu0 %v2141
      %v2307 = vpop.f32.mrf.mxu0
      %v2308 = vadd.f32 %v2065, %v2307
      %v2309 = vpop.f32.mrf.mxu0
      %v2310 = vpop.f32.mrf.mxu0
      %v2311 = vadd.f32 %v2065, %v2310
      %v2312 = vpop.f32.mrf.mxu0
      %2313 = vmatprep.mubr.bf16.mxu0 0
      %2314 = vmatmul.mubr.bf16.gmra.mxu0 %v2144
      %v2315 = vpop.f32.mrf.mxu0
      %v2316 = vadd.f32 %v2065, %v2315
      %v2317 = vpop.f32.mrf.mxu0
      %v2318 = vpop.f32.mrf.mxu0
      %v2319 = vadd.f32 %v2065, %v2318
      %v2320 = vpop.f32.mrf.mxu0
      %2321 = vmatprep.mubr.bf16.mxu0 0
      %2322 = vmatmul.mubr.bf16.gmra.mxu0 %v2147
      %v2323 = vpop.f32.mrf.mxu0
      %v2324 = vadd.f32 %v2065, %v2323
      %v2325 = vpop.f32.mrf.mxu0
      %v2326 = vpop.f32.mrf.mxu0
      %v2327 = vadd.f32 %v2065, %v2326
      %v2328 = vpop.f32.mrf.mxu0
      %2329 = vdwg.mxu0
      %v2330 = vmax.f32 %v2188, 0.0
      %v2331 = vmax.f32 %v2191, 0.0
      %v2332 = vmax.f32 %v2196, 0.0
      %v2333 = vmax.f32 %v2199, 0.0
      %v2334 = vmax.f32 %v2204, 0.0
      %v2335 = vmax.f32 %v2207, 0.0
      %v2336 = vmax.f32 %v2212, 0.0
      %v2337 = vmax.f32 %v2215, 0.0
      %v2338 = vmax.f32 %v2220, 0.0
      %v2339 = vmax.f32 %v2223, 0.0
      %v2340 = vmax.f32 %v2228, 0.0
      %v2341 = vmax.f32 %v2231, 0.0
      %v2342 = vmax.f32 %v2236, 0.0
      %v2343 = vmax.f32 %v2239, 0.0
      %v2344 = vmax.f32 %v2244, 0.0
      %v2345 = vmax.f32 %v2247, 0.0
      %v2346 = vmax.f32 %v2252, 0.0
      %v2347 = vmax.f32 %v2255, 0.0
      %v2348 = vmax.f32 %v2260, 0.0
      %v2349 = vmax.f32 %v2263, 0.0
      %v2350 = vmax.f32 %v2268, 0.0
      %v2351 = vmax.f32 %v2271, 0.0
      %v2352 = vmax.f32 %v2276, 0.0
      %v2353 = vmax.f32 %v2279, 0.0
      %v2354 = vmax.f32 %v2284, 0.0
      %v2355 = vmax.f32 %v2287, 0.0
      %v2356 = vmax.f32 %v2292, 0.0
      %v2357 = vmax.f32 %v2295, 0.0
      %v2358 = vmax.f32 %v2300, 0.0
      %v2359 = vmax.f32 %v2303, 0.0
      %v2360 = vmax.f32 %v2308, 0.0
      %v2361 = vmax.f32 %v2311, 0.0
      %v2362 = vmax.f32 %v2316, 0.0
      %v2363 = vmax.f32 %v2319, 0.0
      %v2364 = vmax.f32 %v2324, 0.0
      %v2365 = vmax.f32 %v2327, 0.0
      %2367 = vset.pattern.permute.xlu0 0
      %2368 = vperm.xlu0 %2367, %v361
      %v2369 = vpop.permute.xlu0 %2368
      %2372 = vset.pattern.permute.xlu0 0
      %2373 = vperm.xlu0 %2372, %v362
      %v2374 = vpop.permute.xlu0 %2373
      %2377 = vset.pattern.permute.xlu0 0
      %2378 = vperm.xlu0 %2377, %v363
      %v2379 = vpop.permute.xlu0 %2378
      %2382 = vset.pattern.permute.xlu0 0
      %2383 = vperm.xlu0 %2382, %v364
      %v2384 = vpop.permute.xlu0 %2383
      %2387 = vset.pattern.permute.xlu0 0
      %2388 = vperm.xlu0 %2387, %v365
      %v2389 = vpop.permute.xlu0 %2388
      %2392 = vset.pattern.permute.xlu0 0
      %2393 = vperm.xlu0 %2392, %v366
      %v2394 = vpop.permute.xlu0 %2393
      %2397 = vset.pattern.permute.xlu0 0
      %2398 = vperm.xlu0 %2397, %v367
      %v2399 = vpop.permute.xlu0 %2398
      %2402 = vset.pattern.permute.xlu0 0
      %2403 = vperm.xlu0 %2402, %v368
      %v2404 = vpop.permute.xlu0 %2403
      %2407 = vset.pattern.permute.xlu0 0
      %2408 = vperm.xlu0 %2407, %v369
      %v2409 = vpop.permute.xlu0 %2408
      %2412 = vset.pattern.permute.xlu0 0
      %2413 = vperm.xlu0 %2412, %v370
      %v2414 = vpop.permute.xlu0 %2413
      %2417 = vset.pattern.permute.xlu0 0
      %2418 = vperm.xlu0 %2417, %v371
      %v2419 = vpop.permute.xlu0 %2418
      %2422 = vset.pattern.permute.xlu0 0
      %2423 = vperm.xlu0 %2422, %v372
      %v2424 = vpop.permute.xlu0 %2423
      %2427 = vset.pattern.permute.xlu0 0
      %2428 = vperm.xlu0 %2427, %v373
      %v2429 = vpop.permute.xlu0 %2428
      %2432 = vset.pattern.permute.xlu0 0
      %2433 = vperm.xlu0 %2432, %v374
      %v2434 = vpop.permute.xlu0 %2433
      %2437 = vset.pattern.permute.xlu0 0
      %2438 = vperm.xlu0 %2437, %v375
      %v2439 = vpop.permute.xlu0 %2438
      %2442 = vset.pattern.permute.xlu0 0
      %2443 = vperm.xlu0 %2442, %v376
      %v2444 = vpop.permute.xlu0 %2443
      %2447 = vset.pattern.permute.xlu0 0
      %2448 = vperm.xlu0 %2447, %v377
      %v2449 = vpop.permute.xlu0 %2448
      %2452 = vset.pattern.permute.xlu0 0
      %2453 = vperm.xlu0 %2452, %v378
      %v2454 = vpop.permute.xlu0 %2453
      %2457 = vset.pattern.permute.xlu0 0
      %2458 = vperm.xlu0 %2457, %v379
      %v2459 = vpop.permute.xlu0 %2458
      %2462 = vset.pattern.permute.xlu0 0
      %2463 = vperm.xlu0 %2462, %v380
      %v2464 = vpop.permute.xlu0 %2463
      %2467 = vset.pattern.permute.xlu0 0
      %2468 = vperm.xlu0 %2467, %v381
      %v2469 = vpop.permute.xlu0 %2468
      %2472 = vset.pattern.permute.xlu0 0
      %2473 = vperm.xlu0 %2472, %v382
      %v2474 = vpop.permute.xlu0 %2473
      %2477 = vset.pattern.permute.xlu0 0
      %2478 = vperm.xlu0 %2477, %v383
      %v2479 = vpop.permute.xlu0 %2478
      %2482 = vset.pattern.permute.xlu0 0
      %2483 = vperm.xlu0 %2482, %v384
      %v2484 = vpop.permute.xlu0 %2483
      %2487 = vset.pattern.permute.xlu0 0
      %2488 = vperm.xlu0 %2487, %v385
      %v2489 = vpop.permute.xlu0 %2488
      %2492 = vset.pattern.permute.xlu0 0
      %2493 = vperm.xlu0 %2492, %v386
      %v2494 = vpop.permute.xlu0 %2493
      %2497 = vset.pattern.permute.xlu0 0
      %2498 = vperm.xlu0 %2497, %v387
      %v2499 = vpop.permute.xlu0 %2498
      %2502 = vset.pattern.permute.xlu0 0
      %2503 = vperm.xlu0 %2502, %v388
      %v2504 = vpop.permute.xlu0 %2503
      %2507 = vset.pattern.permute.xlu0 0
      %2508 = vperm.xlu0 %2507, %v389
      %v2509 = vpop.permute.xlu0 %2508
      %2512 = vset.pattern.permute.xlu0 0
      %2513 = vperm.xlu0 %2512, %v390
      %v2514 = vpop.permute.xlu0 %2513
      %2517 = vset.pattern.permute.xlu0 0
      %2518 = vperm.xlu0 %2517, %v391
      %v2519 = vpop.permute.xlu0 %2518
      %2522 = vset.pattern.permute.xlu0 0
      %2523 = vperm.xlu0 %2522, %v392
      %v2524 = vpop.permute.xlu0 %2523
      %2527 = vset.pattern.permute.xlu0 0
      %2528 = vperm.xlu0 %2527, %v393
      %v2529 = vpop.permute.xlu0 %2528
      %2532 = vset.pattern.permute.xlu0 0
      %2533 = vperm.xlu0 %2532, %v394
      %v2534 = vpop.permute.xlu0 %2533
      %2537 = vset.pattern.permute.xlu0 0
      %2538 = vperm.xlu0 %2537, %v395
      %v2539 = vpop.permute.xlu0 %2538
      %2542 = vset.pattern.permute.xlu0 0
      %2543 = vperm.xlu0 %2542, %v396
      %v2544 = vpop.permute.xlu0 %2543
      %v2546 = vmul.f32 %v2330, %v2369
      %v2547 = vmul.f32 %v2331, %v2374
      %v2548 = vmul.f32 %v2332, %v2379
      %v2549 = vmul.f32 %v2333, %v2384
      %v2550 = vmul.f32 %v2334, %v2389
      %v2551 = vmul.f32 %v2335, %v2394
      %v2552 = vmul.f32 %v2336, %v2399
      %v2553 = vmul.f32 %v2337, %v2404
      %v2554 = vmul.f32 %v2338, %v2409
      %v2555 = vmul.f32 %v2339, %v2414
      %v2556 = vmul.f32 %v2340, %v2419
      %v2557 = vmul.f32 %v2341, %v2424
      %v2558 = vmul.f32 %v2342, %v2429
      %v2559 = vmul.f32 %v2343, %v2434
      %v2560 = vmul.f32 %v2344, %v2439
      %v2561 = vmul.f32 %v2345, %v2444
      %v2562 = vmul.f32 %v2346, %v2449
      %v2563 = vmul.f32 %v2347, %v2454
      %v2564 = vmul.f32 %v2348, %v2459
      %v2565 = vmul.f32 %v2349, %v2464
      %v2566 = vmul.f32 %v2350, %v2469
      %v2567 = vmul.f32 %v2351, %v2474
      %v2568 = vmul.f32 %v2352, %v2479
      %v2569 = vmul.f32 %v2353, %v2484
      %v2570 = vmul.f32 %v2354, %v2489
      %v2571 = vmul.f32 %v2355, %v2494
      %v2572 = vmul.f32 %v2356, %v2499
      %v2573 = vmul.f32 %v2357, %v2504
      %v2574 = vmul.f32 %v2358, %v2509
      %v2575 = vmul.f32 %v2359, %v2514
      %v2576 = vmul.f32 %v2360, %v2519
      %v2577 = vmul.f32 %v2361, %v2524
      %v2578 = vmul.f32 %v2362, %v2529
      %v2579 = vmul.f32 %v2363, %v2534
      %v2580 = vmul.f32 %v2364, %v2539
      %v2581 = vmul.f32 %v2365, %v2544
      %2582 = vst.msk [vmem:[#allocation2] sm:$0xff] %vm1996, 0.0
      %2583 = vst.msk [vmem:[#allocation2 + $0x8] sm:$0xff] %vm1996, 0.0
      %2584 = vst.msk [vmem:[#allocation2 + $0x10] sm:$0xff] %vm1996, 0.0
      %2585 = vst.msk [vmem:[#allocation2 + $0x18] sm:$0xff] %vm1996, 0.0
      %2586 = vst.msk [vmem:[#allocation2 + $0x20] sm:$0xff] %vm1996, 0.0
      %2587 = vst.msk [vmem:[#allocation2 + $0x28] sm:$0xff] %vm1996, 0.0
      %2588 = vst.msk [vmem:[#allocation2 + $0x30] sm:$0xff] %vm1996, 0.0
      %2589 = vst.msk [vmem:[#allocation2 + $0x38] sm:$0xff] %vm1996, 0.0
      %2590 = vst.msk [vmem:[#allocation2 + $0x40] sm:$0xff] %vm1996, 0.0
      %2591 = vst.msk [vmem:[#allocation2 + $0x48] sm:$0xff] %vm1996, 0.0
      %2592 = vst.msk [vmem:[#allocation2 + $0x50] sm:$0xff] %vm1996, 0.0
      %2593 = vst.msk [vmem:[#allocation2 + $0x58] sm:$0xff] %vm1996, 0.0
      %2594 = vst.msk [vmem:[#allocation2 + $0x60] sm:$0xff] %vm1996, 0.0
      %2595 = vst.msk [vmem:[#allocation2 + $0x68] sm:$0xff] %vm1996, 0.0
      %2596 = vst.msk [vmem:[#allocation2 + $0x70] sm:$0xff] %vm1996, 0.0
      %2597 = vst.msk [vmem:[#allocation2 + $0x78] sm:$0xff] %vm1996, 0.0
      %2598 = vst.msk [vmem:[#allocation2 + $0x80] sm:$0xff] %vm1996, 0.0
      %2599 = vst.msk [vmem:[#allocation2 + $0x88] sm:$0xff] %vm1996, 0.0
      %2600 = vst.msk [vmem:[#allocation2 + $0x90] sm:$0xff] %vm1996, 0.0
      %2601 = vst.msk [vmem:[#allocation2 + $0x98] sm:$0xff] %vm1996, 0.0
      %2602 = vst.msk [vmem:[#allocation2 + $0xa0] sm:$0xff] %vm1996, 0.0
      %2603 = vst.msk [vmem:[#allocation2 + $0xa8] sm:$0xff] %vm1996, 0.0
      %2604 = vst.msk [vmem:[#allocation2 + $0xb0] sm:$0xff] %vm1996, 0.0
      %2605 = vst.msk [vmem:[#allocation2 + $0xb8] sm:$0xff] %vm1996, 0.0
      %2606 = vst.msk [vmem:[#allocation2 + $0xc0] sm:$0xff] %vm1996, 0.0
      %2607 = vst.msk [vmem:[#allocation2 + $0xc8] sm:$0xff] %vm1996, 0.0
      %2608 = vst.msk [vmem:[#allocation2 + $0xd0] sm:$0xff] %vm1996, 0.0
      %2609 = vst.msk [vmem:[#allocation2 + $0xd8] sm:$0xff] %vm1996, 0.0
      %2610 = vst.msk [vmem:[#allocation2 + $0xe0] sm:$0xff] %vm1996, 0.0
      %2611 = vst.msk [vmem:[#allocation2 + $0xe8] sm:$0xff] %vm1996, 0.0
      %2612 = vst.msk [vmem:[#allocation2 + $0xf0] sm:$0xff] %vm1996, 0.0
      %2613 = vst.msk [vmem:[#allocation2 + $0xf8] sm:$0xff] %vm1996, 0.0
      %2614 = vst.msk [vmem:[#allocation2 + $0x100] sm:$0xff] %vm1996, 0.0
      %2615 = vst.msk [vmem:[#allocation2 + $0x108] sm:$0xff] %vm1996, 0.0
      %2616 = vst.msk [vmem:[#allocation2 + $0x110] sm:$0xff] %vm1996, 0.0
      %2617 = vst.msk [vmem:[#allocation2 + $0x118] sm:$0xff] %vm1996, 0.0
      %2618 = vst.msk [vmem:[#allocation2 + $0x120] sm:$0xff] %vm1996, 0.0
      %2619 = vst.msk [vmem:[#allocation2 + $0x128] sm:$0xff] %vm1996, 0.0
      %2620 = vst.msk [vmem:[#allocation2 + $0x130] sm:$0xff] %vm1996, 0.0
      %2621 = vst.msk [vmem:[#allocation2 + $0x138] sm:$0xff] %vm1996, 0.0
      %2622 = vst.msk [vmem:[#allocation2 + $0x140] sm:$0xff] %vm1996, 0.0
      %2623 = vst.msk [vmem:[#allocation2 + $0x148] sm:$0xff] %vm1996, 0.0
      %2624 = vst.msk [vmem:[#allocation2 + $0x18] sm:$0xff] %vm1996, %v2546
      %2625 = vst.msk [vmem:[#allocation2 + $0x20] sm:$0xff] %vm1996, %v2547
      %2626 = vst.msk [vmem:[#allocation2 + $0x28] sm:$0xff] %vm1996, %v2548
      %2627 = vst.msk [vmem:[#allocation2 + $0x30] sm:$0xff] %vm1996, %v2549
      %2628 = vst.msk [vmem:[#allocation2 + $0x38] sm:$0xff] %vm1996, %v2550
      %2629 = vst.msk [vmem:[#allocation2 + $0x40] sm:$0xff] %vm1996, %v2551
      %2630 = vst.msk [vmem:[#allocation2 + $0x48] sm:$0xff] %vm1996, %v2552
      %2631 = vst.msk [vmem:[#allocation2 + $0x50] sm:$0xff] %vm1996, %v2553
      %2632 = vst.msk [vmem:[#allocation2 + $0x58] sm:$0xff] %vm1996, %v2554
      %2633 = vst.msk [vmem:[#allocation2 + $0x60] sm:$0xff] %vm1996, %v2555
      %2634 = vst.msk [vmem:[#allocation2 + $0x68] sm:$0xff] %vm1996, %v2556
      %2635 = vst.msk [vmem:[#allocation2 + $0x70] sm:$0xff] %vm1996, %v2557
      %2636 = vst.msk [vmem:[#allocation2 + $0x78] sm:$0xff] %vm1996, %v2558
      %2637 = vst.msk [vmem:[#allocation2 + $0x80] sm:$0xff] %vm1996, %v2559
      %2638 = vst.msk [vmem:[#allocation2 + $0x88] sm:$0xff] %vm1996, %v2560
      %2639 = vst.msk [vmem:[#allocation2 + $0x90] sm:$0xff] %vm1996, %v2561
      %2640 = vst.msk [vmem:[#allocation2 + $0x98] sm:$0xff] %vm1996, %v2562
      %2641 = vst.msk [vmem:[#allocation2 + $0xa0] sm:$0xff] %vm1996, %v2563
      %2642 = vst.msk [vmem:[#allocation2 + $0xa8] sm:$0xff] %vm1996, %v2564
      %2643 = vst.msk [vmem:[#allocation2 + $0xb0] sm:$0xff] %vm1996, %v2565
      %2644 = vst.msk [vmem:[#allocation2 + $0xb8] sm:$0xff] %vm1996, %v2566
      %2645 = vst.msk [vmem:[#allocation2 + $0xc0] sm:$0xff] %vm1996, %v2567
      %2646 = vst.msk [vmem:[#allocation2 + $0xc8] sm:$0xff] %vm1996, %v2568
      %2647 = vst.msk [vmem:[#allocation2 + $0xd0] sm:$0xff] %vm1996, %v2569
      %2648 = vst.msk [vmem:[#allocation2 + $0xd8] sm:$0xff] %vm1996, %v2570
      %2649 = vst.msk [vmem:[#allocation2 + $0xe0] sm:$0xff] %vm1996, %v2571
      %2650 = vst.msk [vmem:[#allocation2 + $0xe8] sm:$0xff] %vm1996, %v2572
      %2651 = vst.msk [vmem:[#allocation2 + $0xf0] sm:$0xff] %vm1996, %v2573
      %2652 = vst.msk [vmem:[#allocation2 + $0xf8] sm:$0xff] %vm1996, %v2574
      %2653 = vst.msk [vmem:[#allocation2 + $0x100] sm:$0xff] %vm1996, %v2575
      %2654 = vst.msk [vmem:[#allocation2 + $0x108] sm:$0xff] %vm1996, %v2576
      %2655 = vst.msk [vmem:[#allocation2 + $0x110] sm:$0xff] %vm1996, %v2577
      %2656 = vst.msk [vmem:[#allocation2 + $0x118] sm:$0xff] %vm1996, %v2578
      %2657 = vst.msk [vmem:[#allocation2 + $0x120] sm:$0xff] %vm1996, %v2579
      %2658 = vst.msk [vmem:[#allocation2 + $0x128] sm:$0xff] %vm1996, %v2580
      %2659 = vst.msk [vmem:[#allocation2 + $0x130] sm:$0xff] %vm1996, %v2581
      %v2660 = vld [vmem:[#allocation2 + $0x5] sm:$0xff]
      %v2661 = vld [vmem:[#allocation2 + $0xd] sm:$0xff]
      %v2662 = vld [vmem:[#allocation2 + $0x15] sm:$0xff]
      %v2663 = vld [vmem:[#allocation2 + $0x1d] sm:$0xff]
      %v2664 = vld [vmem:[#allocation2 + $0x25] sm:$0xff]
      %v2665 = vld [vmem:[#allocation2 + $0x2d] sm:$0xff]
      %v2666 = vld [vmem:[#allocation2 + $0x35] sm:$0xff]
      %v2667 = vld [vmem:[#allocation2 + $0x3d] sm:$0xff]
      %v2668 = vld [vmem:[#allocation2 + $0x45] sm:$0xff]
      %v2669 = vld [vmem:[#allocation2 + $0x4d] sm:$0xff]
      %v2670 = vld [vmem:[#allocation2 + $0x55] sm:$0xff]
      %v2671 = vld [vmem:[#allocation2 + $0x5d] sm:$0xff]
      %v2672 = vld [vmem:[#allocation2 + $0x65] sm:$0xff]
      %v2673 = vld [vmem:[#allocation2 + $0x6d] sm:$0xff]
      %v2674 = vld [vmem:[#allocation2 + $0x75] sm:$0xff]
      %v2675 = vld [vmem:[#allocation2 + $0x7d] sm:$0xff]
      %v2676 = vld [vmem:[#allocation2 + $0x85] sm:$0xff]
      %v2677 = vld [vmem:[#allocation2 + $0x8d] sm:$0xff]
      %v2678 = vld [vmem:[#allocation2 + $0x95] sm:$0xff]
      %v2679 = vld [vmem:[#allocation2 + $0x9d] sm:$0xff]
      %v2680 = vld [vmem:[#allocation2 + $0xa5] sm:$0xff]
      %v2681 = vld [vmem:[#allocation2 + $0xad] sm:$0xff]
      %v2682 = vld [vmem:[#allocation2 + $0xb5] sm:$0xff]
      %v2683 = vld [vmem:[#allocation2 + $0xbd] sm:$0xff]
      %v2684 = vld [vmem:[#allocation2 + $0xc5] sm:$0xff]
      %v2685 = vld [vmem:[#allocation2 + $0xcd] sm:$0xff]
      %v2686 = vld [vmem:[#allocation2 + $0xd5] sm:$0xff]
      %v2687 = vld [vmem:[#allocation2 + $0xdd] sm:$0xff]
      %v2688 = vld [vmem:[#allocation2 + $0xe5] sm:$0xff]
      %v2689 = vld [vmem:[#allocation2 + $0xed] sm:$0xff]
      %v2690 = vld [vmem:[#allocation2 + $0xf5] sm:$0xff]
      %v2691 = vld [vmem:[#allocation2 + $0xfd] sm:$0xff]
      %v2692 = vld [vmem:[#allocation2 + $0x105] sm:$0xff]
      %v2693 = vld [vmem:[#allocation2 + $0x10d] sm:$0xff]
      %v2694 = vld [vmem:[#allocation2 + $0x115] sm:$0xff]
      %v2695 = vld [vmem:[#allocation2 + $0x11d] sm:$0xff]
      %v2696 = vld [vmem:[#allocation2 + $0x6] sm:$0xff]
      %v2697 = vld [vmem:[#allocation2 + $0xe] sm:$0xff]
      %v2698 = vld [vmem:[#allocation2 + $0x16] sm:$0xff]
      %v2699 = vld [vmem:[#allocation2 + $0x1e] sm:$0xff]
      %v2700 = vld [vmem:[#allocation2 + $0x26] sm:$0xff]
      %v2701 = vld [vmem:[#allocation2 + $0x2e] sm:$0xff]
      %v2702 = vld [vmem:[#allocation2 + $0x36] sm:$0xff]
      %v2703 = vld [vmem:[#allocation2 + $0x3e] sm:$0xff]
      %v2704 = vld [vmem:[#allocation2 + $0x46] sm:$0xff]
      %v2705 = vld [vmem:[#allocation2 + $0x4e] sm:$0xff]
      %v2706 = vld [vmem:[#allocation2 + $0x56] sm:$0xff]
      %v2707 = vld [vmem:[#allocation2 + $0x5e] sm:$0xff]
      %v2708 = vld [vmem:[#allocation2 + $0x66] sm:$0xff]
      %v2709 = vld [vmem:[#allocation2 + $0x6e] sm:$0xff]
      %v2710 = vld [vmem:[#allocation2 + $0x76] sm:$0xff]
      %v2711 = vld [vmem:[#allocation2 + $0x7e] sm:$0xff]
      %v2712 = vld [vmem:[#allocation2 + $0x86] sm:$0xff]
      %v2713 = vld [vmem:[#allocation2 + $0x8e] sm:$0xff]
      %v2714 = vld [vmem:[#allocation2 + $0x96] sm:$0xff]
      %v2715 = vld [vmem:[#allocation2 + $0x9e] sm:$0xff]
      %v2716 = vld [vmem:[#allocation2 + $0xa6] sm:$0xff]
      %v2717 = vld [vmem:[#allocation2 + $0xae] sm:$0xff]
      %v2718 = vld [vmem:[#allocation2 + $0xb6] sm:$0xff]
      %v2719 = vld [vmem:[#allocation2 + $0xbe] sm:$0xff]
      %v2720 = vld [vmem:[#allocation2 + $0xc6] sm:$0xff]
      %v2721 = vld [vmem:[#allocation2 + $0xce] sm:$0xff]
      %v2722 = vld [vmem:[#allocation2 + $0xd6] sm:$0xff]
      %v2723 = vld [vmem:[#allocation2 + $0xde] sm:$0xff]
      %v2724 = vld [vmem:[#allocation2 + $0xe6] sm:$0xff]
      %v2725 = vld [vmem:[#allocation2 + $0xee] sm:$0xff]
      %v2726 = vld [vmem:[#allocation2 + $0xf6] sm:$0xff]
      %v2727 = vld [vmem:[#allocation2 + $0xfe] sm:$0xff]
      %v2728 = vld [vmem:[#allocation2 + $0x106] sm:$0xff]
      %v2729 = vld [vmem:[#allocation2 + $0x10e] sm:$0xff]
      %v2730 = vld [vmem:[#allocation2 + $0x116] sm:$0xff]
      %v2731 = vld [vmem:[#allocation2 + $0x11e] sm:$0xff]
      %v2732 = vld [vmem:[#allocation2 + $0x7] sm:$0xff]
      %v2733 = vld [vmem:[#allocation2 + $0xf] sm:$0xff]
      %v2734 = vld [vmem:[#allocation2 + $0x17] sm:$0xff]
      %v2735 = vld [vmem:[#allocation2 + $0x1f] sm:$0xff]
      %v2736 = vld [vmem:[#allocation2 + $0x27] sm:$0xff]
      %v2737 = vld [vmem:[#allocation2 + $0x2f] sm:$0xff]
      %v2738 = vld [vmem:[#allocation2 + $0x37] sm:$0xff]
      %v2739 = vld [vmem:[#allocation2 + $0x3f] sm:$0xff]
      %v2740 = vld [vmem:[#allocation2 + $0x47] sm:$0xff]
      %v2741 = vld [vmem:[#allocation2 + $0x4f] sm:$0xff]
      %v2742 = vld [vmem:[#allocation2 + $0x57] sm:$0xff]
      %v2743 = vld [vmem:[#allocation2 + $0x5f] sm:$0xff]
      %v2744 = vld [vmem:[#allocation2 + $0x67] sm:$0xff]
      %v2745 = vld [vmem:[#allocation2 + $0x6f] sm:$0xff]
      %v2746 = vld [vmem:[#allocation2 + $0x77] sm:$0xff]
      %v2747 = vld [vmem:[#allocation2 + $0x7f] sm:$0xff]
      %v2748 = vld [vmem:[#allocation2 + $0x87] sm:$0xff]
      %v2749 = vld [vmem:[#allocation2 + $0x8f] sm:$0xff]
      %v2750 = vld [vmem:[#allocation2 + $0x97] sm:$0xff]
      %v2751 = vld [vmem:[#allocation2 + $0x9f] sm:$0xff]
      %v2752 = vld [vmem:[#allocation2 + $0xa7] sm:$0xff]
      %v2753 = vld [vmem:[#allocation2 + $0xaf] sm:$0xff]
      %v2754 = vld [vmem:[#allocation2 + $0xb7] sm:$0xff]
      %v2755 = vld [vmem:[#allocation2 + $0xbf] sm:$0xff]
      %v2756 = vld [vmem:[#allocation2 + $0xc7] sm:$0xff]
      %v2757 = vld [vmem:[#allocation2 + $0xcf] sm:$0xff]
      %v2758 = vld [vmem:[#allocation2 + $0xd7] sm:$0xff]
      %v2759 = vld [vmem:[#allocation2 + $0xdf] sm:$0xff]
      %v2760 = vld [vmem:[#allocation2 + $0xe7] sm:$0xff]
      %v2761 = vld [vmem:[#allocation2 + $0xef] sm:$0xff]
      %v2762 = vld [vmem:[#allocation2 + $0xf7] sm:$0xff]
      %v2763 = vld [vmem:[#allocation2 + $0xff] sm:$0xff]
      %v2764 = vld [vmem:[#allocation2 + $0x107] sm:$0xff]
      %v2765 = vld [vmem:[#allocation2 + $0x10f] sm:$0xff]
      %v2766 = vld [vmem:[#allocation2 + $0x117] sm:$0xff]
      %v2767 = vld [vmem:[#allocation2 + $0x11f] sm:$0xff]
      %2804 = vrot.lane.b32.xlu0 %v2696, 64
      %v2805 = vpop.permute.xlu0 %2804
      %2806 = vrot.lane.b32.xlu0 %v2697, 64
      %v2807 = vpop.permute.xlu0 %2806
      %2808 = vrot.lane.b32.xlu0 %v2698, 64
      %v2809 = vpop.permute.xlu0 %2808
      %2810 = vrot.lane.b32.xlu0 %v2699, 64
      %v2811 = vpop.permute.xlu0 %2810
      %2812 = vrot.lane.b32.xlu0 %v2700, 64
      %v2813 = vpop.permute.xlu0 %2812
      %2814 = vrot.lane.b32.xlu0 %v2701, 64
      %v2815 = vpop.permute.xlu0 %2814
      %2816 = vrot.lane.b32.xlu0 %v2702, 64
      %v2817 = vpop.permute.xlu0 %2816
      %2818 = vrot.lane.b32.xlu0 %v2703, 64
      %v2819 = vpop.permute.xlu0 %2818
      %2820 = vrot.lane.b32.xlu0 %v2704, 64
      %v2821 = vpop.permute.xlu0 %2820
      %2822 = vrot.lane.b32.xlu0 %v2705, 64
      %v2823 = vpop.permute.xlu0 %2822
      %2824 = vrot.lane.b32.xlu0 %v2706, 64
      %v2825 = vpop.permute.xlu0 %2824
      %2826 = vrot.lane.b32.xlu0 %v2707, 64
      %v2827 = vpop.permute.xlu0 %2826
      %2828 = vrot.lane.b32.xlu0 %v2708, 64
      %v2829 = vpop.permute.xlu0 %2828
      %2830 = vrot.lane.b32.xlu0 %v2709, 64
      %v2831 = vpop.permute.xlu0 %2830
      %2832 = vrot.lane.b32.xlu0 %v2710, 64
      %v2833 = vpop.permute.xlu0 %2832
      %2834 = vrot.lane.b32.xlu0 %v2711, 64
      %v2835 = vpop.permute.xlu0 %2834
      %2836 = vrot.lane.b32.xlu0 %v2712, 64
      %v2837 = vpop.permute.xlu0 %2836
      %2838 = vrot.lane.b32.xlu0 %v2713, 64
      %v2839 = vpop.permute.xlu0 %2838
      %2840 = vrot.lane.b32.xlu0 %v2714, 64
      %v2841 = vpop.permute.xlu0 %2840
      %2842 = vrot.lane.b32.xlu0 %v2715, 64
      %v2843 = vpop.permute.xlu0 %2842
      %2844 = vrot.lane.b32.xlu0 %v2716, 64
      %v2845 = vpop.permute.xlu0 %2844
      %2846 = vrot.lane.b32.xlu0 %v2717, 64
      %v2847 = vpop.permute.xlu0 %2846
      %2848 = vrot.lane.b32.xlu0 %v2718, 64
      %v2849 = vpop.permute.xlu0 %2848
      %2850 = vrot.lane.b32.xlu0 %v2719, 64
      %v2851 = vpop.permute.xlu0 %2850
      %2852 = vrot.lane.b32.xlu0 %v2720, 64
      %v2853 = vpop.permute.xlu0 %2852
      %2854 = vrot.lane.b32.xlu0 %v2721, 64
      %v2855 = vpop.permute.xlu0 %2854
      %2856 = vrot.lane.b32.xlu0 %v2722, 64
      %v2857 = vpop.permute.xlu0 %2856
      %2858 = vrot.lane.b32.xlu0 %v2723, 64
      %v2859 = vpop.permute.xlu0 %2858
      %2860 = vrot.lane.b32.xlu0 %v2724, 64
      %v2861 = vpop.permute.xlu0 %2860
      %2862 = vrot.lane.b32.xlu0 %v2725, 64
      %v2863 = vpop.permute.xlu0 %2862
      %2864 = vrot.lane.b32.xlu0 %v2726, 64
      %v2865 = vpop.permute.xlu0 %2864
      %2866 = vrot.lane.b32.xlu0 %v2727, 64
      %v2867 = vpop.permute.xlu0 %2866
      %2868 = vrot.lane.b32.xlu0 %v2728, 64
      %v2869 = vpop.permute.xlu0 %2868
      %2870 = vrot.lane.b32.xlu0 %v2729, 64
      %v2871 = vpop.permute.xlu0 %2870
      %2872 = vrot.lane.b32.xlu0 %v2730, 64
      %v2873 = vpop.permute.xlu0 %2872
      %2874 = vrot.lane.b32.xlu0 %v2731, 64
      %v2875 = vpop.permute.xlu0 %2874
      %v2912 = vsel %vm1996, %v2660, %v2805
      %v2913 = vsel %vm1996, %v2661, %v2807
      %v2914 = vsel %vm1996, %v2662, %v2809
      %v2915 = vsel %vm1996, %v2663, %v2811
      %v2916 = vsel %vm1996, %v2664, %v2813
      %v2917 = vsel %vm1996, %v2665, %v2815
      %v2918 = vsel %vm1996, %v2666, %v2817
      %v2919 = vsel %vm1996, %v2667, %v2819
      %v2920 = vsel %vm1996, %v2668, %v2821
      %v2921 = vsel %vm1996, %v2669, %v2823
      %v2922 = vsel %vm1996, %v2670, %v2825
      %v2923 = vsel %vm1996, %v2671, %v2827
      %v2924 = vsel %vm1996, %v2672, %v2829
      %v2925 = vsel %vm1996, %v2673, %v2831
      %v2926 = vsel %vm1996, %v2674, %v2833
      %v2927 = vsel %vm1996, %v2675, %v2835
      %v2928 = vsel %vm1996, %v2676, %v2837
      %v2929 = vsel %vm1996, %v2677, %v2839
      %v2930 = vsel %vm1996, %v2678, %v2841
      %v2931 = vsel %vm1996, %v2679, %v2843
      %v2932 = vsel %vm1996, %v2680, %v2845
      %v2933 = vsel %vm1996, %v2681, %v2847
      %v2934 = vsel %vm1996, %v2682, %v2849
      %v2935 = vsel %vm1996, %v2683, %v2851
      %v2936 = vsel %vm1996, %v2684, %v2853
      %v2937 = vsel %vm1996, %v2685, %v2855
      %v2938 = vsel %vm1996, %v2686, %v2857
      %v2939 = vsel %vm1996, %v2687, %v2859
      %v2940 = vsel %vm1996, %v2688, %v2861
      %v2941 = vsel %vm1996, %v2689, %v2863
      %v2942 = vsel %vm1996, %v2690, %v2865
      %v2943 = vsel %vm1996, %v2691, %v2867
      %v2944 = vsel %vm1996, %v2692, %v2869
      %v2945 = vsel %vm1996, %v2693, %v2871
      %v2946 = vsel %vm1996, %v2694, %v2873
      %v2947 = vsel %vm1996, %v2695, %v2875
      %v2948 = vpack.c.bf16 %v2913, %v2912
      %v2949 = vpack.c.bf16 %v2733, %v2732
      %v2950 = vpack.c.bf16 %v2915, %v2914
      %v2951 = vpack.c.bf16 %v2735, %v2734
      %v2952 = vpack.c.bf16 %v2917, %v2916
      %v2953 = vpack.c.bf16 %v2737, %v2736
      %v2954 = vpack.c.bf16 %v2919, %v2918
      %v2955 = vpack.c.bf16 %v2739, %v2738
      %v2956 = vpack.c.bf16 %v2921, %v2920
      %v2957 = vpack.c.bf16 %v2741, %v2740
      %v2958 = vpack.c.bf16 %v2923, %v2922
      %v2959 = vpack.c.bf16 %v2743, %v2742
      %v2960 = vpack.c.bf16 %v2925, %v2924
      %v2961 = vpack.c.bf16 %v2745, %v2744
      %v2962 = vpack.c.bf16 %v2927, %v2926
      %v2963 = vpack.c.bf16 %v2747, %v2746
      %v2964 = vpack.c.bf16 %v2929, %v2928
      %v2965 = vpack.c.bf16 %v2749, %v2748
      %v2966 = vpack.c.bf16 %v2931, %v2930
      %v2967 = vpack.c.bf16 %v2751, %v2750
      %v2968 = vpack.c.bf16 %v2933, %v2932
      %v2969 = vpack.c.bf16 %v2753, %v2752
      %v2970 = vpack.c.bf16 %v2935, %v2934
      %v2971 = vpack.c.bf16 %v2755, %v2754
      %v2972 = vpack.c.bf16 %v2937, %v2936
      %v2973 = vpack.c.bf16 %v2757, %v2756
      %v2974 = vpack.c.bf16 %v2939, %v2938
      %v2975 = vpack.c.bf16 %v2759, %v2758
      %v2976 = vpack.c.bf16 %v2941, %v2940
      %v2977 = vpack.c.bf16 %v2761, %v2760
      %v2978 = vpack.c.bf16 %v2943, %v2942
      %v2979 = vpack.c.bf16 %v2763, %v2762
      %v2980 = vpack.c.bf16 %v2945, %v2944
      %v2981 = vpack.c.bf16 %v2765, %v2764
      %v2982 = vpack.c.bf16 %v2947, %v2946
      %v2983 = vpack.c.bf16 %v2767, %v2766
      %v2984 = vld [vmem:[%s4] sm:$0xf]
      %v2985 = vld [vmem:[%s4 + $0x4] sm:$0xf]
      %v2986 = vld [vmem:[%s4 + $0x8] sm:$0xf]
      %v2987 = vld [vmem:[%s4 + $0xc] sm:$0xf]
      %v2988 = vld [vmem:[%s4 + $0x10] sm:$0xf]
      %v2989 = vld [vmem:[%s4 + $0x14] sm:$0xf]
      %v2990 = vld [vmem:[%s4 + $0x18] sm:$0xf]
      %v2991 = vld [vmem:[%s4 + $0x1c] sm:$0xf]
      %v2992 = vld [vmem:[%s4 + $0x20] sm:$0xf]
      %v2993 = vld [vmem:[%s4 + $0x24] sm:$0xf]
      %v2994 = vld [vmem:[%s4 + $0x28] sm:$0xf]
      %v2995 = vld [vmem:[%s4 + $0x2c] sm:$0xf]
      %v2996 = vld [vmem:[%s4 + $0x30] sm:$0xf]
      %v2997 = vld [vmem:[%s4 + $0x34] sm:$0xf]
      %v2998 = vld [vmem:[%s4 + $0x38] sm:$0xf]
      %v2999 = vld [vmem:[%s4 + $0x3c] sm:$0xf]
      %v3000 = vld [vmem:[%s4 + $0x40] sm:$0xf]
      %v3001 = vld [vmem:[%s4 + $0x44] sm:$0xf]
      %v3002 = vld [vmem:[%s4 + $0x48] sm:$0xf]
      %v3003 = vld [vmem:[%s4 + $0x4c] sm:$0xf]
      %v3004 = vld [vmem:[%s4 + $0x50] sm:$0xf]
      %v3005 = vld [vmem:[%s4 + $0x54] sm:$0xf]
      %v3006 = vld [vmem:[%s4 + $0x58] sm:$0xf]
      %v3007 = vld [vmem:[%s4 + $0x5c] sm:$0xf]
      %v3008 = vld [vmem:[#allocation2 + $0x127] sm:$0xff]
      %v3009 = vld [vmem:[#allocation2 + $0x12f] sm:$0xff]
      %v3010 = vld [vmem:[#allocation2 + $0x18] sm:$0xff]
      %v3011 = vld [vmem:[#allocation2 + $0x20] sm:$0xff]
      %v3012 = vld [vmem:[#allocation2 + $0x28] sm:$0xff]
      %v3013 = vld [vmem:[#allocation2 + $0x30] sm:$0xff]
      %v3014 = vld [vmem:[#allocation2 + $0x38] sm:$0xff]
      %v3015 = vld [vmem:[#allocation2 + $0x40] sm:$0xff]
      %v3016 = vld [vmem:[#allocation2 + $0x48] sm:$0xff]
      %v3017 = vld [vmem:[#allocation2 + $0x50] sm:$0xff]
      %v3018 = vld [vmem:[#allocation2 + $0x58] sm:$0xff]
      %v3019 = vld [vmem:[#allocation2 + $0x60] sm:$0xff]
      %v3020 = vld [vmem:[#allocation2 + $0x68] sm:$0xff]
      %v3021 = vld [vmem:[#allocation2 + $0x70] sm:$0xff]
      %v3022 = vld [vmem:[#allocation2 + $0x78] sm:$0xff]
      %v3023 = vld [vmem:[#allocation2 + $0x80] sm:$0xff]
      %v3024 = vld [vmem:[#allocation2 + $0x88] sm:$0xff]
      %v3025 = vld [vmem:[#allocation2 + $0x90] sm:$0xff]
      %v3026 = vld [vmem:[#allocation2 + $0x98] sm:$0xff]
      %v3027 = vld [vmem:[#allocation2 + $0xa0] sm:$0xff]
      %v3028 = vld [vmem:[#allocation2 + $0xa8] sm:$0xff]
      %v3029 = vld [vmem:[#allocation2 + $0xb0] sm:$0xff]
      %v3030 = vld [vmem:[#allocation2 + $0xb8] sm:$0xff]
      %v3031 = vld [vmem:[#allocation2 + $0xc0] sm:$0xff]
      %v3032 = vld [vmem:[#allocation2 + $0xc8] sm:$0xff]
      %v3033 = vld [vmem:[#allocation2 + $0xd0] sm:$0xff]
      %v3034 = vld [vmem:[#allocation2 + $0xd8] sm:$0xff]
      %v3035 = vld [vmem:[#allocation2 + $0xe0] sm:$0xff]
      %v3036 = vld [vmem:[#allocation2 + $0xe8] sm:$0xff]
      %v3037 = vld [vmem:[#allocation2 + $0xf0] sm:$0xff]
      %v3038 = vld [vmem:[#allocation2 + $0xf8] sm:$0xff]
      %v3039 = vld [vmem:[#allocation2 + $0x100] sm:$0xff]
      %v3040 = vld [vmem:[#allocation2 + $0x108] sm:$0xff]
      %v3041 = vld [vmem:[#allocation2 + $0x110] sm:$0xff]
      %v3042 = vld [vmem:[#allocation2 + $0x118] sm:$0xff]
      %v3043 = vld [vmem:[#allocation2 + $0x120] sm:$0xff]
      %v3044 = vld [vmem:[#allocation2 + $0x128] sm:$0xff]
      %v3045 = vld [vmem:[#allocation2 + $0x130] sm:$0xff]
      %v3046 = vld [vmem:[#allocation2 + $0x19] sm:$0xff]
      %v3047 = vld [vmem:[#allocation2 + $0x21] sm:$0xff]
      %v3048 = vld [vmem:[#allocation2 + $0x29] sm:$0xff]
      %v3049 = vld [vmem:[#allocation2 + $0x31] sm:$0xff]
      %v3050 = vld [vmem:[#allocation2 + $0x39] sm:$0xff]
      %v3051 = vld [vmem:[#allocation2 + $0x41] sm:$0xff]
      %v3052 = vld [vmem:[#allocation2 + $0x49] sm:$0xff]
      %v3053 = vld [vmem:[#allocation2 + $0x51] sm:$0xff]
      %v3054 = vld [vmem:[#allocation2 + $0x59] sm:$0xff]
      %v3055 = vld [vmem:[#allocation2 + $0x61] sm:$0xff]
      %v3056 = vld [vmem:[#allocation2 + $0x69] sm:$0xff]
      %v3057 = vld [vmem:[#allocation2 + $0x71] sm:$0xff]
      %v3058 = vld [vmem:[#allocation2 + $0x79] sm:$0xff]
      %v3059 = vld [vmem:[#allocation2 + $0x81] sm:$0xff]
      %v3060 = vld [vmem:[#allocation2 + $0x89] sm:$0xff]
      %v3061 = vld [vmem:[#allocation2 + $0x91] sm:$0xff]
      %v3062 = vld [vmem:[#allocation2 + $0x99] sm:$0xff]
      %v3063 = vld [vmem:[#allocation2 + $0xa1] sm:$0xff]
      %v3064 = vld [vmem:[#allocation2 + $0xa9] sm:$0xff]
      %v3065 = vld [vmem:[#allocation2 + $0xb1] sm:$0xff]
      %v3066 = vld [vmem:[#allocation2 + $0xb9] sm:$0xff]
      %v3067 = vld [vmem:[#allocation2 + $0xc1] sm:$0xff]
      %v3068 = vld [vmem:[#allocation2 + $0xc9] sm:$0xff]
      %v3069 = vld [vmem:[#allocation2 + $0xd1] sm:$0xff]
      %v3070 = vld [vmem:[#allocation2 + $0xd9] sm:$0xff]
      %v3071 = vld [vmem:[#allocation2 + $0xe1] sm:$0xff]
      %v3072 = vld [vmem:[#allocation2 + $0xe9] sm:$0xff]
      %v3073 = vld [vmem:[#allocation2 + $0xf1] sm:$0xff]
      %v3074 = vld [vmem:[#allocation2 + $0xf9] sm:$0xff]
      %v3075 = vld [vmem:[#allocation2 + $0x101] sm:$0xff]
      %v3076 = vld [vmem:[#allocation2 + $0x109] sm:$0xff]
      %v3077 = vld [vmem:[#allocation2 + $0x111] sm:$0xff]
      %v3078 = vld [vmem:[#allocation2 + $0x119] sm:$0xff]
      %v3079 = vld [vmem:[#allocation2 + $0x121] sm:$0xff]
      %v3080 = vld [vmem:[#allocation2 + $0x129] sm:$0xff]
      %v3081 = vld [vmem:[#allocation2 + $0x131] sm:$0xff]
      %3118 = vrot.lane.b32.xlu0 %v3010, 64
      %v3119 = vpop.permute.xlu0 %3118
      %3120 = vrot.lane.b32.xlu0 %v3011, 64
      %v3121 = vpop.permute.xlu0 %3120
      %3122 = vrot.lane.b32.xlu0 %v3012, 64
      %v3123 = vpop.permute.xlu0 %3122
      %3124 = vrot.lane.b32.xlu0 %v3013, 64
      %v3125 = vpop.permute.xlu0 %3124
      %3126 = vrot.lane.b32.xlu0 %v3014, 64
      %v3127 = vpop.permute.xlu0 %3126
      %3128 = vrot.lane.b32.xlu0 %v3015, 64
      %v3129 = vpop.permute.xlu0 %3128
      %3130 = vrot.lane.b32.xlu0 %v3016, 64
      %v3131 = vpop.permute.xlu0 %3130
      %3132 = vrot.lane.b32.xlu0 %v3017, 64
      %v3133 = vpop.permute.xlu0 %3132
      %3134 = vrot.lane.b32.xlu0 %v3018, 64
      %v3135 = vpop.permute.xlu0 %3134
      %3136 = vrot.lane.b32.xlu0 %v3019, 64
      %v3137 = vpop.permute.xlu0 %3136
      %3138 = vrot.lane.b32.xlu0 %v3020, 64
      %v3139 = vpop.permute.xlu0 %3138
      %3140 = vrot.lane.b32.xlu0 %v3021, 64
      %v3141 = vpop.permute.xlu0 %3140
      %3142 = vrot.lane.b32.xlu0 %v3022, 64
      %v3143 = vpop.permute.xlu0 %3142
      %3144 = vrot.lane.b32.xlu0 %v3023, 64
      %v3145 = vpop.permute.xlu0 %3144
      %3146 = vrot.lane.b32.xlu0 %v3024, 64
      %v3147 = vpop.permute.xlu0 %3146
      %3148 = vrot.lane.b32.xlu0 %v3025, 64
      %v3149 = vpop.permute.xlu0 %3148
      %3150 = vrot.lane.b32.xlu0 %v3026, 64
      %v3151 = vpop.permute.xlu0 %3150
      %3152 = vrot.lane.b32.xlu0 %v3027, 64
      %v3153 = vpop.permute.xlu0 %3152
      %3154 = vrot.lane.b32.xlu0 %v3028, 64
      %v3155 = vpop.permute.xlu0 %3154
      %3156 = vrot.lane.b32.xlu0 %v3029, 64
      %v3157 = vpop.permute.xlu0 %3156
      %3158 = vrot.lane.b32.xlu0 %v3030, 64
      %v3159 = vpop.permute.xlu0 %3158
      %3160 = vrot.lane.b32.xlu0 %v3031, 64
      %v3161 = vpop.permute.xlu0 %3160
      %3162 = vrot.lane.b32.xlu0 %v3032, 64
      %v3163 = vpop.permute.xlu0 %3162
      %3164 = vrot.lane.b32.xlu0 %v3033, 64
      %v3165 = vpop.permute.xlu0 %3164
      %3166 = vrot.lane.b32.xlu0 %v3034, 64
      %v3167 = vpop.permute.xlu0 %3166
      %3168 = vrot.lane.b32.xlu0 %v3035, 64
      %v3169 = vpop.permute.xlu0 %3168
      %3170 = vrot.lane.b32.xlu0 %v3036, 64
      %v3171 = vpop.permute.xlu0 %3170
      %3172 = vrot.lane.b32.xlu0 %v3037, 64
      %v3173 = vpop.permute.xlu0 %3172
      %3174 = vrot.lane.b32.xlu0 %v3038, 64
      %v3175 = vpop.permute.xlu0 %3174
      %3176 = vrot.lane.b32.xlu0 %v3039, 64
      %v3177 = vpop.permute.xlu0 %3176
      %3178 = vrot.lane.b32.xlu0 %v3040, 64
      %v3179 = vpop.permute.xlu0 %3178
      %3180 = vrot.lane.b32.xlu0 %v3041, 64
      %v3181 = vpop.permute.xlu0 %3180
      %3182 = vrot.lane.b32.xlu0 %v3042, 64
      %v3183 = vpop.permute.xlu0 %3182
      %3184 = vrot.lane.b32.xlu0 %v3043, 64
      %v3185 = vpop.permute.xlu0 %3184
      %3186 = vrot.lane.b32.xlu0 %v3044, 64
      %v3187 = vpop.permute.xlu0 %3186
      %3188 = vrot.lane.b32.xlu0 %v3045, 64
      %v3189 = vpop.permute.xlu0 %3188
      %v3226 = vsel %vm1996, %v2734, %v3119
      %v3227 = vsel %vm1996, %v2735, %v3121
      %v3228 = vsel %vm1996, %v2736, %v3123
      %v3229 = vsel %vm1996, %v2737, %v3125
      %v3230 = vsel %vm1996, %v2738, %v3127
      %v3231 = vsel %vm1996, %v2739, %v3129
      %v3232 = vsel %vm1996, %v2740, %v3131
      %v3233 = vsel %vm1996, %v2741, %v3133
      %v3234 = vsel %vm1996, %v2742, %v3135
      %v3235 = vsel %vm1996, %v2743, %v3137
      %v3236 = vsel %vm1996, %v2744, %v3139
      %v3237 = vsel %vm1996, %v2745, %v3141
      %v3238 = vsel %vm1996, %v2746, %v3143
      %v3239 = vsel %vm1996, %v2747, %v3145
      %v3240 = vsel %vm1996, %v2748, %v3147
      %v3241 = vsel %vm1996, %v2749, %v3149
      %v3242 = vsel %vm1996, %v2750, %v3151
      %v3243 = vsel %vm1996, %v2751, %v3153
      %v3244 = vsel %vm1996, %v2752, %v3155
      %v3245 = vsel %vm1996, %v2753, %v3157
      %v3246 = vsel %vm1996, %v2754, %v3159
      %v3247 = vsel %vm1996, %v2755, %v3161
      %v3248 = vsel %vm1996, %v2756, %v3163
      %v3249 = vsel %vm1996, %v2757, %v3165
      %v3250 = vsel %vm1996, %v2758, %v3167
      %v3251 = vsel %vm1996, %v2759, %v3169
      %v3252 = vsel %vm1996, %v2760, %v3171
      %v3253 = vsel %vm1996, %v2761, %v3173
      %v3254 = vsel %vm1996, %v2762, %v3175
      %v3255 = vsel %vm1996, %v2763, %v3177
      %v3256 = vsel %vm1996, %v2764, %v3179
      %v3257 = vsel %vm1996, %v2765, %v3181
      %v3258 = vsel %vm1996, %v2766, %v3183
      %v3259 = vsel %vm1996, %v2767, %v3185
      %v3260 = vsel %vm1996, %v3008, %v3187
      %v3261 = vsel %vm1996, %v3009, %v3189
      %v3262 = vpack.c.bf16 %v3227, %v3226
      %v3263 = vpack.c.bf16 %v3047, %v3046
      %v3264 = vpack.c.bf16 %v3229, %v3228
      %v3265 = vpack.c.bf16 %v3049, %v3048
      %v3266 = vpack.c.bf16 %v3231, %v3230
      %v3267 = vpack.c.bf16 %v3051, %v3050
      %v3268 = vpack.c.bf16 %v3233, %v3232
      %v3269 = vpack.c.bf16 %v3053, %v3052
      %v3270 = vpack.c.bf16 %v3235, %v3234
      %v3271 = vpack.c.bf16 %v3055, %v3054
      %v3272 = vpack.c.bf16 %v3237, %v3236
      %v3273 = vpack.c.bf16 %v3057, %v3056
      %v3274 = vpack.c.bf16 %v3239, %v3238
      %v3275 = vpack.c.bf16 %v3059, %v3058
      %v3276 = vpack.c.bf16 %v3241, %v3240
      %v3277 = vpack.c.bf16 %v3061, %v3060
      %v3278 = vpack.c.bf16 %v3243, %v3242
      %v3279 = vpack.c.bf16 %v3063, %v3062
      %v3280 = vpack.c.bf16 %v3245, %v3244
      %v3281 = vpack.c.bf16 %v3065, %v3064
      %v3282 = vpack.c.bf16 %v3247, %v3246
      %v3283 = vpack.c.bf16 %v3067, %v3066
      %v3284 = vpack.c.bf16 %v3249, %v3248
      %v3285 = vpack.c.bf16 %v3069, %v3068
      %v3286 = vpack.c.bf16 %v3251, %v3250
      %v3287 = vpack.c.bf16 %v3071, %v3070
      %v3288 = vpack.c.bf16 %v3253, %v3252
      %v3289 = vpack.c.bf16 %v3073, %v3072
      %v3290 = vpack.c.bf16 %v3255, %v3254
      %v3291 = vpack.c.bf16 %v3075, %v3074
      %v3292 = vpack.c.bf16 %v3257, %v3256
      %v3293 = vpack.c.bf16 %v3077, %v3076
      %v3294 = vpack.c.bf16 %v3259, %v3258
      %v3295 = vpack.c.bf16 %v3079, %v3078
      %v3296 = vpack.c.bf16 %v3261, %v3260
      %v3297 = vpack.c.bf16 %v3081, %v3080
      %s3298 = scalar_lea.vmem %s4, 96
      %v3299 = vld [vmem:[%s3298] sm:$0xf]
      %v3300 = vld [vmem:[%s3298 + $0x4] sm:$0xf]
      %v3301 = vld [vmem:[%s3298 + $0x8] sm:$0xf]
      %v3302 = vld [vmem:[%s3298 + $0xc] sm:$0xf]
      %v3303 = vld [vmem:[%s3298 + $0x10] sm:$0xf]
      %v3304 = vld [vmem:[%s3298 + $0x14] sm:$0xf]
      %v3305 = vld [vmem:[%s3298 + $0x18] sm:$0xf]
      %v3306 = vld [vmem:[%s3298 + $0x1c] sm:$0xf]
      %v3307 = vld [vmem:[%s3298 + $0x20] sm:$0xf]
      %v3308 = vld [vmem:[%s3298 + $0x24] sm:$0xf]
      %v3309 = vld [vmem:[%s3298 + $0x28] sm:$0xf]
      %v3310 = vld [vmem:[%s3298 + $0x2c] sm:$0xf]
      %v3311 = vld [vmem:[%s3298 + $0x30] sm:$0xf]
      %v3312 = vld [vmem:[%s3298 + $0x34] sm:$0xf]
      %v3313 = vld [vmem:[%s3298 + $0x38] sm:$0xf]
      %v3314 = vld [vmem:[%s3298 + $0x3c] sm:$0xf]
      %v3315 = vld [vmem:[%s3298 + $0x40] sm:$0xf]
      %v3316 = vld [vmem:[%s3298 + $0x44] sm:$0xf]
      %v3317 = vld [vmem:[%s3298 + $0x48] sm:$0xf]
      %v3318 = vld [vmem:[%s3298 + $0x4c] sm:$0xf]
      %v3319 = vld [vmem:[%s3298 + $0x50] sm:$0xf]
      %v3320 = vld [vmem:[%s3298 + $0x54] sm:$0xf]
      %v3321 = vld [vmem:[%s3298 + $0x58] sm:$0xf]
      %v3322 = vld [vmem:[%s3298 + $0x5c] sm:$0xf]
      %v3347 = vunpack.c.l.b16 %v3299
      %v3348 = vunpack.c.l.b16 %v3300
      %v3349 = vunpack.c.l.b16 %v3301
      %v3350 = vunpack.c.l.b16 %v3302
      %v3351 = vunpack.c.l.b16 %v3303
      %v3352 = vunpack.c.l.b16 %v3304
      %v3353 = vunpack.c.l.b16 %v3305
      %v3354 = vunpack.c.l.b16 %v3306
      %v3355 = vunpack.c.l.b16 %v3307
      %v3356 = vunpack.c.l.b16 %v3308
      %v3357 = vunpack.c.l.b16 %v3309
      %v3358 = vunpack.c.l.b16 %v3310
      %v3359 = vunpack.c.l.b16 %v3311
      %v3360 = vunpack.c.l.b16 %v3312
      %v3361 = vunpack.c.l.b16 %v3313
      %v3362 = vunpack.c.l.b16 %v3314
      %v3363 = vunpack.c.l.b16 %v3315
      %v3364 = vunpack.c.l.b16 %v3316
      %v3365 = vunpack.c.l.b16 %v3317
      %v3366 = vunpack.c.l.b16 %v3318
      %v3367 = vunpack.c.l.b16 %v3319
      %v3368 = vunpack.c.l.b16 %v3320
      %v3369 = vunpack.c.l.b16 %v3321
      %v3370 = vunpack.c.l.b16 %v3322
      %v3371 = vpack.c.b16 %v3348, %v3347
      %v3372 = vpack.c.b16 %v3350, %v3349
      %v3373 = vpack.c.b16 %v3352, %v3351
      %v3374 = vpack.c.b16 %v3354, %v3353
      %v3375 = vpack.c.b16 %v3356, %v3355
      %v3376 = vpack.c.b16 %v3358, %v3357
      %v3377 = vpack.c.b16 %v3360, %v3359
      %v3378 = vpack.c.b16 %v3362, %v3361
      %v3379 = vpack.c.b16 %v3364, %v3363
      %v3380 = vpack.c.b16 %v3366, %v3365
      %v3381 = vpack.c.b16 %v3368, %v3367
      %v3382 = vpack.c.b16 %v3370, %v3369
      %v3396 = vsel %vm1996, %v3263, 0
      %v3399 = vsel %vm1996, %v3265, 0
      %v3402 = vsel %vm1996, %v3267, 0
      %v3405 = vsel %vm1996, %v3269, 0
      %v3408 = vsel %vm1996, %v3271, 0
      %v3411 = vsel %vm1996, %v3273, 0
      %v3414 = vsel %vm1996, %v3275, 0
      %v3417 = vsel %vm1996, %v3277, 0
      %v3420 = vsel %vm1996, %v3279, 0
      %v3423 = vsel %vm1996, %v3281, 0
      %v3426 = vsel %vm1996, %v3283, 0
      %v3429 = vsel %vm1996, %v3285, 0
      %v3432 = vsel %vm1996, %v3287, 0
      %v3435 = vsel %vm1996, %v3289, 0
      %v3438 = vsel %vm1996, %v3291, 0
      %v3441 = vsel %vm1996, %v3293, 0
      %v3444 = vsel %vm1996, %v3295, 0
      %v3447 = vsel %vm1996, %v3297, 0
      %3449 = vmatprep.subr.bf16.mxu0 0
      %3450 = vmatpush1.bf16.msra.mxu0 %v3378
      %3451 = vmatprep.subr.bf16.mxu0 0
      %3452 = vmatpush1.bf16.msra.mxu0 %v3377
      %3453 = vmatprep.subr.bf16.mxu0 0
      %3454 = vmatpush1.bf16.msra.mxu0 %v3376
      %3455 = vmatprep.subr.bf16.mxu0 0
      %3456 = vmatpush1.bf16.msra.mxu0 %v3375
      %3457 = vmatprep.subr.bf16.mxu0 0
      %3458 = vmatpush1.bf16.msra.mxu0 %v3374
      %3459 = vmatprep.subr.bf16.mxu0 0
      %3460 = vmatpush1.bf16.msra.mxu0 %v3373
      %3461 = vmatprep.subr.bf16.mxu0 0
      %3462 = vmatpush1.bf16.msra.mxu0 %v3372
      %3463 = vmatprep.subr.bf16.mxu0 0
      %3464 = vmatpush1.bf16.msra.mxu0 %v3371
      %3465 = vmatprep.subr.bf16.mxu0 0
      %3466 = vmatpush2.bf16.msra.mxu0 0
      %3467 = vmatprep.subr.bf16.mxu0 0
      %3468 = vmatpush2.bf16.msra.mxu0 0
      %3469 = vmatprep.subr.bf16.mxu0 0
      %3470 = vmatpush2.bf16.msra.mxu0 0
      %3471 = vmatprep.subr.bf16.mxu0 0
      %3472 = vmatpush2.bf16.msra.mxu0 0
      %3473 = vmatprep.subr.bf16.mxu0 0
      %3474 = vmatpush2.bf16.msra.mxu0 %v3382
      %3475 = vmatprep.subr.bf16.mxu0 0
      %3476 = vmatpush2.bf16.msra.mxu0 %v3381
      %3477 = vmatprep.subr.bf16.mxu0 0
      %3478 = vmatpush2.bf16.msra.mxu0 %v3380
      %3479 = vmatprep.subr.bf16.mxu0 0
      %3480 = vmatpush2.bf16.msra.mxu0 %v3379
      %3481 = vmatprep.mubr.bf16.mxu0 %v3396
      %3482 = vmatmul.mubr.bf16.gmra.mxu0 %v3262
      %v3483 = vpop.f32.mrf.mxu0
      %v3484 = vadd.f32 0.0, %v3483
      %v3485 = vpop.f32.mrf.mxu0
      %v3486 = vpop.f32.mrf.mxu0
      %v3487 = vadd.f32 0.0, %v3486
      %v3488 = vpop.f32.mrf.mxu0
      %3489 = vmatprep.mubr.bf16.mxu0 %v3399
      %3490 = vmatmul.mubr.bf16.gmra.mxu0 %v3264
      %v3491 = vpop.f32.mrf.mxu0
      %v3492 = vadd.f32 0.0, %v3491
      %v3493 = vpop.f32.mrf.mxu0
      %v3494 = vpop.f32.mrf.mxu0
      %v3495 = vadd.f32 0.0, %v3494
      %v3496 = vpop.f32.mrf.mxu0
      %3497 = vmatprep.mubr.bf16.mxu0 %v3402
      %3498 = vmatmul.mubr.bf16.gmra.mxu0 %v3266
      %v3499 = vpop.f32.mrf.mxu0
      %v3500 = vadd.f32 0.0, %v3499
      %v3501 = vpop.f32.mrf.mxu0
      %v3502 = vpop.f32.mrf.mxu0
      %v3503 = vadd.f32 0.0, %v3502
      %v3504 = vpop.f32.mrf.mxu0
      %3505 = vmatprep.mubr.bf16.mxu0 %v3405
      %3506 = vmatmul.mubr.bf16.gmra.mxu0 %v3268
      %v3507 = vpop.f32.mrf.mxu0
      %v3508 = vadd.f32 0.0, %v3507
      %v3509 = vpop.f32.mrf.mxu0
      %v3510 = vpop.f32.mrf.mxu0
      %v3511 = vadd.f32 0.0, %v3510
      %v3512 = vpop.f32.mrf.mxu0
      %3513 = vmatprep.mubr.bf16.mxu0 %v3408
      %3514 = vmatmul.mubr.bf16.gmra.mxu0 %v3270
      %v3515 = vpop.f32.mrf.mxu0
      %v3516 = vadd.f32 0.0, %v3515
      %v3517 = vpop.f32.mrf.mxu0
      %v3518 = vpop.f32.mrf.mxu0
      %v3519 = vadd.f32 0.0, %v3518
      %v3520 = vpop.f32.mrf.mxu0
      %3521 = vmatprep.mubr.bf16.mxu0 %v3411
      %3522 = vmatmul.mubr.bf16.gmra.mxu0 %v3272
      %v3523 = vpop.f32.mrf.mxu0
      %v3524 = vadd.f32 0.0, %v3523
      %v3525 = vpop.f32.mrf.mxu0
      %v3526 = vpop.f32.mrf.mxu0
      %v3527 = vadd.f32 0.0, %v3526
      %v3528 = vpop.f32.mrf.mxu0
      %3529 = vmatprep.mubr.bf16.mxu0 %v3414
      %3530 = vmatmul.mubr.bf16.gmra.mxu0 %v3274
      %v3531 = vpop.f32.mrf.mxu0
      %v3532 = vadd.f32 0.0, %v3531
      %v3533 = vpop.f32.mrf.mxu0
      %v3534 = vpop.f32.mrf.mxu0
      %v3535 = vadd.f32 0.0, %v3534
      %v3536 = vpop.f32.mrf.mxu0
      %3537 = vmatprep.mubr.bf16.mxu0 %v3417
      %3538 = vmatmul.mubr.bf16.gmra.mxu0 %v3276
      %v3539 = vpop.f32.mrf.mxu0
      %v3540 = vadd.f32 0.0, %v3539
      %v3541 = vpop.f32.mrf.mxu0
      %v3542 = vpop.f32.mrf.mxu0
      %v3543 = vadd.f32 0.0, %v3542
      %v3544 = vpop.f32.mrf.mxu0
      %3545 = vmatprep.mubr.bf16.mxu0 %v3420
      %3546 = vmatmul.mubr.bf16.gmra.mxu0 %v3278
      %v3547 = vpop.f32.mrf.mxu0
      %v3548 = vadd.f32 0.0, %v3547
      %v3549 = vpop.f32.mrf.mxu0
      %v3550 = vpop.f32.mrf.mxu0
      %v3551 = vadd.f32 0.0, %v3550
      %v3552 = vpop.f32.mrf.mxu0
      %3553 = vmatprep.mubr.bf16.mxu0 %v3423
      %3554 = vmatmul.mubr.bf16.gmra.mxu0 %v3280
      %v3555 = vpop.f32.mrf.mxu0
      %v3556 = vadd.f32 0.0, %v3555
      %v3557 = vpop.f32.mrf.mxu0
      %v3558 = vpop.f32.mrf.mxu0
      %v3559 = vadd.f32 0.0, %v3558
      %v3560 = vpop.f32.mrf.mxu0
      %3561 = vmatprep.mubr.bf16.mxu0 %v3426
      %3562 = vmatmul.mubr.bf16.gmra.mxu0 %v3282
      %v3563 = vpop.f32.mrf.mxu0
      %v3564 = vadd.f32 0.0, %v3563
      %v3565 = vpop.f32.mrf.mxu0
      %v3566 = vpop.f32.mrf.mxu0
      %v3567 = vadd.f32 0.0, %v3566
      %v3568 = vpop.f32.mrf.mxu0
      %3569 = vmatprep.mubr.bf16.mxu0 %v3429
      %3570 = vmatmul.mubr.bf16.gmra.mxu0 %v3284
      %v3571 = vpop.f32.mrf.mxu0
      %v3572 = vadd.f32 0.0, %v3571
      %v3573 = vpop.f32.mrf.mxu0
      %v3574 = vpop.f32.mrf.mxu0
      %v3575 = vadd.f32 0.0, %v3574
      %v3576 = vpop.f32.mrf.mxu0
      %3577 = vmatprep.mubr.bf16.mxu0 %v3432
      %3578 = vmatmul.mubr.bf16.gmra.mxu0 %v3286
      %v3579 = vpop.f32.mrf.mxu0
      %v3580 = vadd.f32 0.0, %v3579
      %v3581 = vpop.f32.mrf.mxu0
      %v3582 = vpop.f32.mrf.mxu0
      %v3583 = vadd.f32 0.0, %v3582
      %v3584 = vpop.f32.mrf.mxu0
      %3585 = vmatprep.mubr.bf16.mxu0 %v3435
      %3586 = vmatmul.mubr.bf16.gmra.mxu0 %v3288
      %v3587 = vpop.f32.mrf.mxu0
      %v3588 = vadd.f32 0.0, %v3587
      %v3589 = vpop.f32.mrf.mxu0
      %v3590 = vpop.f32.mrf.mxu0
      %v3591 = vadd.f32 0.0, %v3590
      %v3592 = vpop.f32.mrf.mxu0
      %3593 = vmatprep.mubr.bf16.mxu0 %v3438
      %3594 = vmatmul.mubr.bf16.gmra.mxu0 %v3290
      %v3595 = vpop.f32.mrf.mxu0
      %v3596 = vadd.f32 0.0, %v3595
      %v3597 = vpop.f32.mrf.mxu0
      %v3598 = vpop.f32.mrf.mxu0
      %v3599 = vadd.f32 0.0, %v3598
      %v3600 = vpop.f32.mrf.mxu0
      %3601 = vmatprep.mubr.bf16.mxu0 %v3441
      %3602 = vmatmul.mubr.bf16.gmra.mxu0 %v3292
      %v3603 = vpop.f32.mrf.mxu0
      %v3604 = vadd.f32 0.0, %v3603
      %v3605 = vpop.f32.mrf.mxu0
      %v3606 = vpop.f32.mrf.mxu0
      %v3607 = vadd.f32 0.0, %v3606
      %v3608 = vpop.f32.mrf.mxu0
      %3609 = vmatprep.mubr.bf16.mxu0 %v3444
      %3610 = vmatmul.mubr.bf16.gmra.mxu0 %v3294
      %v3611 = vpop.f32.mrf.mxu0
      %v3612 = vadd.f32 0.0, %v3611
      %v3613 = vpop.f32.mrf.mxu0
      %v3614 = vpop.f32.mrf.mxu0
      %v3615 = vadd.f32 0.0, %v3614
      %v3616 = vpop.f32.mrf.mxu0
      %3617 = vmatprep.mubr.bf16.mxu0 %v3447
      %3618 = vmatmul.mubr.bf16.gmra.mxu0 %v3296
      %v3619 = vpop.f32.mrf.mxu0
      %v3620 = vadd.f32 0.0, %v3619
      %v3621 = vpop.f32.mrf.mxu0
      %v3622 = vpop.f32.mrf.mxu0
      %v3623 = vadd.f32 0.0, %v3622
      %v3624 = vpop.f32.mrf.mxu0
      %3625 = vdwg.mxu0
      %v3650 = vunpack.c.l.b16 %v2984
      %v3651 = vunpack.c.l.b16 %v2985
      %v3652 = vunpack.c.l.b16 %v2986
      %v3653 = vunpack.c.l.b16 %v2987
      %v3654 = vunpack.c.l.b16 %v2988
      %v3655 = vunpack.c.l.b16 %v2989
      %v3656 = vunpack.c.l.b16 %v2990
      %v3657 = vunpack.c.l.b16 %v2991
      %v3658 = vunpack.c.l.b16 %v2992
      %v3659 = vunpack.c.l.b16 %v2993
      %v3660 = vunpack.c.l.b16 %v2994
      %v3661 = vunpack.c.l.b16 %v2995
      %v3662 = vunpack.c.l.b16 %v2996
      %v3663 = vunpack.c.l.b16 %v2997
      %v3664 = vunpack.c.l.b16 %v2998
      %v3665 = vunpack.c.l.b16 %v2999
      %v3666 = vunpack.c.l.b16 %v3000
      %v3667 = vunpack.c.l.b16 %v3001
      %v3668 = vunpack.c.l.b16 %v3002
      %v3669 = vunpack.c.l.b16 %v3003
      %v3670 = vunpack.c.l.b16 %v3004
      %v3671 = vunpack.c.l.b16 %v3005
      %v3672 = vunpack.c.l.b16 %v3006
      %v3673 = vunpack.c.l.b16 %v3007
      %v3674 = vpack.c.b16 %v3651, %v3650
      %v3675 = vpack.c.b16 %v3653, %v3652
      %v3676 = vpack.c.b16 %v3655, %v3654
      %v3677 = vpack.c.b16 %v3657, %v3656
      %v3678 = vpack.c.b16 %v3659, %v3658
      %v3679 = vpack.c.b16 %v3661, %v3660
      %v3680 = vpack.c.b16 %v3663, %v3662
      %v3681 = vpack.c.b16 %v3665, %v3664
      %v3682 = vpack.c.b16 %v3667, %v3666
      %v3683 = vpack.c.b16 %v3669, %v3668
      %v3684 = vpack.c.b16 %v3671, %v3670
      %v3685 = vpack.c.b16 %v3673, %v3672
      %v3699 = vsel %vm1996, %v2949, 0
      %v3702 = vsel %vm1996, %v2951, 0
      %v3705 = vsel %vm1996, %v2953, 0
      %v3708 = vsel %vm1996, %v2955, 0
      %v3711 = vsel %vm1996, %v2957, 0
      %v3714 = vsel %vm1996, %v2959, 0
      %v3717 = vsel %vm1996, %v2961, 0
      %v3720 = vsel %vm1996, %v2963, 0
      %v3723 = vsel %vm1996, %v2965, 0
      %v3726 = vsel %vm1996, %v2967, 0
      %v3729 = vsel %vm1996, %v2969, 0
      %v3732 = vsel %vm1996, %v2971, 0
      %v3735 = vsel %vm1996, %v2973, 0
      %v3738 = vsel %vm1996, %v2975, 0
      %v3741 = vsel %vm1996, %v2977, 0
      %v3744 = vsel %vm1996, %v2979, 0
      %v3747 = vsel %vm1996, %v2981, 0
      %v3750 = vsel %vm1996, %v2983, 0
      %3752 = vmatprep.subr.bf16.mxu0 0
      %3753 = vmatpush1.bf16.msra.mxu0 %v3681
      %3754 = vmatprep.subr.bf16.mxu0 0
      %3755 = vmatpush1.bf16.msra.mxu0 %v3680
      %3756 = vmatprep.subr.bf16.mxu0 0
      %3757 = vmatpush1.bf16.msra.mxu0 %v3679
      %3758 = vmatprep.subr.bf16.mxu0 0
      %3759 = vmatpush1.bf16.msra.mxu0 %v3678
      %3760 = vmatprep.subr.bf16.mxu0 0
      %3761 = vmatpush1.bf16.msra.mxu0 %v3677
      %3762 = vmatprep.subr.bf16.mxu0 0
      %3763 = vmatpush1.bf16.msra.mxu0 %v3676
      %3764 = vmatprep.subr.bf16.mxu0 0
      %3765 = vmatpush1.bf16.msra.mxu0 %v3675
      %3766 = vmatprep.subr.bf16.mxu0 0
      %3767 = vmatpush1.bf16.msra.mxu0 %v3674
      %3768 = vmatprep.subr.bf16.mxu0 0
      %3769 = vmatpush2.bf16.msra.mxu0 0
      %3770 = vmatprep.subr.bf16.mxu0 0
      %3771 = vmatpush2.bf16.msra.mxu0 0
      %3772 = vmatprep.subr.bf16.mxu0 0
      %3773 = vmatpush2.bf16.msra.mxu0 0
      %3774 = vmatprep.subr.bf16.mxu0 0
      %3775 = vmatpush2.bf16.msra.mxu0 0
      %3776 = vmatprep.subr.bf16.mxu0 0
      %3777 = vmatpush2.bf16.msra.mxu0 %v3685
      %3778 = vmatprep.subr.bf16.mxu0 0
      %3779 = vmatpush2.bf16.msra.mxu0 %v3684
      %3780 = vmatprep.subr.bf16.mxu0 0
      %3781 = vmatpush2.bf16.msra.mxu0 %v3683
      %3782 = vmatprep.subr.bf16.mxu0 0
      %3783 = vmatpush2.bf16.msra.mxu0 %v3682
      %3784 = vmatprep.mubr.bf16.mxu0 %v3699
      %3785 = vmatmul.mubr.bf16.gmra.mxu0 %v2948
      %v3786 = vpop.f32.mrf.mxu0
      %v3787 = vadd.f32 %v3484, %v3786
      %v3788 = vpop.f32.mrf.mxu0
      %v3789 = vpop.f32.mrf.mxu0
      %v3790 = vadd.f32 %v3487, %v3789
      %v3791 = vpop.f32.mrf.mxu0
      %3792 = vmatprep.mubr.bf16.mxu0 %v3702
      %3793 = vmatmul.mubr.bf16.gmra.mxu0 %v2950
      %v3794 = vpop.f32.mrf.mxu0
      %v3795 = vadd.f32 %v3492, %v3794
      %v3796 = vpop.f32.mrf.mxu0
      %v3797 = vpop.f32.mrf.mxu0
      %v3798 = vadd.f32 %v3495, %v3797
      %v3799 = vpop.f32.mrf.mxu0
      %3800 = vmatprep.mubr.bf16.mxu0 %v3705
      %3801 = vmatmul.mubr.bf16.gmra.mxu0 %v2952
      %v3802 = vpop.f32.mrf.mxu0
      %v3803 = vadd.f32 %v3500, %v3802
      %v3804 = vpop.f32.mrf.mxu0
      %v3805 = vpop.f32.mrf.mxu0
      %v3806 = vadd.f32 %v3503, %v3805
      %v3807 = vpop.f32.mrf.mxu0
      %3808 = vmatprep.mubr.bf16.mxu0 %v3708
      %3809 = vmatmul.mubr.bf16.gmra.mxu0 %v2954
      %v3810 = vpop.f32.mrf.mxu0
      %v3811 = vadd.f32 %v3508, %v3810
      %v3812 = vpop.f32.mrf.mxu0
      %v3813 = vpop.f32.mrf.mxu0
      %v3814 = vadd.f32 %v3511, %v3813
      %v3815 = vpop.f32.mrf.mxu0
      %3816 = vmatprep.mubr.bf16.mxu0 %v3711
      %3817 = vmatmul.mubr.bf16.gmra.mxu0 %v2956
      %v3818 = vpop.f32.mrf.mxu0
      %v3819 = vadd.f32 %v3516, %v3818
      %v3820 = vpop.f32.mrf.mxu0
      %v3821 = vpop.f32.mrf.mxu0
      %v3822 = vadd.f32 %v3519, %v3821
      %v3823 = vpop.f32.mrf.mxu0
      %3824 = vmatprep.mubr.bf16.mxu0 %v3714
      %3825 = vmatmul.mubr.bf16.gmra.mxu0 %v2958
      %v3826 = vpop.f32.mrf.mxu0
      %v3827 = vadd.f32 %v3524, %v3826
      %v3828 = vpop.f32.mrf.mxu0
      %v3829 = vpop.f32.mrf.mxu0
      %v3830 = vadd.f32 %v3527, %v3829
      %v3831 = vpop.f32.mrf.mxu0
      %3832 = vmatprep.mubr.bf16.mxu0 %v3717
      %3833 = vmatmul.mubr.bf16.gmra.mxu0 %v2960
      %v3834 = vpop.f32.mrf.mxu0
      %v3835 = vadd.f32 %v3532, %v3834
      %v3836 = vpop.f32.mrf.mxu0
      %v3837 = vpop.f32.mrf.mxu0
      %v3838 = vadd.f32 %v3535, %v3837
      %v3839 = vpop.f32.mrf.mxu0
      %3840 = vmatprep.mubr.bf16.mxu0 %v3720
      %3841 = vmatmul.mubr.bf16.gmra.mxu0 %v2962
      %v3842 = vpop.f32.mrf.mxu0
      %v3843 = vadd.f32 %v3540, %v3842
      %v3844 = vpop.f32.mrf.mxu0
      %v3845 = vpop.f32.mrf.mxu0
      %v3846 = vadd.f32 %v3543, %v3845
      %v3847 = vpop.f32.mrf.mxu0
      %3848 = vmatprep.mubr.bf16.mxu0 %v3723
      %3849 = vmatmul.mubr.bf16.gmra.mxu0 %v2964
      %v3850 = vpop.f32.mrf.mxu0
      %v3851 = vadd.f32 %v3548, %v3850
      %v3852 = vpop.f32.mrf.mxu0
      %v3853 = vpop.f32.mrf.mxu0
      %v3854 = vadd.f32 %v3551, %v3853
      %v3855 = vpop.f32.mrf.mxu0
      %3856 = vmatprep.mubr.bf16.mxu0 %v3726
      %3857 = vmatmul.mubr.bf16.gmra.mxu0 %v2966
      %v3858 = vpop.f32.mrf.mxu0
      %v3859 = vadd.f32 %v3556, %v3858
      %v3860 = vpop.f32.mrf.mxu0
      %v3861 = vpop.f32.mrf.mxu0
      %v3862 = vadd.f32 %v3559, %v3861
      %v3863 = vpop.f32.mrf.mxu0
      %3864 = vmatprep.mubr.bf16.mxu0 %v3729
      %3865 = vmatmul.mubr.bf16.gmra.mxu0 %v2968
      %v3866 = vpop.f32.mrf.mxu0
      %v3867 = vadd.f32 %v3564, %v3866
      %v3868 = vpop.f32.mrf.mxu0
      %v3869 = vpop.f32.mrf.mxu0
      %v3870 = vadd.f32 %v3567, %v3869
      %v3871 = vpop.f32.mrf.mxu0
      %3872 = vmatprep.mubr.bf16.mxu0 %v3732
      %3873 = vmatmul.mubr.bf16.gmra.mxu0 %v2970
      %v3874 = vpop.f32.mrf.mxu0
      %v3875 = vadd.f32 %v3572, %v3874
      %v3876 = vpop.f32.mrf.mxu0
      %v3877 = vpop.f32.mrf.mxu0
      %v3878 = vadd.f32 %v3575, %v3877
      %v3879 = vpop.f32.mrf.mxu0
      %3880 = vmatprep.mubr.bf16.mxu0 %v3735
      %3881 = vmatmul.mubr.bf16.gmra.mxu0 %v2972
      %v3882 = vpop.f32.mrf.mxu0
      %v3883 = vadd.f32 %v3580, %v3882
      %v3884 = vpop.f32.mrf.mxu0
      %v3885 = vpop.f32.mrf.mxu0
      %v3886 = vadd.f32 %v3583, %v3885
      %v3887 = vpop.f32.mrf.mxu0
      %3888 = vmatprep.mubr.bf16.mxu0 %v3738
      %3889 = vmatmul.mubr.bf16.gmra.mxu0 %v2974
      %v3890 = vpop.f32.mrf.mxu0
      %v3891 = vadd.f32 %v3588, %v3890
      %v3892 = vpop.f32.mrf.mxu0
      %v3893 = vpop.f32.mrf.mxu0
      %v3894 = vadd.f32 %v3591, %v3893
      %v3895 = vpop.f32.mrf.mxu0
      %3896 = vmatprep.mubr.bf16.mxu0 %v3741
      %3897 = vmatmul.mubr.bf16.gmra.mxu0 %v2976
      %v3898 = vpop.f32.mrf.mxu0
      %v3899 = vadd.f32 %v3596, %v3898
      %v3900 = vpop.f32.mrf.mxu0
      %v3901 = vpop.f32.mrf.mxu0
      %v3902 = vadd.f32 %v3599, %v3901
      %v3903 = vpop.f32.mrf.mxu0
      %3904 = vmatprep.mubr.bf16.mxu0 %v3744
      %3905 = vmatmul.mubr.bf16.gmra.mxu0 %v2978
      %v3906 = vpop.f32.mrf.mxu0
      %v3907 = vadd.f32 %v3604, %v3906
      %v3908 = vpop.f32.mrf.mxu0
      %v3909 = vpop.f32.mrf.mxu0
      %v3910 = vadd.f32 %v3607, %v3909
      %v3911 = vpop.f32.mrf.mxu0
      %3912 = vmatprep.mubr.bf16.mxu0 %v3747
      %3913 = vmatmul.mubr.bf16.gmra.mxu0 %v2980
      %v3914 = vpop.f32.mrf.mxu0
      %v3915 = vadd.f32 %v3612, %v3914
      %v3916 = vpop.f32.mrf.mxu0
      %v3917 = vpop.f32.mrf.mxu0
      %v3918 = vadd.f32 %v3615, %v3917
      %v3919 = vpop.f32.mrf.mxu0
      %3920 = vmatprep.mubr.bf16.mxu0 %v3750
      %3921 = vmatmul.mubr.bf16.gmra.mxu0 %v2982
      %v3922 = vpop.f32.mrf.mxu0
      %v3923 = vadd.f32 %v3620, %v3922
      %v3924 = vpop.f32.mrf.mxu0
      %v3925 = vpop.f32.mrf.mxu0
      %v3926 = vadd.f32 %v3623, %v3925
      %v3927 = vpop.f32.mrf.mxu0
      %3928 = vdwg.mxu0
      %v3929 = vld [vmem:[#allocation2 + $0x29] sm:$0xff]
      %v3930 = vld [vmem:[#allocation2 + $0x31] sm:$0xff]
      %v3931 = vld [vmem:[#allocation2 + $0x39] sm:$0xff]
      %v3932 = vld [vmem:[#allocation2 + $0x41] sm:$0xff]
      %v3933 = vld [vmem:[#allocation2 + $0x49] sm:$0xff]
      %v3934 = vld [vmem:[#allocation2 + $0x51] sm:$0xff]
      %v3935 = vld [vmem:[#allocation2 + $0x59] sm:$0xff]
      %v3936 = vld [vmem:[#allocation2 + $0x61] sm:$0xff]
      %v3937 = vld [vmem:[#allocation2 + $0x69] sm:$0xff]
      %v3938 = vld [vmem:[#allocation2 + $0x71] sm:$0xff]
      %v3939 = vld [vmem:[#allocation2 + $0x79] sm:$0xff]
      %v3940 = vld [vmem:[#allocation2 + $0x81] sm:$0xff]
      %v3941 = vld [vmem:[#allocation2 + $0x89] sm:$0xff]
      %v3942 = vld [vmem:[#allocation2 + $0x91] sm:$0xff]
      %v3943 = vld [vmem:[#allocation2 + $0x99] sm:$0xff]
      %v3944 = vld [vmem:[#allocation2 + $0xa1] sm:$0xff]
      %v3945 = vld [vmem:[#allocation2 + $0xa9] sm:$0xff]
      %v3946 = vld [vmem:[#allocation2 + $0xb1] sm:$0xff]
      %v3947 = vld [vmem:[#allocation2 + $0xb9] sm:$0xff]
      %v3948 = vld [vmem:[#allocation2 + $0xc1] sm:$0xff]
      %v3949 = vld [vmem:[#allocation2 + $0xc9] sm:$0xff]
      %v3950 = vld [vmem:[#allocation2 + $0xd1] sm:$0xff]
      %v3951 = vld [vmem:[#allocation2 + $0xd9] sm:$0xff]
      %v3952 = vld [vmem:[#allocation2 + $0xe1] sm:$0xff]
      %v3953 = vld [vmem:[#allocation2 + $0xe9] sm:$0xff]
      %v3954 = vld [vmem:[#allocation2 + $0xf1] sm:$0xff]
      %v3955 = vld [vmem:[#allocation2 + $0xf9] sm:$0xff]
      %v3956 = vld [vmem:[#allocation2 + $0x101] sm:$0xff]
      %v3957 = vld [vmem:[#allocation2 + $0x109] sm:$0xff]
      %v3958 = vld [vmem:[#allocation2 + $0x111] sm:$0xff]
      %v3959 = vld [vmem:[#allocation2 + $0x119] sm:$0xff]
      %v3960 = vld [vmem:[#allocation2 + $0x121] sm:$0xff]
      %v3961 = vld [vmem:[#allocation2 + $0x129] sm:$0xff]
      %v3962 = vld [vmem:[#allocation2 + $0x131] sm:$0xff]
      %v3963 = vld [vmem:[#allocation2 + $0x139] sm:$0xff]
      %v3964 = vld [vmem:[#allocation2 + $0x141] sm:$0xff]
      %v3965 = vld [vmem:[#allocation2 + $0x2a] sm:$0xff]
      %v3966 = vld [vmem:[#allocation2 + $0x32] sm:$0xff]
      %v3967 = vld [vmem:[#allocation2 + $0x3a] sm:$0xff]
      %v3968 = vld [vmem:[#allocation2 + $0x42] sm:$0xff]
      %v3969 = vld [vmem:[#allocation2 + $0x4a] sm:$0xff]
      %v3970 = vld [vmem:[#allocation2 + $0x52] sm:$0xff]
      %v3971 = vld [vmem:[#allocation2 + $0x5a] sm:$0xff]
      %v3972 = vld [vmem:[#allocation2 + $0x62] sm:$0xff]
      %v3973 = vld [vmem:[#allocation2 + $0x6a] sm:$0xff]
      %v3974 = vld [vmem:[#allocation2 + $0x72] sm:$0xff]
      %v3975 = vld [vmem:[#allocation2 + $0x7a] sm:$0xff]
      %v3976 = vld [vmem:[#allocation2 + $0x82] sm:$0xff]
      %v3977 = vld [vmem:[#allocation2 + $0x8a] sm:$0xff]
      %v3978 = vld [vmem:[#allocation2 + $0x92] sm:$0xff]
      %v3979 = vld [vmem:[#allocation2 + $0x9a] sm:$0xff]
      %v3980 = vld [vmem:[#allocation2 + $0xa2] sm:$0xff]
      %v3981 = vld [vmem:[#allocation2 + $0xaa] sm:$0xff]
      %v3982 = vld [vmem:[#allocation2 + $0xb2] sm:$0xff]
      %v3983 = vld [vmem:[#allocation2 + $0xba] sm:$0xff]
      %v3984 = vld [vmem:[#allocation2 + $0xc2] sm:$0xff]
      %v3985 = vld [vmem:[#allocation2 + $0xca] sm:$0xff]
      %v3986 = vld [vmem:[#allocation2 + $0xd2] sm:$0xff]
      %v3987 = vld [vmem:[#allocation2 + $0xda] sm:$0xff]
      %v3988 = vld [vmem:[#allocation2 + $0xe2] sm:$0xff]
      %v3989 = vld [vmem:[#allocation2 + $0xea] sm:$0xff]
      %v3990 = vld [vmem:[#allocation2 + $0xf2] sm:$0xff]
      %v3991 = vld [vmem:[#allocation2 + $0xfa] sm:$0xff]
      %v3992 = vld [vmem:[#allocation2 + $0x102] sm:$0xff]
      %v3993 = vld [vmem:[#allocation2 + $0x10a] sm:$0xff]
      %v3994 = vld [vmem:[#allocation2 + $0x112] sm:$0xff]
      %v3995 = vld [vmem:[#allocation2 + $0x11a] sm:$0xff]
      %v3996 = vld [vmem:[#allocation2 + $0x122] sm:$0xff]
      %v3997 = vld [vmem:[#allocation2 + $0x12a] sm:$0xff]
      %v3998 = vld [vmem:[#allocation2 + $0x132] sm:$0xff]
      %v3999 = vld [vmem:[#allocation2 + $0x13a] sm:$0xff]
      %v4000 = vld [vmem:[#allocation2 + $0x142] sm:$0xff]
      %v4001 = vld [vmem:[#allocation2 + $0x2b] sm:$0xff]
      %v4002 = vld [vmem:[#allocation2 + $0x33] sm:$0xff]
      %v4003 = vld [vmem:[#allocation2 + $0x3b] sm:$0xff]
      %v4004 = vld [vmem:[#allocation2 + $0x43] sm:$0xff]
      %v4005 = vld [vmem:[#allocation2 + $0x4b] sm:$0xff]
      %v4006 = vld [vmem:[#allocation2 + $0x53] sm:$0xff]
      %v4007 = vld [vmem:[#allocation2 + $0x5b] sm:$0xff]
      %v4008 = vld [vmem:[#allocation2 + $0x63] sm:$0xff]
      %v4009 = vld [vmem:[#allocation2 + $0x6b] sm:$0xff]
      %v4010 = vld [vmem:[#allocation2 + $0x73] sm:$0xff]
      %v4011 = vld [vmem:[#allocation2 + $0x7b] sm:$0xff]
      %v4012 = vld [vmem:[#allocation2 + $0x83] sm:$0xff]
      %v4013 = vld [vmem:[#allocation2 + $0x8b] sm:$0xff]
      %v4014 = vld [vmem:[#allocation2 + $0x93] sm:$0xff]
      %v4015 = vld [vmem:[#allocation2 + $0x9b] sm:$0xff]
      %v4016 = vld [vmem:[#allocation2 + $0xa3] sm:$0xff]
      %v4017 = vld [vmem:[#allocation2 + $0xab] sm:$0xff]
      %v4018 = vld [vmem:[#allocation2 + $0xb3] sm:$0xff]
      %v4019 = vld [vmem:[#allocation2 + $0xbb] sm:$0xff]
      %v4020 = vld [vmem:[#allocation2 + $0xc3] sm:$0xff]
      %v4021 = vld [vmem:[#allocation2 + $0xcb] sm:$0xff]
      %v4022 = vld [vmem:[#allocation2 + $0xd3] sm:$0xff]
      %v4023 = vld [vmem:[#allocation2 + $0xdb] sm:$0xff]
      %v4024 = vld [vmem:[#allocation2 + $0xe3] sm:$0xff]
      %v4025 = vld [vmem:[#allocation2 + $0xeb] sm:$0xff]
      %v4026 = vld [vmem:[#allocation2 + $0xf3] sm:$0xff]
      %v4027 = vld [vmem:[#allocation2 + $0xfb] sm:$0xff]
      %v4028 = vld [vmem:[#allocation2 + $0x103] sm:$0xff]
      %v4029 = vld [vmem:[#allocation2 + $0x10b] sm:$0xff]
      %v4030 = vld [vmem:[#allocation2 + $0x113] sm:$0xff]
      %v4031 = vld [vmem:[#allocation2 + $0x11b] sm:$0xff]
      %v4032 = vld [vmem:[#allocation2 + $0x123] sm:$0xff]
      %v4033 = vld [vmem:[#allocation2 + $0x12b] sm:$0xff]
      %v4034 = vld [vmem:[#allocation2 + $0x133] sm:$0xff]
      %v4035 = vld [vmem:[#allocation2 + $0x13b] sm:$0xff]
      %v4036 = vld [vmem:[#allocation2 + $0x143] sm:$0xff]
      %4073 = vrot.lane.b32.xlu0 %v3965, 64
      %v4074 = vpop.permute.xlu0 %4073
      %4075 = vrot.lane.b32.xlu0 %v3966, 64
      %v4076 = vpop.permute.xlu0 %4075
      %4077 = vrot.lane.b32.xlu0 %v3967, 64
      %v4078 = vpop.permute.xlu0 %4077
      %4079 = vrot.lane.b32.xlu0 %v3968, 64
      %v4080 = vpop.permute.xlu0 %4079
      %4081 = vrot.lane.b32.xlu0 %v3969, 64
      %v4082 = vpop.permute.xlu0 %4081
      %4083 = vrot.lane.b32.xlu0 %v3970, 64
      %v4084 = vpop.permute.xlu0 %4083
      %4085 = vrot.lane.b32.xlu0 %v3971, 64
      %v4086 = vpop.permute.xlu0 %4085
      %4087 = vrot.lane.b32.xlu0 %v3972, 64
      %v4088 = vpop.permute.xlu0 %4087
      %4089 = vrot.lane.b32.xlu0 %v3973, 64
      %v4090 = vpop.permute.xlu0 %4089
      %4091 = vrot.lane.b32.xlu0 %v3974, 64
      %v4092 = vpop.permute.xlu0 %4091
      %4093 = vrot.lane.b32.xlu0 %v3975, 64
      %v4094 = vpop.permute.xlu0 %4093
      %4095 = vrot.lane.b32.xlu0 %v3976, 64
      %v4096 = vpop.permute.xlu0 %4095
      %4097 = vrot.lane.b32.xlu0 %v3977, 64
      %v4098 = vpop.permute.xlu0 %4097
      %4099 = vrot.lane.b32.xlu0 %v3978, 64
      %v4100 = vpop.permute.xlu0 %4099
      %4101 = vrot.lane.b32.xlu0 %v3979, 64
      %v4102 = vpop.permute.xlu0 %4101
      %4103 = vrot.lane.b32.xlu0 %v3980, 64
      %v4104 = vpop.permute.xlu0 %4103
      %4105 = vrot.lane.b32.xlu0 %v3981, 64
      %v4106 = vpop.permute.xlu0 %4105
      %4107 = vrot.lane.b32.xlu0 %v3982, 64
      %v4108 = vpop.permute.xlu0 %4107
      %4109 = vrot.lane.b32.xlu0 %v3983, 64
      %v4110 = vpop.permute.xlu0 %4109
      %4111 = vrot.lane.b32.xlu0 %v3984, 64
      %v4112 = vpop.permute.xlu0 %4111
      %4113 = vrot.lane.b32.xlu0 %v3985, 64
      %v4114 = vpop.permute.xlu0 %4113
      %4115 = vrot.lane.b32.xlu0 %v3986, 64
      %v4116 = vpop.permute.xlu0 %4115
      %4117 = vrot.lane.b32.xlu0 %v3987, 64
      %v4118 = vpop.permute.xlu0 %4117
      %4119 = vrot.lane.b32.xlu0 %v3988, 64
      %v4120 = vpop.permute.xlu0 %4119
      %4121 = vrot.lane.b32.xlu0 %v3989, 64
      %v4122 = vpop.permute.xlu0 %4121
      %4123 = vrot.lane.b32.xlu0 %v3990, 64
      %v4124 = vpop.permute.xlu0 %4123
      %4125 = vrot.lane.b32.xlu0 %v3991, 64
      %v4126 = vpop.permute.xlu0 %4125
      %4127 = vrot.lane.b32.xlu0 %v3992, 64
      %v4128 = vpop.permute.xlu0 %4127
      %4129 = vrot.lane.b32.xlu0 %v3993, 64
      %v4130 = vpop.permute.xlu0 %4129
      %4131 = vrot.lane.b32.xlu0 %v3994, 64
      %v4132 = vpop.permute.xlu0 %4131
      %4133 = vrot.lane.b32.xlu0 %v3995, 64
      %v4134 = vpop.permute.xlu0 %4133
      %4135 = vrot.lane.b32.xlu0 %v3996, 64
      %v4136 = vpop.permute.xlu0 %4135
      %4137 = vrot.lane.b32.xlu0 %v3997, 64
      %v4138 = vpop.permute.xlu0 %4137
      %4139 = vrot.lane.b32.xlu0 %v3998, 64
      %v4140 = vpop.permute.xlu0 %4139
      %4141 = vrot.lane.b32.xlu0 %v3999, 64
      %v4142 = vpop.permute.xlu0 %4141
      %4143 = vrot.lane.b32.xlu0 %v4000, 64
      %v4144 = vpop.permute.xlu0 %4143
      %v4181 = vsel %vm1996, %v3929, %v4074
      %v4182 = vsel %vm1996, %v3930, %v4076
      %v4183 = vsel %vm1996, %v3931, %v4078
      %v4184 = vsel %vm1996, %v3932, %v4080
      %v4185 = vsel %vm1996, %v3933, %v4082
      %v4186 = vsel %vm1996, %v3934, %v4084
      %v4187 = vsel %vm1996, %v3935, %v4086
      %v4188 = vsel %vm1996, %v3936, %v4088
      %v4189 = vsel %vm1996, %v3937, %v4090
      %v4190 = vsel %vm1996, %v3938, %v4092
      %v4191 = vsel %vm1996, %v3939, %v4094
      %v4192 = vsel %vm1996, %v3940, %v4096
      %v4193 = vsel %vm1996, %v3941, %v4098
      %v4194 = vsel %vm1996, %v3942, %v4100
      %v4195 = vsel %vm1996, %v3943, %v4102
      %v4196 = vsel %vm1996, %v3944, %v4104
      %v4197 = vsel %vm1996, %v3945, %v4106
      %v4198 = vsel %vm1996, %v3946, %v4108
      %v4199 = vsel %vm1996, %v3947, %v4110
      %v4200 = vsel %vm1996, %v3948, %v4112
      %v4201 = vsel %vm1996, %v3949, %v4114
      %v4202 = vsel %vm1996, %v3950, %v4116
      %v4203 = vsel %vm1996, %v3951, %v4118
      %v4204 = vsel %vm1996, %v3952, %v4120
      %v4205 = vsel %vm1996, %v3953, %v4122
      %v4206 = vsel %vm1996, %v3954, %v4124
      %v4207 = vsel %vm1996, %v3955, %v4126
      %v4208 = vsel %vm1996, %v3956, %v4128
      %v4209 = vsel %vm1996, %v3957, %v4130
      %v4210 = vsel %vm1996, %v3958, %v4132
      %v4211 = vsel %vm1996, %v3959, %v4134
      %v4212 = vsel %vm1996, %v3960, %v4136
      %v4213 = vsel %vm1996, %v3961, %v4138
      %v4214 = vsel %vm1996, %v3962, %v4140
      %v4215 = vsel %vm1996, %v3963, %v4142
      %v4216 = vsel %vm1996, %v3964, %v4144
      %v4217 = vpack.c.bf16 %v4182, %v4181
      %v4218 = vpack.c.bf16 %v4002, %v4001
      %v4219 = vpack.c.bf16 %v4184, %v4183
      %v4220 = vpack.c.bf16 %v4004, %v4003
      %v4221 = vpack.c.bf16 %v4186, %v4185
      %v4222 = vpack.c.bf16 %v4006, %v4005
      %v4223 = vpack.c.bf16 %v4188, %v4187
      %v4224 = vpack.c.bf16 %v4008, %v4007
      %v4225 = vpack.c.bf16 %v4190, %v4189
      %v4226 = vpack.c.bf16 %v4010, %v4009
      %v4227 = vpack.c.bf16 %v4192, %v4191
      %v4228 = vpack.c.bf16 %v4012, %v4011
      %v4229 = vpack.c.bf16 %v4194, %v4193
      %v4230 = vpack.c.bf16 %v4014, %v4013
      %v4231 = vpack.c.bf16 %v4196, %v4195
      %v4232 = vpack.c.bf16 %v4016, %v4015
      %v4233 = vpack.c.bf16 %v4198, %v4197
      %v4234 = vpack.c.bf16 %v4018, %v4017
      %v4235 = vpack.c.bf16 %v4200, %v4199
      %v4236 = vpack.c.bf16 %v4020, %v4019
      %v4237 = vpack.c.bf16 %v4202, %v4201
      %v4238 = vpack.c.bf16 %v4022, %v4021
      %v4239 = vpack.c.bf16 %v4204, %v4203
      %v4240 = vpack.c.bf16 %v4024, %v4023
      %v4241 = vpack.c.bf16 %v4206, %v4205
      %v4242 = vpack.c.bf16 %v4026, %v4025
      %v4243 = vpack.c.bf16 %v4208, %v4207
      %v4244 = vpack.c.bf16 %v4028, %v4027
      %v4245 = vpack.c.bf16 %v4210, %v4209
      %v4246 = vpack.c.bf16 %v4030, %v4029
      %v4247 = vpack.c.bf16 %v4212, %v4211
      %v4248 = vpack.c.bf16 %v4032, %v4031
      %v4249 = vpack.c.bf16 %v4214, %v4213
      %v4250 = vpack.c.bf16 %v4034, %v4033
      %v4251 = vpack.c.bf16 %v4216, %v4215
      %v4252 = vpack.c.bf16 %v4036, %v4035
      %s4253 = scalar_lea.vmem %s4, 192
      %v4254 = vld [vmem:[%s4253] sm:$0xf]
      %v4255 = vld [vmem:[%s4253 + $0x4] sm:$0xf]
      %v4256 = vld [vmem:[%s4253 + $0x8] sm:$0xf]
      %v4257 = vld [vmem:[%s4253 + $0xc] sm:$0xf]
      %v4258 = vld [vmem:[%s4253 + $0x10] sm:$0xf]
      %v4259 = vld [vmem:[%s4253 + $0x14] sm:$0xf]
      %v4260 = vld [vmem:[%s4253 + $0x18] sm:$0xf]
      %v4261 = vld [vmem:[%s4253 + $0x1c] sm:$0xf]
      %v4262 = vld [vmem:[%s4253 + $0x20] sm:$0xf]
      %v4263 = vld [vmem:[%s4253 + $0x24] sm:$0xf]
      %v4264 = vld [vmem:[%s4253 + $0x28] sm:$0xf]
      %v4265 = vld [vmem:[%s4253 + $0x2c] sm:$0xf]
      %v4266 = vld [vmem:[%s4253 + $0x30] sm:$0xf]
      %v4267 = vld [vmem:[%s4253 + $0x34] sm:$0xf]
      %v4268 = vld [vmem:[%s4253 + $0x38] sm:$0xf]
      %v4269 = vld [vmem:[%s4253 + $0x3c] sm:$0xf]
      %v4270 = vld [vmem:[%s4253 + $0x40] sm:$0xf]
      %v4271 = vld [vmem:[%s4253 + $0x44] sm:$0xf]
      %v4272 = vld [vmem:[%s4253 + $0x48] sm:$0xf]
      %v4273 = vld [vmem:[%s4253 + $0x4c] sm:$0xf]
      %v4274 = vld [vmem:[%s4253 + $0x50] sm:$0xf]
      %v4275 = vld [vmem:[%s4253 + $0x54] sm:$0xf]
      %v4276 = vld [vmem:[%s4253 + $0x58] sm:$0xf]
      %v4277 = vld [vmem:[%s4253 + $0x5c] sm:$0xf]
      %v4302 = vunpack.c.l.b16 %v4254
      %v4303 = vunpack.c.l.b16 %v4255
      %v4304 = vunpack.c.l.b16 %v4256
      %v4305 = vunpack.c.l.b16 %v4257
      %v4306 = vunpack.c.l.b16 %v4258
      %v4307 = vunpack.c.l.b16 %v4259
      %v4308 = vunpack.c.l.b16 %v4260
      %v4309 = vunpack.c.l.b16 %v4261
      %v4310 = vunpack.c.l.b16 %v4262
      %v4311 = vunpack.c.l.b16 %v4263
      %v4312 = vunpack.c.l.b16 %v4264
      %v4313 = vunpack.c.l.b16 %v4265
      %v4314 = vunpack.c.l.b16 %v4266
      %v4315 = vunpack.c.l.b16 %v4267
      %v4316 = vunpack.c.l.b16 %v4268
      %v4317 = vunpack.c.l.b16 %v4269
      %v4318 = vunpack.c.l.b16 %v4270
      %v4319 = vunpack.c.l.b16 %v4271
      %v4320 = vunpack.c.l.b16 %v4272
      %v4321 = vunpack.c.l.b16 %v4273
      %v4322 = vunpack.c.l.b16 %v4274
      %v4323 = vunpack.c.l.b16 %v4275
      %v4324 = vunpack.c.l.b16 %v4276
      %v4325 = vunpack.c.l.b16 %v4277
      %v4326 = vpack.c.b16 %v4303, %v4302
      %v4327 = vpack.c.b16 %v4305, %v4304
      %v4328 = vpack.c.b16 %v4307, %v4306
      %v4329 = vpack.c.b16 %v4309, %v4308
      %v4330 = vpack.c.b16 %v4311, %v4310
      %v4331 = vpack.c.b16 %v4313, %v4312
      %v4332 = vpack.c.b16 %v4315, %v4314
      %v4333 = vpack.c.b16 %v4317, %v4316
      %v4334 = vpack.c.b16 %v4319, %v4318
      %v4335 = vpack.c.b16 %v4321, %v4320
      %v4336 = vpack.c.b16 %v4323, %v4322
      %v4337 = vpack.c.b16 %v4325, %v4324
      %v4351 = vsel %vm1996, %v4218, 0
      %v4354 = vsel %vm1996, %v4220, 0
      %v4357 = vsel %vm1996, %v4222, 0
      %v4360 = vsel %vm1996, %v4224, 0
      %v4363 = vsel %vm1996, %v4226, 0
      %v4366 = vsel %vm1996, %v4228, 0
      %v4369 = vsel %vm1996, %v4230, 0
      %v4372 = vsel %vm1996, %v4232, 0
      %v4375 = vsel %vm1996, %v4234, 0
      %v4378 = vsel %vm1996, %v4236, 0
      %v4381 = vsel %vm1996, %v4238, 0
      %v4384 = vsel %vm1996, %v4240, 0
      %v4387 = vsel %vm1996, %v4242, 0
      %v4390 = vsel %vm1996, %v4244, 0
      %v4393 = vsel %vm1996, %v4246, 0
      %v4396 = vsel %vm1996, %v4248, 0
      %v4399 = vsel %vm1996, %v4250, 0
      %v4402 = vsel %vm1996, %v4252, 0
      %4404 = vmatprep.subr.bf16.mxu0 0
      %4405 = vmatpush1.bf16.msra.mxu0 %v4333
      %4406 = vmatprep.subr.bf16.mxu0 0
      %4407 = vmatpush1.bf16.msra.mxu0 %v4332
      %4408 = vmatprep.subr.bf16.mxu0 0
      %4409 = vmatpush1.bf16.msra.mxu0 %v4331
      %4410 = vmatprep.subr.bf16.mxu0 0
      %4411 = vmatpush1.bf16.msra.mxu0 %v4330
      %4412 = vmatprep.subr.bf16.mxu0 0
      %4413 = vmatpush1.bf16.msra.mxu0 %v4329
      %4414 = vmatprep.subr.bf16.mxu0 0
      %4415 = vmatpush1.bf16.msra.mxu0 %v4328
      %4416 = vmatprep.subr.bf16.mxu0 0
      %4417 = vmatpush1.bf16.msra.mxu0 %v4327
      %4418 = vmatprep.subr.bf16.mxu0 0
      %4419 = vmatpush1.bf16.msra.mxu0 %v4326
      %4420 = vmatprep.subr.bf16.mxu0 0
      %4421 = vmatpush2.bf16.msra.mxu0 0
      %4422 = vmatprep.subr.bf16.mxu0 0
      %4423 = vmatpush2.bf16.msra.mxu0 0
      %4424 = vmatprep.subr.bf16.mxu0 0
      %4425 = vmatpush2.bf16.msra.mxu0 0
      %4426 = vmatprep.subr.bf16.mxu0 0
      %4427 = vmatpush2.bf16.msra.mxu0 0
      %4428 = vmatprep.subr.bf16.mxu0 0
      %4429 = vmatpush2.bf16.msra.mxu0 %v4337
      %4430 = vmatprep.subr.bf16.mxu0 0
      %4431 = vmatpush2.bf16.msra.mxu0 %v4336
      %4432 = vmatprep.subr.bf16.mxu0 0
      %4433 = vmatpush2.bf16.msra.mxu0 %v4335
      %4434 = vmatprep.subr.bf16.mxu0 0
      %4435 = vmatpush2.bf16.msra.mxu0 %v4334
      %4436 = vmatprep.mubr.bf16.mxu0 %v4351
      %4437 = vmatmul.mubr.bf16.gmra.mxu0 %v4217
      %v4438 = vpop.f32.mrf.mxu0
      %v4439 = vadd.f32 0.0, %v4438
      %v4440 = vpop.f32.mrf.mxu0
      %v4441 = vpop.f32.mrf.mxu0
      %v4442 = vadd.f32 0.0, %v4441
      %v4443 = vpop.f32.mrf.mxu0
      %4444 = vmatprep.mubr.bf16.mxu0 %v4354
      %4445 = vmatmul.mubr.bf16.gmra.mxu0 %v4219
      %v4446 = vpop.f32.mrf.mxu0
      %v4447 = vadd.f32 0.0, %v4446
      %v4448 = vpop.f32.mrf.mxu0
      %v4449 = vpop.f32.mrf.mxu0
      %v4450 = vadd.f32 0.0, %v4449
      %v4451 = vpop.f32.mrf.mxu0
      %4452 = vmatprep.mubr.bf16.mxu0 %v4357
      %4453 = vmatmul.mubr.bf16.gmra.mxu0 %v4221
      %v4454 = vpop.f32.mrf.mxu0
      %v4455 = vadd.f32 0.0, %v4454
      %v4456 = vpop.f32.mrf.mxu0
      %v4457 = vpop.f32.mrf.mxu0
      %v4458 = vadd.f32 0.0, %v4457
      %v4459 = vpop.f32.mrf.mxu0
      %4460 = vmatprep.mubr.bf16.mxu0 %v4360
      %4461 = vmatmul.mubr.bf16.gmra.mxu0 %v4223
      %v4462 = vpop.f32.mrf.mxu0
      %v4463 = vadd.f32 0.0, %v4462
      %v4464 = vpop.f32.mrf.mxu0
      %v4465 = vpop.f32.mrf.mxu0
      %v4466 = vadd.f32 0.0, %v4465
      %v4467 = vpop.f32.mrf.mxu0
      %4468 = vmatprep.mubr.bf16.mxu0 %v4363
      %4469 = vmatmul.mubr.bf16.gmra.mxu0 %v4225
      %v4470 = vpop.f32.mrf.mxu0
      %v4471 = vadd.f32 0.0, %v4470
      %v4472 = vpop.f32.mrf.mxu0
      %v4473 = vpop.f32.mrf.mxu0
      %v4474 = vadd.f32 0.0, %v4473
      %v4475 = vpop.f32.mrf.mxu0
      %4476 = vmatprep.mubr.bf16.mxu0 %v4366
      %4477 = vmatmul.mubr.bf16.gmra.mxu0 %v4227
      %v4478 = vpop.f32.mrf.mxu0
      %v4479 = vadd.f32 0.0, %v4478
      %v4480 = vpop.f32.mrf.mxu0
      %v4481 = vpop.f32.mrf.mxu0
      %v4482 = vadd.f32 0.0, %v4481
      %v4483 = vpop.f32.mrf.mxu0
      %4484 = vmatprep.mubr.bf16.mxu0 %v4369
      %4485 = vmatmul.mubr.bf16.gmra.mxu0 %v4229
      %v4486 = vpop.f32.mrf.mxu0
      %v4487 = vadd.f32 0.0, %v4486
      %v4488 = vpop.f32.mrf.mxu0
      %v4489 = vpop.f32.mrf.mxu0
      %v4490 = vadd.f32 0.0, %v4489
      %v4491 = vpop.f32.mrf.mxu0
      %4492 = vmatprep.mubr.bf16.mxu0 %v4372
      %4493 = vmatmul.mubr.bf16.gmra.mxu0 %v4231
      %v4494 = vpop.f32.mrf.mxu0
      %v4495 = vadd.f32 0.0, %v4494
      %v4496 = vpop.f32.mrf.mxu0
      %v4497 = vpop.f32.mrf.mxu0
      %v4498 = vadd.f32 0.0, %v4497
      %v4499 = vpop.f32.mrf.mxu0
      %4500 = vmatprep.mubr.bf16.mxu0 %v4375
      %4501 = vmatmul.mubr.bf16.gmra.mxu0 %v4233
      %v4502 = vpop.f32.mrf.mxu0
      %v4503 = vadd.f32 0.0, %v4502
      %v4504 = vpop.f32.mrf.mxu0
      %v4505 = vpop.f32.mrf.mxu0
      %v4506 = vadd.f32 0.0, %v4505
      %v4507 = vpop.f32.mrf.mxu0
      %4508 = vmatprep.mubr.bf16.mxu0 %v4378
      %4509 = vmatmul.mubr.bf16.gmra.mxu0 %v4235
      %v4510 = vpop.f32.mrf.mxu0
      %v4511 = vadd.f32 0.0, %v4510
      %v4512 = vpop.f32.mrf.mxu0
      %v4513 = vpop.f32.mrf.mxu0
      %v4514 = vadd.f32 0.0, %v4513
      %v4515 = vpop.f32.mrf.mxu0
      %4516 = vmatprep.mubr.bf16.mxu0 %v4381
      %4517 = vmatmul.mubr.bf16.gmra.mxu0 %v4237
      %v4518 = vpop.f32.mrf.mxu0
      %v4519 = vadd.f32 0.0, %v4518
      %v4520 = vpop.f32.mrf.mxu0
      %v4521 = vpop.f32.mrf.mxu0
      %v4522 = vadd.f32 0.0, %v4521
      %v4523 = vpop.f32.mrf.mxu0
      %4524 = vmatprep.mubr.bf16.mxu0 %v4384
      %4525 = vmatmul.mubr.bf16.gmra.mxu0 %v4239
      %v4526 = vpop.f32.mrf.mxu0
      %v4527 = vadd.f32 0.0, %v4526
      %v4528 = vpop.f32.mrf.mxu0
      %v4529 = vpop.f32.mrf.mxu0
      %v4530 = vadd.f32 0.0, %v4529
      %v4531 = vpop.f32.mrf.mxu0
      %4532 = vmatprep.mubr.bf16.mxu0 %v4387
      %4533 = vmatmul.mubr.bf16.gmra.mxu0 %v4241
      %v4534 = vpop.f32.mrf.mxu0
      %v4535 = vadd.f32 0.0, %v4534
      %v4536 = vpop.f32.mrf.mxu0
      %v4537 = vpop.f32.mrf.mxu0
      %v4538 = vadd.f32 0.0, %v4537
      %v4539 = vpop.f32.mrf.mxu0
      %4540 = vmatprep.mubr.bf16.mxu0 %v4390
      %4541 = vmatmul.mubr.bf16.gmra.mxu0 %v4243
      %v4542 = vpop.f32.mrf.mxu0
      %v4543 = vadd.f32 0.0, %v4542
      %v4544 = vpop.f32.mrf.mxu0
      %v4545 = vpop.f32.mrf.mxu0
      %v4546 = vadd.f32 0.0, %v4545
      %v4547 = vpop.f32.mrf.mxu0
      %4548 = vmatprep.mubr.bf16.mxu0 %v4393
      %4549 = vmatmul.mubr.bf16.gmra.mxu0 %v4245
      %v4550 = vpop.f32.mrf.mxu0
      %v4551 = vadd.f32 0.0, %v4550
      %v4552 = vpop.f32.mrf.mxu0
      %v4553 = vpop.f32.mrf.mxu0
      %v4554 = vadd.f32 0.0, %v4553
      %v4555 = vpop.f32.mrf.mxu0
      %4556 = vmatprep.mubr.bf16.mxu0 %v4396
      %4557 = vmatmul.mubr.bf16.gmra.mxu0 %v4247
      %v4558 = vpop.f32.mrf.mxu0
      %v4559 = vadd.f32 0.0, %v4558
      %v4560 = vpop.f32.mrf.mxu0
      %v4561 = vpop.f32.mrf.mxu0
      %v4562 = vadd.f32 0.0, %v4561
      %v4563 = vpop.f32.mrf.mxu0
      %4564 = vmatprep.mubr.bf16.mxu0 %v4399
      %4565 = vmatmul.mubr.bf16.gmra.mxu0 %v4249
      %v4566 = vpop.f32.mrf.mxu0
      %v4567 = vadd.f32 0.0, %v4566
      %v4568 = vpop.f32.mrf.mxu0
      %v4569 = vpop.f32.mrf.mxu0
      %v4570 = vadd.f32 0.0, %v4569
      %v4571 = vpop.f32.mrf.mxu0
      %4572 = vmatprep.mubr.bf16.mxu0 %v4402
      %4573 = vmatmul.mubr.bf16.gmra.mxu0 %v4251
      %v4574 = vpop.f32.mrf.mxu0
      %v4575 = vadd.f32 0.0, %v4574
      %v4576 = vpop.f32.mrf.mxu0
      %v4577 = vpop.f32.mrf.mxu0
      %v4578 = vadd.f32 0.0, %v4577
      %v4579 = vpop.f32.mrf.mxu0
      %4580 = vdwg.mxu0
      %v4581 = vadd.f32 %v3787, %v4439
      %v4582 = vadd.f32 %v3790, %v4442
      %v4583 = vadd.f32 %v3795, %v4447
      %v4584 = vadd.f32 %v3798, %v4450
      %v4585 = vadd.f32 %v3803, %v4455
      %v4586 = vadd.f32 %v3806, %v4458
      %v4587 = vadd.f32 %v3811, %v4463
      %v4588 = vadd.f32 %v3814, %v4466
      %v4589 = vadd.f32 %v3819, %v4471
      %v4590 = vadd.f32 %v3822, %v4474
      %v4591 = vadd.f32 %v3827, %v4479
      %v4592 = vadd.f32 %v3830, %v4482
      %v4593 = vadd.f32 %v3835, %v4487
      %v4594 = vadd.f32 %v3838, %v4490
      %v4595 = vadd.f32 %v3843, %v4495
      %v4596 = vadd.f32 %v3846, %v4498
      %v4597 = vadd.f32 %v3851, %v4503
      %v4598 = vadd.f32 %v3854, %v4506
      %v4599 = vadd.f32 %v3859, %v4511
      %v4600 = vadd.f32 %v3862, %v4514
      %v4601 = vadd.f32 %v3867, %v4519
      %v4602 = vadd.f32 %v3870, %v4522
      %v4603 = vadd.f32 %v3875, %v4527
      %v4604 = vadd.f32 %v3878, %v4530
      %v4605 = vadd.f32 %v3883, %v4535
      %v4606 = vadd.f32 %v3886, %v4538
      %v4607 = vadd.f32 %v3891, %v4543
      %v4608 = vadd.f32 %v3894, %v4546
      %v4609 = vadd.f32 %v3899, %v4551
      %v4610 = vadd.f32 %v3902, %v4554
      %v4611 = vadd.f32 %v3907, %v4559
      %v4612 = vadd.f32 %v3910, %v4562
      %v4613 = vadd.f32 %v3915, %v4567
      %v4614 = vadd.f32 %v3918, %v4570
      %v4615 = vadd.f32 %v3923, %v4575
      %v4616 = vadd.f32 %v3926, %v4578
      %v4617 = vld [vmem:[%s5] sm:$0x1]
      %v4619 = vlaneseq
      %v4620 = vshrl.u32 %v4619, 7
      %v4621 = vsub.s32 0, %v4620
      %v4622 = vrot.slane %v4617, %v4621
      %v4624 = vadd.f32 %v4581, %v4622
      %v4625 = vadd.f32 %v4582, %v4622
      %v4626 = vadd.f32 %v4583, %v4622
      %v4627 = vadd.f32 %v4584, %v4622
      %v4628 = vadd.f32 %v4585, %v4622
      %v4629 = vadd.f32 %v4586, %v4622
      %v4630 = vadd.f32 %v4587, %v4622
      %v4631 = vadd.f32 %v4588, %v4622
      %v4632 = vadd.f32 %v4589, %v4622
      %v4633 = vadd.f32 %v4590, %v4622
      %v4634 = vadd.f32 %v4591, %v4622
      %v4635 = vadd.f32 %v4592, %v4622
      %v4636 = vadd.f32 %v4593, %v4622
      %v4637 = vadd.f32 %v4594, %v4622
      %v4638 = vadd.f32 %v4595, %v4622
      %v4639 = vadd.f32 %v4596, %v4622
      %v4640 = vadd.f32 %v4597, %v4622
      %v4641 = vadd.f32 %v4598, %v4622
      %v4642 = vadd.f32 %v4599, %v4622
      %v4643 = vadd.f32 %v4600, %v4622
      %v4644 = vadd.f32 %v4601, %v4622
      %v4645 = vadd.f32 %v4602, %v4622
      %v4646 = vadd.f32 %v4603, %v4622
      %v4647 = vadd.f32 %v4604, %v4622
      %v4648 = vadd.f32 %v4605, %v4622
      %v4649 = vadd.f32 %v4606, %v4622
      %v4650 = vadd.f32 %v4607, %v4622
      %v4651 = vadd.f32 %v4608, %v4622
      %v4652 = vadd.f32 %v4609, %v4622
      %v4653 = vadd.f32 %v4610, %v4622
      %v4654 = vadd.f32 %v4611, %v4622
      %v4655 = vadd.f32 %v4612, %v4622
      %v4656 = vadd.f32 %v4613, %v4622
      %v4657 = vadd.f32 %v4614, %v4622
      %v4658 = vadd.f32 %v4615, %v4622
      %v4659 = vadd.f32 %v4616, %v4622
      %v4660 = vmax.f32 %v4624, 0.0
      %v4661 = vmax.f32 %v4625, 0.0
      %v4662 = vmax.f32 %v4626, 0.0
      %v4663 = vmax.f32 %v4627, 0.0
      %v4664 = vmax.f32 %v4628, 0.0
      %v4665 = vmax.f32 %v4629, 0.0
      %v4666 = vmax.f32 %v4630, 0.0
      %v4667 = vmax.f32 %v4631, 0.0
      %v4668 = vmax.f32 %v4632, 0.0
      %v4669 = vmax.f32 %v4633, 0.0
      %v4670 = vmax.f32 %v4634, 0.0
      %v4671 = vmax.f32 %v4635, 0.0
      %v4672 = vmax.f32 %v4636, 0.0
      %v4673 = vmax.f32 %v4637, 0.0
      %v4674 = vmax.f32 %v4638, 0.0
      %v4675 = vmax.f32 %v4639, 0.0
      %v4676 = vmax.f32 %v4640, 0.0
      %v4677 = vmax.f32 %v4641, 0.0
      %v4678 = vmax.f32 %v4642, 0.0
      %v4679 = vmax.f32 %v4643, 0.0
      %v4680 = vmax.f32 %v4644, 0.0
      %v4681 = vmax.f32 %v4645, 0.0
      %v4682 = vmax.f32 %v4646, 0.0
      %v4683 = vmax.f32 %v4647, 0.0
      %v4684 = vmax.f32 %v4648, 0.0
      %v4685 = vmax.f32 %v4649, 0.0
      %v4686 = vmax.f32 %v4650, 0.0
      %v4687 = vmax.f32 %v4651, 0.0
      %v4688 = vmax.f32 %v4652, 0.0
      %v4689 = vmax.f32 %v4653, 0.0
      %v4690 = vmax.f32 %v4654, 0.0
      %v4691 = vmax.f32 %v4655, 0.0
      %v4692 = vmax.f32 %v4656, 0.0
      %v4693 = vmax.f32 %v4657, 0.0
      %v4694 = vmax.f32 %v4658, 0.0
      %v4695 = vmax.f32 %v4659, 0.0
      %v4696 = vmul.f32 %v4660, %v2369
      %v4697 = vmul.f32 %v4661, %v2374
      %v4698 = vmul.f32 %v4662, %v2379
      %v4699 = vmul.f32 %v4663, %v2384
      %v4700 = vmul.f32 %v4664, %v2389
      %v4701 = vmul.f32 %v4665, %v2394
      %v4702 = vmul.f32 %v4666, %v2399
      %v4703 = vmul.f32 %v4667, %v2404
      %v4704 = vmul.f32 %v4668, %v2409
      %v4705 = vmul.f32 %v4669, %v2414
      %v4706 = vmul.f32 %v4670, %v2419
      %v4707 = vmul.f32 %v4671, %v2424
      %v4708 = vmul.f32 %v4672, %v2429
      %v4709 = vmul.f32 %v4673, %v2434
      %v4710 = vmul.f32 %v4674, %v2439
      %v4711 = vmul.f32 %v4675, %v2444
      %v4712 = vmul.f32 %v4676, %v2449
      %v4713 = vmul.f32 %v4677, %v2454
      %v4714 = vmul.f32 %v4678, %v2459
      %v4715 = vmul.f32 %v4679, %v2464
      %v4716 = vmul.f32 %v4680, %v2469
      %v4717 = vmul.f32 %v4681, %v2474
      %v4718 = vmul.f32 %v4682, %v2479
      %v4719 = vmul.f32 %v4683, %v2484
      %v4720 = vmul.f32 %v4684, %v2489
      %v4721 = vmul.f32 %v4685, %v2494
      %v4722 = vmul.f32 %v4686, %v2499
      %v4723 = vmul.f32 %v4687, %v2504
      %v4724 = vmul.f32 %v4688, %v2509
      %v4725 = vmul.f32 %v4689, %v2514
      %v4726 = vmul.f32 %v4690, %v2519
      %v4727 = vmul.f32 %v4691, %v2524
      %v4728 = vmul.f32 %v4692, %v2529
      %v4729 = vmul.f32 %v4693, %v2534
      %v4730 = vmul.f32 %v4694, %v2539
      %v4731 = vmul.f32 %v4695, %v2544
      %4732 = vst [vmem:[#allocation3] sm:$0xff] 0.0
      %4733 = vst [vmem:[#allocation3 + $0x8] sm:$0xff] 0.0
      %4734 = vst [vmem:[#allocation3 + $0x10] sm:$0xff] 0.0
      %4735 = vst [vmem:[#allocation3 + $0x18] sm:$0xff] 0.0
      %4736 = vst [vmem:[#allocation3 + $0x20] sm:$0xff] 0.0
      %4737 = vst [vmem:[#allocation3 + $0x28] sm:$0xff] 0.0
      %4738 = vst [vmem:[#allocation3 + $0x30] sm:$0xff] 0.0
      %4739 = vst [vmem:[#allocation3 + $0x38] sm:$0xff] 0.0
      %4740 = vst [vmem:[#allocation3 + $0x40] sm:$0xff] 0.0
      %4741 = vst [vmem:[#allocation3 + $0x48] sm:$0xff] 0.0
      %4742 = vst [vmem:[#allocation3 + $0x50] sm:$0xff] 0.0
      %4743 = vst [vmem:[#allocation3 + $0x58] sm:$0xff] 0.0
      %4744 = vst [vmem:[#allocation3 + $0x60] sm:$0xff] 0.0
      %4745 = vst [vmem:[#allocation3 + $0x68] sm:$0xff] 0.0
      %4746 = vst [vmem:[#allocation3 + $0x70] sm:$0xff] 0.0
      %4747 = vst [vmem:[#allocation3 + $0x78] sm:$0xff] 0.0
      %4748 = vst [vmem:[#allocation3 + $0x80] sm:$0xff] 0.0
      %4749 = vst [vmem:[#allocation3 + $0x88] sm:$0xff] 0.0
      %4750 = vst [vmem:[#allocation3 + $0x90] sm:$0xff] 0.0
      %4751 = vst [vmem:[#allocation3 + $0x98] sm:$0xff] 0.0
      %4752 = vst [vmem:[#allocation3 + $0xa0] sm:$0xff] 0.0
      %4753 = vst [vmem:[#allocation3 + $0xa8] sm:$0xff] 0.0
      %4754 = vst [vmem:[#allocation3 + $0xb0] sm:$0xff] 0.0
      %4755 = vst [vmem:[#allocation3 + $0xb8] sm:$0xff] 0.0
      %4756 = vst [vmem:[#allocation3 + $0xc0] sm:$0xff] 0.0
      %4757 = vst [vmem:[#allocation3 + $0xc8] sm:$0xff] 0.0
      %4758 = vst [vmem:[#allocation3 + $0xd0] sm:$0xff] 0.0
      %4759 = vst [vmem:[#allocation3 + $0xd8] sm:$0xff] 0.0
      %4760 = vst [vmem:[#allocation3 + $0xe0] sm:$0xff] 0.0
      %4761 = vst [vmem:[#allocation3 + $0xe8] sm:$0xff] 0.0
      %4762 = vst [vmem:[#allocation3 + $0xf0] sm:$0xff] 0.0
      %4763 = vst [vmem:[#allocation3 + $0xf8] sm:$0xff] 0.0
      %4764 = vst [vmem:[#allocation3 + $0x100] sm:$0xff] 0.0
      %4765 = vst [vmem:[#allocation3 + $0x108] sm:$0xff] 0.0
      %4766 = vst [vmem:[#allocation3 + $0x110] sm:$0xff] 0.0
      %4767 = vst [vmem:[#allocation3 + $0x118] sm:$0xff] 0.0
      %4768 = vst [vmem:[#allocation3 + $0x120] sm:$0xff] 0.0
      %4769 = vst [vmem:[#allocation3 + $0x128] sm:$0xff] 0.0
      %4770 = vst [vmem:[#allocation3 + $0x130] sm:$0xff] 0.0
      %4771 = vst [vmem:[#allocation3 + $0x138] sm:$0xff] 0.0
      %4772 = vst [vmem:[#allocation3 + $0x140] sm:$0xff] 0.0
      %4773 = vst [vmem:[#allocation3 + $0x148] sm:$0xff] 0.0
      %4774 = vst [vmem:[#allocation3 + $0x18] sm:$0xff] %v4696
      %4775 = vst [vmem:[#allocation3 + $0x20] sm:$0xff] %v4697
      %4776 = vst [vmem:[#allocation3 + $0x28] sm:$0xff] %v4698
      %4777 = vst [vmem:[#allocation3 + $0x30] sm:$0xff] %v4699
      %4778 = vst [vmem:[#allocation3 + $0x38] sm:$0xff] %v4700
      %4779 = vst [vmem:[#allocation3 + $0x40] sm:$0xff] %v4701
      %4780 = vst [vmem:[#allocation3 + $0x48] sm:$0xff] %v4702
      %4781 = vst [vmem:[#allocation3 + $0x50] sm:$0xff] %v4703
      %4782 = vst [vmem:[#allocation3 + $0x58] sm:$0xff] %v4704
      %4783 = vst [vmem:[#allocation3 + $0x60] sm:$0xff] %v4705
      %4784 = vst [vmem:[#allocation3 + $0x68] sm:$0xff] %v4706
      %4785 = vst [vmem:[#allocation3 + $0x70] sm:$0xff] %v4707
      %4786 = vst [vmem:[#allocation3 + $0x78] sm:$0xff] %v4708
      %4787 = vst [vmem:[#allocation3 + $0x80] sm:$0xff] %v4709
      %4788 = vst [vmem:[#allocation3 + $0x88] sm:$0xff] %v4710
      %4789 = vst [vmem:[#allocation3 + $0x90] sm:$0xff] %v4711
      %4790 = vst [vmem:[#allocation3 + $0x98] sm:$0xff] %v4712
      %4791 = vst [vmem:[#allocation3 + $0xa0] sm:$0xff] %v4713
      %4792 = vst [vmem:[#allocation3 + $0xa8] sm:$0xff] %v4714
      %4793 = vst [vmem:[#allocation3 + $0xb0] sm:$0xff] %v4715
      %4794 = vst [vmem:[#allocation3 + $0xb8] sm:$0xff] %v4716
      %4795 = vst [vmem:[#allocation3 + $0xc0] sm:$0xff] %v4717
      %4796 = vst [vmem:[#allocation3 + $0xc8] sm:$0xff] %v4718
      %4797 = vst [vmem:[#allocation3 + $0xd0] sm:$0xff] %v4719
      %4798 = vst [vmem:[#allocation3 + $0xd8] sm:$0xff] %v4720
      %4799 = vst [vmem:[#allocation3 + $0xe0] sm:$0xff] %v4721
      %4800 = vst [vmem:[#allocation3 + $0xe8] sm:$0xff] %v4722
      %4801 = vst [vmem:[#allocation3 + $0xf0] sm:$0xff] %v4723
      %4802 = vst [vmem:[#allocation3 + $0xf8] sm:$0xff] %v4724
      %4803 = vst [vmem:[#allocation3 + $0x100] sm:$0xff] %v4725
      %4804 = vst [vmem:[#allocation3 + $0x108] sm:$0xff] %v4726
      %4805 = vst [vmem:[#allocation3 + $0x110] sm:$0xff] %v4727
      %4806 = vst [vmem:[#allocation3 + $0x118] sm:$0xff] %v4728
      %4807 = vst [vmem:[#allocation3 + $0x120] sm:$0xff] %v4729
      %4808 = vst [vmem:[#allocation3 + $0x128] sm:$0xff] %v4730
      %4809 = vst [vmem:[#allocation3 + $0x130] sm:$0xff] %v4731
      %v4810 = vld [vmem:[#allocation3 + $0x5] sm:$0xff]
      %v4811 = vld [vmem:[#allocation3 + $0xd] sm:$0xff]
      %v4812 = vld [vmem:[#allocation3 + $0x15] sm:$0xff]
      %v4813 = vld [vmem:[#allocation3 + $0x1d] sm:$0xff]
      %v4814 = vld [vmem:[#allocation3 + $0x25] sm:$0xff]
      %v4815 = vld [vmem:[#allocation3 + $0x2d] sm:$0xff]
      %v4816 = vld [vmem:[#allocation3 + $0x35] sm:$0xff]
      %v4817 = vld [vmem:[#allocation3 + $0x3d] sm:$0xff]
      %v4818 = vld [vmem:[#allocation3 + $0x45] sm:$0xff]
      %v4819 = vld [vmem:[#allocation3 + $0x4d] sm:$0xff]
      %v4820 = vld [vmem:[#allocation3 + $0x55] sm:$0xff]
      %v4821 = vld [vmem:[#allocation3 + $0x5d] sm:$0xff]
      %v4822 = vld [vmem:[#allocation3 + $0x65] sm:$0xff]
      %v4823 = vld [vmem:[#allocation3 + $0x6d] sm:$0xff]
      %v4824 = vld [vmem:[#allocation3 + $0x75] sm:$0xff]
      %v4825 = vld [vmem:[#allocation3 + $0x7d] sm:$0xff]
      %v4826 = vld [vmem:[#allocation3 + $0x85] sm:$0xff]
      %v4827 = vld [vmem:[#allocation3 + $0x8d] sm:$0xff]
      %v4828 = vld [vmem:[#allocation3 + $0x95] sm:$0xff]
      %v4829 = vld [vmem:[#allocation3 + $0x9d] sm:$0xff]
      %v4830 = vld [vmem:[#allocation3 + $0xa5] sm:$0xff]
      %v4831 = vld [vmem:[#allocation3 + $0xad] sm:$0xff]
      %v4832 = vld [vmem:[#allocation3 + $0xb5] sm:$0xff]
      %v4833 = vld [vmem:[#allocation3 + $0xbd] sm:$0xff]
      %v4834 = vld [vmem:[#allocation3 + $0xc5] sm:$0xff]
      %v4835 = vld [vmem:[#allocation3 + $0xcd] sm:$0xff]
      %v4836 = vld [vmem:[#allocation3 + $0xd5] sm:$0xff]
      %v4837 = vld [vmem:[#allocation3 + $0xdd] sm:$0xff]
      %v4838 = vld [vmem:[#allocation3 + $0xe5] sm:$0xff]
      %v4839 = vld [vmem:[#allocation3 + $0xed] sm:$0xff]
      %v4840 = vld [vmem:[#allocation3 + $0xf5] sm:$0xff]
      %v4841 = vld [vmem:[#allocation3 + $0xfd] sm:$0xff]
      %v4842 = vld [vmem:[#allocation3 + $0x105] sm:$0xff]
      %v4843 = vld [vmem:[#allocation3 + $0x10d] sm:$0xff]
      %v4844 = vld [vmem:[#allocation3 + $0x115] sm:$0xff]
      %v4845 = vld [vmem:[#allocation3 + $0x11d] sm:$0xff]
      %v4846 = vld [vmem:[#allocation3 + $0x6] sm:$0xff]
      %v4847 = vld [vmem:[#allocation3 + $0xe] sm:$0xff]
      %v4848 = vld [vmem:[#allocation3 + $0x16] sm:$0xff]
      %v4849 = vld [vmem:[#allocation3 + $0x1e] sm:$0xff]
      %v4850 = vld [vmem:[#allocation3 + $0x26] sm:$0xff]
      %v4851 = vld [vmem:[#allocation3 + $0x2e] sm:$0xff]
      %v4852 = vld [vmem:[#allocation3 + $0x36] sm:$0xff]
      %v4853 = vld [vmem:[#allocation3 + $0x3e] sm:$0xff]
      %v4854 = vld [vmem:[#allocation3 + $0x46] sm:$0xff]
      %v4855 = vld [vmem:[#allocation3 + $0x4e] sm:$0xff]
      %v4856 = vld [vmem:[#allocation3 + $0x56] sm:$0xff]
      %v4857 = vld [vmem:[#allocation3 + $0x5e] sm:$0xff]
      %v4858 = vld [vmem:[#allocation3 + $0x66] sm:$0xff]
      %v4859 = vld [vmem:[#allocation3 + $0x6e] sm:$0xff]
      %v4860 = vld [vmem:[#allocation3 + $0x76] sm:$0xff]
      %v4861 = vld [vmem:[#allocation3 + $0x7e] sm:$0xff]
      %v4862 = vld [vmem:[#allocation3 + $0x86] sm:$0xff]
      %v4863 = vld [vmem:[#allocation3 + $0x8e] sm:$0xff]
      %v4864 = vld [vmem:[#allocation3 + $0x96] sm:$0xff]
      %v4865 = vld [vmem:[#allocation3 + $0x9e] sm:$0xff]
      %v4866 = vld [vmem:[#allocation3 + $0xa6] sm:$0xff]
      %v4867 = vld [vmem:[#allocation3 + $0xae] sm:$0xff]
      %v4868 = vld [vmem:[#allocation3 + $0xb6] sm:$0xff]
      %v4869 = vld [vmem:[#allocation3 + $0xbe] sm:$0xff]
      %v4870 = vld [vmem:[#allocation3 + $0xc6] sm:$0xff]
      %v4871 = vld [vmem:[#allocation3 + $0xce] sm:$0xff]
      %v4872 = vld [vmem:[#allocation3 + $0xd6] sm:$0xff]
      %v4873 = vld [vmem:[#allocation3 + $0xde] sm:$0xff]
      %v4874 = vld [vmem:[#allocation3 + $0xe6] sm:$0xff]
      %v4875 = vld [vmem:[#allocation3 + $0xee] sm:$0xff]
      %v4876 = vld [vmem:[#allocation3 + $0xf6] sm:$0xff]
      %v4877 = vld [vmem:[#allocation3 + $0xfe] sm:$0xff]
      %v4878 = vld [vmem:[#allocation3 + $0x106] sm:$0xff]
      %v4879 = vld [vmem:[#allocation3 + $0x10e] sm:$0xff]
      %v4880 = vld [vmem:[#allocation3 + $0x116] sm:$0xff]
      %v4881 = vld [vmem:[#allocation3 + $0x11e] sm:$0xff]
      %v4882 = vld [vmem:[#allocation3 + $0x7] sm:$0xff]
      %v4883 = vld [vmem:[#allocation3 + $0xf] sm:$0xff]
      %v4884 = vld [vmem:[#allocation3 + $0x17] sm:$0xff]
      %v4885 = vld [vmem:[#allocation3 + $0x1f] sm:$0xff]
      %v4886 = vld [vmem:[#allocation3 + $0x27] sm:$0xff]
      %v4887 = vld [vmem:[#allocation3 + $0x2f] sm:$0xff]
      %v4888 = vld [vmem:[#allocation3 + $0x37] sm:$0xff]
      %v4889 = vld [vmem:[#allocation3 + $0x3f] sm:$0xff]
      %v4890 = vld [vmem:[#allocation3 + $0x47] sm:$0xff]
      %v4891 = vld [vmem:[#allocation3 + $0x4f] sm:$0xff]
      %v4892 = vld [vmem:[#allocation3 + $0x57] sm:$0xff]
      %v4893 = vld [vmem:[#allocation3 + $0x5f] sm:$0xff]
      %v4894 = vld [vmem:[#allocation3 + $0x67] sm:$0xff]
      %v4895 = vld [vmem:[#allocation3 + $0x6f] sm:$0xff]
      %v4896 = vld [vmem:[#allocation3 + $0x77] sm:$0xff]
      %v4897 = vld [vmem:[#allocation3 + $0x7f] sm:$0xff]
      %v4898 = vld [vmem:[#allocation3 + $0x87] sm:$0xff]
      %v4899 = vld [vmem:[#allocation3 + $0x8f] sm:$0xff]
      %v4900 = vld [vmem:[#allocation3 + $0x97] sm:$0xff]
      %v4901 = vld [vmem:[#allocation3 + $0x9f] sm:$0xff]
      %v4902 = vld [vmem:[#allocation3 + $0xa7] sm:$0xff]
      %v4903 = vld [vmem:[#allocation3 + $0xaf] sm:$0xff]
      %v4904 = vld [vmem:[#allocation3 + $0xb7] sm:$0xff]
      %v4905 = vld [vmem:[#allocation3 + $0xbf] sm:$0xff]
      %v4906 = vld [vmem:[#allocation3 + $0xc7] sm:$0xff]
      %v4907 = vld [vmem:[#allocation3 + $0xcf] sm:$0xff]
      %v4908 = vld [vmem:[#allocation3 + $0xd7] sm:$0xff]
      %v4909 = vld [vmem:[#allocation3 + $0xdf] sm:$0xff]
      %v4910 = vld [vmem:[#allocation3 + $0xe7] sm:$0xff]
      %v4911 = vld [vmem:[#allocation3 + $0xef] sm:$0xff]
      %v4912 = vld [vmem:[#allocation3 + $0xf7] sm:$0xff]
      %v4913 = vld [vmem:[#allocation3 + $0xff] sm:$0xff]
      %v4914 = vld [vmem:[#allocation3 + $0x107] sm:$0xff]
      %v4915 = vld [vmem:[#allocation3 + $0x10f] sm:$0xff]
      %v4916 = vld [vmem:[#allocation3 + $0x117] sm:$0xff]
      %v4917 = vld [vmem:[#allocation3 + $0x11f] sm:$0xff]
      %v4918 = vpack.c.bf16 %v4811, %v4810
      %v4919 = vpack.c.bf16 %v4847, %v4846
      %v4920 = vpack.c.bf16 %v4883, %v4882
      %v4921 = vpack.c.bf16 %v4813, %v4812
      %v4922 = vpack.c.bf16 %v4849, %v4848
      %v4923 = vpack.c.bf16 %v4885, %v4884
      %v4924 = vpack.c.bf16 %v4815, %v4814
      %v4925 = vpack.c.bf16 %v4851, %v4850
      %v4926 = vpack.c.bf16 %v4887, %v4886
      %v4927 = vpack.c.bf16 %v4817, %v4816
      %v4928 = vpack.c.bf16 %v4853, %v4852
      %v4929 = vpack.c.bf16 %v4889, %v4888
      %v4930 = vpack.c.bf16 %v4819, %v4818
      %v4931 = vpack.c.bf16 %v4855, %v4854
      %v4932 = vpack.c.bf16 %v4891, %v4890
      %v4933 = vpack.c.bf16 %v4821, %v4820
      %v4934 = vpack.c.bf16 %v4857, %v4856
      %v4935 = vpack.c.bf16 %v4893, %v4892
      %v4936 = vpack.c.bf16 %v4823, %v4822
      %v4937 = vpack.c.bf16 %v4859, %v4858
      %v4938 = vpack.c.bf16 %v4895, %v4894
      %v4939 = vpack.c.bf16 %v4825, %v4824
      %v4940 = vpack.c.bf16 %v4861, %v4860
      %v4941 = vpack.c.bf16 %v4897, %v4896
      %v4942 = vpack.c.bf16 %v4827, %v4826
      %v4943 = vpack.c.bf16 %v4863, %v4862
      %v4944 = vpack.c.bf16 %v4899, %v4898
      %v4945 = vpack.c.bf16 %v4829, %v4828
      %v4946 = vpack.c.bf16 %v4865, %v4864
      %v4947 = vpack.c.bf16 %v4901, %v4900
      %v4948 = vpack.c.bf16 %v4831, %v4830
      %v4949 = vpack.c.bf16 %v4867, %v4866
      %v4950 = vpack.c.bf16 %v4903, %v4902
      %v4951 = vpack.c.bf16 %v4833, %v4832
      %v4952 = vpack.c.bf16 %v4869, %v4868
      %v4953 = vpack.c.bf16 %v4905, %v4904
      %v4954 = vpack.c.bf16 %v4835, %v4834
      %v4955 = vpack.c.bf16 %v4871, %v4870
      %v4956 = vpack.c.bf16 %v4907, %v4906
      %v4957 = vpack.c.bf16 %v4837, %v4836
      %v4958 = vpack.c.bf16 %v4873, %v4872
      %v4959 = vpack.c.bf16 %v4909, %v4908
      %v4960 = vpack.c.bf16 %v4839, %v4838
      %v4961 = vpack.c.bf16 %v4875, %v4874
      %v4962 = vpack.c.bf16 %v4911, %v4910
      %v4963 = vpack.c.bf16 %v4841, %v4840
      %v4964 = vpack.c.bf16 %v4877, %v4876
      %v4965 = vpack.c.bf16 %v4913, %v4912
      %v4966 = vpack.c.bf16 %v4843, %v4842
      %v4967 = vpack.c.bf16 %v4879, %v4878
      %v4968 = vpack.c.bf16 %v4915, %v4914
      %v4969 = vpack.c.bf16 %v4845, %v4844
      %v4970 = vpack.c.bf16 %v4881, %v4880
      %v4971 = vpack.c.bf16 %v4917, %v4916
      %v4972 = vld [vmem:[%s6] sm:$0xff]
      %v4973 = vld [vmem:[%s6 + $0x8] sm:$0xff]
      %v4974 = vld [vmem:[%s6 + $0x10] sm:$0xff]
      %v4975 = vld [vmem:[%s6 + $0x18] sm:$0xff]
      %v4976 = vld [vmem:[%s6 + $0x20] sm:$0xff]
      %v4977 = vld [vmem:[%s6 + $0x28] sm:$0xff]
      %v4978 = vld [vmem:[%s6 + $0x30] sm:$0xff]
      %v4979 = vld [vmem:[%s6 + $0x38] sm:$0xff]
      %v4980 = vld [vmem:[%s6 + $0x40] sm:$0xff]
      %v4981 = vld [vmem:[%s6 + $0x48] sm:$0xff]
      %v4982 = vld [vmem:[%s6 + $0x50] sm:$0xff]
      %v4983 = vld [vmem:[%s6 + $0x58] sm:$0xff]
      %v4984 = vld [vmem:[%s6 + $0x60] sm:$0xff]
      %v4985 = vld [vmem:[%s6 + $0x68] sm:$0xff]
      %v4986 = vld [vmem:[%s6 + $0x70] sm:$0xff]
      %v4987 = vld [vmem:[%s6 + $0x78] sm:$0xff]
      %v4988 = vld [vmem:[%s6 + $0x80] sm:$0xff]
      %v4989 = vld [vmem:[%s6 + $0x88] sm:$0xff]
      %v4990 = vld [vmem:[%s6 + $0x90] sm:$0xff]
      %v4991 = vld [vmem:[%s6 + $0x98] sm:$0xff]
      %v4992 = vld [vmem:[%s6 + $0xa0] sm:$0xff]
      %v4993 = vld [vmem:[%s6 + $0xa8] sm:$0xff]
      %v4994 = vld [vmem:[%s6 + $0xb0] sm:$0xff]
      %v4995 = vld [vmem:[%s6 + $0xb8] sm:$0xff]
      %v4996 = vld [vmem:[%s6 + $0xc0] sm:$0xff]
      %v4997 = vld [vmem:[%s6 + $0xc8] sm:$0xff]
      %v4998 = vld [vmem:[%s6 + $0xd0] sm:$0xff]
      %v4999 = vld [vmem:[%s6 + $0xd8] sm:$0xff]
      %v5000 = vld [vmem:[%s6 + $0xe0] sm:$0xff]
      %v5001 = vld [vmem:[%s6 + $0xe8] sm:$0xff]
      %v5002 = vld [vmem:[%s6 + $0xf0] sm:$0xff]
      %v5003 = vld [vmem:[%s6 + $0xf8] sm:$0xff]
      %v5004 = vld [vmem:[%s6 + $0x100] sm:$0xff]
      %v5005 = vld [vmem:[%s6 + $0x108] sm:$0xff]
      %v5006 = vld [vmem:[%s6 + $0x110] sm:$0xff]
      %v5007 = vld [vmem:[%s6 + $0x118] sm:$0xff]
      %v5008 = vld [vmem:[%s6 + $0x120] sm:$0xff]
      %v5009 = vld [vmem:[%s6 + $0x128] sm:$0xff]
      %v5010 = vld [vmem:[%s6 + $0x130] sm:$0xff]
      %v5011 = vld [vmem:[%s6 + $0x138] sm:$0xff]
      %v5012 = vld [vmem:[%s6 + $0x140] sm:$0xff]
      %v5013 = vld [vmem:[%s6 + $0x148] sm:$0xff]
      %v5014 = vld [vmem:[%s6 + $0x150] sm:$0xff]
      %v5015 = vld [vmem:[%s6 + $0x158] sm:$0xff]
      %v5016 = vld [vmem:[%s6 + $0x160] sm:$0xff]
      %v5017 = vld [vmem:[%s6 + $0x168] sm:$0xff]
      %v5018 = vld [vmem:[%s6 + $0x170] sm:$0xff]
      %v5019 = vld [vmem:[%s6 + $0x178] sm:$0xff]
      %v5020 = vld [vmem:[#allocation3 + $0x127] sm:$0xff]
      %v5021 = vld [vmem:[#allocation3 + $0x12f] sm:$0xff]
      %v5022 = vld [vmem:[#allocation3 + $0x18] sm:$0xff]
      %v5023 = vld [vmem:[#allocation3 + $0x20] sm:$0xff]
      %v5024 = vld [vmem:[#allocation3 + $0x28] sm:$0xff]
      %v5025 = vld [vmem:[#allocation3 + $0x30] sm:$0xff]
      %v5026 = vld [vmem:[#allocation3 + $0x38] sm:$0xff]
      %v5027 = vld [vmem:[#allocation3 + $0x40] sm:$0xff]
      %v5028 = vld [vmem:[#allocation3 + $0x48] sm:$0xff]
      %v5029 = vld [vmem:[#allocation3 + $0x50] sm:$0xff]
      %v5030 = vld [vmem:[#allocation3 + $0x58] sm:$0xff]
      %v5031 = vld [vmem:[#allocation3 + $0x60] sm:$0xff]
      %v5032 = vld [vmem:[#allocation3 + $0x68] sm:$0xff]
      %v5033 = vld [vmem:[#allocation3 + $0x70] sm:$0xff]
      %v5034 = vld [vmem:[#allocation3 + $0x78] sm:$0xff]
      %v5035 = vld [vmem:[#allocation3 + $0x80] sm:$0xff]
      %v5036 = vld [vmem:[#allocation3 + $0x88] sm:$0xff]
      %v5037 = vld [vmem:[#allocation3 + $0x90] sm:$0xff]
      %v5038 = vld [vmem:[#allocation3 + $0x98] sm:$0xff]
      %v5039 = vld [vmem:[#allocation3 + $0xa0] sm:$0xff]
      %v5040 = vld [vmem:[#allocation3 + $0xa8] sm:$0xff]
      %v5041 = vld [vmem:[#allocation3 + $0xb0] sm:$0xff]
      %v5042 = vld [vmem:[#allocation3 + $0xb8] sm:$0xff]
      %v5043 = vld [vmem:[#allocation3 + $0xc0] sm:$0xff]
      %v5044 = vld [vmem:[#allocation3 + $0xc8] sm:$0xff]
      %v5045 = vld [vmem:[#allocation3 + $0xd0] sm:$0xff]
      %v5046 = vld [vmem:[#allocation3 + $0xd8] sm:$0xff]
      %v5047 = vld [vmem:[#allocation3 + $0xe0] sm:$0xff]
      %v5048 = vld [vmem:[#allocation3 + $0xe8] sm:$0xff]
      %v5049 = vld [vmem:[#allocation3 + $0xf0] sm:$0xff]
      %v5050 = vld [vmem:[#allocation3 + $0xf8] sm:$0xff]
      %v5051 = vld [vmem:[#allocation3 + $0x100] sm:$0xff]
      %v5052 = vld [vmem:[#allocation3 + $0x108] sm:$0xff]
      %v5053 = vld [vmem:[#allocation3 + $0x110] sm:$0xff]
      %v5054 = vld [vmem:[#allocation3 + $0x118] sm:$0xff]
      %v5055 = vld [vmem:[#allocation3 + $0x120] sm:$0xff]
      %v5056 = vld [vmem:[#allocation3 + $0x128] sm:$0xff]
      %v5057 = vld [vmem:[#allocation3 + $0x130] sm:$0xff]
      %v5058 = vld [vmem:[#allocation3 + $0x19] sm:$0xff]
      %v5059 = vld [vmem:[#allocation3 + $0x21] sm:$0xff]
      %v5060 = vld [vmem:[#allocation3 + $0x29] sm:$0xff]
      %v5061 = vld [vmem:[#allocation3 + $0x31] sm:$0xff]
      %v5062 = vld [vmem:[#allocation3 + $0x39] sm:$0xff]
      %v5063 = vld [vmem:[#allocation3 + $0x41] sm:$0xff]
      %v5064 = vld [vmem:[#allocation3 + $0x49] sm:$0xff]
      %v5065 = vld [vmem:[#allocation3 + $0x51] sm:$0xff]
      %v5066 = vld [vmem:[#allocation3 + $0x59] sm:$0xff]
      %v5067 = vld [vmem:[#allocation3 + $0x61] sm:$0xff]
      %v5068 = vld [vmem:[#allocation3 + $0x69] sm:$0xff]
      %v5069 = vld [vmem:[#allocation3 + $0x71] sm:$0xff]
      %v5070 = vld [vmem:[#allocation3 + $0x79] sm:$0xff]
      %v5071 = vld [vmem:[#allocation3 + $0x81] sm:$0xff]
      %v5072 = vld [vmem:[#allocation3 + $0x89] sm:$0xff]
      %v5073 = vld [vmem:[#allocation3 + $0x91] sm:$0xff]
      %v5074 = vld [vmem:[#allocation3 + $0x99] sm:$0xff]
      %v5075 = vld [vmem:[#allocation3 + $0xa1] sm:$0xff]
      %v5076 = vld [vmem:[#allocation3 + $0xa9] sm:$0xff]
      %v5077 = vld [vmem:[#allocation3 + $0xb1] sm:$0xff]
      %v5078 = vld [vmem:[#allocation3 + $0xb9] sm:$0xff]
      %v5079 = vld [vmem:[#allocation3 + $0xc1] sm:$0xff]
      %v5080 = vld [vmem:[#allocation3 + $0xc9] sm:$0xff]
      %v5081 = vld [vmem:[#allocation3 + $0xd1] sm:$0xff]
      %v5082 = vld [vmem:[#allocation3 + $0xd9] sm:$0xff]
      %v5083 = vld [vmem:[#allocation3 + $0xe1] sm:$0xff]
      %v5084 = vld [vmem:[#allocation3 + $0xe9] sm:$0xff]
      %v5085 = vld [vmem:[#allocation3 + $0xf1] sm:$0xff]
      %v5086 = vld [vmem:[#allocation3 + $0xf9] sm:$0xff]
      %v5087 = vld [vmem:[#allocation3 + $0x101] sm:$0xff]
      %v5088 = vld [vmem:[#allocation3 + $0x109] sm:$0xff]
      %v5089 = vld [vmem:[#allocation3 + $0x111] sm:$0xff]
      %v5090 = vld [vmem:[#allocation3 + $0x119] sm:$0xff]
      %v5091 = vld [vmem:[#allocation3 + $0x121] sm:$0xff]
      %v5092 = vld [vmem:[#allocation3 + $0x129] sm:$0xff]
      %v5093 = vld [vmem:[#allocation3 + $0x131] sm:$0xff]
      %v5094 = vpack.c.bf16 %v5023, %v5022
      %v5095 = vpack.c.bf16 %v5059, %v5058
      %v5096 = vpack.c.bf16 %v5025, %v5024
      %v5097 = vpack.c.bf16 %v5061, %v5060
      %v5098 = vpack.c.bf16 %v5027, %v5026
      %v5099 = vpack.c.bf16 %v5063, %v5062
      %v5100 = vpack.c.bf16 %v5029, %v5028
      %v5101 = vpack.c.bf16 %v5065, %v5064
      %v5102 = vpack.c.bf16 %v5031, %v5030
      %v5103 = vpack.c.bf16 %v5067, %v5066
      %v5104 = vpack.c.bf16 %v5033, %v5032
      %v5105 = vpack.c.bf16 %v5069, %v5068
      %v5106 = vpack.c.bf16 %v5035, %v5034
      %v5107 = vpack.c.bf16 %v5071, %v5070
      %v5108 = vpack.c.bf16 %v5037, %v5036
      %v5109 = vpack.c.bf16 %v5073, %v5072
      %v5110 = vpack.c.bf16 %v5039, %v5038
      %v5111 = vpack.c.bf16 %v5075, %v5074
      %v5112 = vpack.c.bf16 %v5041, %v5040
      %v5113 = vpack.c.bf16 %v5077, %v5076
      %v5114 = vpack.c.bf16 %v5043, %v5042
      %v5115 = vpack.c.bf16 %v5079, %v5078
      %v5116 = vpack.c.bf16 %v5045, %v5044
      %v5117 = vpack.c.bf16 %v5081, %v5080
      %v5118 = vpack.c.bf16 %v5047, %v5046
      %v5119 = vpack.c.bf16 %v5083, %v5082
      %v5120 = vpack.c.bf16 %v5049, %v5048
      %v5121 = vpack.c.bf16 %v5085, %v5084
      %v5122 = vpack.c.bf16 %v5051, %v5050
      %v5123 = vpack.c.bf16 %v5087, %v5086
      %v5124 = vpack.c.bf16 %v5053, %v5052
      %v5125 = vpack.c.bf16 %v5089, %v5088
      %v5126 = vpack.c.bf16 %v5055, %v5054
      %v5127 = vpack.c.bf16 %v5091, %v5090
      %v5128 = vpack.c.bf16 %v5021, %v5020
      %v5129 = vpack.c.bf16 %v5057, %v5056
      %v5130 = vpack.c.bf16 %v5093, %v5092
      %s5131 = scalar_lea.vmem %s6, 384
      %v5132 = vld [vmem:[%s5131] sm:$0xff]
      %v5133 = vld [vmem:[%s5131 + $0x8] sm:$0xff]
      %v5134 = vld [vmem:[%s5131 + $0x10] sm:$0xff]
      %v5135 = vld [vmem:[%s5131 + $0x18] sm:$0xff]
      %v5136 = vld [vmem:[%s5131 + $0x20] sm:$0xff]
      %v5137 = vld [vmem:[%s5131 + $0x28] sm:$0xff]
      %v5138 = vld [vmem:[%s5131 + $0x30] sm:$0xff]
      %v5139 = vld [vmem:[%s5131 + $0x38] sm:$0xff]
      %v5140 = vld [vmem:[%s5131 + $0x40] sm:$0xff]
      %v5141 = vld [vmem:[%s5131 + $0x48] sm:$0xff]
      %v5142 = vld [vmem:[%s5131 + $0x50] sm:$0xff]
      %v5143 = vld [vmem:[%s5131 + $0x58] sm:$0xff]
      %v5144 = vld [vmem:[%s5131 + $0x60] sm:$0xff]
      %v5145 = vld [vmem:[%s5131 + $0x68] sm:$0xff]
      %v5146 = vld [vmem:[%s5131 + $0x70] sm:$0xff]
      %v5147 = vld [vmem:[%s5131 + $0x78] sm:$0xff]
      %v5148 = vld [vmem:[%s5131 + $0x80] sm:$0xff]
      %v5149 = vld [vmem:[%s5131 + $0x88] sm:$0xff]
      %v5150 = vld [vmem:[%s5131 + $0x90] sm:$0xff]
      %v5151 = vld [vmem:[%s5131 + $0x98] sm:$0xff]
      %v5152 = vld [vmem:[%s5131 + $0xa0] sm:$0xff]
      %v5153 = vld [vmem:[%s5131 + $0xa8] sm:$0xff]
      %v5154 = vld [vmem:[%s5131 + $0xb0] sm:$0xff]
      %v5155 = vld [vmem:[%s5131 + $0xb8] sm:$0xff]
      %v5156 = vld [vmem:[%s5131 + $0xc0] sm:$0xff]
      %v5157 = vld [vmem:[%s5131 + $0xc8] sm:$0xff]
      %v5158 = vld [vmem:[%s5131 + $0xd0] sm:$0xff]
      %v5159 = vld [vmem:[%s5131 + $0xd8] sm:$0xff]
      %v5160 = vld [vmem:[%s5131 + $0xe0] sm:$0xff]
      %v5161 = vld [vmem:[%s5131 + $0xe8] sm:$0xff]
      %v5162 = vld [vmem:[%s5131 + $0xf0] sm:$0xff]
      %v5163 = vld [vmem:[%s5131 + $0xf8] sm:$0xff]
      %v5164 = vld [vmem:[%s5131 + $0x100] sm:$0xff]
      %v5165 = vld [vmem:[%s5131 + $0x108] sm:$0xff]
      %v5166 = vld [vmem:[%s5131 + $0x110] sm:$0xff]
      %v5167 = vld [vmem:[%s5131 + $0x118] sm:$0xff]
      %v5168 = vld [vmem:[%s5131 + $0x120] sm:$0xff]
      %v5169 = vld [vmem:[%s5131 + $0x128] sm:$0xff]
      %v5170 = vld [vmem:[%s5131 + $0x130] sm:$0xff]
      %v5171 = vld [vmem:[%s5131 + $0x138] sm:$0xff]
      %v5172 = vld [vmem:[%s5131 + $0x140] sm:$0xff]
      %v5173 = vld [vmem:[%s5131 + $0x148] sm:$0xff]
      %v5174 = vld [vmem:[%s5131 + $0x150] sm:$0xff]
      %v5175 = vld [vmem:[%s5131 + $0x158] sm:$0xff]
      %v5176 = vld [vmem:[%s5131 + $0x160] sm:$0xff]
      %v5177 = vld [vmem:[%s5131 + $0x168] sm:$0xff]
      %v5178 = vld [vmem:[%s5131 + $0x170] sm:$0xff]
      %v5179 = vld [vmem:[%s5131 + $0x178] sm:$0xff]
      %v5228 = vunpack.c.l.b16 %v5132
      %v5229 = vunpack.c.h.b16 %v5132
      %v5230 = vunpack.c.l.b16 %v5133
      %v5231 = vunpack.c.h.b16 %v5133
      %v5232 = vunpack.c.l.b16 %v5134
      %v5233 = vunpack.c.h.b16 %v5134
      %v5234 = vunpack.c.l.b16 %v5135
      %v5235 = vunpack.c.h.b16 %v5135
      %v5236 = vunpack.c.l.b16 %v5136
      %v5237 = vunpack.c.h.b16 %v5136
      %v5238 = vunpack.c.l.b16 %v5137
      %v5239 = vunpack.c.h.b16 %v5137
      %v5240 = vunpack.c.l.b16 %v5138
      %v5241 = vunpack.c.h.b16 %v5138
      %v5242 = vunpack.c.l.b16 %v5139
      %v5243 = vunpack.c.h.b16 %v5139
      %v5244 = vunpack.c.l.b16 %v5140
      %v5245 = vunpack.c.h.b16 %v5140
      %v5246 = vunpack.c.l.b16 %v5141
      %v5247 = vunpack.c.h.b16 %v5141
      %v5248 = vunpack.c.l.b16 %v5142
      %v5249 = vunpack.c.h.b16 %v5142
      %v5250 = vunpack.c.l.b16 %v5143
      %v5251 = vunpack.c.h.b16 %v5143
      %v5252 = vunpack.c.l.b16 %v5144
      %v5253 = vunpack.c.h.b16 %v5144
      %v5254 = vunpack.c.l.b16 %v5145
      %v5255 = vunpack.c.h.b16 %v5145
      %v5256 = vunpack.c.l.b16 %v5146
      %v5257 = vunpack.c.h.b16 %v5146
      %v5258 = vunpack.c.l.b16 %v5147
      %v5259 = vunpack.c.h.b16 %v5147
      %v5260 = vunpack.c.l.b16 %v5148
      %v5261 = vunpack.c.h.b16 %v5148
      %v5262 = vunpack.c.l.b16 %v5149
      %v5263 = vunpack.c.h.b16 %v5149
      %v5264 = vunpack.c.l.b16 %v5150
      %v5265 = vunpack.c.h.b16 %v5150
      %v5266 = vunpack.c.l.b16 %v5151
      %v5267 = vunpack.c.h.b16 %v5151
      %v5268 = vunpack.c.l.b16 %v5152
      %v5269 = vunpack.c.h.b16 %v5152
      %v5270 = vunpack.c.l.b16 %v5153
      %v5271 = vunpack.c.h.b16 %v5153
      %v5272 = vunpack.c.l.b16 %v5154
      %v5273 = vunpack.c.h.b16 %v5154
      %v5274 = vunpack.c.l.b16 %v5155
      %v5275 = vunpack.c.h.b16 %v5155
      %v5276 = vunpack.c.l.b16 %v5156
      %v5277 = vunpack.c.h.b16 %v5156
      %v5278 = vunpack.c.l.b16 %v5157
      %v5279 = vunpack.c.h.b16 %v5157
      %v5280 = vunpack.c.l.b16 %v5158
      %v5281 = vunpack.c.h.b16 %v5158
      %v5282 = vunpack.c.l.b16 %v5159
      %v5283 = vunpack.c.h.b16 %v5159
      %v5284 = vunpack.c.l.b16 %v5160
      %v5285 = vunpack.c.h.b16 %v5160
      %v5286 = vunpack.c.l.b16 %v5161
      %v5287 = vunpack.c.h.b16 %v5161
      %v5288 = vunpack.c.l.b16 %v5162
      %v5289 = vunpack.c.h.b16 %v5162
      %v5290 = vunpack.c.l.b16 %v5163
      %v5291 = vunpack.c.h.b16 %v5163
      %v5292 = vunpack.c.l.b16 %v5164
      %v5293 = vunpack.c.h.b16 %v5164
      %v5294 = vunpack.c.l.b16 %v5165
      %v5295 = vunpack.c.h.b16 %v5165
      %v5296 = vunpack.c.l.b16 %v5166
      %v5297 = vunpack.c.h.b16 %v5166
      %v5298 = vunpack.c.l.b16 %v5167
      %v5299 = vunpack.c.h.b16 %v5167
      %v5300 = vunpack.c.l.b16 %v5168
      %v5301 = vunpack.c.h.b16 %v5168
      %v5302 = vunpack.c.l.b16 %v5169
      %v5303 = vunpack.c.h.b16 %v5169
      %v5304 = vunpack.c.l.b16 %v5170
      %v5305 = vunpack.c.h.b16 %v5170
      %v5306 = vunpack.c.l.b16 %v5171
      %v5307 = vunpack.c.h.b16 %v5171
      %v5308 = vunpack.c.l.b16 %v5172
      %v5309 = vunpack.c.h.b16 %v5172
      %v5310 = vunpack.c.l.b16 %v5173
      %v5311 = vunpack.c.h.b16 %v5173
      %v5312 = vunpack.c.l.b16 %v5174
      %v5313 = vunpack.c.h.b16 %v5174
      %v5314 = vunpack.c.l.b16 %v5175
      %v5315 = vunpack.c.h.b16 %v5175
      %v5316 = vunpack.c.l.b16 %v5176
      %v5317 = vunpack.c.h.b16 %v5176
      %v5318 = vunpack.c.l.b16 %v5177
      %v5319 = vunpack.c.h.b16 %v5177
      %v5320 = vunpack.c.l.b16 %v5178
      %v5321 = vunpack.c.h.b16 %v5178
      %v5322 = vunpack.c.l.b16 %v5179
      %v5323 = vunpack.c.h.b16 %v5179
      %v5324 = vpack.c.b16 %v5230, %v5228
      %v5325 = vpack.c.b16 %v5231, %v5229
      %v5326 = vpack.c.b16 %v5234, %v5232
      %v5327 = vpack.c.b16 %v5235, %v5233
      %v5328 = vpack.c.b16 %v5238, %v5236
      %v5329 = vpack.c.b16 %v5239, %v5237
      %v5330 = vpack.c.b16 %v5242, %v5240
      %v5331 = vpack.c.b16 %v5243, %v5241
      %v5332 = vpack.c.b16 %v5246, %v5244
      %v5333 = vpack.c.b16 %v5247, %v5245
      %v5334 = vpack.c.b16 %v5250, %v5248
      %v5335 = vpack.c.b16 %v5251, %v5249
      %v5336 = vpack.c.b16 %v5254, %v5252
      %v5337 = vpack.c.b16 %v5255, %v5253
      %v5338 = vpack.c.b16 %v5258, %v5256
      %v5339 = vpack.c.b16 %v5259, %v5257
      %v5340 = vpack.c.b16 %v5262, %v5260
      %v5341 = vpack.c.b16 %v5263, %v5261
      %v5342 = vpack.c.b16 %v5266, %v5264
      %v5343 = vpack.c.b16 %v5267, %v5265
      %v5344 = vpack.c.b16 %v5270, %v5268
      %v5345 = vpack.c.b16 %v5271, %v5269
      %v5346 = vpack.c.b16 %v5274, %v5272
      %v5347 = vpack.c.b16 %v5275, %v5273
      %v5348 = vpack.c.b16 %v5278, %v5276
      %v5349 = vpack.c.b16 %v5279, %v5277
      %v5350 = vpack.c.b16 %v5282, %v5280
      %v5351 = vpack.c.b16 %v5283, %v5281
      %v5352 = vpack.c.b16 %v5286, %v5284
      %v5353 = vpack.c.b16 %v5287, %v5285
      %v5354 = vpack.c.b16 %v5290, %v5288
      %v5355 = vpack.c.b16 %v5291, %v5289
      %v5356 = vpack.c.b16 %v5294, %v5292
      %v5357 = vpack.c.b16 %v5295, %v5293
      %v5358 = vpack.c.b16 %v5298, %v5296
      %v5359 = vpack.c.b16 %v5299, %v5297
      %v5360 = vpack.c.b16 %v5302, %v5300
      %v5361 = vpack.c.b16 %v5303, %v5301
      %v5362 = vpack.c.b16 %v5306, %v5304
      %v5363 = vpack.c.b16 %v5307, %v5305
      %v5364 = vpack.c.b16 %v5310, %v5308
      %v5365 = vpack.c.b16 %v5311, %v5309
      %v5366 = vpack.c.b16 %v5314, %v5312
      %v5367 = vpack.c.b16 %v5315, %v5313
      %v5368 = vpack.c.b16 %v5318, %v5316
      %v5369 = vpack.c.b16 %v5319, %v5317
      %v5370 = vpack.c.b16 %v5322, %v5320
      %v5371 = vpack.c.b16 %v5323, %v5321
      %5420 = vmatprep.subr.bf16.mxu0 %v5339
      %5421 = vmatpush1.bf16.msra.mxu0 %v5338
      %5422 = vmatprep.subr.bf16.mxu0 %v5337
      %5423 = vmatpush1.bf16.msra.mxu0 %v5336
      %5424 = vmatprep.subr.bf16.mxu0 %v5335
      %5425 = vmatpush1.bf16.msra.mxu0 %v5334
      %5426 = vmatprep.subr.bf16.mxu0 %v5333
      %5427 = vmatpush1.bf16.msra.mxu0 %v5332
      %5428 = vmatprep.subr.bf16.mxu0 %v5331
      %5429 = vmatpush1.bf16.msra.mxu0 %v5330
      %5430 = vmatprep.subr.bf16.mxu0 %v5329
      %5431 = vmatpush1.bf16.msra.mxu0 %v5328
      %5432 = vmatprep.subr.bf16.mxu0 %v5327
      %5433 = vmatpush1.bf16.msra.mxu0 %v5326
      %5434 = vmatprep.subr.bf16.mxu0 %v5325
      %5435 = vmatpush1.bf16.msra.mxu0 %v5324
      %5436 = vmatprep.subr.bf16.mxu0 %v5355
      %5437 = vmatpush2.bf16.msra.mxu0 %v5354
      %5438 = vmatprep.subr.bf16.mxu0 %v5353
      %5439 = vmatpush2.bf16.msra.mxu0 %v5352
      %5440 = vmatprep.subr.bf16.mxu0 %v5351
      %5441 = vmatpush2.bf16.msra.mxu0 %v5350
      %5442 = vmatprep.subr.bf16.mxu0 %v5349
      %5443 = vmatpush2.bf16.msra.mxu0 %v5348
      %5444 = vmatprep.subr.bf16.mxu0 %v5347
      %5445 = vmatpush2.bf16.msra.mxu0 %v5346
      %5446 = vmatprep.subr.bf16.mxu0 %v5345
      %5447 = vmatpush2.bf16.msra.mxu0 %v5344
      %5448 = vmatprep.subr.bf16.mxu0 %v5343
      %5449 = vmatpush2.bf16.msra.mxu0 %v5342
      %5450 = vmatprep.subr.bf16.mxu0 %v5341
      %5451 = vmatpush2.bf16.msra.mxu0 %v5340
      %5452 = vmatprep.mubr.bf16.mxu0 %v5094
      %5453 = vmatmul.mubr.bf16.gmra.mxu0 %v4923
      %v5454 = vpop.f32.mrf.mxu0
      %v5455 = vadd.f32 0.0, %v5454
      %v5456 = vpop.f32.mrf.mxu0
      %v5457 = vadd.f32 0.0, %v5456
      %v5458 = vpop.f32.mrf.mxu0
      %v5459 = vadd.f32 0.0, %v5458
      %v5460 = vpop.f32.mrf.mxu0
      %v5461 = vadd.f32 0.0, %v5460
      %5462 = vmatprep.mubr.bf16.mxu0 %v5096
      %5463 = vmatmul.mubr.bf16.gmra.mxu0 %v4926
      %v5464 = vpop.f32.mrf.mxu0
      %v5465 = vadd.f32 0.0, %v5464
      %v5466 = vpop.f32.mrf.mxu0
      %v5467 = vadd.f32 0.0, %v5466
      %v5468 = vpop.f32.mrf.mxu0
      %v5469 = vadd.f32 0.0, %v5468
      %v5470 = vpop.f32.mrf.mxu0
      %v5471 = vadd.f32 0.0, %v5470
      %5472 = vmatprep.mubr.bf16.mxu0 %v5098
      %5473 = vmatmul.mubr.bf16.gmra.mxu0 %v4929
      %v5474 = vpop.f32.mrf.mxu0
      %v5475 = vadd.f32 0.0, %v5474
      %v5476 = vpop.f32.mrf.mxu0
      %v5477 = vadd.f32 0.0, %v5476
      %v5478 = vpop.f32.mrf.mxu0
      %v5479 = vadd.f32 0.0, %v5478
      %v5480 = vpop.f32.mrf.mxu0
      %v5481 = vadd.f32 0.0, %v5480
      %5482 = vmatprep.mubr.bf16.mxu0 %v5100
      %5483 = vmatmul.mubr.bf16.gmra.mxu0 %v4932
      %v5484 = vpop.f32.mrf.mxu0
      %v5485 = vadd.f32 0.0, %v5484
      %v5486 = vpop.f32.mrf.mxu0
      %v5487 = vadd.f32 0.0, %v5486
      %v5488 = vpop.f32.mrf.mxu0
      %v5489 = vadd.f32 0.0, %v5488
      %v5490 = vpop.f32.mrf.mxu0
      %v5491 = vadd.f32 0.0, %v5490
      %5492 = vmatprep.mubr.bf16.mxu0 %v5102
      %5493 = vmatmul.mubr.bf16.gmra.mxu0 %v4935
      %v5494 = vpop.f32.mrf.mxu0
      %v5495 = vadd.f32 0.0, %v5494
      %v5496 = vpop.f32.mrf.mxu0
      %v5497 = vadd.f32 0.0, %v5496
      %v5498 = vpop.f32.mrf.mxu0
      %v5499 = vadd.f32 0.0, %v5498
      %v5500 = vpop.f32.mrf.mxu0
      %v5501 = vadd.f32 0.0, %v5500
      %5502 = vmatprep.mubr.bf16.mxu0 %v5104
      %5503 = vmatmul.mubr.bf16.gmra.mxu0 %v4938
      %v5504 = vpop.f32.mrf.mxu0
      %v5505 = vadd.f32 0.0, %v5504
      %v5506 = vpop.f32.mrf.mxu0
      %v5507 = vadd.f32 0.0, %v5506
      %v5508 = vpop.f32.mrf.mxu0
      %v5509 = vadd.f32 0.0, %v5508
      %v5510 = vpop.f32.mrf.mxu0
      %v5511 = vadd.f32 0.0, %v5510
      %5512 = vmatprep.mubr.bf16.mxu0 %v5106
      %5513 = vmatmul.mubr.bf16.gmra.mxu0 %v4941
      %v5514 = vpop.f32.mrf.mxu0
      %v5515 = vadd.f32 0.0, %v5514
      %v5516 = vpop.f32.mrf.mxu0
      %v5517 = vadd.f32 0.0, %v5516
      %v5518 = vpop.f32.mrf.mxu0
      %v5519 = vadd.f32 0.0, %v5518
      %v5520 = vpop.f32.mrf.mxu0
      %v5521 = vadd.f32 0.0, %v5520
      %5522 = vmatprep.mubr.bf16.mxu0 %v5108
      %5523 = vmatmul.mubr.bf16.gmra.mxu0 %v4944
      %v5524 = vpop.f32.mrf.mxu0
      %v5525 = vadd.f32 0.0, %v5524
      %v5526 = vpop.f32.mrf.mxu0
      %v5527 = vadd.f32 0.0, %v5526
      %v5528 = vpop.f32.mrf.mxu0
      %v5529 = vadd.f32 0.0, %v5528
      %v5530 = vpop.f32.mrf.mxu0
      %v5531 = vadd.f32 0.0, %v5530
      %5532 = vmatprep.mubr.bf16.mxu0 %v5110
      %5533 = vmatmul.mubr.bf16.gmra.mxu0 %v4947
      %v5534 = vpop.f32.mrf.mxu0
      %v5535 = vadd.f32 0.0, %v5534
      %v5536 = vpop.f32.mrf.mxu0
      %v5537 = vadd.f32 0.0, %v5536
      %v5538 = vpop.f32.mrf.mxu0
      %v5539 = vadd.f32 0.0, %v5538
      %v5540 = vpop.f32.mrf.mxu0
      %v5541 = vadd.f32 0.0, %v5540
      %5542 = vmatprep.mubr.bf16.mxu0 %v5112
      %5543 = vmatmul.mubr.bf16.gmra.mxu0 %v4950
      %v5544 = vpop.f32.mrf.mxu0
      %v5545 = vadd.f32 0.0, %v5544
      %v5546 = vpop.f32.mrf.mxu0
      %v5547 = vadd.f32 0.0, %v5546
      %v5548 = vpop.f32.mrf.mxu0
      %v5549 = vadd.f32 0.0, %v5548
      %v5550 = vpop.f32.mrf.mxu0
      %v5551 = vadd.f32 0.0, %v5550
      %5552 = vmatprep.mubr.bf16.mxu0 %v5114
      %5553 = vmatmul.mubr.bf16.gmra.mxu0 %v4953
      %v5554 = vpop.f32.mrf.mxu0
      %v5555 = vadd.f32 0.0, %v5554
      %v5556 = vpop.f32.mrf.mxu0
      %v5557 = vadd.f32 0.0, %v5556
      %v5558 = vpop.f32.mrf.mxu0
      %v5559 = vadd.f32 0.0, %v5558
      %v5560 = vpop.f32.mrf.mxu0
      %v5561 = vadd.f32 0.0, %v5560
      %5562 = vmatprep.mubr.bf16.mxu0 %v5116
      %5563 = vmatmul.mubr.bf16.gmra.mxu0 %v4956
      %v5564 = vpop.f32.mrf.mxu0
      %v5565 = vadd.f32 0.0, %v5564
      %v5566 = vpop.f32.mrf.mxu0
      %v5567 = vadd.f32 0.0, %v5566
      %v5568 = vpop.f32.mrf.mxu0
      %v5569 = vadd.f32 0.0, %v5568
      %v5570 = vpop.f32.mrf.mxu0
      %v5571 = vadd.f32 0.0, %v5570
      %5572 = vmatprep.mubr.bf16.mxu0 %v5118
      %5573 = vmatmul.mubr.bf16.gmra.mxu0 %v4959
      %v5574 = vpop.f32.mrf.mxu0
      %v5575 = vadd.f32 0.0, %v5574
      %v5576 = vpop.f32.mrf.mxu0
      %v5577 = vadd.f32 0.0, %v5576
      %v5578 = vpop.f32.mrf.mxu0
      %v5579 = vadd.f32 0.0, %v5578
      %v5580 = vpop.f32.mrf.mxu0
      %v5581 = vadd.f32 0.0, %v5580
      %5582 = vmatprep.mubr.bf16.mxu0 %v5120
      %5583 = vmatmul.mubr.bf16.gmra.mxu0 %v4962
      %v5584 = vpop.f32.mrf.mxu0
      %v5585 = vadd.f32 0.0, %v5584
      %v5586 = vpop.f32.mrf.mxu0
      %v5587 = vadd.f32 0.0, %v5586
      %v5588 = vpop.f32.mrf.mxu0
      %v5589 = vadd.f32 0.0, %v5588
      %v5590 = vpop.f32.mrf.mxu0
      %v5591 = vadd.f32 0.0, %v5590
      %5592 = vmatprep.mubr.bf16.mxu0 %v5122
      %5593 = vmatmul.mubr.bf16.gmra.mxu0 %v4965
      %v5594 = vpop.f32.mrf.mxu0
      %v5595 = vadd.f32 0.0, %v5594
      %v5596 = vpop.f32.mrf.mxu0
      %v5597 = vadd.f32 0.0, %v5596
      %v5598 = vpop.f32.mrf.mxu0
      %v5599 = vadd.f32 0.0, %v5598
      %v5600 = vpop.f32.mrf.mxu0
      %v5601 = vadd.f32 0.0, %v5600
      %5602 = vmatprep.mubr.bf16.mxu0 %v5124
      %5603 = vmatmul.mubr.bf16.gmra.mxu0 %v4968
      %v5604 = vpop.f32.mrf.mxu0
      %v5605 = vadd.f32 0.0, %v5604
      %v5606 = vpop.f32.mrf.mxu0
      %v5607 = vadd.f32 0.0, %v5606
      %v5608 = vpop.f32.mrf.mxu0
      %v5609 = vadd.f32 0.0, %v5608
      %v5610 = vpop.f32.mrf.mxu0
      %v5611 = vadd.f32 0.0, %v5610
      %5612 = vmatprep.mubr.bf16.mxu0 %v5126
      %5613 = vmatmul.mubr.bf16.gmra.mxu0 %v4971
      %v5614 = vpop.f32.mrf.mxu0
      %v5615 = vadd.f32 0.0, %v5614
      %v5616 = vpop.f32.mrf.mxu0
      %v5617 = vadd.f32 0.0, %v5616
      %v5618 = vpop.f32.mrf.mxu0
      %v5619 = vadd.f32 0.0, %v5618
      %v5620 = vpop.f32.mrf.mxu0
      %v5621 = vadd.f32 0.0, %v5620
      %5622 = vmatprep.mubr.bf16.mxu0 %v5129
      %5623 = vmatmul.mubr.bf16.gmra.mxu0 %v5128
      %v5624 = vpop.f32.mrf.mxu0
      %v5625 = vadd.f32 0.0, %v5624
      %v5626 = vpop.f32.mrf.mxu0
      %v5627 = vadd.f32 0.0, %v5626
      %v5628 = vpop.f32.mrf.mxu0
      %v5629 = vadd.f32 0.0, %v5628
      %v5630 = vpop.f32.mrf.mxu0
      %v5631 = vadd.f32 0.0, %v5630
      %5632 = vdwg.mxu0
      %5633 = vmatprep.subr.bf16.mxu0 %v5371
      %5634 = vmatpush1.bf16.msra.mxu0 %v5370
      %5635 = vmatprep.subr.bf16.mxu0 %v5369
      %5636 = vmatpush1.bf16.msra.mxu0 %v5368
      %5637 = vmatprep.subr.bf16.mxu0 %v5367
      %5638 = vmatpush1.bf16.msra.mxu0 %v5366
      %5639 = vmatprep.subr.bf16.mxu0 %v5365
      %5640 = vmatpush1.bf16.msra.mxu0 %v5364
      %5641 = vmatprep.subr.bf16.mxu0 %v5363
      %5642 = vmatpush1.bf16.msra.mxu0 %v5362
      %5643 = vmatprep.subr.bf16.mxu0 %v5361
      %5644 = vmatpush1.bf16.msra.mxu0 %v5360
      %5645 = vmatprep.subr.bf16.mxu0 %v5359
      %5646 = vmatpush1.bf16.msra.mxu0 %v5358
      %5647 = vmatprep.subr.bf16.mxu0 %v5357
      %5648 = vmatpush1.bf16.msra.mxu0 %v5356
      %5649 = vmatprep.subr.bf16.mxu0 0
      %5650 = vmatpush2.bf16.msra.mxu0 0
      %5651 = vmatprep.subr.bf16.mxu0 0
      %5652 = vmatpush2.bf16.msra.mxu0 0
      %5653 = vmatprep.subr.bf16.mxu0 0
      %5654 = vmatpush2.bf16.msra.mxu0 0
      %5655 = vmatprep.subr.bf16.mxu0 0
      %5656 = vmatpush2.bf16.msra.mxu0 0
      %5657 = vmatprep.subr.bf16.mxu0 0
      %5658 = vmatpush2.bf16.msra.mxu0 0
      %5659 = vmatprep.subr.bf16.mxu0 0
      %5660 = vmatpush2.bf16.msra.mxu0 0
      %5661 = vmatprep.subr.bf16.mxu0 0
      %5662 = vmatpush2.bf16.msra.mxu0 0
      %5663 = vmatprep.subr.bf16.mxu0 0
      %5664 = vmatpush2.bf16.msra.mxu0 0
      %5665 = vmatprep.mubr.bf16.mxu0 0
      %5666 = vmatmul.mubr.bf16.gmra.mxu0 %v5095
      %v5667 = vpop.f32.mrf.mxu0
      %v5668 = vadd.f32 %v5455, %v5667
      %v5669 = vpop.f32.mrf.mxu0
      %v5670 = vadd.f32 %v5457, %v5669
      %v5671 = vpop.f32.mrf.mxu0
      %v5672 = vadd.f32 %v5459, %v5671
      %v5673 = vpop.f32.mrf.mxu0
      %v5674 = vadd.f32 %v5461, %v5673
      %5675 = vmatprep.mubr.bf16.mxu0 0
      %5676 = vmatmul.mubr.bf16.gmra.mxu0 %v5097
      %v5677 = vpop.f32.mrf.mxu0
      %v5678 = vadd.f32 %v5465, %v5677
      %v5679 = vpop.f32.mrf.mxu0
      %v5680 = vadd.f32 %v5467, %v5679
      %v5681 = vpop.f32.mrf.mxu0
      %v5682 = vadd.f32 %v5469, %v5681
      %v5683 = vpop.f32.mrf.mxu0
      %v5684 = vadd.f32 %v5471, %v5683
      %5685 = vmatprep.mubr.bf16.mxu0 0
      %5686 = vmatmul.mubr.bf16.gmra.mxu0 %v5099
      %v5687 = vpop.f32.mrf.mxu0
      %v5688 = vadd.f32 %v5475, %v5687
      %v5689 = vpop.f32.mrf.mxu0
      %v5690 = vadd.f32 %v5477, %v5689
      %v5691 = vpop.f32.mrf.mxu0
      %v5692 = vadd.f32 %v5479, %v5691
      %v5693 = vpop.f32.mrf.mxu0
      %v5694 = vadd.f32 %v5481, %v5693
      %5695 = vmatprep.mubr.bf16.mxu0 0
      %5696 = vmatmul.mubr.bf16.gmra.mxu0 %v5101
      %v5697 = vpop.f32.mrf.mxu0
      %v5698 = vadd.f32 %v5485, %v5697
      %v5699 = vpop.f32.mrf.mxu0
      %v5700 = vadd.f32 %v5487, %v5699
      %v5701 = vpop.f32.mrf.mxu0
      %v5702 = vadd.f32 %v5489, %v5701
      %v5703 = vpop.f32.mrf.mxu0
      %v5704 = vadd.f32 %v5491, %v5703
      %5705 = vmatprep.mubr.bf16.mxu0 0
      %5706 = vmatmul.mubr.bf16.gmra.mxu0 %v5103
      %v5707 = vpop.f32.mrf.mxu0
      %v5708 = vadd.f32 %v5495, %v5707
      %v5709 = vpop.f32.mrf.mxu0
      %v5710 = vadd.f32 %v5497, %v5709
      %v5711 = vpop.f32.mrf.mxu0
      %v5712 = vadd.f32 %v5499, %v5711
      %v5713 = vpop.f32.mrf.mxu0
      %v5714 = vadd.f32 %v5501, %v5713
      %5715 = vmatprep.mubr.bf16.mxu0 0
      %5716 = vmatmul.mubr.bf16.gmra.mxu0 %v5105
      %v5717 = vpop.f32.mrf.mxu0
      %v5718 = vadd.f32 %v5505, %v5717
      %v5719 = vpop.f32.mrf.mxu0
      %v5720 = vadd.f32 %v5507, %v5719
      %v5721 = vpop.f32.mrf.mxu0
      %v5722 = vadd.f32 %v5509, %v5721
      %v5723 = vpop.f32.mrf.mxu0
      %v5724 = vadd.f32 %v5511, %v5723
      %5725 = vmatprep.mubr.bf16.mxu0 0
      %5726 = vmatmul.mubr.bf16.gmra.mxu0 %v5107
      %v5727 = vpop.f32.mrf.mxu0
      %v5728 = vadd.f32 %v5515, %v5727
      %v5729 = vpop.f32.mrf.mxu0
      %v5730 = vadd.f32 %v5517, %v5729
      %v5731 = vpop.f32.mrf.mxu0
      %v5732 = vadd.f32 %v5519, %v5731
      %v5733 = vpop.f32.mrf.mxu0
      %v5734 = vadd.f32 %v5521, %v5733
      %5735 = vmatprep.mubr.bf16.mxu0 0
      %5736 = vmatmul.mubr.bf16.gmra.mxu0 %v5109
      %v5737 = vpop.f32.mrf.mxu0
      %v5738 = vadd.f32 %v5525, %v5737
      %v5739 = vpop.f32.mrf.mxu0
      %v5740 = vadd.f32 %v5527, %v5739
      %v5741 = vpop.f32.mrf.mxu0
      %v5742 = vadd.f32 %v5529, %v5741
      %v5743 = vpop.f32.mrf.mxu0
      %v5744 = vadd.f32 %v5531, %v5743
      %5745 = vmatprep.mubr.bf16.mxu0 0
      %5746 = vmatmul.mubr.bf16.gmra.mxu0 %v5111
      %v5747 = vpop.f32.mrf.mxu0
      %v5748 = vadd.f32 %v5535, %v5747
      %v5749 = vpop.f32.mrf.mxu0
      %v5750 = vadd.f32 %v5537, %v5749
      %v5751 = vpop.f32.mrf.mxu0
      %v5752 = vadd.f32 %v5539, %v5751
      %v5753 = vpop.f32.mrf.mxu0
      %v5754 = vadd.f32 %v5541, %v5753
      %5755 = vmatprep.mubr.bf16.mxu0 0
      %5756 = vmatmul.mubr.bf16.gmra.mxu0 %v5113
      %v5757 = vpop.f32.mrf.mxu0
      %v5758 = vadd.f32 %v5545, %v5757
      %v5759 = vpop.f32.mrf.mxu0
      %v5760 = vadd.f32 %v5547, %v5759
      %v5761 = vpop.f32.mrf.mxu0
      %v5762 = vadd.f32 %v5549, %v5761
      %v5763 = vpop.f32.mrf.mxu0
      %v5764 = vadd.f32 %v5551, %v5763
      %5765 = vmatprep.mubr.bf16.mxu0 0
      %5766 = vmatmul.mubr.bf16.gmra.mxu0 %v5115
      %v5767 = vpop.f32.mrf.mxu0
      %v5768 = vadd.f32 %v5555, %v5767
      %v5769 = vpop.f32.mrf.mxu0
      %v5770 = vadd.f32 %v5557, %v5769
      %v5771 = vpop.f32.mrf.mxu0
      %v5772 = vadd.f32 %v5559, %v5771
      %v5773 = vpop.f32.mrf.mxu0
      %v5774 = vadd.f32 %v5561, %v5773
      %5775 = vmatprep.mubr.bf16.mxu0 0
      %5776 = vmatmul.mubr.bf16.gmra.mxu0 %v5117
      %v5777 = vpop.f32.mrf.mxu0
      %v5778 = vadd.f32 %v5565, %v5777
      %v5779 = vpop.f32.mrf.mxu0
      %v5780 = vadd.f32 %v5567, %v5779
      %v5781 = vpop.f32.mrf.mxu0
      %v5782 = vadd.f32 %v5569, %v5781
      %v5783 = vpop.f32.mrf.mxu0
      %v5784 = vadd.f32 %v5571, %v5783
      %5785 = vmatprep.mubr.bf16.mxu0 0
      %5786 = vmatmul.mubr.bf16.gmra.mxu0 %v5119
      %v5787 = vpop.f32.mrf.mxu0
      %v5788 = vadd.f32 %v5575, %v5787
      %v5789 = vpop.f32.mrf.mxu0
      %v5790 = vadd.f32 %v5577, %v5789
      %v5791 = vpop.f32.mrf.mxu0
      %v5792 = vadd.f32 %v5579, %v5791
      %v5793 = vpop.f32.mrf.mxu0
      %v5794 = vadd.f32 %v5581, %v5793
      %5795 = vmatprep.mubr.bf16.mxu0 0
      %5796 = vmatmul.mubr.bf16.gmra.mxu0 %v5121
      %v5797 = vpop.f32.mrf.mxu0
      %v5798 = vadd.f32 %v5585, %v5797
      %v5799 = vpop.f32.mrf.mxu0
      %v5800 = vadd.f32 %v5587, %v5799
      %v5801 = vpop.f32.mrf.mxu0
      %v5802 = vadd.f32 %v5589, %v5801
      %v5803 = vpop.f32.mrf.mxu0
      %v5804 = vadd.f32 %v5591, %v5803
      %5805 = vmatprep.mubr.bf16.mxu0 0
      %5806 = vmatmul.mubr.bf16.gmra.mxu0 %v5123
      %v5807 = vpop.f32.mrf.mxu0
      %v5808 = vadd.f32 %v5595, %v5807
      %v5809 = vpop.f32.mrf.mxu0
      %v5810 = vadd.f32 %v5597, %v5809
      %v5811 = vpop.f32.mrf.mxu0
      %v5812 = vadd.f32 %v5599, %v5811
      %v5813 = vpop.f32.mrf.mxu0
      %v5814 = vadd.f32 %v5601, %v5813
      %5815 = vmatprep.mubr.bf16.mxu0 0
      %5816 = vmatmul.mubr.bf16.gmra.mxu0 %v5125
      %v5817 = vpop.f32.mrf.mxu0
      %v5818 = vadd.f32 %v5605, %v5817
      %v5819 = vpop.f32.mrf.mxu0
      %v5820 = vadd.f32 %v5607, %v5819
      %v5821 = vpop.f32.mrf.mxu0
      %v5822 = vadd.f32 %v5609, %v5821
      %v5823 = vpop.f32.mrf.mxu0
      %v5824 = vadd.f32 %v5611, %v5823
      %5825 = vmatprep.mubr.bf16.mxu0 0
      %5826 = vmatmul.mubr.bf16.gmra.mxu0 %v5127
      %v5827 = vpop.f32.mrf.mxu0
      %v5828 = vadd.f32 %v5615, %v5827
      %v5829 = vpop.f32.mrf.mxu0
      %v5830 = vadd.f32 %v5617, %v5829
      %v5831 = vpop.f32.mrf.mxu0
      %v5832 = vadd.f32 %v5619, %v5831
      %v5833 = vpop.f32.mrf.mxu0
      %v5834 = vadd.f32 %v5621, %v5833
      %5835 = vmatprep.mubr.bf16.mxu0 0
      %5836 = vmatmul.mubr.bf16.gmra.mxu0 %v5130
      %v5837 = vpop.f32.mrf.mxu0
      %v5838 = vadd.f32 %v5625, %v5837
      %v5839 = vpop.f32.mrf.mxu0
      %v5840 = vadd.f32 %v5627, %v5839
      %v5841 = vpop.f32.mrf.mxu0
      %v5842 = vadd.f32 %v5629, %v5841
      %v5843 = vpop.f32.mrf.mxu0
      %v5844 = vadd.f32 %v5631, %v5843
      %5845 = vdwg.mxu0
      %v5894 = vunpack.c.l.b16 %v4972
      %v5895 = vunpack.c.h.b16 %v4972
      %v5896 = vunpack.c.l.b16 %v4973
      %v5897 = vunpack.c.h.b16 %v4973
      %v5898 = vunpack.c.l.b16 %v4974
      %v5899 = vunpack.c.h.b16 %v4974
      %v5900 = vunpack.c.l.b16 %v4975
      %v5901 = vunpack.c.h.b16 %v4975
      %v5902 = vunpack.c.l.b16 %v4976
      %v5903 = vunpack.c.h.b16 %v4976
      %v5904 = vunpack.c.l.b16 %v4977
      %v5905 = vunpack.c.h.b16 %v4977
      %v5906 = vunpack.c.l.b16 %v4978
      %v5907 = vunpack.c.h.b16 %v4978
      %v5908 = vunpack.c.l.b16 %v4979
      %v5909 = vunpack.c.h.b16 %v4979
      %v5910 = vunpack.c.l.b16 %v4980
      %v5911 = vunpack.c.h.b16 %v4980
      %v5912 = vunpack.c.l.b16 %v4981
      %v5913 = vunpack.c.h.b16 %v4981
      %v5914 = vunpack.c.l.b16 %v4982
      %v5915 = vunpack.c.h.b16 %v4982
      %v5916 = vunpack.c.l.b16 %v4983
      %v5917 = vunpack.c.h.b16 %v4983
      %v5918 = vunpack.c.l.b16 %v4984
      %v5919 = vunpack.c.h.b16 %v4984
      %v5920 = vunpack.c.l.b16 %v4985
      %v5921 = vunpack.c.h.b16 %v4985
      %v5922 = vunpack.c.l.b16 %v4986
      %v5923 = vunpack.c.h.b16 %v4986
      %v5924 = vunpack.c.l.b16 %v4987
      %v5925 = vunpack.c.h.b16 %v4987
      %v5926 = vunpack.c.l.b16 %v4988
      %v5927 = vunpack.c.h.b16 %v4988
      %v5928 = vunpack.c.l.b16 %v4989
      %v5929 = vunpack.c.h.b16 %v4989
      %v5930 = vunpack.c.l.b16 %v4990
      %v5931 = vunpack.c.h.b16 %v4990
      %v5932 = vunpack.c.l.b16 %v4991
      %v5933 = vunpack.c.h.b16 %v4991
      %v5934 = vunpack.c.l.b16 %v4992
      %v5935 = vunpack.c.h.b16 %v4992
      %v5936 = vunpack.c.l.b16 %v4993
      %v5937 = vunpack.c.h.b16 %v4993
      %v5938 = vunpack.c.l.b16 %v4994
      %v5939 = vunpack.c.h.b16 %v4994
      %v5940 = vunpack.c.l.b16 %v4995
      %v5941 = vunpack.c.h.b16 %v4995
      %v5942 = vunpack.c.l.b16 %v4996
      %v5943 = vunpack.c.h.b16 %v4996
      %v5944 = vunpack.c.l.b16 %v4997
      %v5945 = vunpack.c.h.b16 %v4997
      %v5946 = vunpack.c.l.b16 %v4998
      %v5947 = vunpack.c.h.b16 %v4998
      %v5948 = vunpack.c.l.b16 %v4999
      %v5949 = vunpack.c.h.b16 %v4999
      %v5950 = vunpack.c.l.b16 %v5000
      %v5951 = vunpack.c.h.b16 %v5000
      %v5952 = vunpack.c.l.b16 %v5001
      %v5953 = vunpack.c.h.b16 %v5001
      %v5954 = vunpack.c.l.b16 %v5002
      %v5955 = vunpack.c.h.b16 %v5002
      %v5956 = vunpack.c.l.b16 %v5003
      %v5957 = vunpack.c.h.b16 %v5003
      %v5958 = vunpack.c.l.b16 %v5004
      %v5959 = vunpack.c.h.b16 %v5004
      %v5960 = vunpack.c.l.b16 %v5005
      %v5961 = vunpack.c.h.b16 %v5005
      %v5962 = vunpack.c.l.b16 %v5006
      %v5963 = vunpack.c.h.b16 %v5006
      %v5964 = vunpack.c.l.b16 %v5007
      %v5965 = vunpack.c.h.b16 %v5007
      %v5966 = vunpack.c.l.b16 %v5008
      %v5967 = vunpack.c.h.b16 %v5008
      %v5968 = vunpack.c.l.b16 %v5009
      %v5969 = vunpack.c.h.b16 %v5009
      %v5970 = vunpack.c.l.b16 %v5010
      %v5971 = vunpack.c.h.b16 %v5010
      %v5972 = vunpack.c.l.b16 %v5011
      %v5973 = vunpack.c.h.b16 %v5011
      %v5974 = vunpack.c.l.b16 %v5012
      %v5975 = vunpack.c.h.b16 %v5012
      %v5976 = vunpack.c.l.b16 %v5013
      %v5977 = vunpack.c.h.b16 %v5013
      %v5978 = vunpack.c.l.b16 %v5014
      %v5979 = vunpack.c.h.b16 %v5014
      %v5980 = vunpack.c.l.b16 %v5015
      %v5981 = vunpack.c.h.b16 %v5015
      %v5982 = vunpack.c.l.b16 %v5016
      %v5983 = vunpack.c.h.b16 %v5016
      %v5984 = vunpack.c.l.b16 %v5017
      %v5985 = vunpack.c.h.b16 %v5017
      %v5986 = vunpack.c.l.b16 %v5018
      %v5987 = vunpack.c.h.b16 %v5018
      %v5988 = vunpack.c.l.b16 %v5019
      %v5989 = vunpack.c.h.b16 %v5019
      %v5990 = vpack.c.b16 %v5896, %v5894
      %v5991 = vpack.c.b16 %v5897, %v5895
      %v5992 = vpack.c.b16 %v5900, %v5898
      %v5993 = vpack.c.b16 %v5901, %v5899
      %v5994 = vpack.c.b16 %v5904, %v5902
      %v5995 = vpack.c.b16 %v5905, %v5903
      %v5996 = vpack.c.b16 %v5908, %v5906
      %v5997 = vpack.c.b16 %v5909, %v5907
      %v5998 = vpack.c.b16 %v5912, %v5910
      %v5999 = vpack.c.b16 %v5913, %v5911
      %v6000 = vpack.c.b16 %v5916, %v5914
      %v6001 = vpack.c.b16 %v5917, %v5915
      %v6002 = vpack.c.b16 %v5920, %v5918
      %v6003 = vpack.c.b16 %v5921, %v5919
      %v6004 = vpack.c.b16 %v5924, %v5922
      %v6005 = vpack.c.b16 %v5925, %v5923
      %v6006 = vpack.c.b16 %v5928, %v5926
      %v6007 = vpack.c.b16 %v5929, %v5927
      %v6008 = vpack.c.b16 %v5932, %v5930
      %v6009 = vpack.c.b16 %v5933, %v5931
      %v6010 = vpack.c.b16 %v5936, %v5934
      %v6011 = vpack.c.b16 %v5937, %v5935
      %v6012 = vpack.c.b16 %v5940, %v5938
      %v6013 = vpack.c.b16 %v5941, %v5939
      %v6014 = vpack.c.b16 %v5944, %v5942
      %v6015 = vpack.c.b16 %v5945, %v5943
      %v6016 = vpack.c.b16 %v5948, %v5946
      %v6017 = vpack.c.b16 %v5949, %v5947
      %v6018 = vpack.c.b16 %v5952, %v5950
      %v6019 = vpack.c.b16 %v5953, %v5951
      %v6020 = vpack.c.b16 %v5956, %v5954
      %v6021 = vpack.c.b16 %v5957, %v5955
      %v6022 = vpack.c.b16 %v5960, %v5958
      %v6023 = vpack.c.b16 %v5961, %v5959
      %v6024 = vpack.c.b16 %v5964, %v5962
      %v6025 = vpack.c.b16 %v5965, %v5963
      %v6026 = vpack.c.b16 %v5968, %v5966
      %v6027 = vpack.c.b16 %v5969, %v5967
      %v6028 = vpack.c.b16 %v5972, %v5970
      %v6029 = vpack.c.b16 %v5973, %v5971
      %v6030 = vpack.c.b16 %v5976, %v5974
      %v6031 = vpack.c.b16 %v5977, %v5975
      %v6032 = vpack.c.b16 %v5980, %v5978
      %v6033 = vpack.c.b16 %v5981, %v5979
      %v6034 = vpack.c.b16 %v5984, %v5982
      %v6035 = vpack.c.b16 %v5985, %v5983
      %v6036 = vpack.c.b16 %v5988, %v5986
      %v6037 = vpack.c.b16 %v5989, %v5987
      %6086 = vmatprep.subr.bf16.mxu0 %v6005
      %6087 = vmatpush1.bf16.msra.mxu0 %v6004
      %6088 = vmatprep.subr.bf16.mxu0 %v6003
      %6089 = vmatpush1.bf16.msra.mxu0 %v6002
      %6090 = vmatprep.subr.bf16.mxu0 %v6001
      %6091 = vmatpush1.bf16.msra.mxu0 %v6000
      %6092 = vmatprep.subr.bf16.mxu0 %v5999
      %6093 = vmatpush1.bf16.msra.mxu0 %v5998
      %6094 = vmatprep.subr.bf16.mxu0 %v5997
      %6095 = vmatpush1.bf16.msra.mxu0 %v5996
      %6096 = vmatprep.subr.bf16.mxu0 %v5995
      %6097 = vmatpush1.bf16.msra.mxu0 %v5994
      %6098 = vmatprep.subr.bf16.mxu0 %v5993
      %6099 = vmatpush1.bf16.msra.mxu0 %v5992
      %6100 = vmatprep.subr.bf16.mxu0 %v5991
      %6101 = vmatpush1.bf16.msra.mxu0 %v5990
      %6102 = vmatprep.subr.bf16.mxu0 %v6021
      %6103 = vmatpush2.bf16.msra.mxu0 %v6020
      %6104 = vmatprep.subr.bf16.mxu0 %v6019
      %6105 = vmatpush2.bf16.msra.mxu0 %v6018
      %6106 = vmatprep.subr.bf16.mxu0 %v6017
      %6107 = vmatpush2.bf16.msra.mxu0 %v6016
      %6108 = vmatprep.subr.bf16.mxu0 %v6015
      %6109 = vmatpush2.bf16.msra.mxu0 %v6014
      %6110 = vmatprep.subr.bf16.mxu0 %v6013
      %6111 = vmatpush2.bf16.msra.mxu0 %v6012
      %6112 = vmatprep.subr.bf16.mxu0 %v6011
      %6113 = vmatpush2.bf16.msra.mxu0 %v6010
      %6114 = vmatprep.subr.bf16.mxu0 %v6009
      %6115 = vmatpush2.bf16.msra.mxu0 %v6008
      %6116 = vmatprep.subr.bf16.mxu0 %v6007
      %6117 = vmatpush2.bf16.msra.mxu0 %v6006
      %6118 = vmatprep.mubr.bf16.mxu0 %v4919
      %6119 = vmatmul.mubr.bf16.gmra.mxu0 %v4918
      %v6120 = vpop.f32.mrf.mxu0
      %v6121 = vadd.f32 %v5668, %v6120
      %v6122 = vpop.f32.mrf.mxu0
      %v6123 = vadd.f32 %v5670, %v6122
      %v6124 = vpop.f32.mrf.mxu0
      %v6125 = vadd.f32 %v5672, %v6124
      %v6126 = vpop.f32.mrf.mxu0
      %v6127 = vadd.f32 %v5674, %v6126
      %6128 = vmatprep.mubr.bf16.mxu0 %v4922
      %6129 = vmatmul.mubr.bf16.gmra.mxu0 %v4921
      %v6130 = vpop.f32.mrf.mxu0
      %v6131 = vadd.f32 %v5678, %v6130
      %v6132 = vpop.f32.mrf.mxu0
      %v6133 = vadd.f32 %v5680, %v6132
      %v6134 = vpop.f32.mrf.mxu0
      %v6135 = vadd.f32 %v5682, %v6134
      %v6136 = vpop.f32.mrf.mxu0
      %v6137 = vadd.f32 %v5684, %v6136
      %6138 = vmatprep.mubr.bf16.mxu0 %v4925
      %6139 = vmatmul.mubr.bf16.gmra.mxu0 %v4924
      %v6140 = vpop.f32.mrf.mxu0
      %v6141 = vadd.f32 %v5688, %v6140
      %v6142 = vpop.f32.mrf.mxu0
      %v6143 = vadd.f32 %v5690, %v6142
      %v6144 = vpop.f32.mrf.mxu0
      %v6145 = vadd.f32 %v5692, %v6144
      %v6146 = vpop.f32.mrf.mxu0
      %v6147 = vadd.f32 %v5694, %v6146
      %6148 = vmatprep.mubr.bf16.mxu0 %v4928
      %6149 = vmatmul.mubr.bf16.gmra.mxu0 %v4927
      %v6150 = vpop.f32.mrf.mxu0
      %v6151 = vadd.f32 %v5698, %v6150
      %v6152 = vpop.f32.mrf.mxu0
      %v6153 = vadd.f32 %v5700, %v6152
      %v6154 = vpop.f32.mrf.mxu0
      %v6155 = vadd.f32 %v5702, %v6154
      %v6156 = vpop.f32.mrf.mxu0
      %v6157 = vadd.f32 %v5704, %v6156
      %6158 = vmatprep.mubr.bf16.mxu0 %v4931
      %6159 = vmatmul.mubr.bf16.gmra.mxu0 %v4930
      %v6160 = vpop.f32.mrf.mxu0
      %v6161 = vadd.f32 %v5708, %v6160
      %v6162 = vpop.f32.mrf.mxu0
      %v6163 = vadd.f32 %v5710, %v6162
      %v6164 = vpop.f32.mrf.mxu0
      %v6165 = vadd.f32 %v5712, %v6164
      %v6166 = vpop.f32.mrf.mxu0
      %v6167 = vadd.f32 %v5714, %v6166
      %6168 = vmatprep.mubr.bf16.mxu0 %v4934
      %6169 = vmatmul.mubr.bf16.gmra.mxu0 %v4933
      %v6170 = vpop.f32.mrf.mxu0
      %v6171 = vadd.f32 %v5718, %v6170
      %v6172 = vpop.f32.mrf.mxu0
      %v6173 = vadd.f32 %v5720, %v6172
      %v6174 = vpop.f32.mrf.mxu0
      %v6175 = vadd.f32 %v5722, %v6174
      %v6176 = vpop.f32.mrf.mxu0
      %v6177 = vadd.f32 %v5724, %v6176
      %6178 = vmatprep.mubr.bf16.mxu0 %v4937
      %6179 = vmatmul.mubr.bf16.gmra.mxu0 %v4936
      %v6180 = vpop.f32.mrf.mxu0
      %v6181 = vadd.f32 %v5728, %v6180
      %v6182 = vpop.f32.mrf.mxu0
      %v6183 = vadd.f32 %v5730, %v6182
      %v6184 = vpop.f32.mrf.mxu0
      %v6185 = vadd.f32 %v5732, %v6184
      %v6186 = vpop.f32.mrf.mxu0
      %v6187 = vadd.f32 %v5734, %v6186
      %6188 = vmatprep.mubr.bf16.mxu0 %v4940
      %6189 = vmatmul.mubr.bf16.gmra.mxu0 %v4939
      %v6190 = vpop.f32.mrf.mxu0
      %v6191 = vadd.f32 %v5738, %v6190
      %v6192 = vpop.f32.mrf.mxu0
      %v6193 = vadd.f32 %v5740, %v6192
      %v6194 = vpop.f32.mrf.mxu0
      %v6195 = vadd.f32 %v5742, %v6194
      %v6196 = vpop.f32.mrf.mxu0
      %v6197 = vadd.f32 %v5744, %v6196
      %6198 = vmatprep.mubr.bf16.mxu0 %v4943
      %6199 = vmatmul.mubr.bf16.gmra.mxu0 %v4942
      %v6200 = vpop.f32.mrf.mxu0
      %v6201 = vadd.f32 %v5748, %v6200
      %v6202 = vpop.f32.mrf.mxu0
      %v6203 = vadd.f32 %v5750, %v6202
      %v6204 = vpop.f32.mrf.mxu0
      %v6205 = vadd.f32 %v5752, %v6204
      %v6206 = vpop.f32.mrf.mxu0
      %v6207 = vadd.f32 %v5754, %v6206
      %6208 = vmatprep.mubr.bf16.mxu0 %v4946
      %6209 = vmatmul.mubr.bf16.gmra.mxu0 %v4945
      %v6210 = vpop.f32.mrf.mxu0
      %v6211 = vadd.f32 %v5758, %v6210
      %v6212 = vpop.f32.mrf.mxu0
      %v6213 = vadd.f32 %v5760, %v6212
      %v6214 = vpop.f32.mrf.mxu0
      %v6215 = vadd.f32 %v5762, %v6214
      %v6216 = vpop.f32.mrf.mxu0
      %v6217 = vadd.f32 %v5764, %v6216
      %6218 = vmatprep.mubr.bf16.mxu0 %v4949
      %6219 = vmatmul.mubr.bf16.gmra.mxu0 %v4948
      %v6220 = vpop.f32.mrf.mxu0
      %v6221 = vadd.f32 %v5768, %v6220
      %v6222 = vpop.f32.mrf.mxu0
      %v6223 = vadd.f32 %v5770, %v6222
      %v6224 = vpop.f32.mrf.mxu0
      %v6225 = vadd.f32 %v5772, %v6224
      %v6226 = vpop.f32.mrf.mxu0
      %v6227 = vadd.f32 %v5774, %v6226
      %6228 = vmatprep.mubr.bf16.mxu0 %v4952
      %6229 = vmatmul.mubr.bf16.gmra.mxu0 %v4951
      %v6230 = vpop.f32.mrf.mxu0
      %v6231 = vadd.f32 %v5778, %v6230
      %v6232 = vpop.f32.mrf.mxu0
      %v6233 = vadd.f32 %v5780, %v6232
      %v6234 = vpop.f32.mrf.mxu0
      %v6235 = vadd.f32 %v5782, %v6234
      %v6236 = vpop.f32.mrf.mxu0
      %v6237 = vadd.f32 %v5784, %v6236
      %6238 = vmatprep.mubr.bf16.mxu0 %v4955
      %6239 = vmatmul.mubr.bf16.gmra.mxu0 %v4954
      %v6240 = vpop.f32.mrf.mxu0
      %v6241 = vadd.f32 %v5788, %v6240
      %v6242 = vpop.f32.mrf.mxu0
      %v6243 = vadd.f32 %v5790, %v6242
      %v6244 = vpop.f32.mrf.mxu0
      %v6245 = vadd.f32 %v5792, %v6244
      %v6246 = vpop.f32.mrf.mxu0
      %v6247 = vadd.f32 %v5794, %v6246
      %6248 = vmatprep.mubr.bf16.mxu0 %v4958
      %6249 = vmatmul.mubr.bf16.gmra.mxu0 %v4957
      %v6250 = vpop.f32.mrf.mxu0
      %v6251 = vadd.f32 %v5798, %v6250
      %v6252 = vpop.f32.mrf.mxu0
      %v6253 = vadd.f32 %v5800, %v6252
      %v6254 = vpop.f32.mrf.mxu0
      %v6255 = vadd.f32 %v5802, %v6254
      %v6256 = vpop.f32.mrf.mxu0
      %v6257 = vadd.f32 %v5804, %v6256
      %6258 = vmatprep.mubr.bf16.mxu0 %v4961
      %6259 = vmatmul.mubr.bf16.gmra.mxu0 %v4960
      %v6260 = vpop.f32.mrf.mxu0
      %v6261 = vadd.f32 %v5808, %v6260
      %v6262 = vpop.f32.mrf.mxu0
      %v6263 = vadd.f32 %v5810, %v6262
      %v6264 = vpop.f32.mrf.mxu0
      %v6265 = vadd.f32 %v5812, %v6264
      %v6266 = vpop.f32.mrf.mxu0
      %v6267 = vadd.f32 %v5814, %v6266
      %6268 = vmatprep.mubr.bf16.mxu0 %v4964
      %6269 = vmatmul.mubr.bf16.gmra.mxu0 %v4963
      %v6270 = vpop.f32.mrf.mxu0
      %v6271 = vadd.f32 %v5818, %v6270
      %v6272 = vpop.f32.mrf.mxu0
      %v6273 = vadd.f32 %v5820, %v6272
      %v6274 = vpop.f32.mrf.mxu0
      %v6275 = vadd.f32 %v5822, %v6274
      %v6276 = vpop.f32.mrf.mxu0
      %v6277 = vadd.f32 %v5824, %v6276
      %6278 = vmatprep.mubr.bf16.mxu0 %v4967
      %6279 = vmatmul.mubr.bf16.gmra.mxu0 %v4966
      %v6280 = vpop.f32.mrf.mxu0
      %v6281 = vadd.f32 %v5828, %v6280
      %v6282 = vpop.f32.mrf.mxu0
      %v6283 = vadd.f32 %v5830, %v6282
      %v6284 = vpop.f32.mrf.mxu0
      %v6285 = vadd.f32 %v5832, %v6284
      %v6286 = vpop.f32.mrf.mxu0
      %v6287 = vadd.f32 %v5834, %v6286
      %6288 = vmatprep.mubr.bf16.mxu0 %v4970
      %6289 = vmatmul.mubr.bf16.gmra.mxu0 %v4969
      %v6290 = vpop.f32.mrf.mxu0
      %v6291 = vadd.f32 %v5838, %v6290
      %v6292 = vpop.f32.mrf.mxu0
      %v6293 = vadd.f32 %v5840, %v6292
      %v6294 = vpop.f32.mrf.mxu0
      %v6295 = vadd.f32 %v5842, %v6294
      %v6296 = vpop.f32.mrf.mxu0
      %v6297 = vadd.f32 %v5844, %v6296
      %6298 = vdwg.mxu0
      %6299 = vmatprep.subr.bf16.mxu0 %v6037
      %6300 = vmatpush1.bf16.msra.mxu0 %v6036
      %6301 = vmatprep.subr.bf16.mxu0 %v6035
      %6302 = vmatpush1.bf16.msra.mxu0 %v6034
      %6303 = vmatprep.subr.bf16.mxu0 %v6033
      %6304 = vmatpush1.bf16.msra.mxu0 %v6032
      %6305 = vmatprep.subr.bf16.mxu0 %v6031
      %6306 = vmatpush1.bf16.msra.mxu0 %v6030
      %6307 = vmatprep.subr.bf16.mxu0 %v6029
      %6308 = vmatpush1.bf16.msra.mxu0 %v6028
      %6309 = vmatprep.subr.bf16.mxu0 %v6027
      %6310 = vmatpush1.bf16.msra.mxu0 %v6026
      %6311 = vmatprep.subr.bf16.mxu0 %v6025
      %6312 = vmatpush1.bf16.msra.mxu0 %v6024
      %6313 = vmatprep.subr.bf16.mxu0 %v6023
      %6314 = vmatpush1.bf16.msra.mxu0 %v6022
      %6315 = vmatprep.subr.bf16.mxu0 0
      %6316 = vmatpush2.bf16.msra.mxu0 0
      %6317 = vmatprep.subr.bf16.mxu0 0
      %6318 = vmatpush2.bf16.msra.mxu0 0
      %6319 = vmatprep.subr.bf16.mxu0 0
      %6320 = vmatpush2.bf16.msra.mxu0 0
      %6321 = vmatprep.subr.bf16.mxu0 0
      %6322 = vmatpush2.bf16.msra.mxu0 0
      %6323 = vmatprep.subr.bf16.mxu0 0
      %6324 = vmatpush2.bf16.msra.mxu0 0
      %6325 = vmatprep.subr.bf16.mxu0 0
      %6326 = vmatpush2.bf16.msra.mxu0 0
      %6327 = vmatprep.subr.bf16.mxu0 0
      %6328 = vmatpush2.bf16.msra.mxu0 0
      %6329 = vmatprep.subr.bf16.mxu0 0
      %6330 = vmatpush2.bf16.msra.mxu0 0
      %6331 = vmatprep.mubr.bf16.mxu0 0
      %6332 = vmatmul.mubr.bf16.gmra.mxu0 %v4920
      %v6333 = vpop.f32.mrf.mxu0
      %v6334 = vadd.f32 %v6121, %v6333
      %v6335 = vpop.f32.mrf.mxu0
      %v6336 = vadd.f32 %v6123, %v6335
      %v6337 = vpop.f32.mrf.mxu0
      %v6338 = vadd.f32 %v6125, %v6337
      %v6339 = vpop.f32.mrf.mxu0
      %v6340 = vadd.f32 %v6127, %v6339
      %6341 = vmatprep.mubr.bf16.mxu0 0
      %6342 = vmatmul.mubr.bf16.gmra.mxu0 %v4923
      %v6343 = vpop.f32.mrf.mxu0
      %v6344 = vadd.f32 %v6131, %v6343
      %v6345 = vpop.f32.mrf.mxu0
      %v6346 = vadd.f32 %v6133, %v6345
      %v6347 = vpop.f32.mrf.mxu0
      %v6348 = vadd.f32 %v6135, %v6347
      %v6349 = vpop.f32.mrf.mxu0
      %v6350 = vadd.f32 %v6137, %v6349
      %6351 = vmatprep.mubr.bf16.mxu0 0
      %6352 = vmatmul.mubr.bf16.gmra.mxu0 %v4926
      %v6353 = vpop.f32.mrf.mxu0
      %v6354 = vadd.f32 %v6141, %v6353
      %v6355 = vpop.f32.mrf.mxu0
      %v6356 = vadd.f32 %v6143, %v6355
      %v6357 = vpop.f32.mrf.mxu0
      %v6358 = vadd.f32 %v6145, %v6357
      %v6359 = vpop.f32.mrf.mxu0
      %v6360 = vadd.f32 %v6147, %v6359
      %6361 = vmatprep.mubr.bf16.mxu0 0
      %6362 = vmatmul.mubr.bf16.gmra.mxu0 %v4929
      %v6363 = vpop.f32.mrf.mxu0
      %v6364 = vadd.f32 %v6151, %v6363
      %v6365 = vpop.f32.mrf.mxu0
      %v6366 = vadd.f32 %v6153, %v6365
      %v6367 = vpop.f32.mrf.mxu0
      %v6368 = vadd.f32 %v6155, %v6367
      %v6369 = vpop.f32.mrf.mxu0
      %v6370 = vadd.f32 %v6157, %v6369
      %6371 = vmatprep.mubr.bf16.mxu0 0
      %6372 = vmatmul.mubr.bf16.gmra.mxu0 %v4932
      %v6373 = vpop.f32.mrf.mxu0
      %v6374 = vadd.f32 %v6161, %v6373
      %v6375 = vpop.f32.mrf.mxu0
      %v6376 = vadd.f32 %v6163, %v6375
      %v6377 = vpop.f32.mrf.mxu0
      %v6378 = vadd.f32 %v6165, %v6377
      %v6379 = vpop.f32.mrf.mxu0
      %v6380 = vadd.f32 %v6167, %v6379
      %6381 = vmatprep.mubr.bf16.mxu0 0
      %6382 = vmatmul.mubr.bf16.gmra.mxu0 %v4935
      %v6383 = vpop.f32.mrf.mxu0
      %v6384 = vadd.f32 %v6171, %v6383
      %v6385 = vpop.f32.mrf.mxu0
      %v6386 = vadd.f32 %v6173, %v6385
      %v6387 = vpop.f32.mrf.mxu0
      %v6388 = vadd.f32 %v6175, %v6387
      %v6389 = vpop.f32.mrf.mxu0
      %v6390 = vadd.f32 %v6177, %v6389
      %6391 = vmatprep.mubr.bf16.mxu0 0
      %6392 = vmatmul.mubr.bf16.gmra.mxu0 %v4938
      %v6393 = vpop.f32.mrf.mxu0
      %v6394 = vadd.f32 %v6181, %v6393
      %v6395 = vpop.f32.mrf.mxu0
      %v6396 = vadd.f32 %v6183, %v6395
      %v6397 = vpop.f32.mrf.mxu0
      %v6398 = vadd.f32 %v6185, %v6397
      %v6399 = vpop.f32.mrf.mxu0
      %v6400 = vadd.f32 %v6187, %v6399
      %6401 = vmatprep.mubr.bf16.mxu0 0
      %6402 = vmatmul.mubr.bf16.gmra.mxu0 %v4941
      %v6403 = vpop.f32.mrf.mxu0
      %v6404 = vadd.f32 %v6191, %v6403
      %v6405 = vpop.f32.mrf.mxu0
      %v6406 = vadd.f32 %v6193, %v6405
      %v6407 = vpop.f32.mrf.mxu0
      %v6408 = vadd.f32 %v6195, %v6407
      %v6409 = vpop.f32.mrf.mxu0
      %v6410 = vadd.f32 %v6197, %v6409
      %6411 = vmatprep.mubr.bf16.mxu0 0
      %6412 = vmatmul.mubr.bf16.gmra.mxu0 %v4944
      %v6413 = vpop.f32.mrf.mxu0
      %v6414 = vadd.f32 %v6201, %v6413
      %v6415 = vpop.f32.mrf.mxu0
      %v6416 = vadd.f32 %v6203, %v6415
      %v6417 = vpop.f32.mrf.mxu0
      %v6418 = vadd.f32 %v6205, %v6417
      %v6419 = vpop.f32.mrf.mxu0
      %v6420 = vadd.f32 %v6207, %v6419
      %6421 = vmatprep.mubr.bf16.mxu0 0
      %6422 = vmatmul.mubr.bf16.gmra.mxu0 %v4947
      %v6423 = vpop.f32.mrf.mxu0
      %v6424 = vadd.f32 %v6211, %v6423
      %v6425 = vpop.f32.mrf.mxu0
      %v6426 = vadd.f32 %v6213, %v6425
      %v6427 = vpop.f32.mrf.mxu0
      %v6428 = vadd.f32 %v6215, %v6427
      %v6429 = vpop.f32.mrf.mxu0
      %v6430 = vadd.f32 %v6217, %v6429
      %6431 = vmatprep.mubr.bf16.mxu0 0
      %6432 = vmatmul.mubr.bf16.gmra.mxu0 %v4950
      %v6433 = vpop.f32.mrf.mxu0
      %v6434 = vadd.f32 %v6221, %v6433
      %v6435 = vpop.f32.mrf.mxu0
      %v6436 = vadd.f32 %v6223, %v6435
      %v6437 = vpop.f32.mrf.mxu0
      %v6438 = vadd.f32 %v6225, %v6437
      %v6439 = vpop.f32.mrf.mxu0
      %v6440 = vadd.f32 %v6227, %v6439
      %6441 = vmatprep.mubr.bf16.mxu0 0
      %6442 = vmatmul.mubr.bf16.gmra.mxu0 %v4953
      %v6443 = vpop.f32.mrf.mxu0
      %v6444 = vadd.f32 %v6231, %v6443
      %v6445 = vpop.f32.mrf.mxu0
      %v6446 = vadd.f32 %v6233, %v6445
      %v6447 = vpop.f32.mrf.mxu0
      %v6448 = vadd.f32 %v6235, %v6447
      %v6449 = vpop.f32.mrf.mxu0
      %v6450 = vadd.f32 %v6237, %v6449
      %6451 = vmatprep.mubr.bf16.mxu0 0
      %6452 = vmatmul.mubr.bf16.gmra.mxu0 %v4956
      %v6453 = vpop.f32.mrf.mxu0
      %v6454 = vadd.f32 %v6241, %v6453
      %v6455 = vpop.f32.mrf.mxu0
      %v6456 = vadd.f32 %v6243, %v6455
      %v6457 = vpop.f32.mrf.mxu0
      %v6458 = vadd.f32 %v6245, %v6457
      %v6459 = vpop.f32.mrf.mxu0
      %v6460 = vadd.f32 %v6247, %v6459
      %6461 = vmatprep.mubr.bf16.mxu0 0
      %6462 = vmatmul.mubr.bf16.gmra.mxu0 %v4959
      %v6463 = vpop.f32.mrf.mxu0
      %v6464 = vadd.f32 %v6251, %v6463
      %v6465 = vpop.f32.mrf.mxu0
      %v6466 = vadd.f32 %v6253, %v6465
      %v6467 = vpop.f32.mrf.mxu0
      %v6468 = vadd.f32 %v6255, %v6467
      %v6469 = vpop.f32.mrf.mxu0
      %v6470 = vadd.f32 %v6257, %v6469
      %6471 = vmatprep.mubr.bf16.mxu0 0
      %6472 = vmatmul.mubr.bf16.gmra.mxu0 %v4962
      %v6473 = vpop.f32.mrf.mxu0
      %v6474 = vadd.f32 %v6261, %v6473
      %v6475 = vpop.f32.mrf.mxu0
      %v6476 = vadd.f32 %v6263, %v6475
      %v6477 = vpop.f32.mrf.mxu0
      %v6478 = vadd.f32 %v6265, %v6477
      %v6479 = vpop.f32.mrf.mxu0
      %v6480 = vadd.f32 %v6267, %v6479
      %6481 = vmatprep.mubr.bf16.mxu0 0
      %6482 = vmatmul.mubr.bf16.gmra.mxu0 %v4965
      %v6483 = vpop.f32.mrf.mxu0
      %v6484 = vadd.f32 %v6271, %v6483
      %v6485 = vpop.f32.mrf.mxu0
      %v6486 = vadd.f32 %v6273, %v6485
      %v6487 = vpop.f32.mrf.mxu0
      %v6488 = vadd.f32 %v6275, %v6487
      %v6489 = vpop.f32.mrf.mxu0
      %v6490 = vadd.f32 %v6277, %v6489
      %6491 = vmatprep.mubr.bf16.mxu0 0
      %6492 = vmatmul.mubr.bf16.gmra.mxu0 %v4968
      %v6493 = vpop.f32.mrf.mxu0
      %v6494 = vadd.f32 %v6281, %v6493
      %v6495 = vpop.f32.mrf.mxu0
      %v6496 = vadd.f32 %v6283, %v6495
      %v6497 = vpop.f32.mrf.mxu0
      %v6498 = vadd.f32 %v6285, %v6497
      %v6499 = vpop.f32.mrf.mxu0
      %v6500 = vadd.f32 %v6287, %v6499
      %6501 = vmatprep.mubr.bf16.mxu0 0
      %6502 = vmatmul.mubr.bf16.gmra.mxu0 %v4971
      %v6503 = vpop.f32.mrf.mxu0
      %v6504 = vadd.f32 %v6291, %v6503
      %v6505 = vpop.f32.mrf.mxu0
      %v6506 = vadd.f32 %v6293, %v6505
      %v6507 = vpop.f32.mrf.mxu0
      %v6508 = vadd.f32 %v6295, %v6507
      %v6509 = vpop.f32.mrf.mxu0
      %v6510 = vadd.f32 %v6297, %v6509
      %6511 = vdwg.mxu0
      %v6512 = vld [vmem:[#allocation3 + $0x29] sm:$0xff]
      %v6513 = vld [vmem:[#allocation3 + $0x31] sm:$0xff]
      %v6514 = vld [vmem:[#allocation3 + $0x39] sm:$0xff]
      %v6515 = vld [vmem:[#allocation3 + $0x41] sm:$0xff]
      %v6516 = vld [vmem:[#allocation3 + $0x49] sm:$0xff]
      %v6517 = vld [vmem:[#allocation3 + $0x51] sm:$0xff]
      %v6518 = vld [vmem:[#allocation3 + $0x59] sm:$0xff]
      %v6519 = vld [vmem:[#allocation3 + $0x61] sm:$0xff]
      %v6520 = vld [vmem:[#allocation3 + $0x69] sm:$0xff]
      %v6521 = vld [vmem:[#allocation3 + $0x71] sm:$0xff]
      %v6522 = vld [vmem:[#allocation3 + $0x79] sm:$0xff]
      %v6523 = vld [vmem:[#allocation3 + $0x81] sm:$0xff]
      %v6524 = vld [vmem:[#allocation3 + $0x89] sm:$0xff]
      %v6525 = vld [vmem:[#allocation3 + $0x91] sm:$0xff]
      %v6526 = vld [vmem:[#allocation3 + $0x99] sm:$0xff]
      %v6527 = vld [vmem:[#allocation3 + $0xa1] sm:$0xff]
      %v6528 = vld [vmem:[#allocation3 + $0xa9] sm:$0xff]
      %v6529 = vld [vmem:[#allocation3 + $0xb1] sm:$0xff]
      %v6530 = vld [vmem:[#allocation3 + $0xb9] sm:$0xff]
      %v6531 = vld [vmem:[#allocation3 + $0xc1] sm:$0xff]
      %v6532 = vld [vmem:[#allocation3 + $0xc9] sm:$0xff]
      %v6533 = vld [vmem:[#allocation3 + $0xd1] sm:$0xff]
      %v6534 = vld [vmem:[#allocation3 + $0xd9] sm:$0xff]
      %v6535 = vld [vmem:[#allocation3 + $0xe1] sm:$0xff]
      %v6536 = vld [vmem:[#allocation3 + $0xe9] sm:$0xff]
      %v6537 = vld [vmem:[#allocation3 + $0xf1] sm:$0xff]
      %v6538 = vld [vmem:[#allocation3 + $0xf9] sm:$0xff]
      %v6539 = vld [vmem:[#allocation3 + $0x101] sm:$0xff]
      %v6540 = vld [vmem:[#allocation3 + $0x109] sm:$0xff]
      %v6541 = vld [vmem:[#allocation3 + $0x111] sm:$0xff]
      %v6542 = vld [vmem:[#allocation3 + $0x119] sm:$0xff]
      %v6543 = vld [vmem:[#allocation3 + $0x121] sm:$0xff]
      %v6544 = vld [vmem:[#allocation3 + $0x129] sm:$0xff]
      %v6545 = vld [vmem:[#allocation3 + $0x131] sm:$0xff]
      %v6546 = vld [vmem:[#allocation3 + $0x139] sm:$0xff]
      %v6547 = vld [vmem:[#allocation3 + $0x141] sm:$0xff]
      %v6548 = vld [vmem:[#allocation3 + $0x2a] sm:$0xff]
      %v6549 = vld [vmem:[#allocation3 + $0x32] sm:$0xff]
      %v6550 = vld [vmem:[#allocation3 + $0x3a] sm:$0xff]
      %v6551 = vld [vmem:[#allocation3 + $0x42] sm:$0xff]
      %v6552 = vld [vmem:[#allocation3 + $0x4a] sm:$0xff]
      %v6553 = vld [vmem:[#allocation3 + $0x52] sm:$0xff]
      %v6554 = vld [vmem:[#allocation3 + $0x5a] sm:$0xff]
      %v6555 = vld [vmem:[#allocation3 + $0x62] sm:$0xff]
      %v6556 = vld [vmem:[#allocation3 + $0x6a] sm:$0xff]
      %v6557 = vld [vmem:[#allocation3 + $0x72] sm:$0xff]
      %v6558 = vld [vmem:[#allocation3 + $0x7a] sm:$0xff]
      %v6559 = vld [vmem:[#allocation3 + $0x82] sm:$0xff]
      %v6560 = vld [vmem:[#allocation3 + $0x8a] sm:$0xff]
      %v6561 = vld [vmem:[#allocation3 + $0x92] sm:$0xff]
      %v6562 = vld [vmem:[#allocation3 + $0x9a] sm:$0xff]
      %v6563 = vld [vmem:[#allocation3 + $0xa2] sm:$0xff]
      %v6564 = vld [vmem:[#allocation3 + $0xaa] sm:$0xff]
      %v6565 = vld [vmem:[#allocation3 + $0xb2] sm:$0xff]
      %v6566 = vld [vmem:[#allocation3 + $0xba] sm:$0xff]
      %v6567 = vld [vmem:[#allocation3 + $0xc2] sm:$0xff]
      %v6568 = vld [vmem:[#allocation3 + $0xca] sm:$0xff]
      %v6569 = vld [vmem:[#allocation3 + $0xd2] sm:$0xff]
      %v6570 = vld [vmem:[#allocation3 + $0xda] sm:$0xff]
      %v6571 = vld [vmem:[#allocation3 + $0xe2] sm:$0xff]
      %v6572 = vld [vmem:[#allocation3 + $0xea] sm:$0xff]
      %v6573 = vld [vmem:[#allocation3 + $0xf2] sm:$0xff]
      %v6574 = vld [vmem:[#allocation3 + $0xfa] sm:$0xff]
      %v6575 = vld [vmem:[#allocation3 + $0x102] sm:$0xff]
      %v6576 = vld [vmem:[#allocation3 + $0x10a] sm:$0xff]
      %v6577 = vld [vmem:[#allocation3 + $0x112] sm:$0xff]
      %v6578 = vld [vmem:[#allocation3 + $0x11a] sm:$0xff]
      %v6579 = vld [vmem:[#allocation3 + $0x122] sm:$0xff]
      %v6580 = vld [vmem:[#allocation3 + $0x12a] sm:$0xff]
      %v6581 = vld [vmem:[#allocation3 + $0x132] sm:$0xff]
      %v6582 = vld [vmem:[#allocation3 + $0x13a] sm:$0xff]
      %v6583 = vld [vmem:[#allocation3 + $0x142] sm:$0xff]
      %v6584 = vld [vmem:[#allocation3 + $0x2b] sm:$0xff]
      %v6585 = vld [vmem:[#allocation3 + $0x33] sm:$0xff]
      %v6586 = vld [vmem:[#allocation3 + $0x3b] sm:$0xff]
      %v6587 = vld [vmem:[#allocation3 + $0x43] sm:$0xff]
      %v6588 = vld [vmem:[#allocation3 + $0x4b] sm:$0xff]
      %v6589 = vld [vmem:[#allocation3 + $0x53] sm:$0xff]
      %v6590 = vld [vmem:[#allocation3 + $0x5b] sm:$0xff]
      %v6591 = vld [vmem:[#allocation3 + $0x63] sm:$0xff]
      %v6592 = vld [vmem:[#allocation3 + $0x6b] sm:$0xff]
      %v6593 = vld [vmem:[#allocation3 + $0x73] sm:$0xff]
      %v6594 = vld [vmem:[#allocation3 + $0x7b] sm:$0xff]
      %v6595 = vld [vmem:[#allocation3 + $0x83] sm:$0xff]
      %v6596 = vld [vmem:[#allocation3 + $0x8b] sm:$0xff]
      %v6597 = vld [vmem:[#allocation3 + $0x93] sm:$0xff]
      %v6598 = vld [vmem:[#allocation3 + $0x9b] sm:$0xff]
      %v6599 = vld [vmem:[#allocation3 + $0xa3] sm:$0xff]
      %v6600 = vld [vmem:[#allocation3 + $0xab] sm:$0xff]
      %v6601 = vld [vmem:[#allocation3 + $0xb3] sm:$0xff]
      %v6602 = vld [vmem:[#allocation3 + $0xbb] sm:$0xff]
      %v6603 = vld [vmem:[#allocation3 + $0xc3] sm:$0xff]
      %v6604 = vld [vmem:[#allocation3 + $0xcb] sm:$0xff]
      %v6605 = vld [vmem:[#allocation3 + $0xd3] sm:$0xff]
      %v6606 = vld [vmem:[#allocation3 + $0xdb] sm:$0xff]
      %v6607 = vld [vmem:[#allocation3 + $0xe3] sm:$0xff]
      %v6608 = vld [vmem:[#allocation3 + $0xeb] sm:$0xff]
      %v6609 = vld [vmem:[#allocation3 + $0xf3] sm:$0xff]
      %v6610 = vld [vmem:[#allocation3 + $0xfb] sm:$0xff]
      %v6611 = vld [vmem:[#allocation3 + $0x103] sm:$0xff]
      %v6612 = vld [vmem:[#allocation3 + $0x10b] sm:$0xff]
      %v6613 = vld [vmem:[#allocation3 + $0x113] sm:$0xff]
      %v6614 = vld [vmem:[#allocation3 + $0x11b] sm:$0xff]
      %v6615 = vld [vmem:[#allocation3 + $0x123] sm:$0xff]
      %v6616 = vld [vmem:[#allocation3 + $0x12b] sm:$0xff]
      %v6617 = vld [vmem:[#allocation3 + $0x133] sm:$0xff]
      %v6618 = vld [vmem:[#allocation3 + $0x13b] sm:$0xff]
      %v6619 = vld [vmem:[#allocation3 + $0x143] sm:$0xff]
      %v6620 = vpack.c.bf16 %v6513, %v6512
      %v6621 = vpack.c.bf16 %v6549, %v6548
      %v6622 = vpack.c.bf16 %v6585, %v6584
      %v6623 = vpack.c.bf16 %v6515, %v6514
      %v6624 = vpack.c.bf16 %v6551, %v6550
      %v6625 = vpack.c.bf16 %v6587, %v6586
      %v6626 = vpack.c.bf16 %v6517, %v6516
      %v6627 = vpack.c.bf16 %v6553, %v6552
      %v6628 = vpack.c.bf16 %v6589, %v6588
      %v6629 = vpack.c.bf16 %v6519, %v6518
      %v6630 = vpack.c.bf16 %v6555, %v6554
      %v6631 = vpack.c.bf16 %v6591, %v6590
      %v6632 = vpack.c.bf16 %v6521, %v6520
      %v6633 = vpack.c.bf16 %v6557, %v6556
      %v6634 = vpack.c.bf16 %v6593, %v6592
      %v6635 = vpack.c.bf16 %v6523, %v6522
      %v6636 = vpack.c.bf16 %v6559, %v6558
      %v6637 = vpack.c.bf16 %v6595, %v6594
      %v6638 = vpack.c.bf16 %v6525, %v6524
      %v6639 = vpack.c.bf16 %v6561, %v6560
      %v6640 = vpack.c.bf16 %v6597, %v6596
      %v6641 = vpack.c.bf16 %v6527, %v6526
      %v6642 = vpack.c.bf16 %v6563, %v6562
      %v6643 = vpack.c.bf16 %v6599, %v6598
      %v6644 = vpack.c.bf16 %v6529, %v6528
      %v6645 = vpack.c.bf16 %v6565, %v6564
      %v6646 = vpack.c.bf16 %v6601, %v6600
      %v6647 = vpack.c.bf16 %v6531, %v6530
      %v6648 = vpack.c.bf16 %v6567, %v6566
      %v6649 = vpack.c.bf16 %v6603, %v6602
      %v6650 = vpack.c.bf16 %v6533, %v6532
      %v6651 = vpack.c.bf16 %v6569, %v6568
      %v6652 = vpack.c.bf16 %v6605, %v6604
      %v6653 = vpack.c.bf16 %v6535, %v6534
      %v6654 = vpack.c.bf16 %v6571, %v6570
      %v6655 = vpack.c.bf16 %v6607, %v6606
      %v6656 = vpack.c.bf16 %v6537, %v6536
      %v6657 = vpack.c.bf16 %v6573, %v6572
      %v6658 = vpack.c.bf16 %v6609, %v6608
      %v6659 = vpack.c.bf16 %v6539, %v6538
      %v6660 = vpack.c.bf16 %v6575, %v6574
      %v6661 = vpack.c.bf16 %v6611, %v6610
      %v6662 = vpack.c.bf16 %v6541, %v6540
      %v6663 = vpack.c.bf16 %v6577, %v6576
      %v6664 = vpack.c.bf16 %v6613, %v6612
      %v6665 = vpack.c.bf16 %v6543, %v6542
      %v6666 = vpack.c.bf16 %v6579, %v6578
      %v6667 = vpack.c.bf16 %v6615, %v6614
      %v6668 = vpack.c.bf16 %v6545, %v6544
      %v6669 = vpack.c.bf16 %v6581, %v6580
      %v6670 = vpack.c.bf16 %v6617, %v6616
      %v6671 = vpack.c.bf16 %v6547, %v6546
      %v6672 = vpack.c.bf16 %v6583, %v6582
      %v6673 = vpack.c.bf16 %v6619, %v6618
      %s6674 = scalar_lea.vmem %s6, 768
      %v6675 = vld [vmem:[%s6674] sm:$0xff]
      %v6676 = vld [vmem:[%s6674 + $0x8] sm:$0xff]
      %v6677 = vld [vmem:[%s6674 + $0x10] sm:$0xff]
      %v6678 = vld [vmem:[%s6674 + $0x18] sm:$0xff]
      %v6679 = vld [vmem:[%s6674 + $0x20] sm:$0xff]
      %v6680 = vld [vmem:[%s6674 + $0x28] sm:$0xff]
      %v6681 = vld [vmem:[%s6674 + $0x30] sm:$0xff]
      %v6682 = vld [vmem:[%s6674 + $0x38] sm:$0xff]
      %v6683 = vld [vmem:[%s6674 + $0x40] sm:$0xff]
      %v6684 = vld [vmem:[%s6674 + $0x48] sm:$0xff]
      %v6685 = vld [vmem:[%s6674 + $0x50] sm:$0xff]
      %v6686 = vld [vmem:[%s6674 + $0x58] sm:$0xff]
      %v6687 = vld [vmem:[%s6674 + $0x60] sm:$0xff]
      %v6688 = vld [vmem:[%s6674 + $0x68] sm:$0xff]
      %v6689 = vld [vmem:[%s6674 + $0x70] sm:$0xff]
      %v6690 = vld [vmem:[%s6674 + $0x78] sm:$0xff]
      %v6691 = vld [vmem:[%s6674 + $0x80] sm:$0xff]
      %v6692 = vld [vmem:[%s6674 + $0x88] sm:$0xff]
      %v6693 = vld [vmem:[%s6674 + $0x90] sm:$0xff]
      %v6694 = vld [vmem:[%s6674 + $0x98] sm:$0xff]
      %v6695 = vld [vmem:[%s6674 + $0xa0] sm:$0xff]
      %v6696 = vld [vmem:[%s6674 + $0xa8] sm:$0xff]
      %v6697 = vld [vmem:[%s6674 + $0xb0] sm:$0xff]
      %v6698 = vld [vmem:[%s6674 + $0xb8] sm:$0xff]
      %v6699 = vld [vmem:[%s6674 + $0xc0] sm:$0xff]
      %v6700 = vld [vmem:[%s6674 + $0xc8] sm:$0xff]
      %v6701 = vld [vmem:[%s6674 + $0xd0] sm:$0xff]
      %v6702 = vld [vmem:[%s6674 + $0xd8] sm:$0xff]
      %v6703 = vld [vmem:[%s6674 + $0xe0] sm:$0xff]
      %v6704 = vld [vmem:[%s6674 + $0xe8] sm:$0xff]
      %v6705 = vld [vmem:[%s6674 + $0xf0] sm:$0xff]
      %v6706 = vld [vmem:[%s6674 + $0xf8] sm:$0xff]
      %v6707 = vld [vmem:[%s6674 + $0x100] sm:$0xff]
      %v6708 = vld [vmem:[%s6674 + $0x108] sm:$0xff]
      %v6709 = vld [vmem:[%s6674 + $0x110] sm:$0xff]
      %v6710 = vld [vmem:[%s6674 + $0x118] sm:$0xff]
      %v6711 = vld [vmem:[%s6674 + $0x120] sm:$0xff]
      %v6712 = vld [vmem:[%s6674 + $0x128] sm:$0xff]
      %v6713 = vld [vmem:[%s6674 + $0x130] sm:$0xff]
      %v6714 = vld [vmem:[%s6674 + $0x138] sm:$0xff]
      %v6715 = vld [vmem:[%s6674 + $0x140] sm:$0xff]
      %v6716 = vld [vmem:[%s6674 + $0x148] sm:$0xff]
      %v6717 = vld [vmem:[%s6674 + $0x150] sm:$0xff]
      %v6718 = vld [vmem:[%s6674 + $0x158] sm:$0xff]
      %v6719 = vld [vmem:[%s6674 + $0x160] sm:$0xff]
      %v6720 = vld [vmem:[%s6674 + $0x168] sm:$0xff]
      %v6721 = vld [vmem:[%s6674 + $0x170] sm:$0xff]
      %v6722 = vld [vmem:[%s6674 + $0x178] sm:$0xff]
      %v6771 = vunpack.c.l.b16 %v6675
      %v6772 = vunpack.c.h.b16 %v6675
      %v6773 = vunpack.c.l.b16 %v6676
      %v6774 = vunpack.c.h.b16 %v6676
      %v6775 = vunpack.c.l.b16 %v6677
      %v6776 = vunpack.c.h.b16 %v6677
      %v6777 = vunpack.c.l.b16 %v6678
      %v6778 = vunpack.c.h.b16 %v6678
      %v6779 = vunpack.c.l.b16 %v6679
      %v6780 = vunpack.c.h.b16 %v6679
      %v6781 = vunpack.c.l.b16 %v6680
      %v6782 = vunpack.c.h.b16 %v6680
      %v6783 = vunpack.c.l.b16 %v6681
      %v6784 = vunpack.c.h.b16 %v6681
      %v6785 = vunpack.c.l.b16 %v6682
      %v6786 = vunpack.c.h.b16 %v6682
      %v6787 = vunpack.c.l.b16 %v6683
      %v6788 = vunpack.c.h.b16 %v6683
      %v6789 = vunpack.c.l.b16 %v6684
      %v6790 = vunpack.c.h.b16 %v6684
      %v6791 = vunpack.c.l.b16 %v6685
      %v6792 = vunpack.c.h.b16 %v6685
      %v6793 = vunpack.c.l.b16 %v6686
      %v6794 = vunpack.c.h.b16 %v6686
      %v6795 = vunpack.c.l.b16 %v6687
      %v6796 = vunpack.c.h.b16 %v6687
      %v6797 = vunpack.c.l.b16 %v6688
      %v6798 = vunpack.c.h.b16 %v6688
      %v6799 = vunpack.c.l.b16 %v6689
      %v6800 = vunpack.c.h.b16 %v6689
      %v6801 = vunpack.c.l.b16 %v6690
      %v6802 = vunpack.c.h.b16 %v6690
      %v6803 = vunpack.c.l.b16 %v6691
      %v6804 = vunpack.c.h.b16 %v6691
      %v6805 = vunpack.c.l.b16 %v6692
      %v6806 = vunpack.c.h.b16 %v6692
      %v6807 = vunpack.c.l.b16 %v6693
      %v6808 = vunpack.c.h.b16 %v6693
      %v6809 = vunpack.c.l.b16 %v6694
      %v6810 = vunpack.c.h.b16 %v6694
      %v6811 = vunpack.c.l.b16 %v6695
      %v6812 = vunpack.c.h.b16 %v6695
      %v6813 = vunpack.c.l.b16 %v6696
      %v6814 = vunpack.c.h.b16 %v6696
      %v6815 = vunpack.c.l.b16 %v6697
      %v6816 = vunpack.c.h.b16 %v6697
      %v6817 = vunpack.c.l.b16 %v6698
      %v6818 = vunpack.c.h.b16 %v6698
      %v6819 = vunpack.c.l.b16 %v6699
      %v6820 = vunpack.c.h.b16 %v6699
      %v6821 = vunpack.c.l.b16 %v6700
      %v6822 = vunpack.c.h.b16 %v6700
      %v6823 = vunpack.c.l.b16 %v6701
      %v6824 = vunpack.c.h.b16 %v6701
      %v6825 = vunpack.c.l.b16 %v6702
      %v6826 = vunpack.c.h.b16 %v6702
      %v6827 = vunpack.c.l.b16 %v6703
      %v6828 = vunpack.c.h.b16 %v6703
      %v6829 = vunpack.c.l.b16 %v6704
      %v6830 = vunpack.c.h.b16 %v6704
      %v6831 = vunpack.c.l.b16 %v6705
      %v6832 = vunpack.c.h.b16 %v6705
      %v6833 = vunpack.c.l.b16 %v6706
      %v6834 = vunpack.c.h.b16 %v6706
      %v6835 = vunpack.c.l.b16 %v6707
      %v6836 = vunpack.c.h.b16 %v6707
      %v6837 = vunpack.c.l.b16 %v6708
      %v6838 = vunpack.c.h.b16 %v6708
      %v6839 = vunpack.c.l.b16 %v6709
      %v6840 = vunpack.c.h.b16 %v6709
      %v6841 = vunpack.c.l.b16 %v6710
      %v6842 = vunpack.c.h.b16 %v6710
      %v6843 = vunpack.c.l.b16 %v6711
      %v6844 = vunpack.c.h.b16 %v6711
      %v6845 = vunpack.c.l.b16 %v6712
      %v6846 = vunpack.c.h.b16 %v6712
      %v6847 = vunpack.c.l.b16 %v6713
      %v6848 = vunpack.c.h.b16 %v6713
      %v6849 = vunpack.c.l.b16 %v6714
      %v6850 = vunpack.c.h.b16 %v6714
      %v6851 = vunpack.c.l.b16 %v6715
      %v6852 = vunpack.c.h.b16 %v6715
      %v6853 = vunpack.c.l.b16 %v6716
      %v6854 = vunpack.c.h.b16 %v6716
      %v6855 = vunpack.c.l.b16 %v6717
      %v6856 = vunpack.c.h.b16 %v6717
      %v6857 = vunpack.c.l.b16 %v6718
      %v6858 = vunpack.c.h.b16 %v6718
      %v6859 = vunpack.c.l.b16 %v6719
      %v6860 = vunpack.c.h.b16 %v6719
      %v6861 = vunpack.c.l.b16 %v6720
      %v6862 = vunpack.c.h.b16 %v6720
      %v6863 = vunpack.c.l.b16 %v6721
      %v6864 = vunpack.c.h.b16 %v6721
      %v6865 = vunpack.c.l.b16 %v6722
      %v6866 = vunpack.c.h.b16 %v6722
      %v6867 = vpack.c.b16 %v6773, %v6771
      %v6868 = vpack.c.b16 %v6774, %v6772
      %v6869 = vpack.c.b16 %v6777, %v6775
      %v6870 = vpack.c.b16 %v6778, %v6776
      %v6871 = vpack.c.b16 %v6781, %v6779
      %v6872 = vpack.c.b16 %v6782, %v6780
      %v6873 = vpack.c.b16 %v6785, %v6783
      %v6874 = vpack.c.b16 %v6786, %v6784
      %v6875 = vpack.c.b16 %v6789, %v6787
      %v6876 = vpack.c.b16 %v6790, %v6788
      %v6877 = vpack.c.b16 %v6793, %v6791
      %v6878 = vpack.c.b16 %v6794, %v6792
      %v6879 = vpack.c.b16 %v6797, %v6795
      %v6880 = vpack.c.b16 %v6798, %v6796
      %v6881 = vpack.c.b16 %v6801, %v6799
      %v6882 = vpack.c.b16 %v6802, %v6800
      %v6883 = vpack.c.b16 %v6805, %v6803
      %v6884 = vpack.c.b16 %v6806, %v6804
      %v6885 = vpack.c.b16 %v6809, %v6807
      %v6886 = vpack.c.b16 %v6810, %v6808
      %v6887 = vpack.c.b16 %v6813, %v6811
      %v6888 = vpack.c.b16 %v6814, %v6812
      %v6889 = vpack.c.b16 %v6817, %v6815
      %v6890 = vpack.c.b16 %v6818, %v6816
      %v6891 = vpack.c.b16 %v6821, %v6819
      %v6892 = vpack.c.b16 %v6822, %v6820
      %v6893 = vpack.c.b16 %v6825, %v6823
      %v6894 = vpack.c.b16 %v6826, %v6824
      %v6895 = vpack.c.b16 %v6829, %v6827
      %v6896 = vpack.c.b16 %v6830, %v6828
      %v6897 = vpack.c.b16 %v6833, %v6831
      %v6898 = vpack.c.b16 %v6834, %v6832
      %v6899 = vpack.c.b16 %v6837, %v6835
      %v6900 = vpack.c.b16 %v6838, %v6836
      %v6901 = vpack.c.b16 %v6841, %v6839
      %v6902 = vpack.c.b16 %v6842, %v6840
      %v6903 = vpack.c.b16 %v6845, %v6843
      %v6904 = vpack.c.b16 %v6846, %v6844
      %v6905 = vpack.c.b16 %v6849, %v6847
      %v6906 = vpack.c.b16 %v6850, %v6848
      %v6907 = vpack.c.b16 %v6853, %v6851
      %v6908 = vpack.c.b16 %v6854, %v6852
      %v6909 = vpack.c.b16 %v6857, %v6855
      %v6910 = vpack.c.b16 %v6858, %v6856
      %v6911 = vpack.c.b16 %v6861, %v6859
      %v6912 = vpack.c.b16 %v6862, %v6860
      %v6913 = vpack.c.b16 %v6865, %v6863
      %v6914 = vpack.c.b16 %v6866, %v6864
      %6963 = vmatprep.subr.bf16.mxu0 %v6882
      %6964 = vmatpush1.bf16.msra.mxu0 %v6881
      %6965 = vmatprep.subr.bf16.mxu0 %v6880
      %6966 = vmatpush1.bf16.msra.mxu0 %v6879
      %6967 = vmatprep.subr.bf16.mxu0 %v6878
      %6968 = vmatpush1.bf16.msra.mxu0 %v6877
      %6969 = vmatprep.subr.bf16.mxu0 %v6876
      %6970 = vmatpush1.bf16.msra.mxu0 %v6875
      %6971 = vmatprep.subr.bf16.mxu0 %v6874
      %6972 = vmatpush1.bf16.msra.mxu0 %v6873
      %6973 = vmatprep.subr.bf16.mxu0 %v6872
      %6974 = vmatpush1.bf16.msra.mxu0 %v6871
      %6975 = vmatprep.subr.bf16.mxu0 %v6870
      %6976 = vmatpush1.bf16.msra.mxu0 %v6869
      %6977 = vmatprep.subr.bf16.mxu0 %v6868
      %6978 = vmatpush1.bf16.msra.mxu0 %v6867
      %6979 = vmatprep.subr.bf16.mxu0 %v6898
      %6980 = vmatpush2.bf16.msra.mxu0 %v6897
      %6981 = vmatprep.subr.bf16.mxu0 %v6896
      %6982 = vmatpush2.bf16.msra.mxu0 %v6895
      %6983 = vmatprep.subr.bf16.mxu0 %v6894
      %6984 = vmatpush2.bf16.msra.mxu0 %v6893
      %6985 = vmatprep.subr.bf16.mxu0 %v6892
      %6986 = vmatpush2.bf16.msra.mxu0 %v6891
      %6987 = vmatprep.subr.bf16.mxu0 %v6890
      %6988 = vmatpush2.bf16.msra.mxu0 %v6889
      %6989 = vmatprep.subr.bf16.mxu0 %v6888
      %6990 = vmatpush2.bf16.msra.mxu0 %v6887
      %6991 = vmatprep.subr.bf16.mxu0 %v6886
      %6992 = vmatpush2.bf16.msra.mxu0 %v6885
      %6993 = vmatprep.subr.bf16.mxu0 %v6884
      %6994 = vmatpush2.bf16.msra.mxu0 %v6883
      %6995 = vmatprep.mubr.bf16.mxu0 %v6621
      %6996 = vmatmul.mubr.bf16.gmra.mxu0 %v6620
      %v6997 = vpop.f32.mrf.mxu0
      %v6998 = vadd.f32 0.0, %v6997
      %v6999 = vpop.f32.mrf.mxu0
      %v7000 = vadd.f32 0.0, %v6999
      %v7001 = vpop.f32.mrf.mxu0
      %v7002 = vadd.f32 0.0, %v7001
      %v7003 = vpop.f32.mrf.mxu0
      %v7004 = vadd.f32 0.0, %v7003
      %7005 = vmatprep.mubr.bf16.mxu0 %v6624
      %7006 = vmatmul.mubr.bf16.gmra.mxu0 %v6623
      %v7007 = vpop.f32.mrf.mxu0
      %v7008 = vadd.f32 0.0, %v7007
      %v7009 = vpop.f32.mrf.mxu0
      %v7010 = vadd.f32 0.0, %v7009
      %v7011 = vpop.f32.mrf.mxu0
      %v7012 = vadd.f32 0.0, %v7011
      %v7013 = vpop.f32.mrf.mxu0
      %v7014 = vadd.f32 0.0, %v7013
      %7015 = vmatprep.mubr.bf16.mxu0 %v6627
      %7016 = vmatmul.mubr.bf16.gmra.mxu0 %v6626
      %v7017 = vpop.f32.mrf.mxu0
      %v7018 = vadd.f32 0.0, %v7017
      %v7019 = vpop.f32.mrf.mxu0
      %v7020 = vadd.f32 0.0, %v7019
      %v7021 = vpop.f32.mrf.mxu0
      %v7022 = vadd.f32 0.0, %v7021
      %v7023 = vpop.f32.mrf.mxu0
      %v7024 = vadd.f32 0.0, %v7023
      %7025 = vmatprep.mubr.bf16.mxu0 %v6630
      %7026 = vmatmul.mubr.bf16.gmra.mxu0 %v6629
      %v7027 = vpop.f32.mrf.mxu0
      %v7028 = vadd.f32 0.0, %v7027
      %v7029 = vpop.f32.mrf.mxu0
      %v7030 = vadd.f32 0.0, %v7029
      %v7031 = vpop.f32.mrf.mxu0
      %v7032 = vadd.f32 0.0, %v7031
      %v7033 = vpop.f32.mrf.mxu0
      %v7034 = vadd.f32 0.0, %v7033
      %7035 = vmatprep.mubr.bf16.mxu0 %v6633
      %7036 = vmatmul.mubr.bf16.gmra.mxu0 %v6632
      %v7037 = vpop.f32.mrf.mxu0
      %v7038 = vadd.f32 0.0, %v7037
      %v7039 = vpop.f32.mrf.mxu0
      %v7040 = vadd.f32 0.0, %v7039
      %v7041 = vpop.f32.mrf.mxu0
      %v7042 = vadd.f32 0.0, %v7041
      %v7043 = vpop.f32.mrf.mxu0
      %v7044 = vadd.f32 0.0, %v7043
      %7045 = vmatprep.mubr.bf16.mxu0 %v6636
      %7046 = vmatmul.mubr.bf16.gmra.mxu0 %v6635
      %v7047 = vpop.f32.mrf.mxu0
      %v7048 = vadd.f32 0.0, %v7047
      %v7049 = vpop.f32.mrf.mxu0
      %v7050 = vadd.f32 0.0, %v7049
      %v7051 = vpop.f32.mrf.mxu0
      %v7052 = vadd.f32 0.0, %v7051
      %v7053 = vpop.f32.mrf.mxu0
      %v7054 = vadd.f32 0.0, %v7053
      %7055 = vmatprep.mubr.bf16.mxu0 %v6639
      %7056 = vmatmul.mubr.bf16.gmra.mxu0 %v6638
      %v7057 = vpop.f32.mrf.mxu0
      %v7058 = vadd.f32 0.0, %v7057
      %v7059 = vpop.f32.mrf.mxu0
      %v7060 = vadd.f32 0.0, %v7059
      %v7061 = vpop.f32.mrf.mxu0
      %v7062 = vadd.f32 0.0, %v7061
      %v7063 = vpop.f32.mrf.mxu0
      %v7064 = vadd.f32 0.0, %v7063
      %7065 = vmatprep.mubr.bf16.mxu0 %v6642
      %7066 = vmatmul.mubr.bf16.gmra.mxu0 %v6641
      %v7067 = vpop.f32.mrf.mxu0
      %v7068 = vadd.f32 0.0, %v7067
      %v7069 = vpop.f32.mrf.mxu0
      %v7070 = vadd.f32 0.0, %v7069
      %v7071 = vpop.f32.mrf.mxu0
      %v7072 = vadd.f32 0.0, %v7071
      %v7073 = vpop.f32.mrf.mxu0
      %v7074 = vadd.f32 0.0, %v7073
      %7075 = vmatprep.mubr.bf16.mxu0 %v6645
      %7076 = vmatmul.mubr.bf16.gmra.mxu0 %v6644
      %v7077 = vpop.f32.mrf.mxu0
      %v7078 = vadd.f32 0.0, %v7077
      %v7079 = vpop.f32.mrf.mxu0
      %v7080 = vadd.f32 0.0, %v7079
      %v7081 = vpop.f32.mrf.mxu0
      %v7082 = vadd.f32 0.0, %v7081
      %v7083 = vpop.f32.mrf.mxu0
      %v7084 = vadd.f32 0.0, %v7083
      %7085 = vmatprep.mubr.bf16.mxu0 %v6648
      %7086 = vmatmul.mubr.bf16.gmra.mxu0 %v6647
      %v7087 = vpop.f32.mrf.mxu0
      %v7088 = vadd.f32 0.0, %v7087
      %v7089 = vpop.f32.mrf.mxu0
      %v7090 = vadd.f32 0.0, %v7089
      %v7091 = vpop.f32.mrf.mxu0
      %v7092 = vadd.f32 0.0, %v7091
      %v7093 = vpop.f32.mrf.mxu0
      %v7094 = vadd.f32 0.0, %v7093
      %7095 = vmatprep.mubr.bf16.mxu0 %v6651
      %7096 = vmatmul.mubr.bf16.gmra.mxu0 %v6650
      %v7097 = vpop.f32.mrf.mxu0
      %v7098 = vadd.f32 0.0, %v7097
      %v7099 = vpop.f32.mrf.mxu0
      %v7100 = vadd.f32 0.0, %v7099
      %v7101 = vpop.f32.mrf.mxu0
      %v7102 = vadd.f32 0.0, %v7101
      %v7103 = vpop.f32.mrf.mxu0
      %v7104 = vadd.f32 0.0, %v7103
      %7105 = vmatprep.mubr.bf16.mxu0 %v6654
      %7106 = vmatmul.mubr.bf16.gmra.mxu0 %v6653
      %v7107 = vpop.f32.mrf.mxu0
      %v7108 = vadd.f32 0.0, %v7107
      %v7109 = vpop.f32.mrf.mxu0
      %v7110 = vadd.f32 0.0, %v7109
      %v7111 = vpop.f32.mrf.mxu0
      %v7112 = vadd.f32 0.0, %v7111
      %v7113 = vpop.f32.mrf.mxu0
      %v7114 = vadd.f32 0.0, %v7113
      %7115 = vmatprep.mubr.bf16.mxu0 %v6657
      %7116 = vmatmul.mubr.bf16.gmra.mxu0 %v6656
      %v7117 = vpop.f32.mrf.mxu0
      %v7118 = vadd.f32 0.0, %v7117
      %v7119 = vpop.f32.mrf.mxu0
      %v7120 = vadd.f32 0.0, %v7119
      %v7121 = vpop.f32.mrf.mxu0
      %v7122 = vadd.f32 0.0, %v7121
      %v7123 = vpop.f32.mrf.mxu0
      %v7124 = vadd.f32 0.0, %v7123
      %7125 = vmatprep.mubr.bf16.mxu0 %v6660
      %7126 = vmatmul.mubr.bf16.gmra.mxu0 %v6659
      %v7127 = vpop.f32.mrf.mxu0
      %v7128 = vadd.f32 0.0, %v7127
      %v7129 = vpop.f32.mrf.mxu0
      %v7130 = vadd.f32 0.0, %v7129
      %v7131 = vpop.f32.mrf.mxu0
      %v7132 = vadd.f32 0.0, %v7131
      %v7133 = vpop.f32.mrf.mxu0
      %v7134 = vadd.f32 0.0, %v7133
      %7135 = vmatprep.mubr.bf16.mxu0 %v6663
      %7136 = vmatmul.mubr.bf16.gmra.mxu0 %v6662
      %v7137 = vpop.f32.mrf.mxu0
      %v7138 = vadd.f32 0.0, %v7137
      %v7139 = vpop.f32.mrf.mxu0
      %v7140 = vadd.f32 0.0, %v7139
      %v7141 = vpop.f32.mrf.mxu0
      %v7142 = vadd.f32 0.0, %v7141
      %v7143 = vpop.f32.mrf.mxu0
      %v7144 = vadd.f32 0.0, %v7143
      %7145 = vmatprep.mubr.bf16.mxu0 %v6666
      %7146 = vmatmul.mubr.bf16.gmra.mxu0 %v6665
      %v7147 = vpop.f32.mrf.mxu0
      %v7148 = vadd.f32 0.0, %v7147
      %v7149 = vpop.f32.mrf.mxu0
      %v7150 = vadd.f32 0.0, %v7149
      %v7151 = vpop.f32.mrf.mxu0
      %v7152 = vadd.f32 0.0, %v7151
      %v7153 = vpop.f32.mrf.mxu0
      %v7154 = vadd.f32 0.0, %v7153
      %7155 = vmatprep.mubr.bf16.mxu0 %v6669
      %7156 = vmatmul.mubr.bf16.gmra.mxu0 %v6668
      %v7157 = vpop.f32.mrf.mxu0
      %v7158 = vadd.f32 0.0, %v7157
      %v7159 = vpop.f32.mrf.mxu0
      %v7160 = vadd.f32 0.0, %v7159
      %v7161 = vpop.f32.mrf.mxu0
      %v7162 = vadd.f32 0.0, %v7161
      %v7163 = vpop.f32.mrf.mxu0
      %v7164 = vadd.f32 0.0, %v7163
      %7165 = vmatprep.mubr.bf16.mxu0 %v6672
      %7166 = vmatmul.mubr.bf16.gmra.mxu0 %v6671
      %v7167 = vpop.f32.mrf.mxu0
      %v7168 = vadd.f32 0.0, %v7167
      %v7169 = vpop.f32.mrf.mxu0
      %v7170 = vadd.f32 0.0, %v7169
      %v7171 = vpop.f32.mrf.mxu0
      %v7172 = vadd.f32 0.0, %v7171
      %v7173 = vpop.f32.mrf.mxu0
      %v7174 = vadd.f32 0.0, %v7173
      %7175 = vdwg.mxu0
      %7176 = vmatprep.subr.bf16.mxu0 %v6914
      %7177 = vmatpush1.bf16.msra.mxu0 %v6913
      %7178 = vmatprep.subr.bf16.mxu0 %v6912
      %7179 = vmatpush1.bf16.msra.mxu0 %v6911
      %7180 = vmatprep.subr.bf16.mxu0 %v6910
      %7181 = vmatpush1.bf16.msra.mxu0 %v6909
      %7182 = vmatprep.subr.bf16.mxu0 %v6908
      %7183 = vmatpush1.bf16.msra.mxu0 %v6907
      %7184 = vmatprep.subr.bf16.mxu0 %v6906
      %7185 = vmatpush1.bf16.msra.mxu0 %v6905
      %7186 = vmatprep.subr.bf16.mxu0 %v6904
      %7187 = vmatpush1.bf16.msra.mxu0 %v6903
      %7188 = vmatprep.subr.bf16.mxu0 %v6902
      %7189 = vmatpush1.bf16.msra.mxu0 %v6901
      %7190 = vmatprep.subr.bf16.mxu0 %v6900
      %7191 = vmatpush1.bf16.msra.mxu0 %v6899
      %7192 = vmatprep.subr.bf16.mxu0 0
      %7193 = vmatpush2.bf16.msra.mxu0 0
      %7194 = vmatprep.subr.bf16.mxu0 0
      %7195 = vmatpush2.bf16.msra.mxu0 0
      %7196 = vmatprep.subr.bf16.mxu0 0
      %7197 = vmatpush2.bf16.msra.mxu0 0
      %7198 = vmatprep.subr.bf16.mxu0 0
      %7199 = vmatpush2.bf16.msra.mxu0 0
      %7200 = vmatprep.subr.bf16.mxu0 0
      %7201 = vmatpush2.bf16.msra.mxu0 0
      %7202 = vmatprep.subr.bf16.mxu0 0
      %7203 = vmatpush2.bf16.msra.mxu0 0
      %7204 = vmatprep.subr.bf16.mxu0 0
      %7205 = vmatpush2.bf16.msra.mxu0 0
      %7206 = vmatprep.subr.bf16.mxu0 0
      %7207 = vmatpush2.bf16.msra.mxu0 0
      %7208 = vmatprep.mubr.bf16.mxu0 0
      %7209 = vmatmul.mubr.bf16.gmra.mxu0 %v6622
      %v7210 = vpop.f32.mrf.mxu0
      %v7211 = vadd.f32 %v6998, %v7210
      %v7212 = vpop.f32.mrf.mxu0
      %v7213 = vadd.f32 %v7000, %v7212
      %v7214 = vpop.f32.mrf.mxu0
      %v7215 = vadd.f32 %v7002, %v7214
      %v7216 = vpop.f32.mrf.mxu0
      %v7217 = vadd.f32 %v7004, %v7216
      %7218 = vmatprep.mubr.bf16.mxu0 0
      %7219 = vmatmul.mubr.bf16.gmra.mxu0 %v6625
      %v7220 = vpop.f32.mrf.mxu0
      %v7221 = vadd.f32 %v7008, %v7220
      %v7222 = vpop.f32.mrf.mxu0
      %v7223 = vadd.f32 %v7010, %v7222
      %v7224 = vpop.f32.mrf.mxu0
      %v7225 = vadd.f32 %v7012, %v7224
      %v7226 = vpop.f32.mrf.mxu0
      %v7227 = vadd.f32 %v7014, %v7226
      %7228 = vmatprep.mubr.bf16.mxu0 0
      %7229 = vmatmul.mubr.bf16.gmra.mxu0 %v6628
      %v7230 = vpop.f32.mrf.mxu0
      %v7231 = vadd.f32 %v7018, %v7230
      %v7232 = vpop.f32.mrf.mxu0
      %v7233 = vadd.f32 %v7020, %v7232
      %v7234 = vpop.f32.mrf.mxu0
      %v7235 = vadd.f32 %v7022, %v7234
      %v7236 = vpop.f32.mrf.mxu0
      %v7237 = vadd.f32 %v7024, %v7236
      %7238 = vmatprep.mubr.bf16.mxu0 0
      %7239 = vmatmul.mubr.bf16.gmra.mxu0 %v6631
      %v7240 = vpop.f32.mrf.mxu0
      %v7241 = vadd.f32 %v7028, %v7240
      %v7242 = vpop.f32.mrf.mxu0
      %v7243 = vadd.f32 %v7030, %v7242
      %v7244 = vpop.f32.mrf.mxu0
      %v7245 = vadd.f32 %v7032, %v7244
      %v7246 = vpop.f32.mrf.mxu0
      %v7247 = vadd.f32 %v7034, %v7246
      %7248 = vmatprep.mubr.bf16.mxu0 0
      %7249 = vmatmul.mubr.bf16.gmra.mxu0 %v6634
      %v7250 = vpop.f32.mrf.mxu0
      %v7251 = vadd.f32 %v7038, %v7250
      %v7252 = vpop.f32.mrf.mxu0
      %v7253 = vadd.f32 %v7040, %v7252
      %v7254 = vpop.f32.mrf.mxu0
      %v7255 = vadd.f32 %v7042, %v7254
      %v7256 = vpop.f32.mrf.mxu0
      %v7257 = vadd.f32 %v7044, %v7256
      %7258 = vmatprep.mubr.bf16.mxu0 0
      %7259 = vmatmul.mubr.bf16.gmra.mxu0 %v6637
      %v7260 = vpop.f32.mrf.mxu0
      %v7261 = vadd.f32 %v7048, %v7260
      %v7262 = vpop.f32.mrf.mxu0
      %v7263 = vadd.f32 %v7050, %v7262
      %v7264 = vpop.f32.mrf.mxu0
      %v7265 = vadd.f32 %v7052, %v7264
      %v7266 = vpop.f32.mrf.mxu0
      %v7267 = vadd.f32 %v7054, %v7266
      %7268 = vmatprep.mubr.bf16.mxu0 0
      %7269 = vmatmul.mubr.bf16.gmra.mxu0 %v6640
      %v7270 = vpop.f32.mrf.mxu0
      %v7271 = vadd.f32 %v7058, %v7270
      %v7272 = vpop.f32.mrf.mxu0
      %v7273 = vadd.f32 %v7060, %v7272
      %v7274 = vpop.f32.mrf.mxu0
      %v7275 = vadd.f32 %v7062, %v7274
      %v7276 = vpop.f32.mrf.mxu0
      %v7277 = vadd.f32 %v7064, %v7276
      %7278 = vmatprep.mubr.bf16.mxu0 0
      %7279 = vmatmul.mubr.bf16.gmra.mxu0 %v6643
      %v7280 = vpop.f32.mrf.mxu0
      %v7281 = vadd.f32 %v7068, %v7280
      %v7282 = vpop.f32.mrf.mxu0
      %v7283 = vadd.f32 %v7070, %v7282
      %v7284 = vpop.f32.mrf.mxu0
      %v7285 = vadd.f32 %v7072, %v7284
      %v7286 = vpop.f32.mrf.mxu0
      %v7287 = vadd.f32 %v7074, %v7286
      %7288 = vmatprep.mubr.bf16.mxu0 0
      %7289 = vmatmul.mubr.bf16.gmra.mxu0 %v6646
      %v7290 = vpop.f32.mrf.mxu0
      %v7291 = vadd.f32 %v7078, %v7290
      %v7292 = vpop.f32.mrf.mxu0
      %v7293 = vadd.f32 %v7080, %v7292
      %v7294 = vpop.f32.mrf.mxu0
      %v7295 = vadd.f32 %v7082, %v7294
      %v7296 = vpop.f32.mrf.mxu0
      %v7297 = vadd.f32 %v7084, %v7296
      %7298 = vmatprep.mubr.bf16.mxu0 0
      %7299 = vmatmul.mubr.bf16.gmra.mxu0 %v6649
      %v7300 = vpop.f32.mrf.mxu0
      %v7301 = vadd.f32 %v7088, %v7300
      %v7302 = vpop.f32.mrf.mxu0
      %v7303 = vadd.f32 %v7090, %v7302
      %v7304 = vpop.f32.mrf.mxu0
      %v7305 = vadd.f32 %v7092, %v7304
      %v7306 = vpop.f32.mrf.mxu0
      %v7307 = vadd.f32 %v7094, %v7306
      %7308 = vmatprep.mubr.bf16.mxu0 0
      %7309 = vmatmul.mubr.bf16.gmra.mxu0 %v6652
      %v7310 = vpop.f32.mrf.mxu0
      %v7311 = vadd.f32 %v7098, %v7310
      %v7312 = vpop.f32.mrf.mxu0
      %v7313 = vadd.f32 %v7100, %v7312
      %v7314 = vpop.f32.mrf.mxu0
      %v7315 = vadd.f32 %v7102, %v7314
      %v7316 = vpop.f32.mrf.mxu0
      %v7317 = vadd.f32 %v7104, %v7316
      %7318 = vmatprep.mubr.bf16.mxu0 0
      %7319 = vmatmul.mubr.bf16.gmra.mxu0 %v6655
      %v7320 = vpop.f32.mrf.mxu0
      %v7321 = vadd.f32 %v7108, %v7320
      %v7322 = vpop.f32.mrf.mxu0
      %v7323 = vadd.f32 %v7110, %v7322
      %v7324 = vpop.f32.mrf.mxu0
      %v7325 = vadd.f32 %v7112, %v7324
      %v7326 = vpop.f32.mrf.mxu0
      %v7327 = vadd.f32 %v7114, %v7326
      %7328 = vmatprep.mubr.bf16.mxu0 0
      %7329 = vmatmul.mubr.bf16.gmra.mxu0 %v6658
      %v7330 = vpop.f32.mrf.mxu0
      %v7331 = vadd.f32 %v7118, %v7330
      %v7332 = vpop.f32.mrf.mxu0
      %v7333 = vadd.f32 %v7120, %v7332
      %v7334 = vpop.f32.mrf.mxu0
      %v7335 = vadd.f32 %v7122, %v7334
      %v7336 = vpop.f32.mrf.mxu0
      %v7337 = vadd.f32 %v7124, %v7336
      %7338 = vmatprep.mubr.bf16.mxu0 0
      %7339 = vmatmul.mubr.bf16.gmra.mxu0 %v6661
      %v7340 = vpop.f32.mrf.mxu0
      %v7341 = vadd.f32 %v7128, %v7340
      %v7342 = vpop.f32.mrf.mxu0
      %v7343 = vadd.f32 %v7130, %v7342
      %v7344 = vpop.f32.mrf.mxu0
      %v7345 = vadd.f32 %v7132, %v7344
      %v7346 = vpop.f32.mrf.mxu0
      %v7347 = vadd.f32 %v7134, %v7346
      %7348 = vmatprep.mubr.bf16.mxu0 0
      %7349 = vmatmul.mubr.bf16.gmra.mxu0 %v6664
      %v7350 = vpop.f32.mrf.mxu0
      %v7351 = vadd.f32 %v7138, %v7350
      %v7352 = vpop.f32.mrf.mxu0
      %v7353 = vadd.f32 %v7140, %v7352
      %v7354 = vpop.f32.mrf.mxu0
      %v7355 = vadd.f32 %v7142, %v7354
      %v7356 = vpop.f32.mrf.mxu0
      %v7357 = vadd.f32 %v7144, %v7356
      %7358 = vmatprep.mubr.bf16.mxu0 0
      %7359 = vmatmul.mubr.bf16.gmra.mxu0 %v6667
      %v7360 = vpop.f32.mrf.mxu0
      %v7361 = vadd.f32 %v7148, %v7360
      %v7362 = vpop.f32.mrf.mxu0
      %v7363 = vadd.f32 %v7150, %v7362
      %v7364 = vpop.f32.mrf.mxu0
      %v7365 = vadd.f32 %v7152, %v7364
      %v7366 = vpop.f32.mrf.mxu0
      %v7367 = vadd.f32 %v7154, %v7366
      %7368 = vmatprep.mubr.bf16.mxu0 0
      %7369 = vmatmul.mubr.bf16.gmra.mxu0 %v6670
      %v7370 = vpop.f32.mrf.mxu0
      %v7371 = vadd.f32 %v7158, %v7370
      %v7372 = vpop.f32.mrf.mxu0
      %v7373 = vadd.f32 %v7160, %v7372
      %v7374 = vpop.f32.mrf.mxu0
      %v7375 = vadd.f32 %v7162, %v7374
      %v7376 = vpop.f32.mrf.mxu0
      %v7377 = vadd.f32 %v7164, %v7376
      %7378 = vmatprep.mubr.bf16.mxu0 0
      %7379 = vmatmul.mubr.bf16.gmra.mxu0 %v6673
      %v7380 = vpop.f32.mrf.mxu0
      %v7381 = vadd.f32 %v7168, %v7380
      %v7382 = vpop.f32.mrf.mxu0
      %v7383 = vadd.f32 %v7170, %v7382
      %v7384 = vpop.f32.mrf.mxu0
      %v7385 = vadd.f32 %v7172, %v7384
      %v7386 = vpop.f32.mrf.mxu0
      %v7387 = vadd.f32 %v7174, %v7386
      %7388 = vdwg.mxu0
      %v7389 = vadd.f32 %v6334, %v7211
      %v7390 = vadd.f32 %v6336, %v7213
      %v7391 = vadd.f32 %v6338, %v7215
      %v7392 = vadd.f32 %v6340, %v7217
      %v7393 = vadd.f32 %v6344, %v7221
      %v7394 = vadd.f32 %v6346, %v7223
      %v7395 = vadd.f32 %v6348, %v7225
      %v7396 = vadd.f32 %v6350, %v7227
      %v7397 = vadd.f32 %v6354, %v7231
      %v7398 = vadd.f32 %v6356, %v7233
      %v7399 = vadd.f32 %v6358, %v7235
      %v7400 = vadd.f32 %v6360, %v7237
      %v7401 = vadd.f32 %v6364, %v7241
      %v7402 = vadd.f32 %v6366, %v7243
      %v7403 = vadd.f32 %v6368, %v7245
      %v7404 = vadd.f32 %v6370, %v7247
      %v7405 = vadd.f32 %v6374, %v7251
      %v7406 = vadd.f32 %v6376, %v7253
      %v7407 = vadd.f32 %v6378, %v7255
      %v7408 = vadd.f32 %v6380, %v7257
      %v7409 = vadd.f32 %v6384, %v7261
      %v7410 = vadd.f32 %v6386, %v7263
      %v7411 = vadd.f32 %v6388, %v7265
      %v7412 = vadd.f32 %v6390, %v7267
      %v7413 = vadd.f32 %v6394, %v7271
      %v7414 = vadd.f32 %v6396, %v7273
      %v7415 = vadd.f32 %v6398, %v7275
      %v7416 = vadd.f32 %v6400, %v7277
      %v7417 = vadd.f32 %v6404, %v7281
      %v7418 = vadd.f32 %v6406, %v7283
      %v7419 = vadd.f32 %v6408, %v7285
      %v7420 = vadd.f32 %v6410, %v7287
      %v7421 = vadd.f32 %v6414, %v7291
      %v7422 = vadd.f32 %v6416, %v7293
      %v7423 = vadd.f32 %v6418, %v7295
      %v7424 = vadd.f32 %v6420, %v7297
      %v7425 = vadd.f32 %v6424, %v7301
      %v7426 = vadd.f32 %v6426, %v7303
      %v7427 = vadd.f32 %v6428, %v7305
      %v7428 = vadd.f32 %v6430, %v7307
      %v7429 = vadd.f32 %v6434, %v7311
      %v7430 = vadd.f32 %v6436, %v7313
      %v7431 = vadd.f32 %v6438, %v7315
      %v7432 = vadd.f32 %v6440, %v7317
      %v7433 = vadd.f32 %v6444, %v7321
      %v7434 = vadd.f32 %v6446, %v7323
      %v7435 = vadd.f32 %v6448, %v7325
      %v7436 = vadd.f32 %v6450, %v7327
      %v7437 = vadd.f32 %v6454, %v7331
      %v7438 = vadd.f32 %v6456, %v7333
      %v7439 = vadd.f32 %v6458, %v7335
      %v7440 = vadd.f32 %v6460, %v7337
      %v7441 = vadd.f32 %v6464, %v7341
      %v7442 = vadd.f32 %v6466, %v7343
      %v7443 = vadd.f32 %v6468, %v7345
      %v7444 = vadd.f32 %v6470, %v7347
      %v7445 = vadd.f32 %v6474, %v7351
      %v7446 = vadd.f32 %v6476, %v7353
      %v7447 = vadd.f32 %v6478, %v7355
      %v7448 = vadd.f32 %v6480, %v7357
      %v7449 = vadd.f32 %v6484, %v7361
      %v7450 = vadd.f32 %v6486, %v7363
      %v7451 = vadd.f32 %v6488, %v7365
      %v7452 = vadd.f32 %v6490, %v7367
      %v7453 = vadd.f32 %v6494, %v7371
      %v7454 = vadd.f32 %v6496, %v7373
      %v7455 = vadd.f32 %v6498, %v7375
      %v7456 = vadd.f32 %v6500, %v7377
      %v7457 = vadd.f32 %v6504, %v7381
      %v7458 = vadd.f32 %v6506, %v7383
      %v7459 = vadd.f32 %v6508, %v7385
      %v7460 = vadd.f32 %v6510, %v7387
      %v7461 = vld [vmem:[%s7] sm:$0x3]
      %v7463 = vlaneseq
      %v7464 = vshrl.u32 %v7463, 7
      %v7465 = vsub.s32 0, %v7464
      %v7466 = vrot.slane %v7461, %v7465
      %v7467 = vlaneseq
      %v7468 = vshrl.u32 %v7467, 7
      %v7469 = vsub.s32 1, %v7468
      %v7470 = vrot.slane %v7461, %v7469
      %v7473 = vadd.f32 %v7389, %v7466
      %v7474 = vadd.f32 %v7390, %v7470
      %v7475 = vadd.f32 %v7391, %v7466
      %v7476 = vadd.f32 %v7392, %v7470
      %v7477 = vadd.f32 %v7393, %v7466
      %v7478 = vadd.f32 %v7394, %v7470
      %v7479 = vadd.f32 %v7395, %v7466
      %v7480 = vadd.f32 %v7396, %v7470
      %v7481 = vadd.f32 %v7397, %v7466
      %v7482 = vadd.f32 %v7398, %v7470
      %v7483 = vadd.f32 %v7399, %v7466
      %v7484 = vadd.f32 %v7400, %v7470
      %v7485 = vadd.f32 %v7401, %v7466
      %v7486 = vadd.f32 %v7402, %v7470
      %v7487 = vadd.f32 %v7403, %v7466
      %v7488 = vadd.f32 %v7404, %v7470
      %v7489 = vadd.f32 %v7405, %v7466
      %v7490 = vadd.f32 %v7406, %v7470
      %v7491 = vadd.f32 %v7407, %v7466
      %v7492 = vadd.f32 %v7408, %v7470
      %v7493 = vadd.f32 %v7409, %v7466
      %v7494 = vadd.f32 %v7410, %v7470
      %v7495 = vadd.f32 %v7411, %v7466
      %v7496 = vadd.f32 %v7412, %v7470
      %v7497 = vadd.f32 %v7413, %v7466
      %v7498 = vadd.f32 %v7414, %v7470
      %v7499 = vadd.f32 %v7415, %v7466
      %v7500 = vadd.f32 %v7416, %v7470
      %v7501 = vadd.f32 %v7417, %v7466
      %v7502 = vadd.f32 %v7418, %v7470
      %v7503 = vadd.f32 %v7419, %v7466
      %v7504 = vadd.f32 %v7420, %v7470
      %v7505 = vadd.f32 %v7421, %v7466
      %v7506 = vadd.f32 %v7422, %v7470
      %v7507 = vadd.f32 %v7423, %v7466
      %v7508 = vadd.f32 %v7424, %v7470
      %v7509 = vadd.f32 %v7425, %v7466
      %v7510 = vadd.f32 %v7426, %v7470
      %v7511 = vadd.f32 %v7427, %v7466
      %v7512 = vadd.f32 %v7428, %v7470
      %v7513 = vadd.f32 %v7429, %v7466
      %v7514 = vadd.f32 %v7430, %v7470
      %v7515 = vadd.f32 %v7431, %v7466
      %v7516 = vadd.f32 %v7432, %v7470
      %v7517 = vadd.f32 %v7433, %v7466
      %v7518 = vadd.f32 %v7434, %v7470
      %v7519 = vadd.f32 %v7435, %v7466
      %v7520 = vadd.f32 %v7436, %v7470
      %v7521 = vadd.f32 %v7437, %v7466
      %v7522 = vadd.f32 %v7438, %v7470
      %v7523 = vadd.f32 %v7439, %v7466
      %v7524 = vadd.f32 %v7440, %v7470
      %v7525 = vadd.f32 %v7441, %v7466
      %v7526 = vadd.f32 %v7442, %v7470
      %v7527 = vadd.f32 %v7443, %v7466
      %v7528 = vadd.f32 %v7444, %v7470
      %v7529 = vadd.f32 %v7445, %v7466
      %v7530 = vadd.f32 %v7446, %v7470
      %v7531 = vadd.f32 %v7447, %v7466
      %v7532 = vadd.f32 %v7448, %v7470
      %v7533 = vadd.f32 %v7449, %v7466
      %v7534 = vadd.f32 %v7450, %v7470
      %v7535 = vadd.f32 %v7451, %v7466
      %v7536 = vadd.f32 %v7452, %v7470
      %v7537 = vadd.f32 %v7453, %v7466
      %v7538 = vadd.f32 %v7454, %v7470
      %v7539 = vadd.f32 %v7455, %v7466
      %v7540 = vadd.f32 %v7456, %v7470
      %v7541 = vadd.f32 %v7457, %v7466
      %v7542 = vadd.f32 %v7458, %v7470
      %v7543 = vadd.f32 %v7459, %v7466
      %v7544 = vadd.f32 %v7460, %v7470
      %v7545 = vmax.f32 %v7473, 0.0
      %v7546 = vmax.f32 %v7474, 0.0
      %v7547 = vmax.f32 %v7475, 0.0
      %v7548 = vmax.f32 %v7476, 0.0
      %v7549 = vmax.f32 %v7477, 0.0
      %v7550 = vmax.f32 %v7478, 0.0
      %v7551 = vmax.f32 %v7479, 0.0
      %v7552 = vmax.f32 %v7480, 0.0
      %v7553 = vmax.f32 %v7481, 0.0
      %v7554 = vmax.f32 %v7482, 0.0
      %v7555 = vmax.f32 %v7483, 0.0
      %v7556 = vmax.f32 %v7484, 0.0
      %v7557 = vmax.f32 %v7485, 0.0
      %v7558 = vmax.f32 %v7486, 0.0
      %v7559 = vmax.f32 %v7487, 0.0
      %v7560 = vmax.f32 %v7488, 0.0
      %v7561 = vmax.f32 %v7489, 0.0
      %v7562 = vmax.f32 %v7490, 0.0
      %v7563 = vmax.f32 %v7491, 0.0
      %v7564 = vmax.f32 %v7492, 0.0
      %v7565 = vmax.f32 %v7493, 0.0
      %v7566 = vmax.f32 %v7494, 0.0
      %v7567 = vmax.f32 %v7495, 0.0
      %v7568 = vmax.f32 %v7496, 0.0
      %v7569 = vmax.f32 %v7497, 0.0
      %v7570 = vmax.f32 %v7498, 0.0
      %v7571 = vmax.f32 %v7499, 0.0
      %v7572 = vmax.f32 %v7500, 0.0
      %v7573 = vmax.f32 %v7501, 0.0
      %v7574 = vmax.f32 %v7502, 0.0
      %v7575 = vmax.f32 %v7503, 0.0
      %v7576 = vmax.f32 %v7504, 0.0
      %v7577 = vmax.f32 %v7505, 0.0
      %v7578 = vmax.f32 %v7506, 0.0
      %v7579 = vmax.f32 %v7507, 0.0
      %v7580 = vmax.f32 %v7508, 0.0
      %v7581 = vmax.f32 %v7509, 0.0
      %v7582 = vmax.f32 %v7510, 0.0
      %v7583 = vmax.f32 %v7511, 0.0
      %v7584 = vmax.f32 %v7512, 0.0
      %v7585 = vmax.f32 %v7513, 0.0
      %v7586 = vmax.f32 %v7514, 0.0
      %v7587 = vmax.f32 %v7515, 0.0
      %v7588 = vmax.f32 %v7516, 0.0
      %v7589 = vmax.f32 %v7517, 0.0
      %v7590 = vmax.f32 %v7518, 0.0
      %v7591 = vmax.f32 %v7519, 0.0
      %v7592 = vmax.f32 %v7520, 0.0
      %v7593 = vmax.f32 %v7521, 0.0
      %v7594 = vmax.f32 %v7522, 0.0
      %v7595 = vmax.f32 %v7523, 0.0
      %v7596 = vmax.f32 %v7524, 0.0
      %v7597 = vmax.f32 %v7525, 0.0
      %v7598 = vmax.f32 %v7526, 0.0
      %v7599 = vmax.f32 %v7527, 0.0
      %v7600 = vmax.f32 %v7528, 0.0
      %v7601 = vmax.f32 %v7529, 0.0
      %v7602 = vmax.f32 %v7530, 0.0
      %v7603 = vmax.f32 %v7531, 0.0
      %v7604 = vmax.f32 %v7532, 0.0
      %v7605 = vmax.f32 %v7533, 0.0
      %v7606 = vmax.f32 %v7534, 0.0
      %v7607 = vmax.f32 %v7535, 0.0
      %v7608 = vmax.f32 %v7536, 0.0
      %v7609 = vmax.f32 %v7537, 0.0
      %v7610 = vmax.f32 %v7538, 0.0
      %v7611 = vmax.f32 %v7539, 0.0
      %v7612 = vmax.f32 %v7540, 0.0
      %v7613 = vmax.f32 %v7541, 0.0
      %v7614 = vmax.f32 %v7542, 0.0
      %v7615 = vmax.f32 %v7543, 0.0
      %v7616 = vmax.f32 %v7544, 0.0
      %v7617 = vpack.c.bf16 %v7547, %v7545
      %v7618 = vpack.c.bf16 %v7548, %v7546
      %v7619 = vpack.c.bf16 %v7551, %v7549
      %v7620 = vpack.c.bf16 %v7552, %v7550
      %v7621 = vpack.c.bf16 %v7555, %v7553
      %v7622 = vpack.c.bf16 %v7556, %v7554
      %v7623 = vpack.c.bf16 %v7559, %v7557
      %v7624 = vpack.c.bf16 %v7560, %v7558
      %v7625 = vpack.c.bf16 %v7563, %v7561
      %v7626 = vpack.c.bf16 %v7564, %v7562
      %v7627 = vpack.c.bf16 %v7567, %v7565
      %v7628 = vpack.c.bf16 %v7568, %v7566
      %v7629 = vpack.c.bf16 %v7571, %v7569
      %v7630 = vpack.c.bf16 %v7572, %v7570
      %v7631 = vpack.c.bf16 %v7575, %v7573
      %v7632 = vpack.c.bf16 %v7576, %v7574
      %v7633 = vpack.c.bf16 %v7579, %v7577
      %v7634 = vpack.c.bf16 %v7580, %v7578
      %v7635 = vpack.c.bf16 %v7583, %v7581
      %v7636 = vpack.c.bf16 %v7584, %v7582
      %v7637 = vpack.c.bf16 %v7587, %v7585
      %v7638 = vpack.c.bf16 %v7588, %v7586
      %v7639 = vpack.c.bf16 %v7591, %v7589
      %v7640 = vpack.c.bf16 %v7592, %v7590
      %v7641 = vpack.c.bf16 %v7595, %v7593
      %v7642 = vpack.c.bf16 %v7596, %v7594
      %v7643 = vpack.c.bf16 %v7599, %v7597
      %v7644 = vpack.c.bf16 %v7600, %v7598
      %v7645 = vpack.c.bf16 %v7603, %v7601
      %v7646 = vpack.c.bf16 %v7604, %v7602
      %v7647 = vpack.c.bf16 %v7607, %v7605
      %v7648 = vpack.c.bf16 %v7608, %v7606
      %v7649 = vpack.c.bf16 %v7611, %v7609
      %v7650 = vpack.c.bf16 %v7612, %v7610
      %v7651 = vpack.c.bf16 %v7615, %v7613
      %v7652 = vpack.c.bf16 %v7616, %v7614
      %v7653 = vld [vmem:[%s8] sm:$0xff]
      %v7654 = vld [vmem:[%s9] sm:$0xff]
      %7656 = vset.pattern.permute.xlu0 0
      %7657 = vperm.xlu0 %7656, %v7654
      %v7658 = vpop.permute.xlu0 %7657
      %v7661 = vunpack.c.l.b16 %v7653
      %v7662 = vunpack.c.h.b16 %v7653
      %v7663 = vpack.c.b16 %v7661, %v7661
      %v7664 = vpack.c.b16 %v7662, %v7662
      %7667 = vmatprep.subr.bf16.mxu0 %v7632
      %7668 = vmatpush1.bf16.xpose.msra.mxu0 %v7631
      %7669 = vmatprep.subr.bf16.mxu0 %v7630
      %7670 = vmatpush1.bf16.xpose.msra.mxu0 %v7629
      %7671 = vmatprep.subr.bf16.mxu0 %v7628
      %7672 = vmatpush1.bf16.xpose.msra.mxu0 %v7627
      %7673 = vmatprep.subr.bf16.mxu0 %v7626
      %7674 = vmatpush1.bf16.xpose.msra.mxu0 %v7625
      %7675 = vmatprep.subr.bf16.mxu0 %v7624
      %7676 = vmatpush1.bf16.xpose.msra.mxu0 %v7623
      %7677 = vmatprep.subr.bf16.mxu0 %v7622
      %7678 = vmatpush1.bf16.xpose.msra.mxu0 %v7621
      %7679 = vmatprep.subr.bf16.mxu0 %v7620
      %7680 = vmatpush1.bf16.xpose.msra.mxu0 %v7619
      %7681 = vmatprep.subr.bf16.mxu0 %v7618
      %7682 = vmatpush1.bf16.xpose.msra.mxu0 %v7617
      %7683 = vmatprep.subr.bf16.mxu0 %v7648
      %7684 = vmatpush2.bf16.xpose.msra.mxu0 %v7647
      %7685 = vmatprep.subr.bf16.mxu0 %v7646
      %7686 = vmatpush2.bf16.xpose.msra.mxu0 %v7645
      %7687 = vmatprep.subr.bf16.mxu0 %v7644
      %7688 = vmatpush2.bf16.xpose.msra.mxu0 %v7643
      %7689 = vmatprep.subr.bf16.mxu0 %v7642
      %7690 = vmatpush2.bf16.xpose.msra.mxu0 %v7641
      %7691 = vmatprep.subr.bf16.mxu0 %v7640
      %7692 = vmatpush2.bf16.xpose.msra.mxu0 %v7639
      %7693 = vmatprep.subr.bf16.mxu0 %v7638
      %7694 = vmatpush2.bf16.xpose.msra.mxu0 %v7637
      %7695 = vmatprep.subr.bf16.mxu0 %v7636
      %7696 = vmatpush2.bf16.xpose.msra.mxu0 %v7635
      %7697 = vmatprep.subr.bf16.mxu0 %v7634
      %7698 = vmatpush2.bf16.xpose.msra.mxu0 %v7633
      %7699 = vmatprep.mubr.bf16.mxu0 %v7664
      %7700 = vmatmul.mubr.bf16.gmra.mxu0 %v7663
      %v7701 = vpop.f32.mrf.mxu0
      %v7702 = vadd.f32 %v7658, %v7701
      %v7703 = vpop.f32.mrf.mxu0
      %v7704 = vadd.f32 %v7658, %v7703
      %v7705 = vpop.f32.mrf.mxu0
      %v7706 = vpop.f32.mrf.mxu0
      %7707 = vdwg.mxu0
      %7708 = vmatprep.subr.bf16.mxu0 0
      %7709 = vmatpush1.bf16.xpose.msra.mxu0 0
      %7710 = vmatprep.subr.bf16.mxu0 0
      %7711 = vmatpush1.bf16.xpose.msra.mxu0 0
      %7712 = vmatprep.subr.bf16.mxu0 0
      %7713 = vmatpush1.bf16.xpose.msra.mxu0 0
      %7714 = vmatprep.subr.bf16.mxu0 0
      %7715 = vmatpush1.bf16.xpose.msra.mxu0 0
      %7716 = vmatprep.subr.bf16.mxu0 0
      %7717 = vmatpush1.bf16.xpose.msra.mxu0 0
      %7718 = vmatprep.subr.bf16.mxu0 0
      %7719 = vmatpush1.bf16.xpose.msra.mxu0 0
      %7720 = vmatprep.subr.bf16.mxu0 %v7652
      %7721 = vmatpush1.bf16.xpose.msra.mxu0 %v7651
      %7722 = vmatprep.subr.bf16.mxu0 %v7650
      %7723 = vmatpush1.bf16.xpose.msra.mxu0 %v7649
      %7724 = vmatprep.subr.bf16.mxu0 0
      %7725 = vmatpush2.bf16.xpose.msra.mxu0 0
      %7726 = vmatprep.subr.bf16.mxu0 0
      %7727 = vmatpush2.bf16.xpose.msra.mxu0 0
      %7728 = vmatprep.subr.bf16.mxu0 0
      %7729 = vmatpush2.bf16.xpose.msra.mxu0 0
      %7730 = vmatprep.subr.bf16.mxu0 0
      %7731 = vmatpush2.bf16.xpose.msra.mxu0 0
      %7732 = vmatprep.subr.bf16.mxu0 0
      %7733 = vmatpush2.bf16.xpose.msra.mxu0 0
      %7734 = vmatprep.subr.bf16.mxu0 0
      %7735 = vmatpush2.bf16.xpose.msra.mxu0 0
      %7736 = vmatprep.subr.bf16.mxu0 0
      %7737 = vmatpush2.bf16.xpose.msra.mxu0 0
      %7738 = vmatprep.subr.bf16.mxu0 0
      %7739 = vmatpush2.bf16.xpose.msra.mxu0 0
      %7740 = vmatprep.mubr.bf16.mxu0 %v7664
      %7741 = vmatmul.mubr.bf16.gmra.mxu0 %v7663
      %v7742 = vpop.f32.mrf.mxu0
      %v7743 = vadd.f32 %v7658, %v7742
      %v7744 = vpop.f32.mrf.mxu0
      %v7745 = vpop.f32.mrf.mxu0
      %v7746 = vpop.f32.mrf.mxu0
      %7747 = vdwg.mxu0
      %v7748 = vmax.f32 %v7702, 0.0
      %v7749 = vmax.f32 %v7704, 0.0
      %v7750 = vmax.f32 %v7743, 0.0
      %7751 = vst [vmem:[%s359] sm:$0xff] %v7748
      %7752 = vst [vmem:[%s359 + $0x8] sm:$0xff] %v7749
      %7753 = vst.msk [vmem:[%s359 + $0x10] sm:$0xff] %vm1848, %v7750
      %p7754 = scmp.lt.s32.totalorder %s21, 1
      %s7755 = scalar_select %p7754, %s21, 1
      %s7756 = smul.addr %s7755, 3
      %s7757 = smul.addr %s7756, 8
      %s7758 = scalar_lea.vmem %s10, %s7757
      // Predicated region
      $region61: #{segmentation_network_stl_forward.1} parent=59 // pred_check
        %p7759 = pneg %p254
      $region62: #{segmentation_network_stl_forward.1} parent=59 // pred_check_branch
        %7761 = sbr.rel (%p7759) target = $region64
      $region63: #{segmentation_network_stl_forward.1} parent=59 // pred_region
        _
      $region64: #{segmentation_network_stl_forward.1} parent=59 // pred_fallthru
        _
    $region60: #{segmentation_network_stl_forward.1} parent=5 // pred_fallthru
      _
    %p7762 = scmp.le.s32.totalorder 2, %s16
    // Predicated region
    $region65: #{segmentation_network_stl_forward.1} parent=5 // pred_check
      %p7763 = pneg %p7762
    $region66: #{segmentation_network_stl_forward.1} parent=5 // pred_check_branch
      %7765 = sbr.rel (%p7763) target = $region68
    $region67: #{segmentation_network_stl_forward.1} parent=5 // pred_region
      %s7766 = ssub.s32 %s16, 2
      // Predicated region
      $region69: #{segmentation_network_stl_forward.1} parent=67 // pred_check
        %p7767 = pneg %p260
      $region70: #{segmentation_network_stl_forward.1} parent=67 // pred_check_branch
        %7769 = sbr.rel (%p7767) target = $region72
      $region71: #{segmentation_network_stl_forward.1} parent=67 // pred_region
        %p7770 = scmp.lt.s32.totalorder %s22, 1
        %s7771 = scalar_select %p7770, %s22, 1
        %s7772 = smul.addr %s7771, 3
        %s7773 = smul.addr %s7772, 8
        %s7774 = scalar_lea.vmem %s10, %s7773
      $region72: #{segmentation_network_stl_forward.1} parent=67 // pred_fallthru
        _
    $region68: #{segmentation_network_stl_forward.1} parent=5 // pred_fallthru
      _
  $region6: #{segmentation_network_stl_forward.1} parent=0 // loop_footer
    %s20 = sadd.s32 1, %s16
  $region7: #{segmentation_network_stl_forward.1} parent=0 // loop_footer_branch
    %15 = sbr.rel target = $region3
  $region8: #{segmentation_network_stl_forward.1} parent=0 // loop_exit
    _

</llo_original>
